<compile_context>
chip_gen: v7x
topology: tpu7x:2x2x1
jax: 0.10.0
libtpu: 0.0.40
codegen_flags: <defaults>
</compile_context>

<pallas_src>
import functools
import numpy as np
import jax
import jax.numpy as jnp
from jax import lax
from jax.experimental import pallas as pl
from jax.experimental.pallas import tpu as pltpu

# ----------------------------- config --------------------------------------
N_LAYER = 2
N_EMBD = 32
HEAD_SIZE = 8
HEAD_SIZE_DIVISOR = 8.0
N_HEAD = N_EMBD // HEAD_SIZE
DIM_ATT = N_EMBD
DIM_FFN = int(N_EMBD * 3.5 // 32 * 32)      # 96
VOCAB = 64
T = 8
LN_EPS = 1e-5
HEAD_PAD = 128                               # vocab head padded to full lane width

_VMEM = functools.partial(pl.BlockSpec, memory_space=pltpu.MemorySpace.VMEM)

_N_FIXED = 8                                 # idx, tgt, s_in, emb, gn_avg, ln_out_w/b, head
_PER_LAYER = 12                              # ln1_w/b, w_tm, u, w, ln_x_w/b, w_out, ln2_w/b, w_cm, w_cm_v


# ------------------------- in-kernel helpers --------------------------------
def _layernorm(x, w, b):
    mu = jnp.mean(x, axis=-1, keepdims=True)
    xc = x - mu
    var = jnp.mean(xc * xc, axis=-1, keepdims=True)
    return xc * lax.rsqrt(var + LN_EPS) * w + b


def _shift_matrix(n, dtype):
    # S[t, t-1] = 1  ->  (S @ x)[t] = x[t-1], row 0 = 0   (== ZeroPad2d((0,0,1,-1)))
    ri = lax.broadcasted_iota(jnp.int32, (n, n), 0)
    ci = lax.broadcasted_iota(jnp.int32, (n, n), 1)
    return jnp.where(ri == ci + 1, 1.0, 0.0).astype(dtype)


# --------------------------- fused full-model kernel -------------------------
def _rwkv_kernel(*refs):
    (idx_ref, tgt_ref, s_in_ref, emb_ref, gn_avg_ref,
     ln_out_w, ln_out_b, head_w) = refs[:_N_FIXED]
    off = _N_FIXED
    layer_refs = []
    for layer_id in range(N_LAYER):
        n = _PER_LAYER + (2 if layer_id == 0 else 0)
        layer_refs.append(refs[off:off + n])
        off += n
    loss_ref, logits_ref, s_out_ref, wkv_buf = refs[off:off + 4]

    H, K, V = N_HEAD, HEAD_SIZE, HEAD_SIZE
    Tn = idx_ref.shape[0]
    shift = _shift_matrix(Tn, jnp.float32)

    # ----------------------- embedding (one-hot MXU gather) ------------------
    idx = idx_ref[...]                                               # (T, 1) int32
    voc_iota = lax.broadcasted_iota(jnp.int32, (Tn, VOCAB), 1)
    onehot = (voc_iota == idx).astype(jnp.float32)                   # (T, VOCAB)
    x = jnp.dot(onehot, emb_ref[...], preferred_element_type=jnp.float32)  # (T, C)

    # ------------------------------- blocks ----------------------------------
    for layer_id in range(N_LAYER):
        prm = list(layer_refs[layer_id])
        if layer_id == 0:
            ln0_w, ln0_b = prm[0], prm[1]
            prm = prm[2:]
            x = _layernorm(x, ln0_w[...], ln0_b[...])
        (ln1_w, ln1_b, w_tm, u_cols, w_cols, ln_x_w, ln_x_b,
         w_out, ln2_w, ln2_b, w_cm, w_cm_v) = prm

        # ----------------------------- TimeMix -------------------------------
        xn = _layernorm(x, ln1_w[...], ln1_b[...])
        xx = jnp.dot(shift, xn, preferred_element_type=jnp.float32)  # time shift
        xcat = jnp.concatenate([xn, xx], axis=-1)                    # (T, 2C)
        # single lane-dense fused projection: columns = [r | k | v | g]
        proj = jnp.dot(xcat, w_tm[...], preferred_element_type=jnp.float32)  # (T, 128)
        r = proj[:, 0 * DIM_ATT:1 * DIM_ATT]
        k = proj[:, 1 * DIM_ATT:2 * DIM_ATT]
        v = proj[:, 2 * DIM_ATT:3 * DIM_ATT]
        g = proj[:, 3 * DIM_ATT:4 * DIM_ATT]
        g = g * jax.nn.sigmoid(g)                                    # SiLU gate

        rT = r.T                                                     # (H*K, T), once per layer
        kT = k.T                                                     # (H*K, T)
        u_all = u_cols[...]                                          # (K, H)
        w_all = w_cols[...]                                          # (K, H)
        state = s_in_ref[...] if layer_id == 0 else s_out_ref[...]   # (H*K, V)

        # WKV recurrence: VPU outer products + sublane reduces only.
        for h in range(H):
            st = state[h * K:(h + 1) * K, :]                         # (K, V)
            u_col = u_all[:, h:h + 1]                                # (K, 1)
            w_col = w_all[:, h:h + 1]                                # (K, 1)
            r_h = rT[h * K:(h + 1) * K, :]                           # (K, T)
            k_h = kT[h * K:(h + 1) * K, :]                           # (K, T)
            v_h = v[:, h * V:(h + 1) * V]                            # (T, V)
            for t in range(Tn):
                kv = k_h[:, t:t + 1] * v_h[t:t + 1, :]               # (K, V) outer prod
                att = st + u_col * kv
                wkv_buf[t:t + 1, h * V:(h + 1) * V] = jnp.sum(
                    r_h[:, t:t + 1] * att, axis=0, keepdims=True)    # (1, V)
                st = w_col * st + kv
            s_out_ref[h * K:(h + 1) * K, :] = st

        out = wkv_buf[...]                                           # (T, H*V)
        # GroupNorm (ln_x) over H groups via a constant group-averaging matmul.
        xg = out * (1.0 / HEAD_SIZE_DIVISOR)
        mu = jnp.dot(xg, gn_avg_ref[...], preferred_element_type=jnp.float32)
        msq = jnp.dot(xg * xg, gn_avg_ref[...], preferred_element_type=jnp.float32)
        var = jnp.maximum(msq - mu * mu, 0.0)
        xg = (xg - mu) * lax.rsqrt(var + LN_EPS) * ln_x_w[...] + ln_x_b[...]
        att_out = jnp.dot(xg * g, w_out[...], preferred_element_type=jnp.float32)

        x = x + att_out                                              # residual 1

        # ---------------------------- ChannelMix -----------------------------
        xn2 = _layernorm(x, ln2_w[...], ln2_b[...])
        xx2 = jnp.dot(shift, xn2, preferred_element_type=jnp.float32)
        xcat2 = jnp.concatenate([xn2, xx2], axis=-1)                 # (T, 2C)
        # fused lane-dense projection: columns = [key(96) | receptance(32)]
        proj2 = jnp.dot(xcat2, w_cm[...], preferred_element_type=jnp.float32)  # (T, 128)
        kc = jnp.maximum(proj2[:, :DIM_FFN], 0.0)
        kc = kc * kc                                                 # relu(k) ** 2
        rc = proj2[:, DIM_FFN:]
        kv2 = jnp.dot(kc, w_cm_v[...], preferred_element_type=jnp.float32)
        x = x + jax.nn.sigmoid(rc) * kv2                             # residual 2

    # --------------------- final LayerNorm + vocab head ----------------------
    xn = _layernorm(x, ln_out_w[...], ln_out_b[...])
    logits = jnp.dot(xn, head_w[...], preferred_element_type=jnp.float32)  # (T, 128)
    logits_ref[...] = logits                                         # lane-dense store

    # ------------------- masked cross-entropy (in-kernel) --------------------
    lane = lax.broadcasted_iota(jnp.int32, (Tn, HEAD_PAD), 1)
    valid = lane < VOCAB
    lm = jnp.where(valid, logits, -1e30)
    m = jnp.max(lm, axis=-1, keepdims=True)
    e = jnp.where(valid, jnp.exp(lm - m), 0.0)
    logz = lm - m - jnp.log(jnp.sum(e, axis=-1, keepdims=True))
    tgt_onehot = (lane == tgt_ref[...]).astype(jnp.float32)          # (T, 128)
    ce = -jnp.sum(tgt_onehot * logz, axis=-1, keepdims=True)         # (T, 1)
    mask = (idx != 0).astype(jnp.float32)                            # (T, 1)
    loss_ref[...] = (jnp.sum(ce * mask, keepdims=True) /
                     jnp.sum(mask, keepdims=True))                   # (1, 1)


# ------------------------------ wrapper ---------------------------------------
def rwkv_forward(packed, input_ids):
    # input_ids: 1-D int32 of length T+1 (PyTorch forward wraps it to B=1)
    idx = input_ids[:-1].astype(jnp.int32).reshape(-1, 1)            # (T, 1)
    tgt = input_ids[1:].astype(jnp.int32).reshape(-1, 1)             # (T, 1)
    seq_len = idx.shape[0]
    s_in = jnp.zeros((N_HEAD * HEAD_SIZE, HEAD_SIZE), jnp.float32)   # states=None

    args = [idx, tgt, s_in, packed['emb'], packed['gn_avg'],
            packed['ln_out_w'], packed['ln_out_b'], packed['head_w_pad']]
    for i in range(N_LAYER):
        p = packed['blocks'][i]
        if i == 0:
            args += [p['ln0_w'], p['ln0_b']]
        args += [p['ln1_w'], p['ln1_b'], p['w_tm'], p['u_cols'], p['w_cols'],
                 p['ln_x_w'], p['ln_x_b'], p['w_out'],
                 p['ln2_w'], p['ln2_b'], p['w_cm'], p['w_cm_v']]

    loss, logits_pad, state = pl.pallas_call(
        _rwkv_kernel,
        out_shape=(jax.ShapeDtypeStruct((1, 1), jnp.float32),
                   jax.ShapeDtypeStruct((seq_len, HEAD_PAD), jnp.float32),
                   jax.ShapeDtypeStruct((N_HEAD * HEAD_SIZE, HEAD_SIZE), jnp.float32)),
        in_specs=[_VMEM()] * len(args),
        out_specs=(_VMEM(), _VMEM(), _VMEM()),
        scratch_shapes=[pltpu.VMEM((seq_len, DIM_ATT), jnp.float32)],
    )(*args)

    logits = logits_pad[:, :VOCAB]                                   # (T, VOCAB)
    # TODO(synk): L2Wrap is identity in the forward pass (backward-only hook).
    return (loss[0, 0], logits[None],
            state.reshape(1, N_HEAD, HEAD_SIZE, HEAD_SIZE))


# ---------------------------- parameter init --------------------------------
def init_raw_params(key):
    keys = jax.random.split(key, 64)
    kit = iter(keys)

    def normal(shape, scale=0.02):
        return jax.random.normal(next(kit), shape, jnp.float32) * scale

    ddd = np.arange(N_EMBD, dtype=np.float64) / N_EMBD
    n = np.arange(DIM_ATT, dtype=np.float64)
    blocks = []
    for layer_id in range(N_LAYER):
        ratio_0_to_1 = layer_id / (N_LAYER - 1)
        ratio_1_to_almost0 = 1.0 - layer_id / N_LAYER
        tm_k = jnp.asarray(np.power(ddd, ratio_1_to_almost0), jnp.float32)
        tm_v = jnp.asarray(np.power(ddd, ratio_1_to_almost0)
                           + 0.3 * ratio_0_to_1, jnp.float32)
        tm_r = jnp.asarray(np.power(ddd, 0.5 * ratio_1_to_almost0), jnp.float32)
        tm_g = tm_r
        decay_speed = -6.0 + 5.0 * (n / (DIM_ATT - 1)) ** (0.7 + 1.3 * ratio_0_to_1)
        time_decay = jnp.asarray(decay_speed.reshape(N_HEAD, HEAD_SIZE), jnp.float32)
        zigzag = ((n + 1) % 3 - 1) * 0.1
        faaaa = ratio_0_to_1 * (1.0 - n / (DIM_ATT - 1)) + zigzag
        time_faaaa = jnp.asarray(faaaa.reshape(N_HEAD, HEAD_SIZE), jnp.float32)

        att = dict(time_mix_k=tm_k, time_mix_v=tm_v, time_mix_r=tm_r, time_mix_g=tm_g,
                   time_decay=time_decay, time_faaaa=time_faaaa,
                   # stored pre-transposed as (in_features, out_features)
                   Wr=normal((N_EMBD, DIM_ATT)), Wk=normal((N_EMBD, DIM_ATT)),
                   Wv=normal((N_EMBD, DIM_ATT)), Wg=normal((N_EMBD, DIM_ATT)),
                   Wo=normal((DIM_ATT, N_EMBD)),
                   ln_x_w=jnp.ones((DIM_ATT,), jnp.float32),
                   ln_x_b=jnp.zeros((DIM_ATT,), jnp.float32))
        cm_mix = jnp.asarray(np.power(ddd, ratio_1_to_almost0), jnp.float32)
        ffn = dict(time_mix_k=cm_mix, time_mix_r=cm_mix,
                   Wk=normal((N_EMBD, DIM_FFN)), Wv=normal((DIM_FFN, N_EMBD)),
                   Wr=normal((N_EMBD, N_EMBD)))
        blk = dict(att=att, ffn=ffn,
                   ln1_w=jnp.ones((N_EMBD,), jnp.float32),
                   ln1_b=jnp.zeros((N_EMBD,), jnp.float32),
                   ln2_w=jnp.ones((N_EMBD,), jnp.float32),
                   ln2_b=jnp.zeros((N_EMBD,), jnp.float32))
        if layer_id == 0:
            blk['ln0_w'] = jnp.ones((N_EMBD,), jnp.float32)
            blk['ln0_b'] = jnp.zeros((N_EMBD,), jnp.float32)
        blocks.append(blk)

    return dict(emb=normal((VOCAB, N_EMBD)), blocks=blocks,
                ln_out_w=jnp.ones((N_EMBD,), jnp.float32),
                ln_out_b=jnp.zeros((N_EMBD,), jnp.float32),
                head_w=normal((N_EMBD, VOCAB)))


def pack_params(raw):
    """Fold mix coefficients into projection weights, pre-lay-out for the kernel."""
    def row(v):                                  # (C,) -> (1, C)
        return jnp.asarray(v, jnp.float32).reshape(1, -1)

    def fold(mix, W):
        # (x*mix + xx*(1-mix)) @ W  ==  [x | xx] @ [[mix*W], [(1-mix)*W]]
        mix = jnp.asarray(mix, jnp.float32)[:, None]
        return jnp.concatenate([mix * W, (1.0 - mix) * W], axis=0)   # (2C, out)

    # constant group-averaging matrix for the H-group GroupNorm (ln_x)
    grp = np.arange(DIM_ATT) // HEAD_SIZE
    gn_avg = jnp.asarray((grp[:, None] == grp[None, :]).astype(np.float32)
                         / HEAD_SIZE)

    blocks = []
    for i, blk in enumerate(raw['blocks']):
        att, ffn = blk['att'], blk['ffn']
        w_tm = jnp.concatenate([fold(att['time_mix_r'], att['Wr']),
                                fold(att['time_mix_k'], att['Wk']),
                                fold(att['time_mix_v'], att['Wv']),
                                fold(att['time_mix_g'], att['Wg'])],
                               axis=1)                               # (2C, 4*DIM_ATT)
        w_cm = jnp.concatenate([fold(ffn['time_mix_k'], ffn['Wk']),
                                fold(ffn['time_mix_r'], ffn['Wr'])],
                               axis=1)                               # (2C, FFN+C)
        p = dict(ln1_w=row(blk['ln1_w']), ln1_b=row(blk['ln1_b']),
                 w_tm=w_tm,
                 u_cols=jnp.asarray(att['time_faaaa'], jnp.float32).T,         # (K, H)
                 w_cols=jnp.exp(-jnp.exp(
                     jnp.asarray(att['time_decay'], jnp.float32))).T,          # (K, H)
                 ln_x_w=row(att['ln_x_w']), ln_x_b=row(att['ln_x_b']),
                 w_out=att['Wo'],
                 ln2_w=row(blk['ln2_w']), ln2_b=row(blk['ln2_b']),
                 w_cm=w_cm, w_cm_v=ffn['Wv'])
        if i == 0:
            p['ln0_w'] = row(blk['ln0_w'])
            p['ln0_b'] = row(blk['ln0_b'])
        blocks.append(p)

    head_pad = jnp.zeros((N_EMBD, HEAD_PAD), jnp.float32)
    head_pad = head_pad.at[:, :VOCAB].set(raw['head_w'])             # lane-dense head
    return dict(emb=raw['emb'], blocks=blocks, gn_avg=gn_avg,
                ln_out_w=row(raw['ln_out_w']), ln_out_b=row(raw['ln_out_b']),
                head_w_pad=head_pad)


# --------------------------------- main --------------------------------------
if __name__ == "__main__":
    key = jax.random.PRNGKey(0)
    pkey, dkey = jax.random.split(key)
    packed = pack_params(init_raw_params(pkey))
    # tokens in [1, VOCAB) so the attention mask (idx != 0) is all ones
    input_ids = jax.random.randint(dkey, (T + 1,), 1, VOCAB, dtype=jnp.int32)

    fwd = jax.jit(rwkv_forward)
    loss, logits, state = fwd(packed, input_ids)
    jax.block_until_ready((loss, logits, state))

    assert logits.shape == (1, T, VOCAB)
    assert state.shape == (1, N_HEAD, HEAD_SIZE, HEAD_SIZE)
    assert bool(jnp.isfinite(loss))
    assert bool(jnp.all(jnp.isfinite(logits)))
    print("KERNEL_OK")
</pallas_src>

<mosaic_0001>
module attributes {stable_mosaic.version = 11 : i64} {
  func.func @_rwkv_kernel(%arg0: memref<8x1xi32, #tpu.memory_space<vmem>>, %arg1: memref<8x1xi32, #tpu.memory_space<vmem>>, %arg2: memref<32x8xf32, #tpu.memory_space<vmem>>, %arg3: memref<64x32xf32, #tpu.memory_space<vmem>>, %arg4: memref<32x32xf32, #tpu.memory_space<vmem>>, %arg5: memref<1x32xf32, #tpu.memory_space<vmem>>, %arg6: memref<1x32xf32, #tpu.memory_space<vmem>>, %arg7: memref<32x128xf32, #tpu.memory_space<vmem>>, %arg8: memref<1x32xf32, #tpu.memory_space<vmem>>, %arg9: memref<1x32xf32, #tpu.memory_space<vmem>>, %arg10: memref<1x32xf32, #tpu.memory_space<vmem>>, %arg11: memref<1x32xf32, #tpu.memory_space<vmem>>, %arg12: memref<64x128xf32, #tpu.memory_space<vmem>>, %arg13: memref<8x4xf32, #tpu.memory_space<vmem>>, %arg14: memref<8x4xf32, #tpu.memory_space<vmem>>, %arg15: memref<1x32xf32, #tpu.memory_space<vmem>>, %arg16: memref<1x32xf32, #tpu.memory_space<vmem>>, %arg17: memref<32x32xf32, #tpu.memory_space<vmem>>, %arg18: memref<1x32xf32, #tpu.memory_space<vmem>>, %arg19: memref<1x32xf32, #tpu.memory_space<vmem>>, %arg20: memref<64x128xf32, #tpu.memory_space<vmem>>, %arg21: memref<96x32xf32, #tpu.memory_space<vmem>>, %arg22: memref<1x32xf32, #tpu.memory_space<vmem>>, %arg23: memref<1x32xf32, #tpu.memory_space<vmem>>, %arg24: memref<64x128xf32, #tpu.memory_space<vmem>>, %arg25: memref<8x4xf32, #tpu.memory_space<vmem>>, %arg26: memref<8x4xf32, #tpu.memory_space<vmem>>, %arg27: memref<1x32xf32, #tpu.memory_space<vmem>>, %arg28: memref<1x32xf32, #tpu.memory_space<vmem>>, %arg29: memref<32x32xf32, #tpu.memory_space<vmem>>, %arg30: memref<1x32xf32, #tpu.memory_space<vmem>>, %arg31: memref<1x32xf32, #tpu.memory_space<vmem>>, %arg32: memref<64x128xf32, #tpu.memory_space<vmem>>, %arg33: memref<96x32xf32, #tpu.memory_space<vmem>>, %arg34: memref<1x1xf32, #tpu.memory_space<vmem>>, %arg35: memref<8x128xf32, #tpu.memory_space<vmem>>, %arg36: memref<32x8xf32, #tpu.memory_space<vmem>>, %arg37: memref<8x32xf32, #tpu.memory_space<vmem>>) attributes {dimension_semantics = [], scalar_prefetch = 0 : i64, scratch_operands = 1 : i64, tpu.core_type = #tpu.core_type<tc>} {
    %0 = tpu.iota {dimensions = array<i32: 0>} : vector<8x8xi32>
    %1 = tpu.iota {dimensions = array<i32: 1>} : vector<8x8xi32>
    %c1_i32 = arith.constant 1 : i32
    %2 = vector.broadcast %c1_i32 : i32 to vector<8x8xi32>
    %3 = arith.addi %1, %2 : vector<8x8xi32>
    %4 = arith.cmpi eq, %0, %3 : vector<8x8xi32>
    %cst = arith.constant 1.000000e+00 : f32
    %cst_0 = arith.constant 0.000000e+00 : f32
    %5 = vector.broadcast %cst : f32 to vector<8x8xf32>
    %6 = vector.broadcast %cst_0 : f32 to vector<8x8xf32>
    %7 = arith.select %4, %5, %6 : vector<8x8xi1>, vector<8x8xf32>
    %c0 = arith.constant 0 : index
    %c0_1 = arith.constant 0 : index
    %8 = vector.load %arg0[%c0, %c0_1] : memref<8x1xi32, #tpu.memory_space<vmem>>, vector<8x1xi32>
    %9 = tpu.iota {dimensions = array<i32: 1>} : vector<8x64xi32>
    %10 = vector.broadcast %8 : vector<8x1xi32> to vector<8x64xi32>
    %11 = arith.cmpi eq, %9, %10 : vector<8x64xi32>
    %12 = arith.extui %11 : vector<8x64xi1> to vector<8x64xi32>
    %13 = arith.sitofp %12 : vector<8x64xi32> to vector<8x64xf32>
    %c0_2 = arith.constant 0 : index
    %c0_3 = arith.constant 0 : index
    %14 = vector.load %arg3[%c0_2, %c0_3] : memref<64x32xf32, #tpu.memory_space<vmem>>, vector<64x32xf32>
    %cst_4 = arith.constant dense<0.000000e+00> : vector<8x32xf32>
    %15 = tpu.matmul %13, %14, %cst_4 {dimension_numbers = #tpu.dot_dimension_numbers<[1], [0], [0], [1], [0, 0, 1, 1], [], []>} : vector<8x64xf32>, vector<64x32xf32>, vector<8x32xf32> -> vector<8x32xf32>
    %c0_5 = arith.constant 0 : index
    %c0_6 = arith.constant 0 : index
    %16 = vector.load %arg8[%c0_5, %c0_6] : memref<1x32xf32, #tpu.memory_space<vmem>>, vector<1x32xf32>
    %c0_7 = arith.constant 0 : index
    %c0_8 = arith.constant 0 : index
    %17 = vector.load %arg9[%c0_7, %c0_8] : memref<1x32xf32, #tpu.memory_space<vmem>>, vector<1x32xf32>
    %cst_9 = arith.constant dense<0.000000e+00> : vector<8xf32>
    %18 = vector.multi_reduction <add>, %15, %cst_9 [1] : vector<8x32xf32> to vector<8xf32>
    %19 = vector.shape_cast %18 : vector<8xf32> to vector<8x1xf32>
    %cst_10 = arith.constant 3.200000e+01 : f32
    %20 = vector.broadcast %cst_10 : f32 to vector<8x1xf32>
    %21 = arith.divf %19, %20 : vector<8x1xf32>
    %22 = vector.broadcast %21 : vector<8x1xf32> to vector<8x32xf32>
    %23 = arith.subf %15, %22 : vector<8x32xf32>
    %24 = arith.mulf %23, %23 : vector<8x32xf32>
    %cst_11 = arith.constant dense<0.000000e+00> : vector<8xf32>
    %25 = vector.multi_reduction <add>, %24, %cst_11 [1] : vector<8x32xf32> to vector<8xf32>
    %26 = vector.shape_cast %25 : vector<8xf32> to vector<8x1xf32>
    %cst_12 = arith.constant 3.200000e+01 : f32
    %27 = vector.broadcast %cst_12 : f32 to vector<8x1xf32>
    %28 = arith.divf %26, %27 : vector<8x1xf32>
    %cst_13 = arith.constant 9.99999974E-6 : f32
    %29 = vector.broadcast %cst_13 : f32 to vector<8x1xf32>
    %30 = arith.addf %28, %29 : vector<8x1xf32>
    %31 = math.rsqrt %30 : vector<8x1xf32>
    %32 = vector.broadcast %31 : vector<8x1xf32> to vector<8x32xf32>
    %33 = arith.mulf %23, %32 : vector<8x32xf32>
    %34 = vector.broadcast %16 : vector<1x32xf32> to vector<8x32xf32>
    %35 = arith.mulf %33, %34 : vector<8x32xf32>
    %36 = vector.broadcast %17 : vector<1x32xf32> to vector<8x32xf32>
    %37 = arith.addf %35, %36 : vector<8x32xf32>
    %c0_14 = arith.constant 0 : index
    %c0_15 = arith.constant 0 : index
    %38 = vector.load %arg10[%c0_14, %c0_15] : memref<1x32xf32, #tpu.memory_space<vmem>>, vector<1x32xf32>
    %c0_16 = arith.constant 0 : index
    %c0_17 = arith.constant 0 : index
    %39 = vector.load %arg11[%c0_16, %c0_17] : memref<1x32xf32, #tpu.memory_space<vmem>>, vector<1x32xf32>
    %cst_18 = arith.constant dense<0.000000e+00> : vector<8xf32>
    %40 = vector.multi_reduction <add>, %37, %cst_18 [1] : vector<8x32xf32> to vector<8xf32>
    %41 = vector.shape_cast %40 : vector<8xf32> to vector<8x1xf32>
    %cst_19 = arith.constant 3.200000e+01 : f32
    %42 = vector.broadcast %cst_19 : f32 to vector<8x1xf32>
    %43 = arith.divf %41, %42 : vector<8x1xf32>
    %44 = vector.broadcast %43 : vector<8x1xf32> to vector<8x32xf32>
    %45 = arith.subf %37, %44 : vector<8x32xf32>
    %46 = arith.mulf %45, %45 : vector<8x32xf32>
    %cst_20 = arith.constant dense<0.000000e+00> : vector<8xf32>
    %47 = vector.multi_reduction <add>, %46, %cst_20 [1] : vector<8x32xf32> to vector<8xf32>
    %48 = vector.shape_cast %47 : vector<8xf32> to vector<8x1xf32>
    %cst_21 = arith.constant 3.200000e+01 : f32
    %49 = vector.broadcast %cst_21 : f32 to vector<8x1xf32>
    %50 = arith.divf %48, %49 : vector<8x1xf32>
    %cst_22 = arith.constant 9.99999974E-6 : f32
    %51 = vector.broadcast %cst_22 : f32 to vector<8x1xf32>
    %52 = arith.addf %50, %51 : vector<8x1xf32>
    %53 = math.rsqrt %52 : vector<8x1xf32>
    %54 = vector.broadcast %53 : vector<8x1xf32> to vector<8x32xf32>
    %55 = arith.mulf %45, %54 : vector<8x32xf32>
    %56 = vector.broadcast %38 : vector<1x32xf32> to vector<8x32xf32>
    %57 = arith.mulf %55, %56 : vector<8x32xf32>
    %58 = vector.broadcast %39 : vector<1x32xf32> to vector<8x32xf32>
    %59 = arith.addf %57, %58 : vector<8x32xf32>
    %cst_23 = arith.constant dense<0.000000e+00> : vector<8x32xf32>
    %60 = tpu.matmul %7, %59, %cst_23 {dimension_numbers = #tpu.dot_dimension_numbers<[1], [0], [0], [1], [0, 0, 1, 1], [], []>} : vector<8x8xf32>, vector<8x32xf32>, vector<8x32xf32> -> vector<8x32xf32>
    %61 = tpu.concatenate %59, %60 in 1 : vector<8x32xf32>, vector<8x32xf32> -> vector<8x64xf32>
    %c0_24 = arith.constant 0 : index
    %c0_25 = arith.constant 0 : index
    %62 = vector.load %arg12[%c0_24, %c0_25] : memref<64x128xf32, #tpu.memory_space<vmem>>, vector<64x128xf32>
    %cst_26 = arith.constant dense<0.000000e+00> : vector<8x128xf32>
    %63 = tpu.matmul %61, %62, %cst_26 {dimension_numbers = #tpu.dot_dimension_numbers<[1], [0], [0], [1], [0, 0, 1, 1], [], []>} : vector<8x64xf32>, vector<64x128xf32>, vector<8x128xf32> -> vector<8x128xf32>
    %64 = vector.extract_strided_slice %63 {offsets = [0, 0], sizes = [8, 32], strides = [1, 1]} : vector<8x128xf32> to vector<8x32xf32>
    %65 = vector.extract_strided_slice %63 {offsets = [0, 32], sizes = [8, 32], strides = [1, 1]} : vector<8x128xf32> to vector<8x32xf32>
    %66 = vector.extract_strided_slice %63 {offsets = [0, 64], sizes = [8, 32], strides = [1, 1]} : vector<8x128xf32> to vector<8x32xf32>
    %67 = vector.extract_strided_slice %63 {offsets = [0, 96], sizes = [8, 32], strides = [1, 1]} : vector<8x128xf32> to vector<8x32xf32>
    %68 = arith.negf %67 : vector<8x32xf32>
    %69 = math.exp %68 : vector<8x32xf32>
    %cst_27 = arith.constant 1.000000e+00 : f32
    %70 = vector.broadcast %cst_27 : f32 to vector<8x32xf32>
    %71 = arith.addf %70, %69 : vector<8x32xf32>
    %72 = arith.divf %70, %71 : vector<8x32xf32>
    %73 = arith.mulf %67, %72 : vector<8x32xf32>
    %74 = tpu.transpose %64, [1, 0] : vector<8x32xf32> -> vector<32x8xf32>
    %75 = tpu.transpose %65, [1, 0] : vector<8x32xf32> -> vector<32x8xf32>
    %c0_28 = arith.constant 0 : index
    %c0_29 = arith.constant 0 : index
    %76 = vector.load %arg13[%c0_28, %c0_29] : memref<8x4xf32, #tpu.memory_space<vmem>>, vector<8x4xf32>
    %c0_30 = arith.constant 0 : index
    %c0_31 = arith.constant 0 : index
    %77 = vector.load %arg14[%c0_30, %c0_31] : memref<8x4xf32, #tpu.memory_space<vmem>>, vector<8x4xf32>
    %c0_32 = arith.constant 0 : index
    %c0_33 = arith.constant 0 : index
    %78 = vector.load %arg2[%c0_32, %c0_33] : memref<32x8xf32, #tpu.memory_space<vmem>>, vector<32x8xf32>
    %79 = vector.extract_strided_slice %78 {offsets = [0, 0], sizes = [8, 8], strides = [1, 1]} : vector<32x8xf32> to vector<8x8xf32>
    %80 = vector.extract_strided_slice %76 {offsets = [0, 0], sizes = [8, 1], strides = [1, 1]} : vector<8x4xf32> to vector<8x1xf32>
    %81 = vector.extract_strided_slice %77 {offsets = [0, 0], sizes = [8, 1], strides = [1, 1]} : vector<8x4xf32> to vector<8x1xf32>
    %82 = vector.extract_strided_slice %74 {offsets = [0, 0], sizes = [8, 8], strides = [1, 1]} : vector<32x8xf32> to vector<8x8xf32>
    %83 = vector.extract_strided_slice %75 {offsets = [0, 0], sizes = [8, 8], strides = [1, 1]} : vector<32x8xf32> to vector<8x8xf32>
    %84 = vector.extract_strided_slice %66 {offsets = [0, 0], sizes = [8, 8], strides = [1, 1]} : vector<8x32xf32> to vector<8x8xf32>
    %85 = vector.extract_strided_slice %83 {offsets = [0, 0], sizes = [8, 1], strides = [1, 1]} : vector<8x8xf32> to vector<8x1xf32>
    %86 = vector.extract_strided_slice %84 {offsets = [0, 0], sizes = [1, 8], strides = [1, 1]} : vector<8x8xf32> to vector<1x8xf32>
    %87 = vector.broadcast %85 : vector<8x1xf32> to vector<8x8xf32>
    %88 = vector.broadcast %86 : vector<1x8xf32> to vector<8x8xf32>
    %89 = arith.mulf %87, %88 : vector<8x8xf32>
    %90 = vector.broadcast %80 : vector<8x1xf32> to vector<8x8xf32>
    %91 = arith.mulf %90, %89 : vector<8x8xf32>
    %92 = arith.addf %79, %91 : vector<8x8xf32>
    %93 = vector.extract_strided_slice %82 {offsets = [0, 0], sizes = [8, 1], strides = [1, 1]} : vector<8x8xf32> to vector<8x1xf32>
    %94 = vector.broadcast %93 : vector<8x1xf32> to vector<8x8xf32>
    %95 = arith.mulf %94, %92 : vector<8x8xf32>
    %cst_34 = arith.constant dense<0.000000e+00> : vector<8xf32>
    %96 = vector.multi_reduction <add>, %95, %cst_34 [0] : vector<8x8xf32> to vector<8xf32>
    %97 = vector.shape_cast %96 : vector<8xf32> to vector<1x8xf32>
    %c0_35 = arith.constant 0 : index
    %c0_36 = arith.constant 0 : index
    %98 = vector.load %arg37[%c0_35, %c0_36] : memref<8x32xf32, #tpu.memory_space<vmem>>, vector<1x8xf32>
    tpu.vector_store %arg37[%c0_35, %c0_36], %97 {strides = array<i32>} : memref<8x32xf32, #tpu.memory_space<vmem>>, vector<1x8xf32>,
    %99 = vector.broadcast %81 : vector<8x1xf32> to vector<8x8xf32>
    %100 = arith.mulf %99, %79 : vector<8x8xf32>
    %101 = arith.addf %100, %89 : vector<8x8xf32>
    %102 = vector.extract_strided_slice %83 {offsets = [0, 1], sizes = [8, 1], strides = [1, 1]} : vector<8x8xf32> to vector<8x1xf32>
    %103 = vector.extract_strided_slice %84 {offsets = [1, 0], sizes = [1, 8], strides = [1, 1]} : vector<8x8xf32> to vector<1x8xf32>
    %104 = vector.broadcast %102 : vector<8x1xf32> to vector<8x8xf32>
    %105 = vector.broadcast %103 : vector<1x8xf32> to vector<8x8xf32>
    %106 = arith.mulf %104, %105 : vector<8x8xf32>
    %107 = vector.broadcast %80 : vector<8x1xf32> to vector<8x8xf32>
    %108 = arith.mulf %107, %106 : vector<8x8xf32>
    %109 = arith.addf %101, %108 : vector<8x8xf32>
    %110 = vector.extract_strided_slice %82 {offsets = [0, 1], sizes = [8, 1], strides = [1, 1]} : vector<8x8xf32> to vector<8x1xf32>
    %111 = vector.broadcast %110 : vector<8x1xf32> to vector<8x8xf32>
    %112 = arith.mulf %111, %109 : vector<8x8xf32>
    %cst_37 = arith.constant dense<0.000000e+00> : vector<8xf32>
    %113 = vector.multi_reduction <add>, %112, %cst_37 [0] : vector<8x8xf32> to vector<8xf32>
    %114 = vector.shape_cast %113 : vector<8xf32> to vector<1x8xf32>
    %c1 = arith.constant 1 : index
    %c0_38 = arith.constant 0 : index
    %115 = vector.load %arg37[%c1, %c0_38] : memref<8x32xf32, #tpu.memory_space<vmem>>, vector<1x8xf32>
    tpu.vector_store %arg37[%c1, %c0_38], %114 {strides = array<i32>} : memref<8x32xf32, #tpu.memory_space<vmem>>, vector<1x8xf32>,
    %116 = vector.broadcast %81 : vector<8x1xf32> to vector<8x8xf32>
    %117 = arith.mulf %116, %101 : vector<8x8xf32>
    %118 = arith.addf %117, %106 : vector<8x8xf32>
    %119 = vector.extract_strided_slice %83 {offsets = [0, 2], sizes = [8, 1], strides = [1, 1]} : vector<8x8xf32> to vector<8x1xf32>
    %120 = vector.extract_strided_slice %84 {offsets = [2, 0], sizes = [1, 8], strides = [1, 1]} : vector<8x8xf32> to vector<1x8xf32>
    %121 = vector.broadcast %119 : vector<8x1xf32> to vector<8x8xf32>
    %122 = vector.broadcast %120 : vector<1x8xf32> to vector<8x8xf32>
    %123 = arith.mulf %121, %122 : vector<8x8xf32>
    %124 = vector.broadcast %80 : vector<8x1xf32> to vector<8x8xf32>
    %125 = arith.mulf %124, %123 : vector<8x8xf32>
    %126 = arith.addf %118, %125 : vector<8x8xf32>
    %127 = vector.extract_strided_slice %82 {offsets = [0, 2], sizes = [8, 1], strides = [1, 1]} : vector<8x8xf32> to vector<8x1xf32>
    %128 = vector.broadcast %127 : vector<8x1xf32> to vector<8x8xf32>
    %129 = arith.mulf %128, %126 : vector<8x8xf32>
    %cst_39 = arith.constant dense<0.000000e+00> : vector<8xf32>
    %130 = vector.multi_reduction <add>, %129, %cst_39 [0] : vector<8x8xf32> to vector<8xf32>
    %131 = vector.shape_cast %130 : vector<8xf32> to vector<1x8xf32>
    %c2 = arith.constant 2 : index
    %c0_40 = arith.constant 0 : index
    %132 = vector.load %arg37[%c2, %c0_40] : memref<8x32xf32, #tpu.memory_space<vmem>>, vector<1x8xf32>
    tpu.vector_store %arg37[%c2, %c0_40], %131 {strides = array<i32>} : memref<8x32xf32, #tpu.memory_space<vmem>>, vector<1x8xf32>,
    %133 = vector.broadcast %81 : vector<8x1xf32> to vector<8x8xf32>
    %134 = arith.mulf %133, %118 : vector<8x8xf32>
    %135 = arith.addf %134, %123 : vector<8x8xf32>
    %136 = vector.extract_strided_slice %83 {offsets = [0, 3], sizes = [8, 1], strides = [1, 1]} : vector<8x8xf32> to vector<8x1xf32>
    %137 = vector.extract_strided_slice %84 {offsets = [3, 0], sizes = [1, 8], strides = [1, 1]} : vector<8x8xf32> to vector<1x8xf32>
    %138 = vector.broadcast %136 : vector<8x1xf32> to vector<8x8xf32>
    %139 = vector.broadcast %137 : vector<1x8xf32> to vector<8x8xf32>
    %140 = arith.mulf %138, %139 : vector<8x8xf32>
    %141 = vector.broadcast %80 : vector<8x1xf32> to vector<8x8xf32>
    %142 = arith.mulf %141, %140 : vector<8x8xf32>
    %143 = arith.addf %135, %142 : vector<8x8xf32>
    %144 = vector.extract_strided_slice %82 {offsets = [0, 3], sizes = [8, 1], strides = [1, 1]} : vector<8x8xf32> to vector<8x1xf32>
    %145 = vector.broadcast %144 : vector<8x1xf32> to vector<8x8xf32>
    %146 = arith.mulf %145, %143 : vector<8x8xf32>
    %cst_41 = arith.constant dense<0.000000e+00> : vector<8xf32>
    %147 = vector.multi_reduction <add>, %146, %cst_41 [0] : vector<8x8xf32> to vector<8xf32>
    %148 = vector.shape_cast %147 : vector<8xf32> to vector<1x8xf32>
    %c3 = arith.constant 3 : index
    %c0_42 = arith.constant 0 : index
    %149 = vector.load %arg37[%c3, %c0_42] : memref<8x32xf32, #tpu.memory_space<vmem>>, vector<1x8xf32>
    tpu.vector_store %arg37[%c3, %c0_42], %148 {strides = array<i32>} : memref<8x32xf32, #tpu.memory_space<vmem>>, vector<1x8xf32>,
    %150 = vector.broadcast %81 : vector<8x1xf32> to vector<8x8xf32>
    %151 = arith.mulf %150, %135 : vector<8x8xf32>
    %152 = arith.addf %151, %140 : vector<8x8xf32>
    %153 = vector.extract_strided_slice %83 {offsets = [0, 4], sizes = [8, 1], strides = [1, 1]} : vector<8x8xf32> to vector<8x1xf32>
    %154 = vector.extract_strided_slice %84 {offsets = [4, 0], sizes = [1, 8], strides = [1, 1]} : vector<8x8xf32> to vector<1x8xf32>
    %155 = vector.broadcast %153 : vector<8x1xf32> to vector<8x8xf32>
    %156 = vector.broadcast %154 : vector<1x8xf32> to vector<8x8xf32>
    %157 = arith.mulf %155, %156 : vector<8x8xf32>
    %158 = vector.broadcast %80 : vector<8x1xf32> to vector<8x8xf32>
    %159 = arith.mulf %158, %157 : vector<8x8xf32>
    %160 = arith.addf %152, %159 : vector<8x8xf32>
    %161 = vector.extract_strided_slice %82 {offsets = [0, 4], sizes = [8, 1], strides = [1, 1]} : vector<8x8xf32> to vector<8x1xf32>
    %162 = vector.broadcast %161 : vector<8x1xf32> to vector<8x8xf32>
    %163 = arith.mulf %162, %160 : vector<8x8xf32>
    %cst_43 = arith.constant dense<0.000000e+00> : vector<8xf32>
    %164 = vector.multi_reduction <add>, %163, %cst_43 [0] : vector<8x8xf32> to vector<8xf32>
    %165 = vector.shape_cast %164 : vector<8xf32> to vector<1x8xf32>
    %c4 = arith.constant 4 : index
    %c0_44 = arith.constant 0 : index
    %166 = vector.load %arg37[%c4, %c0_44] : memref<8x32xf32, #tpu.memory_space<vmem>>, vector<1x8xf32>
    tpu.vector_store %arg37[%c4, %c0_44], %165 {strides = array<i32>} : memref<8x32xf32, #tpu.memory_space<vmem>>, vector<1x8xf32>,
    %167 = vector.broadcast %81 : vector<8x1xf32> to vector<8x8xf32>
    %168 = arith.mulf %167, %152 : vector<8x8xf32>
    %169 = arith.addf %168, %157 : vector<8x8xf32>
    %170 = vector.extract_strided_slice %83 {offsets = [0, 5], sizes = [8, 1], strides = [1, 1]} : vector<8x8xf32> to vector<8x1xf32>
    %171 = vector.extract_strided_slice %84 {offsets = [5, 0], sizes = [1, 8], strides = [1, 1]} : vector<8x8xf32> to vector<1x8xf32>
    %172 = vector.broadcast %170 : vector<8x1xf32> to vector<8x8xf32>
    %173 = vector.broadcast %171 : vector<1x8xf32> to vector<8x8xf32>
    %174 = arith.mulf %172, %173 : vector<8x8xf32>
    %175 = vector.broadcast %80 : vector<8x1xf32> to vector<8x8xf32>
    %176 = arith.mulf %175, %174 : vector<8x8xf32>
    %177 = arith.addf %169, %176 : vector<8x8xf32>
    %178 = vector.extract_strided_slice %82 {offsets = [0, 5], sizes = [8, 1], strides = [1, 1]} : vector<8x8xf32> to vector<8x1xf32>
    %179 = vector.broadcast %178 : vector<8x1xf32> to vector<8x8xf32>
    %180 = arith.mulf %179, %177 : vector<8x8xf32>
    %cst_45 = arith.constant dense<0.000000e+00> : vector<8xf32>
    %181 = vector.multi_reduction <add>, %180, %cst_45 [0] : vector<8x8xf32> to vector<8xf32>
    %182 = vector.shape_cast %181 : vector<8xf32> to vector<1x8xf32>
    %c5 = arith.constant 5 : index
    %c0_46 = arith.constant 0 : index
    %183 = vector.load %arg37[%c5, %c0_46] : memref<8x32xf32, #tpu.memory_space<vmem>>, vector<1x8xf32>
    tpu.vector_store %arg37[%c5, %c0_46], %182 {strides = array<i32>} : memref<8x32xf32, #tpu.memory_space<vmem>>, vector<1x8xf32>,
    %184 = vector.broadcast %81 : vector<8x1xf32> to vector<8x8xf32>
    %185 = arith.mulf %184, %169 : vector<8x8xf32>
    %186 = arith.addf %185, %174 : vector<8x8xf32>
    %187 = vector.extract_strided_slice %83 {offsets = [0, 6], sizes = [8, 1], strides = [1, 1]} : vector<8x8xf32> to vector<8x1xf32>
    %188 = vector.extract_strided_slice %84 {offsets = [6, 0], sizes = [1, 8], strides = [1, 1]} : vector<8x8xf32> to vector<1x8xf32>
    %189 = vector.broadcast %187 : vector<8x1xf32> to vector<8x8xf32>
    %190 = vector.broadcast %188 : vector<1x8xf32> to vector<8x8xf32>
    %191 = arith.mulf %189, %190 : vector<8x8xf32>
    %192 = vector.broadcast %80 : vector<8x1xf32> to vector<8x8xf32>
    %193 = arith.mulf %192, %191 : vector<8x8xf32>
    %194 = arith.addf %186, %193 : vector<8x8xf32>
    %195 = vector.extract_strided_slice %82 {offsets = [0, 6], sizes = [8, 1], strides = [1, 1]} : vector<8x8xf32> to vector<8x1xf32>
    %196 = vector.broadcast %195 : vector<8x1xf32> to vector<8x8xf32>
    %197 = arith.mulf %196, %194 : vector<8x8xf32>
    %cst_47 = arith.constant dense<0.000000e+00> : vector<8xf32>
    %198 = vector.multi_reduction <add>, %197, %cst_47 [0] : vector<8x8xf32> to vector<8xf32>
    %199 = vector.shape_cast %198 : vector<8xf32> to vector<1x8xf32>
    %c6 = arith.constant 6 : index
    %c0_48 = arith.constant 0 : index
    %200 = vector.load %arg37[%c6, %c0_48] : memref<8x32xf32, #tpu.memory_space<vmem>>, vector<1x8xf32>
    tpu.vector_store %arg37[%c6, %c0_48], %199 {strides = array<i32>} : memref<8x32xf32, #tpu.memory_space<vmem>>, vector<1x8xf32>,
    %201 = vector.broadcast %81 : vector<8x1xf32> to vector<8x8xf32>
    %202 = arith.mulf %201, %186 : vector<8x8xf32>
    %203 = arith.addf %202, %191 : vector<8x8xf32>
    %204 = vector.extract_strided_slice %83 {offsets = [0, 7], sizes = [8, 1], strides = [1, 1]} : vector<8x8xf32> to vector<8x1xf32>
    %205 = vector.extract_strided_slice %84 {offsets = [7, 0], sizes = [1, 8], strides = [1, 1]} : vector<8x8xf32> to vector<1x8xf32>
    %206 = vector.broadcast %204 : vector<8x1xf32> to vector<8x8xf32>
    %207 = vector.broadcast %205 : vector<1x8xf32> to vector<8x8xf32>
    %208 = arith.mulf %206, %207 : vector<8x8xf32>
    %209 = vector.broadcast %80 : vector<8x1xf32> to vector<8x8xf32>
    %210 = arith.mulf %209, %208 : vector<8x8xf32>
    %211 = arith.addf %203, %210 : vector<8x8xf32>
    %212 = vector.extract_strided_slice %82 {offsets = [0, 7], sizes = [8, 1], strides = [1, 1]} : vector<8x8xf32> to vector<8x1xf32>
    %213 = vector.broadcast %212 : vector<8x1xf32> to vector<8x8xf32>
    %214 = arith.mulf %213, %211 : vector<8x8xf32>
    %cst_49 = arith.constant dense<0.000000e+00> : vector<8xf32>
    %215 = vector.multi_reduction <add>, %214, %cst_49 [0] : vector<8x8xf32> to vector<8xf32>
    %216 = vector.shape_cast %215 : vector<8xf32> to vector<1x8xf32>
    %c7 = arith.constant 7 : index
    %c0_50 = arith.constant 0 : index
    %217 = vector.load %arg37[%c7, %c0_50] : memref<8x32xf32, #tpu.memory_space<vmem>>, vector<1x8xf32>
    tpu.vector_store %arg37[%c7, %c0_50], %216 {strides = array<i32>} : memref<8x32xf32, #tpu.memory_space<vmem>>, vector<1x8xf32>,
    %218 = vector.broadcast %81 : vector<8x1xf32> to vector<8x8xf32>
    %219 = arith.mulf %218, %203 : vector<8x8xf32>
    %220 = arith.addf %219, %208 : vector<8x8xf32>
    %c0_51 = arith.constant 0 : index
    %c0_52 = arith.constant 0 : index
    %221 = vector.load %arg36[%c0_51, %c0_52] : memref<32x8xf32, #tpu.memory_space<vmem>>, vector<8x8xf32>
    tpu.vector_store %arg36[%c0_51, %c0_52], %220 {strides = array<i32>} : memref<32x8xf32, #tpu.memory_space<vmem>>, vector<8x8xf32>,
    %222 = vector.extract_strided_slice %78 {offsets = [8, 0], sizes = [8, 8], strides = [1, 1]} : vector<32x8xf32> to vector<8x8xf32>
    %223 = vector.extract_strided_slice %76 {offsets = [0, 1], sizes = [8, 1], strides = [1, 1]} : vector<8x4xf32> to vector<8x1xf32>
    %224 = vector.extract_strided_slice %77 {offsets = [0, 1], sizes = [8, 1], strides = [1, 1]} : vector<8x4xf32> to vector<8x1xf32>
    %225 = vector.extract_strided_slice %74 {offsets = [8, 0], sizes = [8, 8], strides = [1, 1]} : vector<32x8xf32> to vector<8x8xf32>
    %226 = vector.extract_strided_slice %75 {offsets = [8, 0], sizes = [8, 8], strides = [1, 1]} : vector<32x8xf32> to vector<8x8xf32>
    %227 = vector.extract_strided_slice %66 {offsets = [0, 8], sizes = [8, 8], strides = [1, 1]} : vector<8x32xf32> to vector<8x8xf32>
    %228 = vector.extract_strided_slice %226 {offsets = [0, 0], sizes = [8, 1], strides = [1, 1]} : vector<8x8xf32> to vector<8x1xf32>
    %229 = vector.extract_strided_slice %227 {offsets = [0, 0], sizes = [1, 8], strides = [1, 1]} : vector<8x8xf32> to vector<1x8xf32>
    %230 = vector.broadcast %228 : vector<8x1xf32> to vector<8x8xf32>
    %231 = vector.broadcast %229 : vector<1x8xf32> to vector<8x8xf32>
    %232 = arith.mulf %230, %231 : vector<8x8xf32>
    %233 = vector.broadcast %223 : vector<8x1xf32> to vector<8x8xf32>
    %234 = arith.mulf %233, %232 : vector<8x8xf32>
    %235 = arith.addf %222, %234 : vector<8x8xf32>
    %236 = vector.extract_strided_slice %225 {offsets = [0, 0], sizes = [8, 1], strides = [1, 1]} : vector<8x8xf32> to vector<8x1xf32>
    %237 = vector.broadcast %236 : vector<8x1xf32> to vector<8x8xf32>
    %238 = arith.mulf %237, %235 : vector<8x8xf32>
    %cst_53 = arith.constant dense<0.000000e+00> : vector<8xf32>
    %239 = vector.multi_reduction <add>, %238, %cst_53 [0] : vector<8x8xf32> to vector<8xf32>
    %240 = vector.shape_cast %239 : vector<8xf32> to vector<1x8xf32>
    %c0_54 = arith.constant 0 : index
    %c8 = arith.constant 8 : index
    %241 = vector.load %arg37[%c0_54, %c8] : memref<8x32xf32, #tpu.memory_space<vmem>>, vector<1x8xf32>
    tpu.vector_store %arg37[%c0_54, %c8], %240 {strides = array<i32>} : memref<8x32xf32, #tpu.memory_space<vmem>>, vector<1x8xf32>,
    %242 = vector.broadcast %224 : vector<8x1xf32> to vector<8x8xf32>
    %243 = arith.mulf %242, %222 : vector<8x8xf32>
    %244 = arith.addf %243, %232 : vector<8x8xf32>
    %245 = vector.extract_strided_slice %226 {offsets = [0, 1], sizes = [8, 1], strides = [1, 1]} : vector<8x8xf32> to vector<8x1xf32>
    %246 = vector.extract_strided_slice %227 {offsets = [1, 0], sizes = [1, 8], strides = [1, 1]} : vector<8x8xf32> to vector<1x8xf32>
    %247 = vector.broadcast %245 : vector<8x1xf32> to vector<8x8xf32>
    %248 = vector.broadcast %246 : vector<1x8xf32> to vector<8x8xf32>
    %249 = arith.mulf %247, %248 : vector<8x8xf32>
    %250 = vector.broadcast %223 : vector<8x1xf32> to vector<8x8xf32>
    %251 = arith.mulf %250, %249 : vector<8x8xf32>
    %252 = arith.addf %244, %251 : vector<8x8xf32>
    %253 = vector.extract_strided_slice %225 {offsets = [0, 1], sizes = [8, 1], strides = [1, 1]} : vector<8x8xf32> to vector<8x1xf32>
    %254 = vector.broadcast %253 : vector<8x1xf32> to vector<8x8xf32>
    %255 = arith.mulf %254, %252 : vector<8x8xf32>
    %cst_55 = arith.constant dense<0.000000e+00> : vector<8xf32>
    %256 = vector.multi_reduction <add>, %255, %cst_55 [0] : vector<8x8xf32> to vector<8xf32>
    %257 = vector.shape_cast %256 : vector<8xf32> to vector<1x8xf32>
    %c1_56 = arith.constant 1 : index
    %c8_57 = arith.constant 8 : index
    %258 = vector.load %arg37[%c1_56, %c8_57] : memref<8x32xf32, #tpu.memory_space<vmem>>, vector<1x8xf32>
    tpu.vector_store %arg37[%c1_56, %c8_57], %257 {strides = array<i32>} : memref<8x32xf32, #tpu.memory_space<vmem>>, vector<1x8xf32>,
    %259 = vector.broadcast %224 : vector<8x1xf32> to vector<8x8xf32>
    %260 = arith.mulf %259, %244 : vector<8x8xf32>
    %261 = arith.addf %260, %249 : vector<8x8xf32>
    %262 = vector.extract_strided_slice %226 {offsets = [0, 2], sizes = [8, 1], strides = [1, 1]} : vector<8x8xf32> to vector<8x1xf32>
    %263 = vector.extract_strided_slice %227 {offsets = [2, 0], sizes = [1, 8], strides = [1, 1]} : vector<8x8xf32> to vector<1x8xf32>
    %264 = vector.broadcast %262 : vector<8x1xf32> to vector<8x8xf32>
    %265 = vector.broadcast %263 : vector<1x8xf32> to vector<8x8xf32>
    %266 = arith.mulf %264, %265 : vector<8x8xf32>
    %267 = vector.broadcast %223 : vector<8x1xf32> to vector<8x8xf32>
    %268 = arith.mulf %267, %266 : vector<8x8xf32>
    %269 = arith.addf %261, %268 : vector<8x8xf32>
    %270 = vector.extract_strided_slice %225 {offsets = [0, 2], sizes = [8, 1], strides = [1, 1]} : vector<8x8xf32> to vector<8x1xf32>
    %271 = vector.broadcast %270 : vector<8x1xf32> to vector<8x8xf32>
    %272 = arith.mulf %271, %269 : vector<8x8xf32>
    %cst_58 = arith.constant dense<0.000000e+00> : vector<8xf32>
    %273 = vector.multi_reduction <add>, %272, %cst_58 [0] : vector<8x8xf32> to vector<8xf32>
    %274 = vector.shape_cast %273 : vector<8xf32> to vector<1x8xf32>
    %c2_59 = arith.constant 2 : index
    %c8_60 = arith.constant 8 : index
    %275 = vector.load %arg37[%c2_59, %c8_60] : memref<8x32xf32, #tpu.memory_space<vmem>>, vector<1x8xf32>
    tpu.vector_store %arg37[%c2_59, %c8_60], %274 {strides = array<i32>} : memref<8x32xf32, #tpu.memory_space<vmem>>, vector<1x8xf32>,
    %276 = vector.broadcast %224 : vector<8x1xf32> to vector<8x8xf32>
    %277 = arith.mulf %276, %261 : vector<8x8xf32>
    %278 = arith.addf %277, %266 : vector<8x8xf32>
    %279 = vector.extract_strided_slice %226 {offsets = [0, 3], sizes = [8, 1], strides = [1, 1]} : vector<8x8xf32> to vector<8x1xf32>
    %280 = vector.extract_strided_slice %227 {offsets = [3, 0], sizes = [1, 8], strides = [1, 1]} : vector<8x8xf32> to vector<1x8xf32>
    %281 = vector.broadcast %279 : vector<8x1xf32> to vector<8x8xf32>
    %282 = vector.broadcast %280 : vector<1x8xf32> to vector<8x8xf32>
    %283 = arith.mulf %281, %282 : vector<8x8xf32>
    %284 = vector.broadcast %223 : vector<8x1xf32> to vector<8x8xf32>
    %285 = arith.mulf %284, %283 : vector<8x8xf32>
    %286 = arith.addf %278, %285 : vector<8x8xf32>
    %287 = vector.extract_strided_slice %225 {offsets = [0, 3], sizes = [8, 1], strides = [1, 1]} : vector<8x8xf32> to vector<8x1xf32>
    %288 = vector.broadcast %287 : vector<8x1xf32> to vector<8x8xf32>
    %289 = arith.mulf %288, %286 : vector<8x8xf32>
    %cst_61 = arith.constant dense<0.000000e+00> : vector<8xf32>
    %290 = vector.multi_reduction <add>, %289, %cst_61 [0] : vector<8x8xf32> to vector<8xf32>
    %291 = vector.shape_cast %290 : vector<8xf32> to vector<1x8xf32>
    %c3_62 = arith.constant 3 : index
    %c8_63 = arith.constant 8 : index
    %292 = vector.load %arg37[%c3_62, %c8_63] : memref<8x32xf32, #tpu.memory_space<vmem>>, vector<1x8xf32>
    tpu.vector_store %arg37[%c3_62, %c8_63], %291 {strides = array<i32>} : memref<8x32xf32, #tpu.memory_space<vmem>>, vector<1x8xf32>,
    %293 = vector.broadcast %224 : vector<8x1xf32> to vector<8x8xf32>
    %294 = arith.mulf %293, %278 : vector<8x8xf32>
    %295 = arith.addf %294, %283 : vector<8x8xf32>
    %296 = vector.extract_strided_slice %226 {offsets = [0, 4], sizes = [8, 1], strides = [1, 1]} : vector<8x8xf32> to vector<8x1xf32>
    %297 = vector.extract_strided_slice %227 {offsets = [4, 0], sizes = [1, 8], strides = [1, 1]} : vector<8x8xf32> to vector<1x8xf32>
    %298 = vector.broadcast %296 : vector<8x1xf32> to vector<8x8xf32>
    %299 = vector.broadcast %297 : vector<1x8xf32> to vector<8x8xf32>
    %300 = arith.mulf %298, %299 : vector<8x8xf32>
    %301 = vector.broadcast %223 : vector<8x1xf32> to vector<8x8xf32>
    %302 = arith.mulf %301, %300 : vector<8x8xf32>
    %303 = arith.addf %295, %302 : vector<8x8xf32>
    %304 = vector.extract_strided_slice %225 {offsets = [0, 4], sizes = [8, 1], strides = [1, 1]} : vector<8x8xf32> to vector<8x1xf32>
    %305 = vector.broadcast %304 : vector<8x1xf32> to vector<8x8xf32>
    %306 = arith.mulf %305, %303 : vector<8x8xf32>
    %cst_64 = arith.constant dense<0.000000e+00> : vector<8xf32>
    %307 = vector.multi_reduction <add>, %306, %cst_64 [0] : vector<8x8xf32> to vector<8xf32>
    %308 = vector.shape_cast %307 : vector<8xf32> to vector<1x8xf32>
    %c4_65 = arith.constant 4 : index
    %c8_66 = arith.constant 8 : index
    %309 = vector.load %arg37[%c4_65, %c8_66] : memref<8x32xf32, #tpu.memory_space<vmem>>, vector<1x8xf32>
    tpu.vector_store %arg37[%c4_65, %c8_66], %308 {strides = array<i32>} : memref<8x32xf32, #tpu.memory_space<vmem>>, vector<1x8xf32>,
    %310 = vector.broadcast %224 : vector<8x1xf32> to vector<8x8xf32>
    %311 = arith.mulf %310, %295 : vector<8x8xf32>
    %312 = arith.addf %311, %300 : vector<8x8xf32>
    %313 = vector.extract_strided_slice %226 {offsets = [0, 5], sizes = [8, 1], strides = [1, 1]} : vector<8x8xf32> to vector<8x1xf32>
    %314 = vector.extract_strided_slice %227 {offsets = [5, 0], sizes = [1, 8], strides = [1, 1]} : vector<8x8xf32> to vector<1x8xf32>
    %315 = vector.broadcast %313 : vector<8x1xf32> to vector<8x8xf32>
    %316 = vector.broadcast %314 : vector<1x8xf32> to vector<8x8xf32>
    %317 = arith.mulf %315, %316 : vector<8x8xf32>
    %318 = vector.broadcast %223 : vector<8x1xf32> to vector<8x8xf32>
    %319 = arith.mulf %318, %317 : vector<8x8xf32>
    %320 = arith.addf %312, %319 : vector<8x8xf32>
    %321 = vector.extract_strided_slice %225 {offsets = [0, 5], sizes = [8, 1], strides = [1, 1]} : vector<8x8xf32> to vector<8x1xf32>
    %322 = vector.broadcast %321 : vector<8x1xf32> to vector<8x8xf32>
    %323 = arith.mulf %322, %320 : vector<8x8xf32>
    %cst_67 = arith.constant dense<0.000000e+00> : vector<8xf32>
    %324 = vector.multi_reduction <add>, %323, %cst_67 [0] : vector<8x8xf32> to vector<8xf32>
    %325 = vector.shape_cast %324 : vector<8xf32> to vector<1x8xf32>
    %c5_68 = arith.constant 5 : index
    %c8_69 = arith.constant 8 : index
    %326 = vector.load %arg37[%c5_68, %c8_69] : memref<8x32xf32, #tpu.memory_space<vmem>>, vector<1x8xf32>
    tpu.vector_store %arg37[%c5_68, %c8_69], %325 {strides = array<i32>} : memref<8x32xf32, #tpu.memory_space<vmem>>, vector<1x8xf32>,
    %327 = vector.broadcast %224 : vector<8x1xf32> to vector<8x8xf32>
    %328 = arith.mulf %327, %312 : vector<8x8xf32>
    %329 = arith.addf %328, %317 : vector<8x8xf32>
    %330 = vector.extract_strided_slice %226 {offsets = [0, 6], sizes = [8, 1], strides = [1, 1]} : vector<8x8xf32> to vector<8x1xf32>
    %331 = vector.extract_strided_slice %227 {offsets = [6, 0], sizes = [1, 8], strides = [1, 1]} : vector<8x8xf32> to vector<1x8xf32>
    %332 = vector.broadcast %330 : vector<8x1xf32> to vector<8x8xf32>
    %333 = vector.broadcast %331 : vector<1x8xf32> to vector<8x8xf32>
    %334 = arith.mulf %332, %333 : vector<8x8xf32>
    %335 = vector.broadcast %223 : vector<8x1xf32> to vector<8x8xf32>
    %336 = arith.mulf %335, %334 : vector<8x8xf32>
    %337 = arith.addf %329, %336 : vector<8x8xf32>
    %338 = vector.extract_strided_slice %225 {offsets = [0, 6], sizes = [8, 1], strides = [1, 1]} : vector<8x8xf32> to vector<8x1xf32>
    %339 = vector.broadcast %338 : vector<8x1xf32> to vector<8x8xf32>
    %340 = arith.mulf %339, %337 : vector<8x8xf32>
    %cst_70 = arith.constant dense<0.000000e+00> : vector<8xf32>
    %341 = vector.multi_reduction <add>, %340, %cst_70 [0] : vector<8x8xf32> to vector<8xf32>
    %342 = vector.shape_cast %341 : vector<8xf32> to vector<1x8xf32>
    %c6_71 = arith.constant 6 : index
    %c8_72 = arith.constant 8 : index
    %343 = vector.load %arg37[%c6_71, %c8_72] : memref<8x32xf32, #tpu.memory_space<vmem>>, vector<1x8xf32>
    tpu.vector_store %arg37[%c6_71, %c8_72], %342 {strides = array<i32>} : memref<8x32xf32, #tpu.memory_space<vmem>>, vector<1x8xf32>,
    %344 = vector.broadcast %224 : vector<8x1xf32> to vector<8x8xf32>
    %345 = arith.mulf %344, %329 : vector<8x8xf32>
    %346 = arith.addf %345, %334 : vector<8x8xf32>
    %347 = vector.extract_strided_slice %226 {offsets = [0, 7], sizes = [8, 1], strides = [1, 1]} : vector<8x8xf32> to vector<8x1xf32>
    %348 = vector.extract_strided_slice %227 {offsets = [7, 0], sizes = [1, 8], strides = [1, 1]} : vector<8x8xf32> to vector<1x8xf32>
    %349 = vector.broadcast %347 : vector<8x1xf32> to vector<8x8xf32>
    %350 = vector.broadcast %348 : vector<1x8xf32> to vector<8x8xf32>
    %351 = arith.mulf %349, %350 : vector<8x8xf32>
    %352 = vector.broadcast %223 : vector<8x1xf32> to vector<8x8xf32>
    %353 = arith.mulf %352, %351 : vector<8x8xf32>
    %354 = arith.addf %346, %353 : vector<8x8xf32>
    %355 = vector.extract_strided_slice %225 {offsets = [0, 7], sizes = [8, 1], strides = [1, 1]} : vector<8x8xf32> to vector<8x1xf32>
    %356 = vector.broadcast %355 : vector<8x1xf32> to vector<8x8xf32>
    %357 = arith.mulf %356, %354 : vector<8x8xf32>
    %cst_73 = arith.constant dense<0.000000e+00> : vector<8xf32>
    %358 = vector.multi_reduction <add>, %357, %cst_73 [0] : vector<8x8xf32> to vector<8xf32>
    %359 = vector.shape_cast %358 : vector<8xf32> to vector<1x8xf32>
    %c7_74 = arith.constant 7 : index
    %c8_75 = arith.constant 8 : index
    %360 = vector.load %arg37[%c7_74, %c8_75] : memref<8x32xf32, #tpu.memory_space<vmem>>, vector<1x8xf32>
    tpu.vector_store %arg37[%c7_74, %c8_75], %359 {strides = array<i32>} : memref<8x32xf32, #tpu.memory_space<vmem>>, vector<1x8xf32>,
    %361 = vector.broadcast %224 : vector<8x1xf32> to vector<8x8xf32>
    %362 = arith.mulf %361, %346 : vector<8x8xf32>
    %363 = arith.addf %362, %351 : vector<8x8xf32>
    %c8_76 = arith.constant 8 : index
    %c0_77 = arith.constant 0 : index
    %364 = vector.load %arg36[%c8_76, %c0_77] : memref<32x8xf32, #tpu.memory_space<vmem>>, vector<8x8xf32>
    tpu.vector_store %arg36[%c8_76, %c0_77], %363 {strides = array<i32>} : memref<32x8xf32, #tpu.memory_space<vmem>>, vector<8x8xf32>,
    %365 = vector.extract_strided_slice %78 {offsets = [16, 0], sizes = [8, 8], strides = [1, 1]} : vector<32x8xf32> to vector<8x8xf32>
    %366 = vector.extract_strided_slice %76 {offsets = [0, 2], sizes = [8, 1], strides = [1, 1]} : vector<8x4xf32> to vector<8x1xf32>
    %367 = vector.extract_strided_slice %77 {offsets = [0, 2], sizes = [8, 1], strides = [1, 1]} : vector<8x4xf32> to vector<8x1xf32>
    %368 = vector.extract_strided_slice %74 {offsets = [16, 0], sizes = [8, 8], strides = [1, 1]} : vector<32x8xf32> to vector<8x8xf32>
    %369 = vector.extract_strided_slice %75 {offsets = [16, 0], sizes = [8, 8], strides = [1, 1]} : vector<32x8xf32> to vector<8x8xf32>
    %370 = vector.extract_strided_slice %66 {offsets = [0, 16], sizes = [8, 8], strides = [1, 1]} : vector<8x32xf32> to vector<8x8xf32>
    %371 = vector.extract_strided_slice %369 {offsets = [0, 0], sizes = [8, 1], strides = [1, 1]} : vector<8x8xf32> to vector<8x1xf32>
    %372 = vector.extract_strided_slice %370 {offsets = [0, 0], sizes = [1, 8], strides = [1, 1]} : vector<8x8xf32> to vector<1x8xf32>
    %373 = vector.broadcast %371 : vector<8x1xf32> to vector<8x8xf32>
    %374 = vector.broadcast %372 : vector<1x8xf32> to vector<8x8xf32>
    %375 = arith.mulf %373, %374 : vector<8x8xf32>
    %376 = vector.broadcast %366 : vector<8x1xf32> to vector<8x8xf32>
    %377 = arith.mulf %376, %375 : vector<8x8xf32>
    %378 = arith.addf %365, %377 : vector<8x8xf32>
    %379 = vector.extract_strided_slice %368 {offsets = [0, 0], sizes = [8, 1], strides = [1, 1]} : vector<8x8xf32> to vector<8x1xf32>
    %380 = vector.broadcast %379 : vector<8x1xf32> to vector<8x8xf32>
    %381 = arith.mulf %380, %378 : vector<8x8xf32>
    %cst_78 = arith.constant dense<0.000000e+00> : vector<8xf32>
    %382 = vector.multi_reduction <add>, %381, %cst_78 [0] : vector<8x8xf32> to vector<8xf32>
    %383 = vector.shape_cast %382 : vector<8xf32> to vector<1x8xf32>
    %c0_79 = arith.constant 0 : index
    %c16 = arith.constant 16 : index
    %384 = vector.load %arg37[%c0_79, %c16] : memref<8x32xf32, #tpu.memory_space<vmem>>, vector<1x8xf32>
    tpu.vector_store %arg37[%c0_79, %c16], %383 {strides = array<i32>} : memref<8x32xf32, #tpu.memory_space<vmem>>, vector<1x8xf32>,
    %385 = vector.broadcast %367 : vector<8x1xf32> to vector<8x8xf32>
    %386 = arith.mulf %385, %365 : vector<8x8xf32>
    %387 = arith.addf %386, %375 : vector<8x8xf32>
    %388 = vector.extract_strided_slice %369 {offsets = [0, 1], sizes = [8, 1], strides = [1, 1]} : vector<8x8xf32> to vector<8x1xf32>
    %389 = vector.extract_strided_slice %370 {offsets = [1, 0], sizes = [1, 8], strides = [1, 1]} : vector<8x8xf32> to vector<1x8xf32>
    %390 = vector.broadcast %388 : vector<8x1xf32> to vector<8x8xf32>
    %391 = vector.broadcast %389 : vector<1x8xf32> to vector<8x8xf32>
    %392 = arith.mulf %390, %391 : vector<8x8xf32>
    %393 = vector.broadcast %366 : vector<8x1xf32> to vector<8x8xf32>
    %394 = arith.mulf %393, %392 : vector<8x8xf32>
    %395 = arith.addf %387, %394 : vector<8x8xf32>
    %396 = vector.extract_strided_slice %368 {offsets = [0, 1], sizes = [8, 1], strides = [1, 1]} : vector<8x8xf32> to vector<8x1xf32>
    %397 = vector.broadcast %396 : vector<8x1xf32> to vector<8x8xf32>
    %398 = arith.mulf %397, %395 : vector<8x8xf32>
    %cst_80 = arith.constant dense<0.000000e+00> : vector<8xf32>
    %399 = vector.multi_reduction <add>, %398, %cst_80 [0] : vector<8x8xf32> to vector<8xf32>
    %400 = vector.shape_cast %399 : vector<8xf32> to vector<1x8xf32>
    %c1_81 = arith.constant 1 : index
    %c16_82 = arith.constant 16 : index
    %401 = vector.load %arg37[%c1_81, %c16_82] : memref<8x32xf32, #tpu.memory_space<vmem>>, vector<1x8xf32>
    tpu.vector_store %arg37[%c1_81, %c16_82], %400 {strides = array<i32>} : memref<8x32xf32, #tpu.memory_space<vmem>>, vector<1x8xf32>,
    %402 = vector.broadcast %367 : vector<8x1xf32> to vector<8x8xf32>
    %403 = arith.mulf %402, %387 : vector<8x8xf32>
    %404 = arith.addf %403, %392 : vector<8x8xf32>
    %405 = vector.extract_strided_slice %369 {offsets = [0, 2], sizes = [8, 1], strides = [1, 1]} : vector<8x8xf32> to vector<8x1xf32>
    %406 = vector.extract_strided_slice %370 {offsets = [2, 0], sizes = [1, 8], strides = [1, 1]} : vector<8x8xf32> to vector<1x8xf32>
    %407 = vector.broadcast %405 : vector<8x1xf32> to vector<8x8xf32>
    %408 = vector.broadcast %406 : vector<1x8xf32> to vector<8x8xf32>
    %409 = arith.mulf %407, %408 : vector<8x8xf32>
    %410 = vector.broadcast %366 : vector<8x1xf32> to vector<8x8xf32>
    %411 = arith.mulf %410, %409 : vector<8x8xf32>
    %412 = arith.addf %404, %411 : vector<8x8xf32>
    %413 = vector.extract_strided_slice %368 {offsets = [0, 2], sizes = [8, 1], strides = [1, 1]} : vector<8x8xf32> to vector<8x1xf32>
    %414 = vector.broadcast %413 : vector<8x1xf32> to vector<8x8xf32>
    %415 = arith.mulf %414, %412 : vector<8x8xf32>
    %cst_83 = arith.constant dense<0.000000e+00> : vector<8xf32>
    %416 = vector.multi_reduction <add>, %415, %cst_83 [0] : vector<8x8xf32> to vector<8xf32>
    %417 = vector.shape_cast %416 : vector<8xf32> to vector<1x8xf32>
    %c2_84 = arith.constant 2 : index
    %c16_85 = arith.constant 16 : index
    %418 = vector.load %arg37[%c2_84, %c16_85] : memref<8x32xf32, #tpu.memory_space<vmem>>, vector<1x8xf32>
    tpu.vector_store %arg37[%c2_84, %c16_85], %417 {strides = array<i32>} : memref<8x32xf32, #tpu.memory_space<vmem>>, vector<1x8xf32>,
    %419 = vector.broadcast %367 : vector<8x1xf32> to vector<8x8xf32>
    %420 = arith.mulf %419, %404 : vector<8x8xf32>
    %421 = arith.addf %420, %409 : vector<8x8xf32>
    %422 = vector.extract_strided_slice %369 {offsets = [0, 3], sizes = [8, 1], strides = [1, 1]} : vector<8x8xf32> to vector<8x1xf32>
    %423 = vector.extract_strided_slice %370 {offsets = [3, 0], sizes = [1, 8], strides = [1, 1]} : vector<8x8xf32> to vector<1x8xf32>
    %424 = vector.broadcast %422 : vector<8x1xf32> to vector<8x8xf32>
    %425 = vector.broadcast %423 : vector<1x8xf32> to vector<8x8xf32>
    %426 = arith.mulf %424, %425 : vector<8x8xf32>
    %427 = vector.broadcast %366 : vector<8x1xf32> to vector<8x8xf32>
    %428 = arith.mulf %427, %426 : vector<8x8xf32>
    %429 = arith.addf %421, %428 : vector<8x8xf32>
    %430 = vector.extract_strided_slice %368 {offsets = [0, 3], sizes = [8, 1], strides = [1, 1]} : vector<8x8xf32> to vector<8x1xf32>
    %431 = vector.broadcast %430 : vector<8x1xf32> to vector<8x8xf32>
    %432 = arith.mulf %431, %429 : vector<8x8xf32>
    %cst_86 = arith.constant dense<0.000000e+00> : vector<8xf32>
    %433 = vector.multi_reduction <add>, %432, %cst_86 [0] : vector<8x8xf32> to vector<8xf32>
    %434 = vector.shape_cast %433 : vector<8xf32> to vector<1x8xf32>
    %c3_87 = arith.constant 3 : index
    %c16_88 = arith.constant 16 : index
    %435 = vector.load %arg37[%c3_87, %c16_88] : memref<8x32xf32, #tpu.memory_space<vmem>>, vector<1x8xf32>
    tpu.vector_store %arg37[%c3_87, %c16_88], %434 {strides = array<i32>} : memref<8x32xf32, #tpu.memory_space<vmem>>, vector<1x8xf32>,
    %436 = vector.broadcast %367 : vector<8x1xf32> to vector<8x8xf32>
    %437 = arith.mulf %436, %421 : vector<8x8xf32>
    %438 = arith.addf %437, %426 : vector<8x8xf32>
    %439 = vector.extract_strided_slice %369 {offsets = [0, 4], sizes = [8, 1], strides = [1, 1]} : vector<8x8xf32> to vector<8x1xf32>
    %440 = vector.extract_strided_slice %370 {offsets = [4, 0], sizes = [1, 8], strides = [1, 1]} : vector<8x8xf32> to vector<1x8xf32>
    %441 = vector.broadcast %439 : vector<8x1xf32> to vector<8x8xf32>
    %442 = vector.broadcast %440 : vector<1x8xf32> to vector<8x8xf32>
    %443 = arith.mulf %441, %442 : vector<8x8xf32>
    %444 = vector.broadcast %366 : vector<8x1xf32> to vector<8x8xf32>
    %445 = arith.mulf %444, %443 : vector<8x8xf32>
    %446 = arith.addf %438, %445 : vector<8x8xf32>
    %447 = vector.extract_strided_slice %368 {offsets = [0, 4], sizes = [8, 1], strides = [1, 1]} : vector<8x8xf32> to vector<8x1xf32>
    %448 = vector.broadcast %447 : vector<8x1xf32> to vector<8x8xf32>
    %449 = arith.mulf %448, %446 : vector<8x8xf32>
    %cst_89 = arith.constant dense<0.000000e+00> : vector<8xf32>
    %450 = vector.multi_reduction <add>, %449, %cst_89 [0] : vector<8x8xf32> to vector<8xf32>
    %451 = vector.shape_cast %450 : vector<8xf32> to vector<1x8xf32>
    %c4_90 = arith.constant 4 : index
    %c16_91 = arith.constant 16 : index
    %452 = vector.load %arg37[%c4_90, %c16_91] : memref<8x32xf32, #tpu.memory_space<vmem>>, vector<1x8xf32>
    tpu.vector_store %arg37[%c4_90, %c16_91], %451 {strides = array<i32>} : memref<8x32xf32, #tpu.memory_space<vmem>>, vector<1x8xf32>,
    %453 = vector.broadcast %367 : vector<8x1xf32> to vector<8x8xf32>
    %454 = arith.mulf %453, %438 : vector<8x8xf32>
    %455 = arith.addf %454, %443 : vector<8x8xf32>
    %456 = vector.extract_strided_slice %369 {offsets = [0, 5], sizes = [8, 1], strides = [1, 1]} : vector<8x8xf32> to vector<8x1xf32>
    %457 = vector.extract_strided_slice %370 {offsets = [5, 0], sizes = [1, 8], strides = [1, 1]} : vector<8x8xf32> to vector<1x8xf32>
    %458 = vector.broadcast %456 : vector<8x1xf32> to vector<8x8xf32>
    %459 = vector.broadcast %457 : vector<1x8xf32> to vector<8x8xf32>
    %460 = arith.mulf %458, %459 : vector<8x8xf32>
    %461 = vector.broadcast %366 : vector<8x1xf32> to vector<8x8xf32>
    %462 = arith.mulf %461, %460 : vector<8x8xf32>
    %463 = arith.addf %455, %462 : vector<8x8xf32>
    %464 = vector.extract_strided_slice %368 {offsets = [0, 5], sizes = [8, 1], strides = [1, 1]} : vector<8x8xf32> to vector<8x1xf32>
    %465 = vector.broadcast %464 : vector<8x1xf32> to vector<8x8xf32>
    %466 = arith.mulf %465, %463 : vector<8x8xf32>
    %cst_92 = arith.constant dense<0.000000e+00> : vector<8xf32>
    %467 = vector.multi_reduction <add>, %466, %cst_92 [0] : vector<8x8xf32> to vector<8xf32>
    %468 = vector.shape_cast %467 : vector<8xf32> to vector<1x8xf32>
    %c5_93 = arith.constant 5 : index
    %c16_94 = arith.constant 16 : index
    %469 = vector.load %arg37[%c5_93, %c16_94] : memref<8x32xf32, #tpu.memory_space<vmem>>, vector<1x8xf32>
    tpu.vector_store %arg37[%c5_93, %c16_94], %468 {strides = array<i32>} : memref<8x32xf32, #tpu.memory_space<vmem>>, vector<1x8xf32>,
    %470 = vector.broadcast %367 : vector<8x1xf32> to vector<8x8xf32>
    %471 = arith.mulf %470, %455 : vector<8x8xf32>
    %472 = arith.addf %471, %460 : vector<8x8xf32>
    %473 = vector.extract_strided_slice %369 {offsets = [0, 6], sizes = [8, 1], strides = [1, 1]} : vector<8x8xf32> to vector<8x1xf32>
    %474 = vector.extract_strided_slice %370 {offsets = [6, 0], sizes = [1, 8], strides = [1, 1]} : vector<8x8xf32> to vector<1x8xf32>
    %475 = vector.broadcast %473 : vector<8x1xf32> to vector<8x8xf32>
    %476 = vector.broadcast %474 : vector<1x8xf32> to vector<8x8xf32>
    %477 = arith.mulf %475, %476 : vector<8x8xf32>
    %478 = vector.broadcast %366 : vector<8x1xf32> to vector<8x8xf32>
    %479 = arith.mulf %478, %477 : vector<8x8xf32>
    %480 = arith.addf %472, %479 : vector<8x8xf32>
    %481 = vector.extract_strided_slice %368 {offsets = [0, 6], sizes = [8, 1], strides = [1, 1]} : vector<8x8xf32> to vector<8x1xf32>
    %482 = vector.broadcast %481 : vector<8x1xf32> to vector<8x8xf32>
    %483 = arith.mulf %482, %480 : vector<8x8xf32>
    %cst_95 = arith.constant dense<0.000000e+00> : vector<8xf32>
    %484 = vector.multi_reduction <add>, %483, %cst_95 [0] : vector<8x8xf32> to vector<8xf32>
    %485 = vector.shape_cast %484 : vector<8xf32> to vector<1x8xf32>
    %c6_96 = arith.constant 6 : index
    %c16_97 = arith.constant 16 : index
    %486 = vector.load %arg37[%c6_96, %c16_97] : memref<8x32xf32, #tpu.memory_space<vmem>>, vector<1x8xf32>
    tpu.vector_store %arg37[%c6_96, %c16_97], %485 {strides = array<i32>} : memref<8x32xf32, #tpu.memory_space<vmem>>, vector<1x8xf32>,
    %487 = vector.broadcast %367 : vector<8x1xf32> to vector<8x8xf32>
    %488 = arith.mulf %487, %472 : vector<8x8xf32>
    %489 = arith.addf %488, %477 : vector<8x8xf32>
    %490 = vector.extract_strided_slice %369 {offsets = [0, 7], sizes = [8, 1], strides = [1, 1]} : vector<8x8xf32> to vector<8x1xf32>
    %491 = vector.extract_strided_slice %370 {offsets = [7, 0], sizes = [1, 8], strides = [1, 1]} : vector<8x8xf32> to vector<1x8xf32>
    %492 = vector.broadcast %490 : vector<8x1xf32> to vector<8x8xf32>
    %493 = vector.broadcast %491 : vector<1x8xf32> to vector<8x8xf32>
    %494 = arith.mulf %492, %493 : vector<8x8xf32>
    %495 = vector.broadcast %366 : vector<8x1xf32> to vector<8x8xf32>
    %496 = arith.mulf %495, %494 : vector<8x8xf32>
    %497 = arith.addf %489, %496 : vector<8x8xf32>
    %498 = vector.extract_strided_slice %368 {offsets = [0, 7], sizes = [8, 1], strides = [1, 1]} : vector<8x8xf32> to vector<8x1xf32>
    %499 = vector.broadcast %498 : vector<8x1xf32> to vector<8x8xf32>
    %500 = arith.mulf %499, %497 : vector<8x8xf32>
    %cst_98 = arith.constant dense<0.000000e+00> : vector<8xf32>
    %501 = vector.multi_reduction <add>, %500, %cst_98 [0] : vector<8x8xf32> to vector<8xf32>
    %502 = vector.shape_cast %501 : vector<8xf32> to vector<1x8xf32>
    %c7_99 = arith.constant 7 : index
    %c16_100 = arith.constant 16 : index
    %503 = vector.load %arg37[%c7_99, %c16_100] : memref<8x32xf32, #tpu.memory_space<vmem>>, vector<1x8xf32>
    tpu.vector_store %arg37[%c7_99, %c16_100], %502 {strides = array<i32>} : memref<8x32xf32, #tpu.memory_space<vmem>>, vector<1x8xf32>,
    %504 = vector.broadcast %367 : vector<8x1xf32> to vector<8x8xf32>
    %505 = arith.mulf %504, %489 : vector<8x8xf32>
    %506 = arith.addf %505, %494 : vector<8x8xf32>
    %c16_101 = arith.constant 16 : index
    %c0_102 = arith.constant 0 : index
    %507 = vector.load %arg36[%c16_101, %c0_102] : memref<32x8xf32, #tpu.memory_space<vmem>>, vector<8x8xf32>
    tpu.vector_store %arg36[%c16_101, %c0_102], %506 {strides = array<i32>} : memref<32x8xf32, #tpu.memory_space<vmem>>, vector<8x8xf32>,
    %508 = vector.extract_strided_slice %78 {offsets = [24, 0], sizes = [8, 8], strides = [1, 1]} : vector<32x8xf32> to vector<8x8xf32>
    %509 = vector.extract_strided_slice %76 {offsets = [0, 3], sizes = [8, 1], strides = [1, 1]} : vector<8x4xf32> to vector<8x1xf32>
    %510 = vector.extract_strided_slice %77 {offsets = [0, 3], sizes = [8, 1], strides = [1, 1]} : vector<8x4xf32> to vector<8x1xf32>
    %511 = vector.extract_strided_slice %74 {offsets = [24, 0], sizes = [8, 8], strides = [1, 1]} : vector<32x8xf32> to vector<8x8xf32>
    %512 = vector.extract_strided_slice %75 {offsets = [24, 0], sizes = [8, 8], strides = [1, 1]} : vector<32x8xf32> to vector<8x8xf32>
    %513 = vector.extract_strided_slice %66 {offsets = [0, 24], sizes = [8, 8], strides = [1, 1]} : vector<8x32xf32> to vector<8x8xf32>
    %514 = vector.extract_strided_slice %512 {offsets = [0, 0], sizes = [8, 1], strides = [1, 1]} : vector<8x8xf32> to vector<8x1xf32>
    %515 = vector.extract_strided_slice %513 {offsets = [0, 0], sizes = [1, 8], strides = [1, 1]} : vector<8x8xf32> to vector<1x8xf32>
    %516 = vector.broadcast %514 : vector<8x1xf32> to vector<8x8xf32>
    %517 = vector.broadcast %515 : vector<1x8xf32> to vector<8x8xf32>
    %518 = arith.mulf %516, %517 : vector<8x8xf32>
    %519 = vector.broadcast %509 : vector<8x1xf32> to vector<8x8xf32>
    %520 = arith.mulf %519, %518 : vector<8x8xf32>
    %521 = arith.addf %508, %520 : vector<8x8xf32>
    %522 = vector.extract_strided_slice %511 {offsets = [0, 0], sizes = [8, 1], strides = [1, 1]} : vector<8x8xf32> to vector<8x1xf32>
    %523 = vector.broadcast %522 : vector<8x1xf32> to vector<8x8xf32>
    %524 = arith.mulf %523, %521 : vector<8x8xf32>
    %cst_103 = arith.constant dense<0.000000e+00> : vector<8xf32>
    %525 = vector.multi_reduction <add>, %524, %cst_103 [0] : vector<8x8xf32> to vector<8xf32>
    %526 = vector.shape_cast %525 : vector<8xf32> to vector<1x8xf32>
    %c0_104 = arith.constant 0 : index
    %c24 = arith.constant 24 : index
    %527 = vector.load %arg37[%c0_104, %c24] : memref<8x32xf32, #tpu.memory_space<vmem>>, vector<1x8xf32>
    tpu.vector_store %arg37[%c0_104, %c24], %526 {strides = array<i32>} : memref<8x32xf32, #tpu.memory_space<vmem>>, vector<1x8xf32>,
    %528 = vector.broadcast %510 : vector<8x1xf32> to vector<8x8xf32>
    %529 = arith.mulf %528, %508 : vector<8x8xf32>
    %530 = arith.addf %529, %518 : vector<8x8xf32>
    %531 = vector.extract_strided_slice %512 {offsets = [0, 1], sizes = [8, 1], strides = [1, 1]} : vector<8x8xf32> to vector<8x1xf32>
    %532 = vector.extract_strided_slice %513 {offsets = [1, 0], sizes = [1, 8], strides = [1, 1]} : vector<8x8xf32> to vector<1x8xf32>
    %533 = vector.broadcast %531 : vector<8x1xf32> to vector<8x8xf32>
    %534 = vector.broadcast %532 : vector<1x8xf32> to vector<8x8xf32>
    %535 = arith.mulf %533, %534 : vector<8x8xf32>
    %536 = vector.broadcast %509 : vector<8x1xf32> to vector<8x8xf32>
    %537 = arith.mulf %536, %535 : vector<8x8xf32>
    %538 = arith.addf %530, %537 : vector<8x8xf32>
    %539 = vector.extract_strided_slice %511 {offsets = [0, 1], sizes = [8, 1], strides = [1, 1]} : vector<8x8xf32> to vector<8x1xf32>
    %540 = vector.broadcast %539 : vector<8x1xf32> to vector<8x8xf32>
    %541 = arith.mulf %540, %538 : vector<8x8xf32>
    %cst_105 = arith.constant dense<0.000000e+00> : vector<8xf32>
    %542 = vector.multi_reduction <add>, %541, %cst_105 [0] : vector<8x8xf32> to vector<8xf32>
    %543 = vector.shape_cast %542 : vector<8xf32> to vector<1x8xf32>
    %c1_106 = arith.constant 1 : index
    %c24_107 = arith.constant 24 : index
    %544 = vector.load %arg37[%c1_106, %c24_107] : memref<8x32xf32, #tpu.memory_space<vmem>>, vector<1x8xf32>
    tpu.vector_store %arg37[%c1_106, %c24_107], %543 {strides = array<i32>} : memref<8x32xf32, #tpu.memory_space<vmem>>, vector<1x8xf32>,
    %545 = vector.broadcast %510 : vector<8x1xf32> to vector<8x8xf32>
    %546 = arith.mulf %545, %530 : vector<8x8xf32>
    %547 = arith.addf %546, %535 : vector<8x8xf32>
    %548 = vector.extract_strided_slice %512 {offsets = [0, 2], sizes = [8, 1], strides = [1, 1]} : vector<8x8xf32> to vector<8x1xf32>
    %549 = vector.extract_strided_slice %513 {offsets = [2, 0], sizes = [1, 8], strides = [1, 1]} : vector<8x8xf32> to vector<1x8xf32>
    %550 = vector.broadcast %548 : vector<8x1xf32> to vector<8x8xf32>
    %551 = vector.broadcast %549 : vector<1x8xf32> to vector<8x8xf32>
    %552 = arith.mulf %550, %551 : vector<8x8xf32>
    %553 = vector.broadcast %509 : vector<8x1xf32> to vector<8x8xf32>
    %554 = arith.mulf %553, %552 : vector<8x8xf32>
    %555 = arith.addf %547, %554 : vector<8x8xf32>
    %556 = vector.extract_strided_slice %511 {offsets = [0, 2], sizes = [8, 1], strides = [1, 1]} : vector<8x8xf32> to vector<8x1xf32>
    %557 = vector.broadcast %556 : vector<8x1xf32> to vector<8x8xf32>
    %558 = arith.mulf %557, %555 : vector<8x8xf32>
    %cst_108 = arith.constant dense<0.000000e+00> : vector<8xf32>
    %559 = vector.multi_reduction <add>, %558, %cst_108 [0] : vector<8x8xf32> to vector<8xf32>
    %560 = vector.shape_cast %559 : vector<8xf32> to vector<1x8xf32>
    %c2_109 = arith.constant 2 : index
    %c24_110 = arith.constant 24 : index
    %561 = vector.load %arg37[%c2_109, %c24_110] : memref<8x32xf32, #tpu.memory_space<vmem>>, vector<1x8xf32>
    tpu.vector_store %arg37[%c2_109, %c24_110], %560 {strides = array<i32>} : memref<8x32xf32, #tpu.memory_space<vmem>>, vector<1x8xf32>,
    %562 = vector.broadcast %510 : vector<8x1xf32> to vector<8x8xf32>
    %563 = arith.mulf %562, %547 : vector<8x8xf32>
    %564 = arith.addf %563, %552 : vector<8x8xf32>
    %565 = vector.extract_strided_slice %512 {offsets = [0, 3], sizes = [8, 1], strides = [1, 1]} : vector<8x8xf32> to vector<8x1xf32>
    %566 = vector.extract_strided_slice %513 {offsets = [3, 0], sizes = [1, 8], strides = [1, 1]} : vector<8x8xf32> to vector<1x8xf32>
    %567 = vector.broadcast %565 : vector<8x1xf32> to vector<8x8xf32>
    %568 = vector.broadcast %566 : vector<1x8xf32> to vector<8x8xf32>
    %569 = arith.mulf %567, %568 : vector<8x8xf32>
    %570 = vector.broadcast %509 : vector<8x1xf32> to vector<8x8xf32>
    %571 = arith.mulf %570, %569 : vector<8x8xf32>
    %572 = arith.addf %564, %571 : vector<8x8xf32>
    %573 = vector.extract_strided_slice %511 {offsets = [0, 3], sizes = [8, 1], strides = [1, 1]} : vector<8x8xf32> to vector<8x1xf32>
    %574 = vector.broadcast %573 : vector<8x1xf32> to vector<8x8xf32>
    %575 = arith.mulf %574, %572 : vector<8x8xf32>
    %cst_111 = arith.constant dense<0.000000e+00> : vector<8xf32>
    %576 = vector.multi_reduction <add>, %575, %cst_111 [0] : vector<8x8xf32> to vector<8xf32>
    %577 = vector.shape_cast %576 : vector<8xf32> to vector<1x8xf32>
    %c3_112 = arith.constant 3 : index
    %c24_113 = arith.constant 24 : index
    %578 = vector.load %arg37[%c3_112, %c24_113] : memref<8x32xf32, #tpu.memory_space<vmem>>, vector<1x8xf32>
    tpu.vector_store %arg37[%c3_112, %c24_113], %577 {strides = array<i32>} : memref<8x32xf32, #tpu.memory_space<vmem>>, vector<1x8xf32>,
    %579 = vector.broadcast %510 : vector<8x1xf32> to vector<8x8xf32>
    %580 = arith.mulf %579, %564 : vector<8x8xf32>
    %581 = arith.addf %580, %569 : vector<8x8xf32>
    %582 = vector.extract_strided_slice %512 {offsets = [0, 4], sizes = [8, 1], strides = [1, 1]} : vector<8x8xf32> to vector<8x1xf32>
    %583 = vector.extract_strided_slice %513 {offsets = [4, 0], sizes = [1, 8], strides = [1, 1]} : vector<8x8xf32> to vector<1x8xf32>
    %584 = vector.broadcast %582 : vector<8x1xf32> to vector<8x8xf32>
    %585 = vector.broadcast %583 : vector<1x8xf32> to vector<8x8xf32>
    %586 = arith.mulf %584, %585 : vector<8x8xf32>
    %587 = vector.broadcast %509 : vector<8x1xf32> to vector<8x8xf32>
    %588 = arith.mulf %587, %586 : vector<8x8xf32>
    %589 = arith.addf %581, %588 : vector<8x8xf32>
    %590 = vector.extract_strided_slice %511 {offsets = [0, 4], sizes = [8, 1], strides = [1, 1]} : vector<8x8xf32> to vector<8x1xf32>
    %591 = vector.broadcast %590 : vector<8x1xf32> to vector<8x8xf32>
    %592 = arith.mulf %591, %589 : vector<8x8xf32>
    %cst_114 = arith.constant dense<0.000000e+00> : vector<8xf32>
    %593 = vector.multi_reduction <add>, %592, %cst_114 [0] : vector<8x8xf32> to vector<8xf32>
    %594 = vector.shape_cast %593 : vector<8xf32> to vector<1x8xf32>
    %c4_115 = arith.constant 4 : index
    %c24_116 = arith.constant 24 : index
    %595 = vector.load %arg37[%c4_115, %c24_116] : memref<8x32xf32, #tpu.memory_space<vmem>>, vector<1x8xf32>
    tpu.vector_store %arg37[%c4_115, %c24_116], %594 {strides = array<i32>} : memref<8x32xf32, #tpu.memory_space<vmem>>, vector<1x8xf32>,
    %596 = vector.broadcast %510 : vector<8x1xf32> to vector<8x8xf32>
    %597 = arith.mulf %596, %581 : vector<8x8xf32>
    %598 = arith.addf %597, %586 : vector<8x8xf32>
    %599 = vector.extract_strided_slice %512 {offsets = [0, 5], sizes = [8, 1], strides = [1, 1]} : vector<8x8xf32> to vector<8x1xf32>
    %600 = vector.extract_strided_slice %513 {offsets = [5, 0], sizes = [1, 8], strides = [1, 1]} : vector<8x8xf32> to vector<1x8xf32>
    %601 = vector.broadcast %599 : vector<8x1xf32> to vector<8x8xf32>
    %602 = vector.broadcast %600 : vector<1x8xf32> to vector<8x8xf32>
    %603 = arith.mulf %601, %602 : vector<8x8xf32>
    %604 = vector.broadcast %509 : vector<8x1xf32> to vector<8x8xf32>
    %605 = arith.mulf %604, %603 : vector<8x8xf32>
    %606 = arith.addf %598, %605 : vector<8x8xf32>
    %607 = vector.extract_strided_slice %511 {offsets = [0, 5], sizes = [8, 1], strides = [1, 1]} : vector<8x8xf32> to vector<8x1xf32>
    %608 = vector.broadcast %607 : vector<8x1xf32> to vector<8x8xf32>
    %609 = arith.mulf %608, %606 : vector<8x8xf32>
    %cst_117 = arith.constant dense<0.000000e+00> : vector<8xf32>
    %610 = vector.multi_reduction <add>, %609, %cst_117 [0] : vector<8x8xf32> to vector<8xf32>
    %611 = vector.shape_cast %610 : vector<8xf32> to vector<1x8xf32>
    %c5_118 = arith.constant 5 : index
    %c24_119 = arith.constant 24 : index
    %612 = vector.load %arg37[%c5_118, %c24_119] : memref<8x32xf32, #tpu.memory_space<vmem>>, vector<1x8xf32>
    tpu.vector_store %arg37[%c5_118, %c24_119], %611 {strides = array<i32>} : memref<8x32xf32, #tpu.memory_space<vmem>>, vector<1x8xf32>,
    %613 = vector.broadcast %510 : vector<8x1xf32> to vector<8x8xf32>
    %614 = arith.mulf %613, %598 : vector<8x8xf32>
    %615 = arith.addf %614, %603 : vector<8x8xf32>
    %616 = vector.extract_strided_slice %512 {offsets = [0, 6], sizes = [8, 1], strides = [1, 1]} : vector<8x8xf32> to vector<8x1xf32>
    %617 = vector.extract_strided_slice %513 {offsets = [6, 0], sizes = [1, 8], strides = [1, 1]} : vector<8x8xf32> to vector<1x8xf32>
    %618 = vector.broadcast %616 : vector<8x1xf32> to vector<8x8xf32>
    %619 = vector.broadcast %617 : vector<1x8xf32> to vector<8x8xf32>
    %620 = arith.mulf %618, %619 : vector<8x8xf32>
    %621 = vector.broadcast %509 : vector<8x1xf32> to vector<8x8xf32>
    %622 = arith.mulf %621, %620 : vector<8x8xf32>
    %623 = arith.addf %615, %622 : vector<8x8xf32>
    %624 = vector.extract_strided_slice %511 {offsets = [0, 6], sizes = [8, 1], strides = [1, 1]} : vector<8x8xf32> to vector<8x1xf32>
    %625 = vector.broadcast %624 : vector<8x1xf32> to vector<8x8xf32>
    %626 = arith.mulf %625, %623 : vector<8x8xf32>
    %cst_120 = arith.constant dense<0.000000e+00> : vector<8xf32>
    %627 = vector.multi_reduction <add>, %626, %cst_120 [0] : vector<8x8xf32> to vector<8xf32>
    %628 = vector.shape_cast %627 : vector<8xf32> to vector<1x8xf32>
    %c6_121 = arith.constant 6 : index
    %c24_122 = arith.constant 24 : index
    %629 = vector.load %arg37[%c6_121, %c24_122] : memref<8x32xf32, #tpu.memory_space<vmem>>, vector<1x8xf32>
    tpu.vector_store %arg37[%c6_121, %c24_122], %628 {strides = array<i32>} : memref<8x32xf32, #tpu.memory_space<vmem>>, vector<1x8xf32>,
    %630 = vector.broadcast %510 : vector<8x1xf32> to vector<8x8xf32>
    %631 = arith.mulf %630, %615 : vector<8x8xf32>
    %632 = arith.addf %631, %620 : vector<8x8xf32>
    %633 = vector.extract_strided_slice %512 {offsets = [0, 7], sizes = [8, 1], strides = [1, 1]} : vector<8x8xf32> to vector<8x1xf32>
    %634 = vector.extract_strided_slice %513 {offsets = [7, 0], sizes = [1, 8], strides = [1, 1]} : vector<8x8xf32> to vector<1x8xf32>
    %635 = vector.broadcast %633 : vector<8x1xf32> to vector<8x8xf32>
    %636 = vector.broadcast %634 : vector<1x8xf32> to vector<8x8xf32>
    %637 = arith.mulf %635, %636 : vector<8x8xf32>
    %638 = vector.broadcast %509 : vector<8x1xf32> to vector<8x8xf32>
    %639 = arith.mulf %638, %637 : vector<8x8xf32>
    %640 = arith.addf %632, %639 : vector<8x8xf32>
    %641 = vector.extract_strided_slice %511 {offsets = [0, 7], sizes = [8, 1], strides = [1, 1]} : vector<8x8xf32> to vector<8x1xf32>
    %642 = vector.broadcast %641 : vector<8x1xf32> to vector<8x8xf32>
    %643 = arith.mulf %642, %640 : vector<8x8xf32>
    %cst_123 = arith.constant dense<0.000000e+00> : vector<8xf32>
    %644 = vector.multi_reduction <add>, %643, %cst_123 [0] : vector<8x8xf32> to vector<8xf32>
    %645 = vector.shape_cast %644 : vector<8xf32> to vector<1x8xf32>
    %c7_124 = arith.constant 7 : index
    %c24_125 = arith.constant 24 : index
    %646 = vector.load %arg37[%c7_124, %c24_125] : memref<8x32xf32, #tpu.memory_space<vmem>>, vector<1x8xf32>
    tpu.vector_store %arg37[%c7_124, %c24_125], %645 {strides = array<i32>} : memref<8x32xf32, #tpu.memory_space<vmem>>, vector<1x8xf32>,
    %647 = vector.broadcast %510 : vector<8x1xf32> to vector<8x8xf32>
    %648 = arith.mulf %647, %632 : vector<8x8xf32>
    %649 = arith.addf %648, %637 : vector<8x8xf32>
    %c24_126 = arith.constant 24 : index
    %c0_127 = arith.constant 0 : index
    %650 = vector.load %arg36[%c24_126, %c0_127] : memref<32x8xf32, #tpu.memory_space<vmem>>, vector<8x8xf32>
    tpu.vector_store %arg36[%c24_126, %c0_127], %649 {strides = array<i32>} : memref<32x8xf32, #tpu.memory_space<vmem>>, vector<8x8xf32>,
    %c0_128 = arith.constant 0 : index
    %c0_129 = arith.constant 0 : index
    %651 = vector.load %arg37[%c0_128, %c0_129] : memref<8x32xf32, #tpu.memory_space<vmem>>, vector<8x32xf32>
    %cst_130 = arith.constant 1.250000e-01 : f32
    %652 = vector.broadcast %cst_130 : f32 to vector<8x32xf32>
    %653 = arith.mulf %651, %652 : vector<8x32xf32>
    %c0_131 = arith.constant 0 : index
    %c0_132 = arith.constant 0 : index
    %654 = vector.load %arg4[%c0_131, %c0_132] : memref<32x32xf32, #tpu.memory_space<vmem>>, vector<32x32xf32>
    %cst_133 = arith.constant dense<0.000000e+00> : vector<8x32xf32>
    %655 = tpu.matmul %653, %654, %cst_133 {dimension_numbers = #tpu.dot_dimension_numbers<[1], [0], [0], [1], [0, 0, 1, 1], [], []>} : vector<8x32xf32>, vector<32x32xf32>, vector<8x32xf32> -> vector<8x32xf32>
    %656 = arith.mulf %653, %653 : vector<8x32xf32>
    %c0_134 = arith.constant 0 : index
    %c0_135 = arith.constant 0 : index
    %657 = vector.load %arg4[%c0_134, %c0_135] : memref<32x32xf32, #tpu.memory_space<vmem>>, vector<32x32xf32>
    %cst_136 = arith.constant dense<0.000000e+00> : vector<8x32xf32>
    %658 = tpu.matmul %656, %657, %cst_136 {dimension_numbers = #tpu.dot_dimension_numbers<[1], [0], [0], [1], [0, 0, 1, 1], [], []>} : vector<8x32xf32>, vector<32x32xf32>, vector<8x32xf32> -> vector<8x32xf32>
    %659 = arith.mulf %655, %655 : vector<8x32xf32>
    %660 = arith.subf %658, %659 : vector<8x32xf32>
    %cst_137 = arith.constant 0.000000e+00 : f32
    %661 = vector.broadcast %cst_137 : f32 to vector<8x32xf32>
    %662 = arith.maximumf %660, %661 : vector<8x32xf32>
    %663 = arith.subf %653, %655 : vector<8x32xf32>
    %cst_138 = arith.constant 9.99999974E-6 : f32
    %664 = vector.broadcast %cst_138 : f32 to vector<8x32xf32>
    %665 = arith.addf %662, %664 : vector<8x32xf32>
    %666 = math.rsqrt %665 : vector<8x32xf32>
    %667 = arith.mulf %663, %666 : vector<8x32xf32>
    %c0_139 = arith.constant 0 : index
    %c0_140 = arith.constant 0 : index
    %668 = vector.load %arg15[%c0_139, %c0_140] : memref<1x32xf32, #tpu.memory_space<vmem>>, vector<1x32xf32>
    %669 = vector.broadcast %668 : vector<1x32xf32> to vector<8x32xf32>
    %670 = arith.mulf %667, %669 : vector<8x32xf32>
    %c0_141 = arith.constant 0 : index
    %c0_142 = arith.constant 0 : index
    %671 = vector.load %arg16[%c0_141, %c0_142] : memref<1x32xf32, #tpu.memory_space<vmem>>, vector<1x32xf32>
    %672 = vector.broadcast %671 : vector<1x32xf32> to vector<8x32xf32>
    %673 = arith.addf %670, %672 : vector<8x32xf32>
    %674 = arith.mulf %673, %73 : vector<8x32xf32>
    %c0_143 = arith.constant 0 : index
    %c0_144 = arith.constant 0 : index
    %675 = vector.load %arg17[%c0_143, %c0_144] : memref<32x32xf32, #tpu.memory_space<vmem>>, vector<32x32xf32>
    %cst_145 = arith.constant dense<0.000000e+00> : vector<8x32xf32>
    %676 = tpu.matmul %674, %675, %cst_145 {dimension_numbers = #tpu.dot_dimension_numbers<[1], [0], [0], [1], [0, 0, 1, 1], [], []>} : vector<8x32xf32>, vector<32x32xf32>, vector<8x32xf32> -> vector<8x32xf32>
    %677 = arith.addf %37, %676 : vector<8x32xf32>
    %c0_146 = arith.constant 0 : index
    %c0_147 = arith.constant 0 : index
    %678 = vector.load %arg18[%c0_146, %c0_147] : memref<1x32xf32, #tpu.memory_space<vmem>>, vector<1x32xf32>
    %c0_148 = arith.constant 0 : index
    %c0_149 = arith.constant 0 : index
    %679 = vector.load %arg19[%c0_148, %c0_149] : memref<1x32xf32, #tpu.memory_space<vmem>>, vector<1x32xf32>
    %cst_150 = arith.constant dense<0.000000e+00> : vector<8xf32>
    %680 = vector.multi_reduction <add>, %677, %cst_150 [1] : vector<8x32xf32> to vector<8xf32>
    %681 = vector.shape_cast %680 : vector<8xf32> to vector<8x1xf32>
    %cst_151 = arith.constant 3.200000e+01 : f32
    %682 = vector.broadcast %cst_151 : f32 to vector<8x1xf32>
    %683 = arith.divf %681, %682 : vector<8x1xf32>
    %684 = vector.broadcast %683 : vector<8x1xf32> to vector<8x32xf32>
    %685 = arith.subf %677, %684 : vector<8x32xf32>
    %686 = arith.mulf %685, %685 : vector<8x32xf32>
    %cst_152 = arith.constant dense<0.000000e+00> : vector<8xf32>
    %687 = vector.multi_reduction <add>, %686, %cst_152 [1] : vector<8x32xf32> to vector<8xf32>
    %688 = vector.shape_cast %687 : vector<8xf32> to vector<8x1xf32>
    %cst_153 = arith.constant 3.200000e+01 : f32
    %689 = vector.broadcast %cst_153 : f32 to vector<8x1xf32>
    %690 = arith.divf %688, %689 : vector<8x1xf32>
    %cst_154 = arith.constant 9.99999974E-6 : f32
    %691 = vector.broadcast %cst_154 : f32 to vector<8x1xf32>
    %692 = arith.addf %690, %691 : vector<8x1xf32>
    %693 = math.rsqrt %692 : vector<8x1xf32>
    %694 = vector.broadcast %693 : vector<8x1xf32> to vector<8x32xf32>
    %695 = arith.mulf %685, %694 : vector<8x32xf32>
    %696 = vector.broadcast %678 : vector<1x32xf32> to vector<8x32xf32>
    %697 = arith.mulf %695, %696 : vector<8x32xf32>
    %698 = vector.broadcast %679 : vector<1x32xf32> to vector<8x32xf32>
    %699 = arith.addf %697, %698 : vector<8x32xf32>
    %cst_155 = arith.constant dense<0.000000e+00> : vector<8x32xf32>
    %700 = tpu.matmul %7, %699, %cst_155 {dimension_numbers = #tpu.dot_dimension_numbers<[1], [0], [0], [1], [0, 0, 1, 1], [], []>} : vector<8x8xf32>, vector<8x32xf32>, vector<8x32xf32> -> vector<8x32xf32>
    %701 = tpu.concatenate %699, %700 in 1 : vector<8x32xf32>, vector<8x32xf32> -> vector<8x64xf32>
    %c0_156 = arith.constant 0 : index
    %c0_157 = arith.constant 0 : index
    %702 = vector.load %arg20[%c0_156, %c0_157] : memref<64x128xf32, #tpu.memory_space<vmem>>, vector<64x128xf32>
    %cst_158 = arith.constant dense<0.000000e+00> : vector<8x128xf32>
    %703 = tpu.matmul %701, %702, %cst_158 {dimension_numbers = #tpu.dot_dimension_numbers<[1], [0], [0], [1], [0, 0, 1, 1], [], []>} : vector<8x64xf32>, vector<64x128xf32>, vector<8x128xf32> -> vector<8x128xf32>
    %704 = vector.extract_strided_slice %703 {offsets = [0, 0], sizes = [8, 96], strides = [1, 1]} : vector<8x128xf32> to vector<8x96xf32>
    %cst_159 = arith.constant 0.000000e+00 : f32
    %705 = vector.broadcast %cst_159 : f32 to vector<8x96xf32>
    %706 = arith.maximumf %704, %705 : vector<8x96xf32>
    %707 = arith.mulf %706, %706 : vector<8x96xf32>
    %708 = vector.extract_strided_slice %703 {offsets = [0, 96], sizes = [8, 32], strides = [1, 1]} : vector<8x128xf32> to vector<8x32xf32>
    %c0_160 = arith.constant 0 : index
    %c0_161 = arith.constant 0 : index
    %709 = vector.load %arg21[%c0_160, %c0_161] : memref<96x32xf32, #tpu.memory_space<vmem>>, vector<96x32xf32>
    %cst_162 = arith.constant dense<0.000000e+00> : vector<8x32xf32>
    %710 = tpu.matmul %707, %709, %cst_162 {dimension_numbers = #tpu.dot_dimension_numbers<[1], [0], [0], [1], [0, 0, 1, 1], [], []>} : vector<8x96xf32>, vector<96x32xf32>, vector<8x32xf32> -> vector<8x32xf32>
    %711 = arith.negf %708 : vector<8x32xf32>
    %712 = math.exp %711 : vector<8x32xf32>
    %cst_163 = arith.constant 1.000000e+00 : f32
    %713 = vector.broadcast %cst_163 : f32 to vector<8x32xf32>
    %714 = arith.addf %713, %712 : vector<8x32xf32>
    %715 = arith.divf %713, %714 : vector<8x32xf32>
    %716 = arith.mulf %715, %710 : vector<8x32xf32>
    %717 = arith.addf %677, %716 : vector<8x32xf32>
    %c0_164 = arith.constant 0 : index
    %c0_165 = arith.constant 0 : index
    %718 = vector.load %arg22[%c0_164, %c0_165] : memref<1x32xf32, #tpu.memory_space<vmem>>, vector<1x32xf32>
    %c0_166 = arith.constant 0 : index
    %c0_167 = arith.constant 0 : index
    %719 = vector.load %arg23[%c0_166, %c0_167] : memref<1x32xf32, #tpu.memory_space<vmem>>, vector<1x32xf32>
    %cst_168 = arith.constant dense<0.000000e+00> : vector<8xf32>
    %720 = vector.multi_reduction <add>, %717, %cst_168 [1] : vector<8x32xf32> to vector<8xf32>
    %721 = vector.shape_cast %720 : vector<8xf32> to vector<8x1xf32>
    %cst_169 = arith.constant 3.200000e+01 : f32
    %722 = vector.broadcast %cst_169 : f32 to vector<8x1xf32>
    %723 = arith.divf %721, %722 : vector<8x1xf32>
    %724 = vector.broadcast %723 : vector<8x1xf32> to vector<8x32xf32>
    %725 = arith.subf %717, %724 : vector<8x32xf32>
    %726 = arith.mulf %725, %725 : vector<8x32xf32>
    %cst_170 = arith.constant dense<0.000000e+00> : vector<8xf32>
    %727 = vector.multi_reduction <add>, %726, %cst_170 [1] : vector<8x32xf32> to vector<8xf32>
    %728 = vector.shape_cast %727 : vector<8xf32> to vector<8x1xf32>
    %cst_171 = arith.constant 3.200000e+01 : f32
    %729 = vector.broadcast %cst_171 : f32 to vector<8x1xf32>
    %730 = arith.divf %728, %729 : vector<8x1xf32>
    %cst_172 = arith.constant 9.99999974E-6 : f32
    %731 = vector.broadcast %cst_172 : f32 to vector<8x1xf32>
    %732 = arith.addf %730, %731 : vector<8x1xf32>
    %733 = math.rsqrt %732 : vector<8x1xf32>
    %734 = vector.broadcast %733 : vector<8x1xf32> to vector<8x32xf32>
    %735 = arith.mulf %725, %734 : vector<8x32xf32>
    %736 = vector.broadcast %718 : vector<1x32xf32> to vector<8x32xf32>
    %737 = arith.mulf %735, %736 : vector<8x32xf32>
    %738 = vector.broadcast %719 : vector<1x32xf32> to vector<8x32xf32>
    %739 = arith.addf %737, %738 : vector<8x32xf32>
    %cst_173 = arith.constant dense<0.000000e+00> : vector<8x32xf32>
    %740 = tpu.matmul %7, %739, %cst_173 {dimension_numbers = #tpu.dot_dimension_numbers<[1], [0], [0], [1], [0, 0, 1, 1], [], []>} : vector<8x8xf32>, vector<8x32xf32>, vector<8x32xf32> -> vector<8x32xf32>
    %741 = tpu.concatenate %739, %740 in 1 : vector<8x32xf32>, vector<8x32xf32> -> vector<8x64xf32>
    %c0_174 = arith.constant 0 : index
    %c0_175 = arith.constant 0 : index
    %742 = vector.load %arg24[%c0_174, %c0_175] : memref<64x128xf32, #tpu.memory_space<vmem>>, vector<64x128xf32>
    %cst_176 = arith.constant dense<0.000000e+00> : vector<8x128xf32>
    %743 = tpu.matmul %741, %742, %cst_176 {dimension_numbers = #tpu.dot_dimension_numbers<[1], [0], [0], [1], [0, 0, 1, 1], [], []>} : vector<8x64xf32>, vector<64x128xf32>, vector<8x128xf32> -> vector<8x128xf32>
    %744 = vector.extract_strided_slice %743 {offsets = [0, 0], sizes = [8, 32], strides = [1, 1]} : vector<8x128xf32> to vector<8x32xf32>
    %745 = vector.extract_strided_slice %743 {offsets = [0, 32], sizes = [8, 32], strides = [1, 1]} : vector<8x128xf32> to vector<8x32xf32>
    %746 = vector.extract_strided_slice %743 {offsets = [0, 64], sizes = [8, 32], strides = [1, 1]} : vector<8x128xf32> to vector<8x32xf32>
    %747 = vector.extract_strided_slice %743 {offsets = [0, 96], sizes = [8, 32], strides = [1, 1]} : vector<8x128xf32> to vector<8x32xf32>
    %748 = arith.negf %747 : vector<8x32xf32>
    %749 = math.exp %748 : vector<8x32xf32>
    %cst_177 = arith.constant 1.000000e+00 : f32
    %750 = vector.broadcast %cst_177 : f32 to vector<8x32xf32>
    %751 = arith.addf %750, %749 : vector<8x32xf32>
    %752 = arith.divf %750, %751 : vector<8x32xf32>
    %753 = arith.mulf %747, %752 : vector<8x32xf32>
    %754 = tpu.transpose %744, [1, 0] : vector<8x32xf32> -> vector<32x8xf32>
    %755 = tpu.transpose %745, [1, 0] : vector<8x32xf32> -> vector<32x8xf32>
    %c0_178 = arith.constant 0 : index
    %c0_179 = arith.constant 0 : index
    %756 = vector.load %arg25[%c0_178, %c0_179] : memref<8x4xf32, #tpu.memory_space<vmem>>, vector<8x4xf32>
    %c0_180 = arith.constant 0 : index
    %c0_181 = arith.constant 0 : index
    %757 = vector.load %arg26[%c0_180, %c0_181] : memref<8x4xf32, #tpu.memory_space<vmem>>, vector<8x4xf32>
    %c0_182 = arith.constant 0 : index
    %c0_183 = arith.constant 0 : index
    %758 = vector.load %arg36[%c0_182, %c0_183] : memref<32x8xf32, #tpu.memory_space<vmem>>, vector<32x8xf32>
    %759 = vector.extract_strided_slice %758 {offsets = [0, 0], sizes = [8, 8], strides = [1, 1]} : vector<32x8xf32> to vector<8x8xf32>
    %760 = vector.extract_strided_slice %756 {offsets = [0, 0], sizes = [8, 1], strides = [1, 1]} : vector<8x4xf32> to vector<8x1xf32>
    %761 = vector.extract_strided_slice %757 {offsets = [0, 0], sizes = [8, 1], strides = [1, 1]} : vector<8x4xf32> to vector<8x1xf32>
    %762 = vector.extract_strided_slice %754 {offsets = [0, 0], sizes = [8, 8], strides = [1, 1]} : vector<32x8xf32> to vector<8x8xf32>
    %763 = vector.extract_strided_slice %755 {offsets = [0, 0], sizes = [8, 8], strides = [1, 1]} : vector<32x8xf32> to vector<8x8xf32>
    %764 = vector.extract_strided_slice %746 {offsets = [0, 0], sizes = [8, 8], strides = [1, 1]} : vector<8x32xf32> to vector<8x8xf32>
    %765 = vector.extract_strided_slice %763 {offsets = [0, 0], sizes = [8, 1], strides = [1, 1]} : vector<8x8xf32> to vector<8x1xf32>
    %766 = vector.extract_strided_slice %764 {offsets = [0, 0], sizes = [1, 8], strides = [1, 1]} : vector<8x8xf32> to vector<1x8xf32>
    %767 = vector.broadcast %765 : vector<8x1xf32> to vector<8x8xf32>
    %768 = vector.broadcast %766 : vector<1x8xf32> to vector<8x8xf32>
    %769 = arith.mulf %767, %768 : vector<8x8xf32>
    %770 = vector.broadcast %760 : vector<8x1xf32> to vector<8x8xf32>
    %771 = arith.mulf %770, %769 : vector<8x8xf32>
    %772 = arith.addf %759, %771 : vector<8x8xf32>
    %773 = vector.extract_strided_slice %762 {offsets = [0, 0], sizes = [8, 1], strides = [1, 1]} : vector<8x8xf32> to vector<8x1xf32>
    %774 = vector.broadcast %773 : vector<8x1xf32> to vector<8x8xf32>
    %775 = arith.mulf %774, %772 : vector<8x8xf32>
    %cst_184 = arith.constant dense<0.000000e+00> : vector<8xf32>
    %776 = vector.multi_reduction <add>, %775, %cst_184 [0] : vector<8x8xf32> to vector<8xf32>
    %777 = vector.shape_cast %776 : vector<8xf32> to vector<1x8xf32>
    %c0_185 = arith.constant 0 : index
    %c0_186 = arith.constant 0 : index
    %778 = vector.load %arg37[%c0_185, %c0_186] : memref<8x32xf32, #tpu.memory_space<vmem>>, vector<1x8xf32>
    tpu.vector_store %arg37[%c0_185, %c0_186], %777 {strides = array<i32>} : memref<8x32xf32, #tpu.memory_space<vmem>>, vector<1x8xf32>,
    %779 = vector.broadcast %761 : vector<8x1xf32> to vector<8x8xf32>
    %780 = arith.mulf %779, %759 : vector<8x8xf32>
    %781 = arith.addf %780, %769 : vector<8x8xf32>
    %782 = vector.extract_strided_slice %763 {offsets = [0, 1], sizes = [8, 1], strides = [1, 1]} : vector<8x8xf32> to vector<8x1xf32>
    %783 = vector.extract_strided_slice %764 {offsets = [1, 0], sizes = [1, 8], strides = [1, 1]} : vector<8x8xf32> to vector<1x8xf32>
    %784 = vector.broadcast %782 : vector<8x1xf32> to vector<8x8xf32>
    %785 = vector.broadcast %783 : vector<1x8xf32> to vector<8x8xf32>
    %786 = arith.mulf %784, %785 : vector<8x8xf32>
    %787 = vector.broadcast %760 : vector<8x1xf32> to vector<8x8xf32>
    %788 = arith.mulf %787, %786 : vector<8x8xf32>
    %789 = arith.addf %781, %788 : vector<8x8xf32>
    %790 = vector.extract_strided_slice %762 {offsets = [0, 1], sizes = [8, 1], strides = [1, 1]} : vector<8x8xf32> to vector<8x1xf32>
    %791 = vector.broadcast %790 : vector<8x1xf32> to vector<8x8xf32>
    %792 = arith.mulf %791, %789 : vector<8x8xf32>
    %cst_187 = arith.constant dense<0.000000e+00> : vector<8xf32>
    %793 = vector.multi_reduction <add>, %792, %cst_187 [0] : vector<8x8xf32> to vector<8xf32>
    %794 = vector.shape_cast %793 : vector<8xf32> to vector<1x8xf32>
    %c1_188 = arith.constant 1 : index
    %c0_189 = arith.constant 0 : index
    %795 = vector.load %arg37[%c1_188, %c0_189] : memref<8x32xf32, #tpu.memory_space<vmem>>, vector<1x8xf32>
    tpu.vector_store %arg37[%c1_188, %c0_189], %794 {strides = array<i32>} : memref<8x32xf32, #tpu.memory_space<vmem>>, vector<1x8xf32>,
    %796 = vector.broadcast %761 : vector<8x1xf32> to vector<8x8xf32>
    %797 = arith.mulf %796, %781 : vector<8x8xf32>
    %798 = arith.addf %797, %786 : vector<8x8xf32>
    %799 = vector.extract_strided_slice %763 {offsets = [0, 2], sizes = [8, 1], strides = [1, 1]} : vector<8x8xf32> to vector<8x1xf32>
    %800 = vector.extract_strided_slice %764 {offsets = [2, 0], sizes = [1, 8], strides = [1, 1]} : vector<8x8xf32> to vector<1x8xf32>
    %801 = vector.broadcast %799 : vector<8x1xf32> to vector<8x8xf32>
    %802 = vector.broadcast %800 : vector<1x8xf32> to vector<8x8xf32>
    %803 = arith.mulf %801, %802 : vector<8x8xf32>
    %804 = vector.broadcast %760 : vector<8x1xf32> to vector<8x8xf32>
    %805 = arith.mulf %804, %803 : vector<8x8xf32>
    %806 = arith.addf %798, %805 : vector<8x8xf32>
    %807 = vector.extract_strided_slice %762 {offsets = [0, 2], sizes = [8, 1], strides = [1, 1]} : vector<8x8xf32> to vector<8x1xf32>
    %808 = vector.broadcast %807 : vector<8x1xf32> to vector<8x8xf32>
    %809 = arith.mulf %808, %806 : vector<8x8xf32>
    %cst_190 = arith.constant dense<0.000000e+00> : vector<8xf32>
    %810 = vector.multi_reduction <add>, %809, %cst_190 [0] : vector<8x8xf32> to vector<8xf32>
    %811 = vector.shape_cast %810 : vector<8xf32> to vector<1x8xf32>
    %c2_191 = arith.constant 2 : index
    %c0_192 = arith.constant 0 : index
    %812 = vector.load %arg37[%c2_191, %c0_192] : memref<8x32xf32, #tpu.memory_space<vmem>>, vector<1x8xf32>
    tpu.vector_store %arg37[%c2_191, %c0_192], %811 {strides = array<i32>} : memref<8x32xf32, #tpu.memory_space<vmem>>, vector<1x8xf32>,
    %813 = vector.broadcast %761 : vector<8x1xf32> to vector<8x8xf32>
    %814 = arith.mulf %813, %798 : vector<8x8xf32>
    %815 = arith.addf %814, %803 : vector<8x8xf32>
    %816 = vector.extract_strided_slice %763 {offsets = [0, 3], sizes = [8, 1], strides = [1, 1]} : vector<8x8xf32> to vector<8x1xf32>
    %817 = vector.extract_strided_slice %764 {offsets = [3, 0], sizes = [1, 8], strides = [1, 1]} : vector<8x8xf32> to vector<1x8xf32>
    %818 = vector.broadcast %816 : vector<8x1xf32> to vector<8x8xf32>
    %819 = vector.broadcast %817 : vector<1x8xf32> to vector<8x8xf32>
    %820 = arith.mulf %818, %819 : vector<8x8xf32>
    %821 = vector.broadcast %760 : vector<8x1xf32> to vector<8x8xf32>
    %822 = arith.mulf %821, %820 : vector<8x8xf32>
    %823 = arith.addf %815, %822 : vector<8x8xf32>
    %824 = vector.extract_strided_slice %762 {offsets = [0, 3], sizes = [8, 1], strides = [1, 1]} : vector<8x8xf32> to vector<8x1xf32>
    %825 = vector.broadcast %824 : vector<8x1xf32> to vector<8x8xf32>
    %826 = arith.mulf %825, %823 : vector<8x8xf32>
    %cst_193 = arith.constant dense<0.000000e+00> : vector<8xf32>
    %827 = vector.multi_reduction <add>, %826, %cst_193 [0] : vector<8x8xf32> to vector<8xf32>
    %828 = vector.shape_cast %827 : vector<8xf32> to vector<1x8xf32>
    %c3_194 = arith.constant 3 : index
    %c0_195 = arith.constant 0 : index
    %829 = vector.load %arg37[%c3_194, %c0_195] : memref<8x32xf32, #tpu.memory_space<vmem>>, vector<1x8xf32>
    tpu.vector_store %arg37[%c3_194, %c0_195], %828 {strides = array<i32>} : memref<8x32xf32, #tpu.memory_space<vmem>>, vector<1x8xf32>,
    %830 = vector.broadcast %761 : vector<8x1xf32> to vector<8x8xf32>
    %831 = arith.mulf %830, %815 : vector<8x8xf32>
    %832 = arith.addf %831, %820 : vector<8x8xf32>
    %833 = vector.extract_strided_slice %763 {offsets = [0, 4], sizes = [8, 1], strides = [1, 1]} : vector<8x8xf32> to vector<8x1xf32>
    %834 = vector.extract_strided_slice %764 {offsets = [4, 0], sizes = [1, 8], strides = [1, 1]} : vector<8x8xf32> to vector<1x8xf32>
    %835 = vector.broadcast %833 : vector<8x1xf32> to vector<8x8xf32>
    %836 = vector.broadcast %834 : vector<1x8xf32> to vector<8x8xf32>
    %837 = arith.mulf %835, %836 : vector<8x8xf32>
    %838 = vector.broadcast %760 : vector<8x1xf32> to vector<8x8xf32>
    %839 = arith.mulf %838, %837 : vector<8x8xf32>
    %840 = arith.addf %832, %839 : vector<8x8xf32>
    %841 = vector.extract_strided_slice %762 {offsets = [0, 4], sizes = [8, 1], strides = [1, 1]} : vector<8x8xf32> to vector<8x1xf32>
    %842 = vector.broadcast %841 : vector<8x1xf32> to vector<8x8xf32>
    %843 = arith.mulf %842, %840 : vector<8x8xf32>
    %cst_196 = arith.constant dense<0.000000e+00> : vector<8xf32>
    %844 = vector.multi_reduction <add>, %843, %cst_196 [0] : vector<8x8xf32> to vector<8xf32>
    %845 = vector.shape_cast %844 : vector<8xf32> to vector<1x8xf32>
    %c4_197 = arith.constant 4 : index
    %c0_198 = arith.constant 0 : index
    %846 = vector.load %arg37[%c4_197, %c0_198] : memref<8x32xf32, #tpu.memory_space<vmem>>, vector<1x8xf32>
    tpu.vector_store %arg37[%c4_197, %c0_198], %845 {strides = array<i32>} : memref<8x32xf32, #tpu.memory_space<vmem>>, vector<1x8xf32>,
    %847 = vector.broadcast %761 : vector<8x1xf32> to vector<8x8xf32>
    %848 = arith.mulf %847, %832 : vector<8x8xf32>
    %849 = arith.addf %848, %837 : vector<8x8xf32>
    %850 = vector.extract_strided_slice %763 {offsets = [0, 5], sizes = [8, 1], strides = [1, 1]} : vector<8x8xf32> to vector<8x1xf32>
    %851 = vector.extract_strided_slice %764 {offsets = [5, 0], sizes = [1, 8], strides = [1, 1]} : vector<8x8xf32> to vector<1x8xf32>
    %852 = vector.broadcast %850 : vector<8x1xf32> to vector<8x8xf32>
    %853 = vector.broadcast %851 : vector<1x8xf32> to vector<8x8xf32>
    %854 = arith.mulf %852, %853 : vector<8x8xf32>
    %855 = vector.broadcast %760 : vector<8x1xf32> to vector<8x8xf32>
    %856 = arith.mulf %855, %854 : vector<8x8xf32>
    %857 = arith.addf %849, %856 : vector<8x8xf32>
    %858 = vector.extract_strided_slice %762 {offsets = [0, 5], sizes = [8, 1], strides = [1, 1]} : vector<8x8xf32> to vector<8x1xf32>
    %859 = vector.broadcast %858 : vector<8x1xf32> to vector<8x8xf32>
    %860 = arith.mulf %859, %857 : vector<8x8xf32>
    %cst_199 = arith.constant dense<0.000000e+00> : vector<8xf32>
    %861 = vector.multi_reduction <add>, %860, %cst_199 [0] : vector<8x8xf32> to vector<8xf32>
    %862 = vector.shape_cast %861 : vector<8xf32> to vector<1x8xf32>
    %c5_200 = arith.constant 5 : index
    %c0_201 = arith.constant 0 : index
    %863 = vector.load %arg37[%c5_200, %c0_201] : memref<8x32xf32, #tpu.memory_space<vmem>>, vector<1x8xf32>
    tpu.vector_store %arg37[%c5_200, %c0_201], %862 {strides = array<i32>} : memref<8x32xf32, #tpu.memory_space<vmem>>, vector<1x8xf32>,
    %864 = vector.broadcast %761 : vector<8x1xf32> to vector<8x8xf32>
    %865 = arith.mulf %864, %849 : vector<8x8xf32>
    %866 = arith.addf %865, %854 : vector<8x8xf32>
    %867 = vector.extract_strided_slice %763 {offsets = [0, 6], sizes = [8, 1], strides = [1, 1]} : vector<8x8xf32> to vector<8x1xf32>
    %868 = vector.extract_strided_slice %764 {offsets = [6, 0], sizes = [1, 8], strides = [1, 1]} : vector<8x8xf32> to vector<1x8xf32>
    %869 = vector.broadcast %867 : vector<8x1xf32> to vector<8x8xf32>
    %870 = vector.broadcast %868 : vector<1x8xf32> to vector<8x8xf32>
    %871 = arith.mulf %869, %870 : vector<8x8xf32>
    %872 = vector.broadcast %760 : vector<8x1xf32> to vector<8x8xf32>
    %873 = arith.mulf %872, %871 : vector<8x8xf32>
    %874 = arith.addf %866, %873 : vector<8x8xf32>
    %875 = vector.extract_strided_slice %762 {offsets = [0, 6], sizes = [8, 1], strides = [1, 1]} : vector<8x8xf32> to vector<8x1xf32>
    %876 = vector.broadcast %875 : vector<8x1xf32> to vector<8x8xf32>
    %877 = arith.mulf %876, %874 : vector<8x8xf32>
    %cst_202 = arith.constant dense<0.000000e+00> : vector<8xf32>
    %878 = vector.multi_reduction <add>, %877, %cst_202 [0] : vector<8x8xf32> to vector<8xf32>
    %879 = vector.shape_cast %878 : vector<8xf32> to vector<1x8xf32>
    %c6_203 = arith.constant 6 : index
    %c0_204 = arith.constant 0 : index
    %880 = vector.load %arg37[%c6_203, %c0_204] : memref<8x32xf32, #tpu.memory_space<vmem>>, vector<1x8xf32>
    tpu.vector_store %arg37[%c6_203, %c0_204], %879 {strides = array<i32>} : memref<8x32xf32, #tpu.memory_space<vmem>>, vector<1x8xf32>,
    %881 = vector.broadcast %761 : vector<8x1xf32> to vector<8x8xf32>
    %882 = arith.mulf %881, %866 : vector<8x8xf32>
    %883 = arith.addf %882, %871 : vector<8x8xf32>
    %884 = vector.extract_strided_slice %763 {offsets = [0, 7], sizes = [8, 1], strides = [1, 1]} : vector<8x8xf32> to vector<8x1xf32>
    %885 = vector.extract_strided_slice %764 {offsets = [7, 0], sizes = [1, 8], strides = [1, 1]} : vector<8x8xf32> to vector<1x8xf32>
    %886 = vector.broadcast %884 : vector<8x1xf32> to vector<8x8xf32>
    %887 = vector.broadcast %885 : vector<1x8xf32> to vector<8x8xf32>
    %888 = arith.mulf %886, %887 : vector<8x8xf32>
    %889 = vector.broadcast %760 : vector<8x1xf32> to vector<8x8xf32>
    %890 = arith.mulf %889, %888 : vector<8x8xf32>
    %891 = arith.addf %883, %890 : vector<8x8xf32>
    %892 = vector.extract_strided_slice %762 {offsets = [0, 7], sizes = [8, 1], strides = [1, 1]} : vector<8x8xf32> to vector<8x1xf32>
    %893 = vector.broadcast %892 : vector<8x1xf32> to vector<8x8xf32>
    %894 = arith.mulf %893, %891 : vector<8x8xf32>
    %cst_205 = arith.constant dense<0.000000e+00> : vector<8xf32>
    %895 = vector.multi_reduction <add>, %894, %cst_205 [0] : vector<8x8xf32> to vector<8xf32>
    %896 = vector.shape_cast %895 : vector<8xf32> to vector<1x8xf32>
    %c7_206 = arith.constant 7 : index
    %c0_207 = arith.constant 0 : index
    %897 = vector.load %arg37[%c7_206, %c0_207] : memref<8x32xf32, #tpu.memory_space<vmem>>, vector<1x8xf32>
    tpu.vector_store %arg37[%c7_206, %c0_207], %896 {strides = array<i32>} : memref<8x32xf32, #tpu.memory_space<vmem>>, vector<1x8xf32>,
    %898 = vector.broadcast %761 : vector<8x1xf32> to vector<8x8xf32>
    %899 = arith.mulf %898, %883 : vector<8x8xf32>
    %900 = arith.addf %899, %888 : vector<8x8xf32>
    %c0_208 = arith.constant 0 : index
    %c0_209 = arith.constant 0 : index
    %901 = vector.load %arg36[%c0_208, %c0_209] : memref<32x8xf32, #tpu.memory_space<vmem>>, vector<8x8xf32>
    tpu.vector_store %arg36[%c0_208, %c0_209], %900 {strides = array<i32>} : memref<32x8xf32, #tpu.memory_space<vmem>>, vector<8x8xf32>,
    %902 = vector.extract_strided_slice %758 {offsets = [8, 0], sizes = [8, 8], strides = [1, 1]} : vector<32x8xf32> to vector<8x8xf32>
    %903 = vector.extract_strided_slice %756 {offsets = [0, 1], sizes = [8, 1], strides = [1, 1]} : vector<8x4xf32> to vector<8x1xf32>
    %904 = vector.extract_strided_slice %757 {offsets = [0, 1], sizes = [8, 1], strides = [1, 1]} : vector<8x4xf32> to vector<8x1xf32>
    %905 = vector.extract_strided_slice %754 {offsets = [8, 0], sizes = [8, 8], strides = [1, 1]} : vector<32x8xf32> to vector<8x8xf32>
    %906 = vector.extract_strided_slice %755 {offsets = [8, 0], sizes = [8, 8], strides = [1, 1]} : vector<32x8xf32> to vector<8x8xf32>
    %907 = vector.extract_strided_slice %746 {offsets = [0, 8], sizes = [8, 8], strides = [1, 1]} : vector<8x32xf32> to vector<8x8xf32>
    %908 = vector.extract_strided_slice %906 {offsets = [0, 0], sizes = [8, 1], strides = [1, 1]} : vector<8x8xf32> to vector<8x1xf32>
    %909 = vector.extract_strided_slice %907 {offsets = [0, 0], sizes = [1, 8], strides = [1, 1]} : vector<8x8xf32> to vector<1x8xf32>
    %910 = vector.broadcast %908 : vector<8x1xf32> to vector<8x8xf32>
    %911 = vector.broadcast %909 : vector<1x8xf32> to vector<8x8xf32>
    %912 = arith.mulf %910, %911 : vector<8x8xf32>
    %913 = vector.broadcast %903 : vector<8x1xf32> to vector<8x8xf32>
    %914 = arith.mulf %913, %912 : vector<8x8xf32>
    %915 = arith.addf %902, %914 : vector<8x8xf32>
    %916 = vector.extract_strided_slice %905 {offsets = [0, 0], sizes = [8, 1], strides = [1, 1]} : vector<8x8xf32> to vector<8x1xf32>
    %917 = vector.broadcast %916 : vector<8x1xf32> to vector<8x8xf32>
    %918 = arith.mulf %917, %915 : vector<8x8xf32>
    %cst_210 = arith.constant dense<0.000000e+00> : vector<8xf32>
    %919 = vector.multi_reduction <add>, %918, %cst_210 [0] : vector<8x8xf32> to vector<8xf32>
    %920 = vector.shape_cast %919 : vector<8xf32> to vector<1x8xf32>
    %c0_211 = arith.constant 0 : index
    %c8_212 = arith.constant 8 : index
    %921 = vector.load %arg37[%c0_211, %c8_212] : memref<8x32xf32, #tpu.memory_space<vmem>>, vector<1x8xf32>
    tpu.vector_store %arg37[%c0_211, %c8_212], %920 {strides = array<i32>} : memref<8x32xf32, #tpu.memory_space<vmem>>, vector<1x8xf32>,
    %922 = vector.broadcast %904 : vector<8x1xf32> to vector<8x8xf32>
    %923 = arith.mulf %922, %902 : vector<8x8xf32>
    %924 = arith.addf %923, %912 : vector<8x8xf32>
    %925 = vector.extract_strided_slice %906 {offsets = [0, 1], sizes = [8, 1], strides = [1, 1]} : vector<8x8xf32> to vector<8x1xf32>
    %926 = vector.extract_strided_slice %907 {offsets = [1, 0], sizes = [1, 8], strides = [1, 1]} : vector<8x8xf32> to vector<1x8xf32>
    %927 = vector.broadcast %925 : vector<8x1xf32> to vector<8x8xf32>
    %928 = vector.broadcast %926 : vector<1x8xf32> to vector<8x8xf32>
    %929 = arith.mulf %927, %928 : vector<8x8xf32>
    %930 = vector.broadcast %903 : vector<8x1xf32> to vector<8x8xf32>
    %931 = arith.mulf %930, %929 : vector<8x8xf32>
    %932 = arith.addf %924, %931 : vector<8x8xf32>
    %933 = vector.extract_strided_slice %905 {offsets = [0, 1], sizes = [8, 1], strides = [1, 1]} : vector<8x8xf32> to vector<8x1xf32>
    %934 = vector.broadcast %933 : vector<8x1xf32> to vector<8x8xf32>
    %935 = arith.mulf %934, %932 : vector<8x8xf32>
    %cst_213 = arith.constant dense<0.000000e+00> : vector<8xf32>
    %936 = vector.multi_reduction <add>, %935, %cst_213 [0] : vector<8x8xf32> to vector<8xf32>
    %937 = vector.shape_cast %936 : vector<8xf32> to vector<1x8xf32>
    %c1_214 = arith.constant 1 : index
    %c8_215 = arith.constant 8 : index
    %938 = vector.load %arg37[%c1_214, %c8_215] : memref<8x32xf32, #tpu.memory_space<vmem>>, vector<1x8xf32>
    tpu.vector_store %arg37[%c1_214, %c8_215], %937 {strides = array<i32>} : memref<8x32xf32, #tpu.memory_space<vmem>>, vector<1x8xf32>,
    %939 = vector.broadcast %904 : vector<8x1xf32> to vector<8x8xf32>
    %940 = arith.mulf %939, %924 : vector<8x8xf32>
    %941 = arith.addf %940, %929 : vector<8x8xf32>
    %942 = vector.extract_strided_slice %906 {offsets = [0, 2], sizes = [8, 1], strides = [1, 1]} : vector<8x8xf32> to vector<8x1xf32>
    %943 = vector.extract_strided_slice %907 {offsets = [2, 0], sizes = [1, 8], strides = [1, 1]} : vector<8x8xf32> to vector<1x8xf32>
    %944 = vector.broadcast %942 : vector<8x1xf32> to vector<8x8xf32>
    %945 = vector.broadcast %943 : vector<1x8xf32> to vector<8x8xf32>
    %946 = arith.mulf %944, %945 : vector<8x8xf32>
    %947 = vector.broadcast %903 : vector<8x1xf32> to vector<8x8xf32>
    %948 = arith.mulf %947, %946 : vector<8x8xf32>
    %949 = arith.addf %941, %948 : vector<8x8xf32>
    %950 = vector.extract_strided_slice %905 {offsets = [0, 2], sizes = [8, 1], strides = [1, 1]} : vector<8x8xf32> to vector<8x1xf32>
    %951 = vector.broadcast %950 : vector<8x1xf32> to vector<8x8xf32>
    %952 = arith.mulf %951, %949 : vector<8x8xf32>
    %cst_216 = arith.constant dense<0.000000e+00> : vector<8xf32>
    %953 = vector.multi_reduction <add>, %952, %cst_216 [0] : vector<8x8xf32> to vector<8xf32>
    %954 = vector.shape_cast %953 : vector<8xf32> to vector<1x8xf32>
    %c2_217 = arith.constant 2 : index
    %c8_218 = arith.constant 8 : index
    %955 = vector.load %arg37[%c2_217, %c8_218] : memref<8x32xf32, #tpu.memory_space<vmem>>, vector<1x8xf32>
    tpu.vector_store %arg37[%c2_217, %c8_218], %954 {strides = array<i32>} : memref<8x32xf32, #tpu.memory_space<vmem>>, vector<1x8xf32>,
    %956 = vector.broadcast %904 : vector<8x1xf32> to vector<8x8xf32>
    %957 = arith.mulf %956, %941 : vector<8x8xf32>
    %958 = arith.addf %957, %946 : vector<8x8xf32>
    %959 = vector.extract_strided_slice %906 {offsets = [0, 3], sizes = [8, 1], strides = [1, 1]} : vector<8x8xf32> to vector<8x1xf32>
    %960 = vector.extract_strided_slice %907 {offsets = [3, 0], sizes = [1, 8], strides = [1, 1]} : vector<8x8xf32> to vector<1x8xf32>
    %961 = vector.broadcast %959 : vector<8x1xf32> to vector<8x8xf32>
    %962 = vector.broadcast %960 : vector<1x8xf32> to vector<8x8xf32>
    %963 = arith.mulf %961, %962 : vector<8x8xf32>
    %964 = vector.broadcast %903 : vector<8x1xf32> to vector<8x8xf32>
    %965 = arith.mulf %964, %963 : vector<8x8xf32>
    %966 = arith.addf %958, %965 : vector<8x8xf32>
    %967 = vector.extract_strided_slice %905 {offsets = [0, 3], sizes = [8, 1], strides = [1, 1]} : vector<8x8xf32> to vector<8x1xf32>
    %968 = vector.broadcast %967 : vector<8x1xf32> to vector<8x8xf32>
    %969 = arith.mulf %968, %966 : vector<8x8xf32>
    %cst_219 = arith.constant dense<0.000000e+00> : vector<8xf32>
    %970 = vector.multi_reduction <add>, %969, %cst_219 [0] : vector<8x8xf32> to vector<8xf32>
    %971 = vector.shape_cast %970 : vector<8xf32> to vector<1x8xf32>
    %c3_220 = arith.constant 3 : index
    %c8_221 = arith.constant 8 : index
    %972 = vector.load %arg37[%c3_220, %c8_221] : memref<8x32xf32, #tpu.memory_space<vmem>>, vector<1x8xf32>
    tpu.vector_store %arg37[%c3_220, %c8_221], %971 {strides = array<i32>} : memref<8x32xf32, #tpu.memory_space<vmem>>, vector<1x8xf32>,
    %973 = vector.broadcast %904 : vector<8x1xf32> to vector<8x8xf32>
    %974 = arith.mulf %973, %958 : vector<8x8xf32>
    %975 = arith.addf %974, %963 : vector<8x8xf32>
    %976 = vector.extract_strided_slice %906 {offsets = [0, 4], sizes = [8, 1], strides = [1, 1]} : vector<8x8xf32> to vector<8x1xf32>
    %977 = vector.extract_strided_slice %907 {offsets = [4, 0], sizes = [1, 8], strides = [1, 1]} : vector<8x8xf32> to vector<1x8xf32>
    %978 = vector.broadcast %976 : vector<8x1xf32> to vector<8x8xf32>
    %979 = vector.broadcast %977 : vector<1x8xf32> to vector<8x8xf32>
    %980 = arith.mulf %978, %979 : vector<8x8xf32>
    %981 = vector.broadcast %903 : vector<8x1xf32> to vector<8x8xf32>
    %982 = arith.mulf %981, %980 : vector<8x8xf32>
    %983 = arith.addf %975, %982 : vector<8x8xf32>
    %984 = vector.extract_strided_slice %905 {offsets = [0, 4], sizes = [8, 1], strides = [1, 1]} : vector<8x8xf32> to vector<8x1xf32>
    %985 = vector.broadcast %984 : vector<8x1xf32> to vector<8x8xf32>
    %986 = arith.mulf %985, %983 : vector<8x8xf32>
    %cst_222 = arith.constant dense<0.000000e+00> : vector<8xf32>
    %987 = vector.multi_reduction <add>, %986, %cst_222 [0] : vector<8x8xf32> to vector<8xf32>
    %988 = vector.shape_cast %987 : vector<8xf32> to vector<1x8xf32>
    %c4_223 = arith.constant 4 : index
    %c8_224 = arith.constant 8 : index
    %989 = vector.load %arg37[%c4_223, %c8_224] : memref<8x32xf32, #tpu.memory_space<vmem>>, vector<1x8xf32>
    tpu.vector_store %arg37[%c4_223, %c8_224], %988 {strides = array<i32>} : memref<8x32xf32, #tpu.memory_space<vmem>>, vector<1x8xf32>,
    %990 = vector.broadcast %904 : vector<8x1xf32> to vector<8x8xf32>
    %991 = arith.mulf %990, %975 : vector<8x8xf32>
    %992 = arith.addf %991, %980 : vector<8x8xf32>
    %993 = vector.extract_strided_slice %906 {offsets = [0, 5], sizes = [8, 1], strides = [1, 1]} : vector<8x8xf32> to vector<8x1xf32>
    %994 = vector.extract_strided_slice %907 {offsets = [5, 0], sizes = [1, 8], strides = [1, 1]} : vector<8x8xf32> to vector<1x8xf32>
    %995 = vector.broadcast %993 : vector<8x1xf32> to vector<8x8xf32>
    %996 = vector.broadcast %994 : vector<1x8xf32> to vector<8x8xf32>
    %997 = arith.mulf %995, %996 : vector<8x8xf32>
    %998 = vector.broadcast %903 : vector<8x1xf32> to vector<8x8xf32>
    %999 = arith.mulf %998, %997 : vector<8x8xf32>
    %1000 = arith.addf %992, %999 : vector<8x8xf32>
    %1001 = vector.extract_strided_slice %905 {offsets = [0, 5], sizes = [8, 1], strides = [1, 1]} : vector<8x8xf32> to vector<8x1xf32>
    %1002 = vector.broadcast %1001 : vector<8x1xf32> to vector<8x8xf32>
    %1003 = arith.mulf %1002, %1000 : vector<8x8xf32>
    %cst_225 = arith.constant dense<0.000000e+00> : vector<8xf32>
    %1004 = vector.multi_reduction <add>, %1003, %cst_225 [0] : vector<8x8xf32> to vector<8xf32>
    %1005 = vector.shape_cast %1004 : vector<8xf32> to vector<1x8xf32>
    %c5_226 = arith.constant 5 : index
    %c8_227 = arith.constant 8 : index
    %1006 = vector.load %arg37[%c5_226, %c8_227] : memref<8x32xf32, #tpu.memory_space<vmem>>, vector<1x8xf32>
    tpu.vector_store %arg37[%c5_226, %c8_227], %1005 {strides = array<i32>} : memref<8x32xf32, #tpu.memory_space<vmem>>, vector<1x8xf32>,
    %1007 = vector.broadcast %904 : vector<8x1xf32> to vector<8x8xf32>
    %1008 = arith.mulf %1007, %992 : vector<8x8xf32>
    %1009 = arith.addf %1008, %997 : vector<8x8xf32>
    %1010 = vector.extract_strided_slice %906 {offsets = [0, 6], sizes = [8, 1], strides = [1, 1]} : vector<8x8xf32> to vector<8x1xf32>
    %1011 = vector.extract_strided_slice %907 {offsets = [6, 0], sizes = [1, 8], strides = [1, 1]} : vector<8x8xf32> to vector<1x8xf32>
    %1012 = vector.broadcast %1010 : vector<8x1xf32> to vector<8x8xf32>
    %1013 = vector.broadcast %1011 : vector<1x8xf32> to vector<8x8xf32>
    %1014 = arith.mulf %1012, %1013 : vector<8x8xf32>
    %1015 = vector.broadcast %903 : vector<8x1xf32> to vector<8x8xf32>
    %1016 = arith.mulf %1015, %1014 : vector<8x8xf32>
    %1017 = arith.addf %1009, %1016 : vector<8x8xf32>
    %1018 = vector.extract_strided_slice %905 {offsets = [0, 6], sizes = [8, 1], strides = [1, 1]} : vector<8x8xf32> to vector<8x1xf32>
    %1019 = vector.broadcast %1018 : vector<8x1xf32> to vector<8x8xf32>
    %1020 = arith.mulf %1019, %1017 : vector<8x8xf32>
    %cst_228 = arith.constant dense<0.000000e+00> : vector<8xf32>
    %1021 = vector.multi_reduction <add>, %1020, %cst_228 [0] : vector<8x8xf32> to vector<8xf32>
    %1022 = vector.shape_cast %1021 : vector<8xf32> to vector<1x8xf32>
    %c6_229 = arith.constant 6 : index
    %c8_230 = arith.constant 8 : index
    %1023 = vector.load %arg37[%c6_229, %c8_230] : memref<8x32xf32, #tpu.memory_space<vmem>>, vector<1x8xf32>
    tpu.vector_store %arg37[%c6_229, %c8_230], %1022 {strides = array<i32>} : memref<8x32xf32, #tpu.memory_space<vmem>>, vector<1x8xf32>,
    %1024 = vector.broadcast %904 : vector<8x1xf32> to vector<8x8xf32>
    %1025 = arith.mulf %1024, %1009 : vector<8x8xf32>
    %1026 = arith.addf %1025, %1014 : vector<8x8xf32>
    %1027 = vector.extract_strided_slice %906 {offsets = [0, 7], sizes = [8, 1], strides = [1, 1]} : vector<8x8xf32> to vector<8x1xf32>
    %1028 = vector.extract_strided_slice %907 {offsets = [7, 0], sizes = [1, 8], strides = [1, 1]} : vector<8x8xf32> to vector<1x8xf32>
    %1029 = vector.broadcast %1027 : vector<8x1xf32> to vector<8x8xf32>
    %1030 = vector.broadcast %1028 : vector<1x8xf32> to vector<8x8xf32>
    %1031 = arith.mulf %1029, %1030 : vector<8x8xf32>
    %1032 = vector.broadcast %903 : vector<8x1xf32> to vector<8x8xf32>
    %1033 = arith.mulf %1032, %1031 : vector<8x8xf32>
    %1034 = arith.addf %1026, %1033 : vector<8x8xf32>
    %1035 = vector.extract_strided_slice %905 {offsets = [0, 7], sizes = [8, 1], strides = [1, 1]} : vector<8x8xf32> to vector<8x1xf32>
    %1036 = vector.broadcast %1035 : vector<8x1xf32> to vector<8x8xf32>
    %1037 = arith.mulf %1036, %1034 : vector<8x8xf32>
    %cst_231 = arith.constant dense<0.000000e+00> : vector<8xf32>
    %1038 = vector.multi_reduction <add>, %1037, %cst_231 [0] : vector<8x8xf32> to vector<8xf32>
    %1039 = vector.shape_cast %1038 : vector<8xf32> to vector<1x8xf32>
    %c7_232 = arith.constant 7 : index
    %c8_233 = arith.constant 8 : index
    %1040 = vector.load %arg37[%c7_232, %c8_233] : memref<8x32xf32, #tpu.memory_space<vmem>>, vector<1x8xf32>
    tpu.vector_store %arg37[%c7_232, %c8_233], %1039 {strides = array<i32>} : memref<8x32xf32, #tpu.memory_space<vmem>>, vector<1x8xf32>,
    %1041 = vector.broadcast %904 : vector<8x1xf32> to vector<8x8xf32>
    %1042 = arith.mulf %1041, %1026 : vector<8x8xf32>
    %1043 = arith.addf %1042, %1031 : vector<8x8xf32>
    %c8_234 = arith.constant 8 : index
    %c0_235 = arith.constant 0 : index
    %1044 = vector.load %arg36[%c8_234, %c0_235] : memref<32x8xf32, #tpu.memory_space<vmem>>, vector<8x8xf32>
    tpu.vector_store %arg36[%c8_234, %c0_235], %1043 {strides = array<i32>} : memref<32x8xf32, #tpu.memory_space<vmem>>, vector<8x8xf32>,
    %1045 = vector.extract_strided_slice %758 {offsets = [16, 0], sizes = [8, 8], strides = [1, 1]} : vector<32x8xf32> to vector<8x8xf32>
    %1046 = vector.extract_strided_slice %756 {offsets = [0, 2], sizes = [8, 1], strides = [1, 1]} : vector<8x4xf32> to vector<8x1xf32>
    %1047 = vector.extract_strided_slice %757 {offsets = [0, 2], sizes = [8, 1], strides = [1, 1]} : vector<8x4xf32> to vector<8x1xf32>
    %1048 = vector.extract_strided_slice %754 {offsets = [16, 0], sizes = [8, 8], strides = [1, 1]} : vector<32x8xf32> to vector<8x8xf32>
    %1049 = vector.extract_strided_slice %755 {offsets = [16, 0], sizes = [8, 8], strides = [1, 1]} : vector<32x8xf32> to vector<8x8xf32>
    %1050 = vector.extract_strided_slice %746 {offsets = [0, 16], sizes = [8, 8], strides = [1, 1]} : vector<8x32xf32> to vector<8x8xf32>
    %1051 = vector.extract_strided_slice %1049 {offsets = [0, 0], sizes = [8, 1], strides = [1, 1]} : vector<8x8xf32> to vector<8x1xf32>
    %1052 = vector.extract_strided_slice %1050 {offsets = [0, 0], sizes = [1, 8], strides = [1, 1]} : vector<8x8xf32> to vector<1x8xf32>
    %1053 = vector.broadcast %1051 : vector<8x1xf32> to vector<8x8xf32>
    %1054 = vector.broadcast %1052 : vector<1x8xf32> to vector<8x8xf32>
    %1055 = arith.mulf %1053, %1054 : vector<8x8xf32>
    %1056 = vector.broadcast %1046 : vector<8x1xf32> to vector<8x8xf32>
    %1057 = arith.mulf %1056, %1055 : vector<8x8xf32>
    %1058 = arith.addf %1045, %1057 : vector<8x8xf32>
    %1059 = vector.extract_strided_slice %1048 {offsets = [0, 0], sizes = [8, 1], strides = [1, 1]} : vector<8x8xf32> to vector<8x1xf32>
    %1060 = vector.broadcast %1059 : vector<8x1xf32> to vector<8x8xf32>
    %1061 = arith.mulf %1060, %1058 : vector<8x8xf32>
    %cst_236 = arith.constant dense<0.000000e+00> : vector<8xf32>
    %1062 = vector.multi_reduction <add>, %1061, %cst_236 [0] : vector<8x8xf32> to vector<8xf32>
    %1063 = vector.shape_cast %1062 : vector<8xf32> to vector<1x8xf32>
    %c0_237 = arith.constant 0 : index
    %c16_238 = arith.constant 16 : index
    %1064 = vector.load %arg37[%c0_237, %c16_238] : memref<8x32xf32, #tpu.memory_space<vmem>>, vector<1x8xf32>
    tpu.vector_store %arg37[%c0_237, %c16_238], %1063 {strides = array<i32>} : memref<8x32xf32, #tpu.memory_space<vmem>>, vector<1x8xf32>,
    %1065 = vector.broadcast %1047 : vector<8x1xf32> to vector<8x8xf32>
    %1066 = arith.mulf %1065, %1045 : vector<8x8xf32>
    %1067 = arith.addf %1066, %1055 : vector<8x8xf32>
    %1068 = vector.extract_strided_slice %1049 {offsets = [0, 1], sizes = [8, 1], strides = [1, 1]} : vector<8x8xf32> to vector<8x1xf32>
    %1069 = vector.extract_strided_slice %1050 {offsets = [1, 0], sizes = [1, 8], strides = [1, 1]} : vector<8x8xf32> to vector<1x8xf32>
    %1070 = vector.broadcast %1068 : vector<8x1xf32> to vector<8x8xf32>
    %1071 = vector.broadcast %1069 : vector<1x8xf32> to vector<8x8xf32>
    %1072 = arith.mulf %1070, %1071 : vector<8x8xf32>
    %1073 = vector.broadcast %1046 : vector<8x1xf32> to vector<8x8xf32>
    %1074 = arith.mulf %1073, %1072 : vector<8x8xf32>
    %1075 = arith.addf %1067, %1074 : vector<8x8xf32>
    %1076 = vector.extract_strided_slice %1048 {offsets = [0, 1], sizes = [8, 1], strides = [1, 1]} : vector<8x8xf32> to vector<8x1xf32>
    %1077 = vector.broadcast %1076 : vector<8x1xf32> to vector<8x8xf32>
    %1078 = arith.mulf %1077, %1075 : vector<8x8xf32>
    %cst_239 = arith.constant dense<0.000000e+00> : vector<8xf32>
    %1079 = vector.multi_reduction <add>, %1078, %cst_239 [0] : vector<8x8xf32> to vector<8xf32>
    %1080 = vector.shape_cast %1079 : vector<8xf32> to vector<1x8xf32>
    %c1_240 = arith.constant 1 : index
    %c16_241 = arith.constant 16 : index
    %1081 = vector.load %arg37[%c1_240, %c16_241] : memref<8x32xf32, #tpu.memory_space<vmem>>, vector<1x8xf32>
    tpu.vector_store %arg37[%c1_240, %c16_241], %1080 {strides = array<i32>} : memref<8x32xf32, #tpu.memory_space<vmem>>, vector<1x8xf32>,
    %1082 = vector.broadcast %1047 : vector<8x1xf32> to vector<8x8xf32>
    %1083 = arith.mulf %1082, %1067 : vector<8x8xf32>
    %1084 = arith.addf %1083, %1072 : vector<8x8xf32>
    %1085 = vector.extract_strided_slice %1049 {offsets = [0, 2], sizes = [8, 1], strides = [1, 1]} : vector<8x8xf32> to vector<8x1xf32>
    %1086 = vector.extract_strided_slice %1050 {offsets = [2, 0], sizes = [1, 8], strides = [1, 1]} : vector<8x8xf32> to vector<1x8xf32>
    %1087 = vector.broadcast %1085 : vector<8x1xf32> to vector<8x8xf32>
    %1088 = vector.broadcast %1086 : vector<1x8xf32> to vector<8x8xf32>
    %1089 = arith.mulf %1087, %1088 : vector<8x8xf32>
    %1090 = vector.broadcast %1046 : vector<8x1xf32> to vector<8x8xf32>
    %1091 = arith.mulf %1090, %1089 : vector<8x8xf32>
    %1092 = arith.addf %1084, %1091 : vector<8x8xf32>
    %1093 = vector.extract_strided_slice %1048 {offsets = [0, 2], sizes = [8, 1], strides = [1, 1]} : vector<8x8xf32> to vector<8x1xf32>
    %1094 = vector.broadcast %1093 : vector<8x1xf32> to vector<8x8xf32>
    %1095 = arith.mulf %1094, %1092 : vector<8x8xf32>
    %cst_242 = arith.constant dense<0.000000e+00> : vector<8xf32>
    %1096 = vector.multi_reduction <add>, %1095, %cst_242 [0] : vector<8x8xf32> to vector<8xf32>
    %1097 = vector.shape_cast %1096 : vector<8xf32> to vector<1x8xf32>
    %c2_243 = arith.constant 2 : index
    %c16_244 = arith.constant 16 : index
    %1098 = vector.load %arg37[%c2_243, %c16_244] : memref<8x32xf32, #tpu.memory_space<vmem>>, vector<1x8xf32>
    tpu.vector_store %arg37[%c2_243, %c16_244], %1097 {strides = array<i32>} : memref<8x32xf32, #tpu.memory_space<vmem>>, vector<1x8xf32>,
    %1099 = vector.broadcast %1047 : vector<8x1xf32> to vector<8x8xf32>
    %1100 = arith.mulf %1099, %1084 : vector<8x8xf32>
    %1101 = arith.addf %1100, %1089 : vector<8x8xf32>
    %1102 = vector.extract_strided_slice %1049 {offsets = [0, 3], sizes = [8, 1], strides = [1, 1]} : vector<8x8xf32> to vector<8x1xf32>
    %1103 = vector.extract_strided_slice %1050 {offsets = [3, 0], sizes = [1, 8], strides = [1, 1]} : vector<8x8xf32> to vector<1x8xf32>
    %1104 = vector.broadcast %1102 : vector<8x1xf32> to vector<8x8xf32>
    %1105 = vector.broadcast %1103 : vector<1x8xf32> to vector<8x8xf32>
    %1106 = arith.mulf %1104, %1105 : vector<8x8xf32>
    %1107 = vector.broadcast %1046 : vector<8x1xf32> to vector<8x8xf32>
    %1108 = arith.mulf %1107, %1106 : vector<8x8xf32>
    %1109 = arith.addf %1101, %1108 : vector<8x8xf32>
    %1110 = vector.extract_strided_slice %1048 {offsets = [0, 3], sizes = [8, 1], strides = [1, 1]} : vector<8x8xf32> to vector<8x1xf32>
    %1111 = vector.broadcast %1110 : vector<8x1xf32> to vector<8x8xf32>
    %1112 = arith.mulf %1111, %1109 : vector<8x8xf32>
    %cst_245 = arith.constant dense<0.000000e+00> : vector<8xf32>
    %1113 = vector.multi_reduction <add>, %1112, %cst_245 [0] : vector<8x8xf32> to vector<8xf32>
    %1114 = vector.shape_cast %1113 : vector<8xf32> to vector<1x8xf32>
    %c3_246 = arith.constant 3 : index
    %c16_247 = arith.constant 16 : index
    %1115 = vector.load %arg37[%c3_246, %c16_247] : memref<8x32xf32, #tpu.memory_space<vmem>>, vector<1x8xf32>
    tpu.vector_store %arg37[%c3_246, %c16_247], %1114 {strides = array<i32>} : memref<8x32xf32, #tpu.memory_space<vmem>>, vector<1x8xf32>,
    %1116 = vector.broadcast %1047 : vector<8x1xf32> to vector<8x8xf32>
    %1117 = arith.mulf %1116, %1101 : vector<8x8xf32>
    %1118 = arith.addf %1117, %1106 : vector<8x8xf32>
    %1119 = vector.extract_strided_slice %1049 {offsets = [0, 4], sizes = [8, 1], strides = [1, 1]} : vector<8x8xf32> to vector<8x1xf32>
    %1120 = vector.extract_strided_slice %1050 {offsets = [4, 0], sizes = [1, 8], strides = [1, 1]} : vector<8x8xf32> to vector<1x8xf32>
    %1121 = vector.broadcast %1119 : vector<8x1xf32> to vector<8x8xf32>
    %1122 = vector.broadcast %1120 : vector<1x8xf32> to vector<8x8xf32>
    %1123 = arith.mulf %1121, %1122 : vector<8x8xf32>
    %1124 = vector.broadcast %1046 : vector<8x1xf32> to vector<8x8xf32>
    %1125 = arith.mulf %1124, %1123 : vector<8x8xf32>
    %1126 = arith.addf %1118, %1125 : vector<8x8xf32>
    %1127 = vector.extract_strided_slice %1048 {offsets = [0, 4], sizes = [8, 1], strides = [1, 1]} : vector<8x8xf32> to vector<8x1xf32>
    %1128 = vector.broadcast %1127 : vector<8x1xf32> to vector<8x8xf32>
    %1129 = arith.mulf %1128, %1126 : vector<8x8xf32>
    %cst_248 = arith.constant dense<0.000000e+00> : vector<8xf32>
    %1130 = vector.multi_reduction <add>, %1129, %cst_248 [0] : vector<8x8xf32> to vector<8xf32>
    %1131 = vector.shape_cast %1130 : vector<8xf32> to vector<1x8xf32>
    %c4_249 = arith.constant 4 : index
    %c16_250 = arith.constant 16 : index
    %1132 = vector.load %arg37[%c4_249, %c16_250] : memref<8x32xf32, #tpu.memory_space<vmem>>, vector<1x8xf32>
    tpu.vector_store %arg37[%c4_249, %c16_250], %1131 {strides = array<i32>} : memref<8x32xf32, #tpu.memory_space<vmem>>, vector<1x8xf32>,
    %1133 = vector.broadcast %1047 : vector<8x1xf32> to vector<8x8xf32>
    %1134 = arith.mulf %1133, %1118 : vector<8x8xf32>
    %1135 = arith.addf %1134, %1123 : vector<8x8xf32>
    %1136 = vector.extract_strided_slice %1049 {offsets = [0, 5], sizes = [8, 1], strides = [1, 1]} : vector<8x8xf32> to vector<8x1xf32>
    %1137 = vector.extract_strided_slice %1050 {offsets = [5, 0], sizes = [1, 8], strides = [1, 1]} : vector<8x8xf32> to vector<1x8xf32>
    %1138 = vector.broadcast %1136 : vector<8x1xf32> to vector<8x8xf32>
    %1139 = vector.broadcast %1137 : vector<1x8xf32> to vector<8x8xf32>
    %1140 = arith.mulf %1138, %1139 : vector<8x8xf32>
    %1141 = vector.broadcast %1046 : vector<8x1xf32> to vector<8x8xf32>
    %1142 = arith.mulf %1141, %1140 : vector<8x8xf32>
    %1143 = arith.addf %1135, %1142 : vector<8x8xf32>
    %1144 = vector.extract_strided_slice %1048 {offsets = [0, 5], sizes = [8, 1], strides = [1, 1]} : vector<8x8xf32> to vector<8x1xf32>
    %1145 = vector.broadcast %1144 : vector<8x1xf32> to vector<8x8xf32>
    %1146 = arith.mulf %1145, %1143 : vector<8x8xf32>
    %cst_251 = arith.constant dense<0.000000e+00> : vector<8xf32>
    %1147 = vector.multi_reduction <add>, %1146, %cst_251 [0] : vector<8x8xf32> to vector<8xf32>
    %1148 = vector.shape_cast %1147 : vector<8xf32> to vector<1x8xf32>
    %c5_252 = arith.constant 5 : index
    %c16_253 = arith.constant 16 : index
    %1149 = vector.load %arg37[%c5_252, %c16_253] : memref<8x32xf32, #tpu.memory_space<vmem>>, vector<1x8xf32>
    tpu.vector_store %arg37[%c5_252, %c16_253], %1148 {strides = array<i32>} : memref<8x32xf32, #tpu.memory_space<vmem>>, vector<1x8xf32>,
    %1150 = vector.broadcast %1047 : vector<8x1xf32> to vector<8x8xf32>
    %1151 = arith.mulf %1150, %1135 : vector<8x8xf32>
    %1152 = arith.addf %1151, %1140 : vector<8x8xf32>
    %1153 = vector.extract_strided_slice %1049 {offsets = [0, 6], sizes = [8, 1], strides = [1, 1]} : vector<8x8xf32> to vector<8x1xf32>
    %1154 = vector.extract_strided_slice %1050 {offsets = [6, 0], sizes = [1, 8], strides = [1, 1]} : vector<8x8xf32> to vector<1x8xf32>
    %1155 = vector.broadcast %1153 : vector<8x1xf32> to vector<8x8xf32>
    %1156 = vector.broadcast %1154 : vector<1x8xf32> to vector<8x8xf32>
    %1157 = arith.mulf %1155, %1156 : vector<8x8xf32>
    %1158 = vector.broadcast %1046 : vector<8x1xf32> to vector<8x8xf32>
    %1159 = arith.mulf %1158, %1157 : vector<8x8xf32>
    %1160 = arith.addf %1152, %1159 : vector<8x8xf32>
    %1161 = vector.extract_strided_slice %1048 {offsets = [0, 6], sizes = [8, 1], strides = [1, 1]} : vector<8x8xf32> to vector<8x1xf32>
    %1162 = vector.broadcast %1161 : vector<8x1xf32> to vector<8x8xf32>
    %1163 = arith.mulf %1162, %1160 : vector<8x8xf32>
    %cst_254 = arith.constant dense<0.000000e+00> : vector<8xf32>
    %1164 = vector.multi_reduction <add>, %1163, %cst_254 [0] : vector<8x8xf32> to vector<8xf32>
    %1165 = vector.shape_cast %1164 : vector<8xf32> to vector<1x8xf32>
    %c6_255 = arith.constant 6 : index
    %c16_256 = arith.constant 16 : index
    %1166 = vector.load %arg37[%c6_255, %c16_256] : memref<8x32xf32, #tpu.memory_space<vmem>>, vector<1x8xf32>
    tpu.vector_store %arg37[%c6_255, %c16_256], %1165 {strides = array<i32>} : memref<8x32xf32, #tpu.memory_space<vmem>>, vector<1x8xf32>,
    %1167 = vector.broadcast %1047 : vector<8x1xf32> to vector<8x8xf32>
    %1168 = arith.mulf %1167, %1152 : vector<8x8xf32>
    %1169 = arith.addf %1168, %1157 : vector<8x8xf32>
    %1170 = vector.extract_strided_slice %1049 {offsets = [0, 7], sizes = [8, 1], strides = [1, 1]} : vector<8x8xf32> to vector<8x1xf32>
    %1171 = vector.extract_strided_slice %1050 {offsets = [7, 0], sizes = [1, 8], strides = [1, 1]} : vector<8x8xf32> to vector<1x8xf32>
    %1172 = vector.broadcast %1170 : vector<8x1xf32> to vector<8x8xf32>
    %1173 = vector.broadcast %1171 : vector<1x8xf32> to vector<8x8xf32>
    %1174 = arith.mulf %1172, %1173 : vector<8x8xf32>
    %1175 = vector.broadcast %1046 : vector<8x1xf32> to vector<8x8xf32>
    %1176 = arith.mulf %1175, %1174 : vector<8x8xf32>
    %1177 = arith.addf %1169, %1176 : vector<8x8xf32>
    %1178 = vector.extract_strided_slice %1048 {offsets = [0, 7], sizes = [8, 1], strides = [1, 1]} : vector<8x8xf32> to vector<8x1xf32>
    %1179 = vector.broadcast %1178 : vector<8x1xf32> to vector<8x8xf32>
    %1180 = arith.mulf %1179, %1177 : vector<8x8xf32>
    %cst_257 = arith.constant dense<0.000000e+00> : vector<8xf32>
    %1181 = vector.multi_reduction <add>, %1180, %cst_257 [0] : vector<8x8xf32> to vector<8xf32>
    %1182 = vector.shape_cast %1181 : vector<8xf32> to vector<1x8xf32>
    %c7_258 = arith.constant 7 : index
    %c16_259 = arith.constant 16 : index
    %1183 = vector.load %arg37[%c7_258, %c16_259] : memref<8x32xf32, #tpu.memory_space<vmem>>, vector<1x8xf32>
    tpu.vector_store %arg37[%c7_258, %c16_259], %1182 {strides = array<i32>} : memref<8x32xf32, #tpu.memory_space<vmem>>, vector<1x8xf32>,
    %1184 = vector.broadcast %1047 : vector<8x1xf32> to vector<8x8xf32>
    %1185 = arith.mulf %1184, %1169 : vector<8x8xf32>
    %1186 = arith.addf %1185, %1174 : vector<8x8xf32>
    %c16_260 = arith.constant 16 : index
    %c0_261 = arith.constant 0 : index
    %1187 = vector.load %arg36[%c16_260, %c0_261] : memref<32x8xf32, #tpu.memory_space<vmem>>, vector<8x8xf32>
    tpu.vector_store %arg36[%c16_260, %c0_261], %1186 {strides = array<i32>} : memref<32x8xf32, #tpu.memory_space<vmem>>, vector<8x8xf32>,
    %1188 = vector.extract_strided_slice %758 {offsets = [24, 0], sizes = [8, 8], strides = [1, 1]} : vector<32x8xf32> to vector<8x8xf32>
    %1189 = vector.extract_strided_slice %756 {offsets = [0, 3], sizes = [8, 1], strides = [1, 1]} : vector<8x4xf32> to vector<8x1xf32>
    %1190 = vector.extract_strided_slice %757 {offsets = [0, 3], sizes = [8, 1], strides = [1, 1]} : vector<8x4xf32> to vector<8x1xf32>
    %1191 = vector.extract_strided_slice %754 {offsets = [24, 0], sizes = [8, 8], strides = [1, 1]} : vector<32x8xf32> to vector<8x8xf32>
    %1192 = vector.extract_strided_slice %755 {offsets = [24, 0], sizes = [8, 8], strides = [1, 1]} : vector<32x8xf32> to vector<8x8xf32>
    %1193 = vector.extract_strided_slice %746 {offsets = [0, 24], sizes = [8, 8], strides = [1, 1]} : vector<8x32xf32> to vector<8x8xf32>
    %1194 = vector.extract_strided_slice %1192 {offsets = [0, 0], sizes = [8, 1], strides = [1, 1]} : vector<8x8xf32> to vector<8x1xf32>
    %1195 = vector.extract_strided_slice %1193 {offsets = [0, 0], sizes = [1, 8], strides = [1, 1]} : vector<8x8xf32> to vector<1x8xf32>
    %1196 = vector.broadcast %1194 : vector<8x1xf32> to vector<8x8xf32>
    %1197 = vector.broadcast %1195 : vector<1x8xf32> to vector<8x8xf32>
    %1198 = arith.mulf %1196, %1197 : vector<8x8xf32>
    %1199 = vector.broadcast %1189 : vector<8x1xf32> to vector<8x8xf32>
    %1200 = arith.mulf %1199, %1198 : vector<8x8xf32>
    %1201 = arith.addf %1188, %1200 : vector<8x8xf32>
    %1202 = vector.extract_strided_slice %1191 {offsets = [0, 0], sizes = [8, 1], strides = [1, 1]} : vector<8x8xf32> to vector<8x1xf32>
    %1203 = vector.broadcast %1202 : vector<8x1xf32> to vector<8x8xf32>
    %1204 = arith.mulf %1203, %1201 : vector<8x8xf32>
    %cst_262 = arith.constant dense<0.000000e+00> : vector<8xf32>
    %1205 = vector.multi_reduction <add>, %1204, %cst_262 [0] : vector<8x8xf32> to vector<8xf32>
    %1206 = vector.shape_cast %1205 : vector<8xf32> to vector<1x8xf32>
    %c0_263 = arith.constant 0 : index
    %c24_264 = arith.constant 24 : index
    %1207 = vector.load %arg37[%c0_263, %c24_264] : memref<8x32xf32, #tpu.memory_space<vmem>>, vector<1x8xf32>
    tpu.vector_store %arg37[%c0_263, %c24_264], %1206 {strides = array<i32>} : memref<8x32xf32, #tpu.memory_space<vmem>>, vector<1x8xf32>,
    %1208 = vector.broadcast %1190 : vector<8x1xf32> to vector<8x8xf32>
    %1209 = arith.mulf %1208, %1188 : vector<8x8xf32>
    %1210 = arith.addf %1209, %1198 : vector<8x8xf32>
    %1211 = vector.extract_strided_slice %1192 {offsets = [0, 1], sizes = [8, 1], strides = [1, 1]} : vector<8x8xf32> to vector<8x1xf32>
    %1212 = vector.extract_strided_slice %1193 {offsets = [1, 0], sizes = [1, 8], strides = [1, 1]} : vector<8x8xf32> to vector<1x8xf32>
    %1213 = vector.broadcast %1211 : vector<8x1xf32> to vector<8x8xf32>
    %1214 = vector.broadcast %1212 : vector<1x8xf32> to vector<8x8xf32>
    %1215 = arith.mulf %1213, %1214 : vector<8x8xf32>
    %1216 = vector.broadcast %1189 : vector<8x1xf32> to vector<8x8xf32>
    %1217 = arith.mulf %1216, %1215 : vector<8x8xf32>
    %1218 = arith.addf %1210, %1217 : vector<8x8xf32>
    %1219 = vector.extract_strided_slice %1191 {offsets = [0, 1], sizes = [8, 1], strides = [1, 1]} : vector<8x8xf32> to vector<8x1xf32>
    %1220 = vector.broadcast %1219 : vector<8x1xf32> to vector<8x8xf32>
    %1221 = arith.mulf %1220, %1218 : vector<8x8xf32>
    %cst_265 = arith.constant dense<0.000000e+00> : vector<8xf32>
    %1222 = vector.multi_reduction <add>, %1221, %cst_265 [0] : vector<8x8xf32> to vector<8xf32>
    %1223 = vector.shape_cast %1222 : vector<8xf32> to vector<1x8xf32>
    %c1_266 = arith.constant 1 : index
    %c24_267 = arith.constant 24 : index
    %1224 = vector.load %arg37[%c1_266, %c24_267] : memref<8x32xf32, #tpu.memory_space<vmem>>, vector<1x8xf32>
    tpu.vector_store %arg37[%c1_266, %c24_267], %1223 {strides = array<i32>} : memref<8x32xf32, #tpu.memory_space<vmem>>, vector<1x8xf32>,
    %1225 = vector.broadcast %1190 : vector<8x1xf32> to vector<8x8xf32>
    %1226 = arith.mulf %1225, %1210 : vector<8x8xf32>
    %1227 = arith.addf %1226, %1215 : vector<8x8xf32>
    %1228 = vector.extract_strided_slice %1192 {offsets = [0, 2], sizes = [8, 1], strides = [1, 1]} : vector<8x8xf32> to vector<8x1xf32>
    %1229 = vector.extract_strided_slice %1193 {offsets = [2, 0], sizes = [1, 8], strides = [1, 1]} : vector<8x8xf32> to vector<1x8xf32>
    %1230 = vector.broadcast %1228 : vector<8x1xf32> to vector<8x8xf32>
    %1231 = vector.broadcast %1229 : vector<1x8xf32> to vector<8x8xf32>
    %1232 = arith.mulf %1230, %1231 : vector<8x8xf32>
    %1233 = vector.broadcast %1189 : vector<8x1xf32> to vector<8x8xf32>
    %1234 = arith.mulf %1233, %1232 : vector<8x8xf32>
    %1235 = arith.addf %1227, %1234 : vector<8x8xf32>
    %1236 = vector.extract_strided_slice %1191 {offsets = [0, 2], sizes = [8, 1], strides = [1, 1]} : vector<8x8xf32> to vector<8x1xf32>
    %1237 = vector.broadcast %1236 : vector<8x1xf32> to vector<8x8xf32>
    %1238 = arith.mulf %1237, %1235 : vector<8x8xf32>
    %cst_268 = arith.constant dense<0.000000e+00> : vector<8xf32>
    %1239 = vector.multi_reduction <add>, %1238, %cst_268 [0] : vector<8x8xf32> to vector<8xf32>
    %1240 = vector.shape_cast %1239 : vector<8xf32> to vector<1x8xf32>
    %c2_269 = arith.constant 2 : index
    %c24_270 = arith.constant 24 : index
    %1241 = vector.load %arg37[%c2_269, %c24_270] : memref<8x32xf32, #tpu.memory_space<vmem>>, vector<1x8xf32>
    tpu.vector_store %arg37[%c2_269, %c24_270], %1240 {strides = array<i32>} : memref<8x32xf32, #tpu.memory_space<vmem>>, vector<1x8xf32>,
    %1242 = vector.broadcast %1190 : vector<8x1xf32> to vector<8x8xf32>
    %1243 = arith.mulf %1242, %1227 : vector<8x8xf32>
    %1244 = arith.addf %1243, %1232 : vector<8x8xf32>
    %1245 = vector.extract_strided_slice %1192 {offsets = [0, 3], sizes = [8, 1], strides = [1, 1]} : vector<8x8xf32> to vector<8x1xf32>
    %1246 = vector.extract_strided_slice %1193 {offsets = [3, 0], sizes = [1, 8], strides = [1, 1]} : vector<8x8xf32> to vector<1x8xf32>
    %1247 = vector.broadcast %1245 : vector<8x1xf32> to vector<8x8xf32>
    %1248 = vector.broadcast %1246 : vector<1x8xf32> to vector<8x8xf32>
    %1249 = arith.mulf %1247, %1248 : vector<8x8xf32>
    %1250 = vector.broadcast %1189 : vector<8x1xf32> to vector<8x8xf32>
    %1251 = arith.mulf %1250, %1249 : vector<8x8xf32>
    %1252 = arith.addf %1244, %1251 : vector<8x8xf32>
    %1253 = vector.extract_strided_slice %1191 {offsets = [0, 3], sizes = [8, 1], strides = [1, 1]} : vector<8x8xf32> to vector<8x1xf32>
    %1254 = vector.broadcast %1253 : vector<8x1xf32> to vector<8x8xf32>
    %1255 = arith.mulf %1254, %1252 : vector<8x8xf32>
    %cst_271 = arith.constant dense<0.000000e+00> : vector<8xf32>
    %1256 = vector.multi_reduction <add>, %1255, %cst_271 [0] : vector<8x8xf32> to vector<8xf32>
    %1257 = vector.shape_cast %1256 : vector<8xf32> to vector<1x8xf32>
    %c3_272 = arith.constant 3 : index
    %c24_273 = arith.constant 24 : index
    %1258 = vector.load %arg37[%c3_272, %c24_273] : memref<8x32xf32, #tpu.memory_space<vmem>>, vector<1x8xf32>
    tpu.vector_store %arg37[%c3_272, %c24_273], %1257 {strides = array<i32>} : memref<8x32xf32, #tpu.memory_space<vmem>>, vector<1x8xf32>,
    %1259 = vector.broadcast %1190 : vector<8x1xf32> to vector<8x8xf32>
    %1260 = arith.mulf %1259, %1244 : vector<8x8xf32>
    %1261 = arith.addf %1260, %1249 : vector<8x8xf32>
    %1262 = vector.extract_strided_slice %1192 {offsets = [0, 4], sizes = [8, 1], strides = [1, 1]} : vector<8x8xf32> to vector<8x1xf32>
    %1263 = vector.extract_strided_slice %1193 {offsets = [4, 0], sizes = [1, 8], strides = [1, 1]} : vector<8x8xf32> to vector<1x8xf32>
    %1264 = vector.broadcast %1262 : vector<8x1xf32> to vector<8x8xf32>
    %1265 = vector.broadcast %1263 : vector<1x8xf32> to vector<8x8xf32>
    %1266 = arith.mulf %1264, %1265 : vector<8x8xf32>
    %1267 = vector.broadcast %1189 : vector<8x1xf32> to vector<8x8xf32>
    %1268 = arith.mulf %1267, %1266 : vector<8x8xf32>
    %1269 = arith.addf %1261, %1268 : vector<8x8xf32>
    %1270 = vector.extract_strided_slice %1191 {offsets = [0, 4], sizes = [8, 1], strides = [1, 1]} : vector<8x8xf32> to vector<8x1xf32>
    %1271 = vector.broadcast %1270 : vector<8x1xf32> to vector<8x8xf32>
    %1272 = arith.mulf %1271, %1269 : vector<8x8xf32>
    %cst_274 = arith.constant dense<0.000000e+00> : vector<8xf32>
    %1273 = vector.multi_reduction <add>, %1272, %cst_274 [0] : vector<8x8xf32> to vector<8xf32>
    %1274 = vector.shape_cast %1273 : vector<8xf32> to vector<1x8xf32>
    %c4_275 = arith.constant 4 : index
    %c24_276 = arith.constant 24 : index
    %1275 = vector.load %arg37[%c4_275, %c24_276] : memref<8x32xf32, #tpu.memory_space<vmem>>, vector<1x8xf32>
    tpu.vector_store %arg37[%c4_275, %c24_276], %1274 {strides = array<i32>} : memref<8x32xf32, #tpu.memory_space<vmem>>, vector<1x8xf32>,
    %1276 = vector.broadcast %1190 : vector<8x1xf32> to vector<8x8xf32>
    %1277 = arith.mulf %1276, %1261 : vector<8x8xf32>
    %1278 = arith.addf %1277, %1266 : vector<8x8xf32>
    %1279 = vector.extract_strided_slice %1192 {offsets = [0, 5], sizes = [8, 1], strides = [1, 1]} : vector<8x8xf32> to vector<8x1xf32>
    %1280 = vector.extract_strided_slice %1193 {offsets = [5, 0], sizes = [1, 8], strides = [1, 1]} : vector<8x8xf32> to vector<1x8xf32>
    %1281 = vector.broadcast %1279 : vector<8x1xf32> to vector<8x8xf32>
    %1282 = vector.broadcast %1280 : vector<1x8xf32> to vector<8x8xf32>
    %1283 = arith.mulf %1281, %1282 : vector<8x8xf32>
    %1284 = vector.broadcast %1189 : vector<8x1xf32> to vector<8x8xf32>
    %1285 = arith.mulf %1284, %1283 : vector<8x8xf32>
    %1286 = arith.addf %1278, %1285 : vector<8x8xf32>
    %1287 = vector.extract_strided_slice %1191 {offsets = [0, 5], sizes = [8, 1], strides = [1, 1]} : vector<8x8xf32> to vector<8x1xf32>
    %1288 = vector.broadcast %1287 : vector<8x1xf32> to vector<8x8xf32>
    %1289 = arith.mulf %1288, %1286 : vector<8x8xf32>
    %cst_277 = arith.constant dense<0.000000e+00> : vector<8xf32>
    %1290 = vector.multi_reduction <add>, %1289, %cst_277 [0] : vector<8x8xf32> to vector<8xf32>
    %1291 = vector.shape_cast %1290 : vector<8xf32> to vector<1x8xf32>
    %c5_278 = arith.constant 5 : index
    %c24_279 = arith.constant 24 : index
    %1292 = vector.load %arg37[%c5_278, %c24_279] : memref<8x32xf32, #tpu.memory_space<vmem>>, vector<1x8xf32>
    tpu.vector_store %arg37[%c5_278, %c24_279], %1291 {strides = array<i32>} : memref<8x32xf32, #tpu.memory_space<vmem>>, vector<1x8xf32>,
    %1293 = vector.broadcast %1190 : vector<8x1xf32> to vector<8x8xf32>
    %1294 = arith.mulf %1293, %1278 : vector<8x8xf32>
    %1295 = arith.addf %1294, %1283 : vector<8x8xf32>
    %1296 = vector.extract_strided_slice %1192 {offsets = [0, 6], sizes = [8, 1], strides = [1, 1]} : vector<8x8xf32> to vector<8x1xf32>
    %1297 = vector.extract_strided_slice %1193 {offsets = [6, 0], sizes = [1, 8], strides = [1, 1]} : vector<8x8xf32> to vector<1x8xf32>
    %1298 = vector.broadcast %1296 : vector<8x1xf32> to vector<8x8xf32>
    %1299 = vector.broadcast %1297 : vector<1x8xf32> to vector<8x8xf32>
    %1300 = arith.mulf %1298, %1299 : vector<8x8xf32>
    %1301 = vector.broadcast %1189 : vector<8x1xf32> to vector<8x8xf32>
    %1302 = arith.mulf %1301, %1300 : vector<8x8xf32>
    %1303 = arith.addf %1295, %1302 : vector<8x8xf32>
    %1304 = vector.extract_strided_slice %1191 {offsets = [0, 6], sizes = [8, 1], strides = [1, 1]} : vector<8x8xf32> to vector<8x1xf32>
    %1305 = vector.broadcast %1304 : vector<8x1xf32> to vector<8x8xf32>
    %1306 = arith.mulf %1305, %1303 : vector<8x8xf32>
    %cst_280 = arith.constant dense<0.000000e+00> : vector<8xf32>
    %1307 = vector.multi_reduction <add>, %1306, %cst_280 [0] : vector<8x8xf32> to vector<8xf32>
    %1308 = vector.shape_cast %1307 : vector<8xf32> to vector<1x8xf32>
    %c6_281 = arith.constant 6 : index
    %c24_282 = arith.constant 24 : index
    %1309 = vector.load %arg37[%c6_281, %c24_282] : memref<8x32xf32, #tpu.memory_space<vmem>>, vector<1x8xf32>
    tpu.vector_store %arg37[%c6_281, %c24_282], %1308 {strides = array<i32>} : memref<8x32xf32, #tpu.memory_space<vmem>>, vector<1x8xf32>,
    %1310 = vector.broadcast %1190 : vector<8x1xf32> to vector<8x8xf32>
    %1311 = arith.mulf %1310, %1295 : vector<8x8xf32>
    %1312 = arith.addf %1311, %1300 : vector<8x8xf32>
    %1313 = vector.extract_strided_slice %1192 {offsets = [0, 7], sizes = [8, 1], strides = [1, 1]} : vector<8x8xf32> to vector<8x1xf32>
    %1314 = vector.extract_strided_slice %1193 {offsets = [7, 0], sizes = [1, 8], strides = [1, 1]} : vector<8x8xf32> to vector<1x8xf32>
    %1315 = vector.broadcast %1313 : vector<8x1xf32> to vector<8x8xf32>
    %1316 = vector.broadcast %1314 : vector<1x8xf32> to vector<8x8xf32>
    %1317 = arith.mulf %1315, %1316 : vector<8x8xf32>
    %1318 = vector.broadcast %1189 : vector<8x1xf32> to vector<8x8xf32>
    %1319 = arith.mulf %1318, %1317 : vector<8x8xf32>
    %1320 = arith.addf %1312, %1319 : vector<8x8xf32>
    %1321 = vector.extract_strided_slice %1191 {offsets = [0, 7], sizes = [8, 1], strides = [1, 1]} : vector<8x8xf32> to vector<8x1xf32>
    %1322 = vector.broadcast %1321 : vector<8x1xf32> to vector<8x8xf32>
    %1323 = arith.mulf %1322, %1320 : vector<8x8xf32>
    %cst_283 = arith.constant dense<0.000000e+00> : vector<8xf32>
    %1324 = vector.multi_reduction <add>, %1323, %cst_283 [0] : vector<8x8xf32> to vector<8xf32>
    %1325 = vector.shape_cast %1324 : vector<8xf32> to vector<1x8xf32>
    %c7_284 = arith.constant 7 : index
    %c24_285 = arith.constant 24 : index
    %1326 = vector.load %arg37[%c7_284, %c24_285] : memref<8x32xf32, #tpu.memory_space<vmem>>, vector<1x8xf32>
    tpu.vector_store %arg37[%c7_284, %c24_285], %1325 {strides = array<i32>} : memref<8x32xf32, #tpu.memory_space<vmem>>, vector<1x8xf32>,
    %1327 = vector.broadcast %1190 : vector<8x1xf32> to vector<8x8xf32>
    %1328 = arith.mulf %1327, %1312 : vector<8x8xf32>
    %1329 = arith.addf %1328, %1317 : vector<8x8xf32>
    %c24_286 = arith.constant 24 : index
    %c0_287 = arith.constant 0 : index
    %1330 = vector.load %arg36[%c24_286, %c0_287] : memref<32x8xf32, #tpu.memory_space<vmem>>, vector<8x8xf32>
    tpu.vector_store %arg36[%c24_286, %c0_287], %1329 {strides = array<i32>} : memref<32x8xf32, #tpu.memory_space<vmem>>, vector<8x8xf32>,
    %c0_288 = arith.constant 0 : index
    %c0_289 = arith.constant 0 : index
    %1331 = vector.load %arg37[%c0_288, %c0_289] : memref<8x32xf32, #tpu.memory_space<vmem>>, vector<8x32xf32>
    %cst_290 = arith.constant 1.250000e-01 : f32
    %1332 = vector.broadcast %cst_290 : f32 to vector<8x32xf32>
    %1333 = arith.mulf %1331, %1332 : vector<8x32xf32>
    %c0_291 = arith.constant 0 : index
    %c0_292 = arith.constant 0 : index
    %1334 = vector.load %arg4[%c0_291, %c0_292] : memref<32x32xf32, #tpu.memory_space<vmem>>, vector<32x32xf32>
    %cst_293 = arith.constant dense<0.000000e+00> : vector<8x32xf32>
    %1335 = tpu.matmul %1333, %1334, %cst_293 {dimension_numbers = #tpu.dot_dimension_numbers<[1], [0], [0], [1], [0, 0, 1, 1], [], []>} : vector<8x32xf32>, vector<32x32xf32>, vector<8x32xf32> -> vector<8x32xf32>
    %1336 = arith.mulf %1333, %1333 : vector<8x32xf32>
    %c0_294 = arith.constant 0 : index
    %c0_295 = arith.constant 0 : index
    %1337 = vector.load %arg4[%c0_294, %c0_295] : memref<32x32xf32, #tpu.memory_space<vmem>>, vector<32x32xf32>
    %cst_296 = arith.constant dense<0.000000e+00> : vector<8x32xf32>
    %1338 = tpu.matmul %1336, %1337, %cst_296 {dimension_numbers = #tpu.dot_dimension_numbers<[1], [0], [0], [1], [0, 0, 1, 1], [], []>} : vector<8x32xf32>, vector<32x32xf32>, vector<8x32xf32> -> vector<8x32xf32>
    %1339 = arith.mulf %1335, %1335 : vector<8x32xf32>
    %1340 = arith.subf %1338, %1339 : vector<8x32xf32>
    %cst_297 = arith.constant 0.000000e+00 : f32
    %1341 = vector.broadcast %cst_297 : f32 to vector<8x32xf32>
    %1342 = arith.maximumf %1340, %1341 : vector<8x32xf32>
    %1343 = arith.subf %1333, %1335 : vector<8x32xf32>
    %cst_298 = arith.constant 9.99999974E-6 : f32
    %1344 = vector.broadcast %cst_298 : f32 to vector<8x32xf32>
    %1345 = arith.addf %1342, %1344 : vector<8x32xf32>
    %1346 = math.rsqrt %1345 : vector<8x32xf32>
    %1347 = arith.mulf %1343, %1346 : vector<8x32xf32>
    %c0_299 = arith.constant 0 : index
    %c0_300 = arith.constant 0 : index
    %1348 = vector.load %arg27[%c0_299, %c0_300] : memref<1x32xf32, #tpu.memory_space<vmem>>, vector<1x32xf32>
    %1349 = vector.broadcast %1348 : vector<1x32xf32> to vector<8x32xf32>
    %1350 = arith.mulf %1347, %1349 : vector<8x32xf32>
    %c0_301 = arith.constant 0 : index
    %c0_302 = arith.constant 0 : index
    %1351 = vector.load %arg28[%c0_301, %c0_302] : memref<1x32xf32, #tpu.memory_space<vmem>>, vector<1x32xf32>
    %1352 = vector.broadcast %1351 : vector<1x32xf32> to vector<8x32xf32>
    %1353 = arith.addf %1350, %1352 : vector<8x32xf32>
    %1354 = arith.mulf %1353, %753 : vector<8x32xf32>
    %c0_303 = arith.constant 0 : index
    %c0_304 = arith.constant 0 : index
    %1355 = vector.load %arg29[%c0_303, %c0_304] : memref<32x32xf32, #tpu.memory_space<vmem>>, vector<32x32xf32>
    %cst_305 = arith.constant dense<0.000000e+00> : vector<8x32xf32>
    %1356 = tpu.matmul %1354, %1355, %cst_305 {dimension_numbers = #tpu.dot_dimension_numbers<[1], [0], [0], [1], [0, 0, 1, 1], [], []>} : vector<8x32xf32>, vector<32x32xf32>, vector<8x32xf32> -> vector<8x32xf32>
    %1357 = arith.addf %717, %1356 : vector<8x32xf32>
    %c0_306 = arith.constant 0 : index
    %c0_307 = arith.constant 0 : index
    %1358 = vector.load %arg30[%c0_306, %c0_307] : memref<1x32xf32, #tpu.memory_space<vmem>>, vector<1x32xf32>
    %c0_308 = arith.constant 0 : index
    %c0_309 = arith.constant 0 : index
    %1359 = vector.load %arg31[%c0_308, %c0_309] : memref<1x32xf32, #tpu.memory_space<vmem>>, vector<1x32xf32>
    %cst_310 = arith.constant dense<0.000000e+00> : vector<8xf32>
    %1360 = vector.multi_reduction <add>, %1357, %cst_310 [1] : vector<8x32xf32> to vector<8xf32>
    %1361 = vector.shape_cast %1360 : vector<8xf32> to vector<8x1xf32>
    %cst_311 = arith.constant 3.200000e+01 : f32
    %1362 = vector.broadcast %cst_311 : f32 to vector<8x1xf32>
    %1363 = arith.divf %1361, %1362 : vector<8x1xf32>
    %1364 = vector.broadcast %1363 : vector<8x1xf32> to vector<8x32xf32>
    %1365 = arith.subf %1357, %1364 : vector<8x32xf32>
    %1366 = arith.mulf %1365, %1365 : vector<8x32xf32>
    %cst_312 = arith.constant dense<0.000000e+00> : vector<8xf32>
    %1367 = vector.multi_reduction <add>, %1366, %cst_312 [1] : vector<8x32xf32> to vector<8xf32>
    %1368 = vector.shape_cast %1367 : vector<8xf32> to vector<8x1xf32>
    %cst_313 = arith.constant 3.200000e+01 : f32
    %1369 = vector.broadcast %cst_313 : f32 to vector<8x1xf32>
    %1370 = arith.divf %1368, %1369 : vector<8x1xf32>
    %cst_314 = arith.constant 9.99999974E-6 : f32
    %1371 = vector.broadcast %cst_314 : f32 to vector<8x1xf32>
    %1372 = arith.addf %1370, %1371 : vector<8x1xf32>
    %1373 = math.rsqrt %1372 : vector<8x1xf32>
    %1374 = vector.broadcast %1373 : vector<8x1xf32> to vector<8x32xf32>
    %1375 = arith.mulf %1365, %1374 : vector<8x32xf32>
    %1376 = vector.broadcast %1358 : vector<1x32xf32> to vector<8x32xf32>
    %1377 = arith.mulf %1375, %1376 : vector<8x32xf32>
    %1378 = vector.broadcast %1359 : vector<1x32xf32> to vector<8x32xf32>
    %1379 = arith.addf %1377, %1378 : vector<8x32xf32>
    %cst_315 = arith.constant dense<0.000000e+00> : vector<8x32xf32>
    %1380 = tpu.matmul %7, %1379, %cst_315 {dimension_numbers = #tpu.dot_dimension_numbers<[1], [0], [0], [1], [0, 0, 1, 1], [], []>} : vector<8x8xf32>, vector<8x32xf32>, vector<8x32xf32> -> vector<8x32xf32>
    %1381 = tpu.concatenate %1379, %1380 in 1 : vector<8x32xf32>, vector<8x32xf32> -> vector<8x64xf32>
    %c0_316 = arith.constant 0 : index
    %c0_317 = arith.constant 0 : index
    %1382 = vector.load %arg32[%c0_316, %c0_317] : memref<64x128xf32, #tpu.memory_space<vmem>>, vector<64x128xf32>
    %cst_318 = arith.constant dense<0.000000e+00> : vector<8x128xf32>
    %1383 = tpu.matmul %1381, %1382, %cst_318 {dimension_numbers = #tpu.dot_dimension_numbers<[1], [0], [0], [1], [0, 0, 1, 1], [], []>} : vector<8x64xf32>, vector<64x128xf32>, vector<8x128xf32> -> vector<8x128xf32>
    %1384 = vector.extract_strided_slice %1383 {offsets = [0, 0], sizes = [8, 96], strides = [1, 1]} : vector<8x128xf32> to vector<8x96xf32>
    %cst_319 = arith.constant 0.000000e+00 : f32
    %1385 = vector.broadcast %cst_319 : f32 to vector<8x96xf32>
    %1386 = arith.maximumf %1384, %1385 : vector<8x96xf32>
    %1387 = arith.mulf %1386, %1386 : vector<8x96xf32>
    %1388 = vector.extract_strided_slice %1383 {offsets = [0, 96], sizes = [8, 32], strides = [1, 1]} : vector<8x128xf32> to vector<8x32xf32>
    %c0_320 = arith.constant 0 : index
    %c0_321 = arith.constant 0 : index
    %1389 = vector.load %arg33[%c0_320, %c0_321] : memref<96x32xf32, #tpu.memory_space<vmem>>, vector<96x32xf32>
    %cst_322 = arith.constant dense<0.000000e+00> : vector<8x32xf32>
    %1390 = tpu.matmul %1387, %1389, %cst_322 {dimension_numbers = #tpu.dot_dimension_numbers<[1], [0], [0], [1], [0, 0, 1, 1], [], []>} : vector<8x96xf32>, vector<96x32xf32>, vector<8x32xf32> -> vector<8x32xf32>
    %1391 = arith.negf %1388 : vector<8x32xf32>
    %1392 = math.exp %1391 : vector<8x32xf32>
    %cst_323 = arith.constant 1.000000e+00 : f32
    %1393 = vector.broadcast %cst_323 : f32 to vector<8x32xf32>
    %1394 = arith.addf %1393, %1392 : vector<8x32xf32>
    %1395 = arith.divf %1393, %1394 : vector<8x32xf32>
    %1396 = arith.mulf %1395, %1390 : vector<8x32xf32>
    %1397 = arith.addf %1357, %1396 : vector<8x32xf32>
    %c0_324 = arith.constant 0 : index
    %c0_325 = arith.constant 0 : index
    %1398 = vector.load %arg5[%c0_324, %c0_325] : memref<1x32xf32, #tpu.memory_space<vmem>>, vector<1x32xf32>
    %c0_326 = arith.constant 0 : index
    %c0_327 = arith.constant 0 : index
    %1399 = vector.load %arg6[%c0_326, %c0_327] : memref<1x32xf32, #tpu.memory_space<vmem>>, vector<1x32xf32>
    %cst_328 = arith.constant dense<0.000000e+00> : vector<8xf32>
    %1400 = vector.multi_reduction <add>, %1397, %cst_328 [1] : vector<8x32xf32> to vector<8xf32>
    %1401 = vector.shape_cast %1400 : vector<8xf32> to vector<8x1xf32>
    %cst_329 = arith.constant 3.200000e+01 : f32
    %1402 = vector.broadcast %cst_329 : f32 to vector<8x1xf32>
    %1403 = arith.divf %1401, %1402 : vector<8x1xf32>
    %1404 = vector.broadcast %1403 : vector<8x1xf32> to vector<8x32xf32>
    %1405 = arith.subf %1397, %1404 : vector<8x32xf32>
    %1406 = arith.mulf %1405, %1405 : vector<8x32xf32>
    %cst_330 = arith.constant dense<0.000000e+00> : vector<8xf32>
    %1407 = vector.multi_reduction <add>, %1406, %cst_330 [1] : vector<8x32xf32> to vector<8xf32>
    %1408 = vector.shape_cast %1407 : vector<8xf32> to vector<8x1xf32>
    %cst_331 = arith.constant 3.200000e+01 : f32
    %1409 = vector.broadcast %cst_331 : f32 to vector<8x1xf32>
    %1410 = arith.divf %1408, %1409 : vector<8x1xf32>
    %cst_332 = arith.constant 9.99999974E-6 : f32
    %1411 = vector.broadcast %cst_332 : f32 to vector<8x1xf32>
    %1412 = arith.addf %1410, %1411 : vector<8x1xf32>
    %1413 = math.rsqrt %1412 : vector<8x1xf32>
    %1414 = vector.broadcast %1413 : vector<8x1xf32> to vector<8x32xf32>
    %1415 = arith.mulf %1405, %1414 : vector<8x32xf32>
    %1416 = vector.broadcast %1398 : vector<1x32xf32> to vector<8x32xf32>
    %1417 = arith.mulf %1415, %1416 : vector<8x32xf32>
    %1418 = vector.broadcast %1399 : vector<1x32xf32> to vector<8x32xf32>
    %1419 = arith.addf %1417, %1418 : vector<8x32xf32>
    %c0_333 = arith.constant 0 : index
    %c0_334 = arith.constant 0 : index
    %1420 = vector.load %arg7[%c0_333, %c0_334] : memref<32x128xf32, #tpu.memory_space<vmem>>, vector<32x128xf32>
    %cst_335 = arith.constant dense<0.000000e+00> : vector<8x128xf32>
    %1421 = tpu.matmul %1419, %1420, %cst_335 {dimension_numbers = #tpu.dot_dimension_numbers<[1], [0], [0], [1], [0, 0, 1, 1], [], []>} : vector<8x32xf32>, vector<32x128xf32>, vector<8x128xf32> -> vector<8x128xf32>
    %c0_336 = arith.constant 0 : index
    %c0_337 = arith.constant 0 : index
    %1422 = vector.load %arg35[%c0_336, %c0_337] : memref<8x128xf32, #tpu.memory_space<vmem>>, vector<8x128xf32>
    tpu.vector_store %arg35[%c0_336, %c0_337], %1421 {strides = array<i32>} : memref<8x128xf32, #tpu.memory_space<vmem>>, vector<8x128xf32>,
    %1423 = tpu.iota {dimensions = array<i32: 1>} : vector<8x128xi32>
    %c64_i32 = arith.constant 64 : i32
    %1424 = vector.broadcast %c64_i32 : i32 to vector<8x128xi32>
    %1425 = arith.cmpi slt, %1423, %1424 : vector<8x128xi32>
    %cst_338 = arith.constant -1.000000e+30 : f32
    %1426 = vector.broadcast %cst_338 : f32 to vector<8x128xf32>
    %1427 = arith.select %1425, %1421, %1426 : vector<8x128xi1>, vector<8x128xf32>
    %cst_339 = arith.constant dense<0xFF800000> : vector<8xf32>
    %1428 = vector.multi_reduction <maximumf>, %1427, %cst_339 [1] : vector<8x128xf32> to vector<8xf32>
    %1429 = vector.shape_cast %1428 : vector<8xf32> to vector<8x1xf32>
    %1430 = vector.broadcast %1429 : vector<8x1xf32> to vector<8x128xf32>
    %1431 = arith.subf %1427, %1430 : vector<8x128xf32>
    %1432 = math.exp %1431 : vector<8x128xf32>
    %cst_340 = arith.constant 0.000000e+00 : f32
    %1433 = vector.broadcast %cst_340 : f32 to vector<8x128xf32>
    %1434 = arith.select %1425, %1432, %1433 : vector<8x128xi1>, vector<8x128xf32>
    %1435 = vector.broadcast %1429 : vector<8x1xf32> to vector<8x128xf32>
    %1436 = arith.subf %1427, %1435 : vector<8x128xf32>
    %cst_341 = arith.constant dense<0.000000e+00> : vector<8xf32>
    %1437 = vector.multi_reduction <add>, %1434, %cst_341 [1] : vector<8x128xf32> to vector<8xf32>
    %1438 = vector.shape_cast %1437 : vector<8xf32> to vector<8x1xf32>
    %1439 = math.log %1438 : vector<8x1xf32>
    %1440 = vector.broadcast %1439 : vector<8x1xf32> to vector<8x128xf32>
    %1441 = arith.subf %1436, %1440 : vector<8x128xf32>
    %c0_342 = arith.constant 0 : index
    %c0_343 = arith.constant 0 : index
    %1442 = vector.load %arg1[%c0_342, %c0_343] : memref<8x1xi32, #tpu.memory_space<vmem>>, vector<8x1xi32>
    %1443 = vector.broadcast %1442 : vector<8x1xi32> to vector<8x128xi32>
    %1444 = arith.cmpi eq, %1423, %1443 : vector<8x128xi32>
    %1445 = arith.extui %1444 : vector<8x128xi1> to vector<8x128xi32>
    %1446 = arith.sitofp %1445 : vector<8x128xi32> to vector<8x128xf32>
    %1447 = arith.mulf %1446, %1441 : vector<8x128xf32>
    %cst_344 = arith.constant dense<0.000000e+00> : vector<8xf32>
    %1448 = vector.multi_reduction <add>, %1447, %cst_344 [1] : vector<8x128xf32> to vector<8xf32>
    %1449 = vector.shape_cast %1448 : vector<8xf32> to vector<8x1xf32>
    %cst_345 = arith.constant 0.000000e+00 : f32
    %1450 = vector.broadcast %cst_345 : f32 to vector<8x1xf32>
    %1451 = arith.subf %1450, %1449 : vector<8x1xf32>
    %c0_i32 = arith.constant 0 : i32
    %1452 = vector.broadcast %c0_i32 : i32 to vector<8x1xi32>
    %1453 = arith.cmpi ne, %8, %1452 : vector<8x1xi32>
    %1454 = arith.extui %1453 : vector<8x1xi1> to vector<8x1xi32>
    %1455 = arith.sitofp %1454 : vector<8x1xi32> to vector<8x1xf32>
    %1456 = arith.mulf %1451, %1455 : vector<8x1xf32>
    %1457 = vector.shape_cast %1456 : vector<8x1xf32> to vector<1x8x1xf32>
    %cst_346 = arith.constant dense<0.000000e+00> : vector<1xf32>
    %1458 = vector.multi_reduction <add>, %1457, %cst_346 [1, 2] : vector<1x8x1xf32> to vector<1xf32>
    %1459 = vector.shape_cast %1458 : vector<1xf32> to vector<1x1x1xf32>
    %1460 = vector.extract %1459[0, 0, 0] : f32 from vector<1x1x1xf32>
    %1461 = vector.broadcast %1460 : f32 to vector<1x1xf32>
    %1462 = vector.shape_cast %1455 : vector<8x1xf32> to vector<1x8x1xf32>
    %cst_347 = arith.constant dense<0.000000e+00> : vector<1xf32>
    %1463 = vector.multi_reduction <add>, %1462, %cst_347 [1, 2] : vector<1x8x1xf32> to vector<1xf32>
    %1464 = vector.shape_cast %1463 : vector<1xf32> to vector<1x1x1xf32>
    %1465 = vector.extract %1464[0, 0, 0] : f32 from vector<1x1x1xf32>
    %1466 = vector.broadcast %1465 : f32 to vector<1x1xf32>
    %1467 = arith.divf %1461, %1466 : vector<1x1xf32>
    %c0_348 = arith.constant 0 : index
    %c0_349 = arith.constant 0 : index
    %1468 = vector.load %arg34[%c0_348, %c0_349] : memref<1x1xf32, #tpu.memory_space<vmem>>, vector<1x1xf32>
    tpu.vector_store %arg34[%c0_348, %c0_349], %1467 {strides = array<i32>} : memref<1x1xf32, #tpu.memory_space<vmem>>, vector<1x1xf32>,
    return
  }
}

</mosaic_0001>

<llo_original>
// kernel: rwkv_forward.1
$region0: #{rwkv_forward.1}
  #allocation0 [shape = 'u32[]', space=smem, size = 0x4, offset = 0x4, fixed_abs, tag = 'smem constant byte address 0x4 - core index']
  #allocation1 [shape = 'u32[144,128]{1,0:T(1,128)}', space=vmem, size = 0x12000, scoped, tag = 'internal scratch']
  #allocation2 [shape = 'f32[8,32]{1,0:T(8,128)}', space=vmem, size = 0x1000, scoped, tag = 'scratch operand']
  %s0 = inlined_call_operand.smem [shape: u32[37], index: -1, kind: input, shape index: {}]
  %s1 = sld [smem:[%s0]]
  %s2 = scalar_lea.smem %s0, 1
  %s3 = sld [smem:[%s2]]
  %s4 = scalar_lea.smem %s0, 2
  %s5 = sld [smem:[%s4]]
  %s6 = scalar_lea.smem %s0, 3
  %s7 = sld [smem:[%s6]]
  %s8 = scalar_lea.smem %s0, 4
  %s9 = sld [smem:[%s8]]
  %s10 = scalar_lea.smem %s0, 5
  %s11 = sld [smem:[%s10]]
  %s12 = scalar_lea.smem %s0, 6
  %s13 = sld [smem:[%s12]]
  %s14 = scalar_lea.smem %s0, 7
  %s15 = sld [smem:[%s14]]
  %s16 = scalar_lea.smem %s0, 8
  %s17 = sld [smem:[%s16]]
  %s18 = scalar_lea.smem %s0, 9
  %s19 = sld [smem:[%s18]]
  %s20 = scalar_lea.smem %s0, 10
  %s21 = sld [smem:[%s20]]
  %s22 = scalar_lea.smem %s0, 11
  %s23 = sld [smem:[%s22]]
  %s24 = scalar_lea.smem %s0, 12
  %s25 = sld [smem:[%s24]]
  %s26 = scalar_lea.smem %s0, 13
  %s27 = sld [smem:[%s26]]
  %s28 = scalar_lea.smem %s0, 14
  %s29 = sld [smem:[%s28]]
  %s30 = scalar_lea.smem %s0, 15
  %s31 = sld [smem:[%s30]]
  %s32 = scalar_lea.smem %s0, 16
  %s33 = sld [smem:[%s32]]
  %s34 = scalar_lea.smem %s0, 17
  %s35 = sld [smem:[%s34]]
  %s36 = scalar_lea.smem %s0, 18
  %s37 = sld [smem:[%s36]]
  %s38 = scalar_lea.smem %s0, 19
  %s39 = sld [smem:[%s38]]
  %s40 = scalar_lea.smem %s0, 20
  %s41 = sld [smem:[%s40]]
  %s42 = scalar_lea.smem %s0, 21
  %s43 = sld [smem:[%s42]]
  %s44 = scalar_lea.smem %s0, 22
  %s45 = sld [smem:[%s44]]
  %s46 = scalar_lea.smem %s0, 23
  %s47 = sld [smem:[%s46]]
  %s48 = scalar_lea.smem %s0, 24
  %s49 = sld [smem:[%s48]]
  %s50 = scalar_lea.smem %s0, 25
  %s51 = sld [smem:[%s50]]
  %s52 = scalar_lea.smem %s0, 26
  %s53 = sld [smem:[%s52]]
  %s54 = scalar_lea.smem %s0, 27
  %s55 = sld [smem:[%s54]]
  %s56 = scalar_lea.smem %s0, 28
  %s57 = sld [smem:[%s56]]
  %s58 = scalar_lea.smem %s0, 29
  %s59 = sld [smem:[%s58]]
  %s60 = scalar_lea.smem %s0, 30
  %s61 = sld [smem:[%s60]]
  %s62 = scalar_lea.smem %s0, 31
  %s63 = sld [smem:[%s62]]
  %s64 = scalar_lea.smem %s0, 32
  %s65 = sld [smem:[%s64]]
  %s66 = scalar_lea.smem %s0, 33
  %s67 = sld [smem:[%s66]]
  %s68 = scalar_lea.smem %s0, 34
  %s69 = sld [smem:[%s68]]
  %s70 = scalar_lea.smem %s0, 35
  %s71 = sld [smem:[%s70]]
  %s72 = scalar_lea.smem %s0, 36
  %s73 = sld [smem:[%s72]]
  %74 = xla_tuple %s69, %s71, %s73
  %s75 = sld [smem:[#allocation0]]
  $region194: #{rwkv_forward.1} parent=0
    _
  %s77 = ssub.s32 1, %s75
  %s78 = scalar_select 0, %s77, %s75
  $region1: #{rwkv_forward.1} parent=0
    #allocation3 [shape = 'u8[512]{0}', space=vmem, size = 0x400, scoped, tag = 'input window, operand 8, single buffered']
    #allocation4 [shape = 's32[1]{0}', space=sflag, size = 0x4, scoped, tag = 'scoped memory for rwkv_forward.1']
    #allocation5 [shape = 's32[1]{0}', space=sflag, size = 0x4, scoped, tag = 'scoped memory for rwkv_forward.1']
    #allocation6 [shape = 'u8[512]{0}', space=vmem, size = 0x400, scoped, tag = 'input window, operand 9, single buffered']
    #allocation7 [shape = 's32[1]{0}', space=sflag, size = 0x4, scoped, tag = 'scoped memory for rwkv_forward.1']
    #allocation8 [shape = 'u8[512]{0}', space=vmem, size = 0x400, scoped, tag = 'input window, operand 10, single buffered']
    #allocation9 [shape = 'u8[512]{0}', space=vmem, size = 0x400, scoped, tag = 'input window, operand 11, single buffered']
    #allocation10 [shape = 's32[1]{0}', space=sflag, size = 0x4, scoped, tag = 'scoped memory for rwkv_forward.1']
    #allocation11 [shape = 'u8[512]{0}', space=vmem, size = 0x400, scoped, tag = 'input window, operand 15, single buffered']
    #allocation12 [shape = 'u8[512]{0}', space=vmem, size = 0x400, scoped, tag = 'input window, operand 16, single buffered']
    #allocation13 [shape = 's32[1]{0}', space=sflag, size = 0x4, scoped, tag = 'scoped memory for rwkv_forward.1']
    #allocation14 [shape = 'u8[512]{0}', space=vmem, size = 0x400, scoped, tag = 'input window, operand 18, single buffered']
    #allocation15 [shape = 'u8[512]{0}', space=vmem, size = 0x400, scoped, tag = 'input window, operand 19, single buffered']
    #allocation16 [shape = 's32[1]{0}', space=sflag, size = 0x4, scoped, tag = 'scoped memory for rwkv_forward.1']
    #allocation17 [shape = 'u8[512]{0}', space=vmem, size = 0x400, scoped, tag = 'output window, operand 0, single buffered']
    #allocation18 [shape = 'u8[16384]{0}', space=vmem, size = 0x4000, scoped, tag = 'output window, operand 2, single buffered']
    #allocation19 [shape = 's32[1]{0}', space=sflag, size = 0x4, scoped, tag = 'scoped memory for rwkv_forward.1']
    %79 = vsyncpa [#allocation4], 0
    %80 = vsyncpa [#allocation7], 0
    %81 = vsyncpa [#allocation10], 0
    %82 = vsyncpa [#allocation13], 0
    %83 = vsyncpa [#allocation16], 0
    %84 = vsyncpa [#allocation5], 0
    %85 = vsyncpa [#allocation19], 0
    // Predicated region
    $region2: #{rwkv_forward.1} parent=1 // pred_check
      _
    $region3: #{rwkv_forward.1} parent=1 // pred_check_branch
      %87 = sbr.rel (0) target = $region5
    $region4: #{rwkv_forward.1} parent=1 // pred_region
      _
    $region5: #{rwkv_forward.1} parent=1 // pred_fallthru
      _
    // Predicated region
    $region6: #{rwkv_forward.1} parent=1 // pred_check
      _
    $region7: #{rwkv_forward.1} parent=1 // pred_check_branch
      %89 = sbr.rel (0) target = $region9
    $region8: #{rwkv_forward.1} parent=1 // pred_region
      _
    $region9: #{rwkv_forward.1} parent=1 // pred_fallthru
      _
    // Predicated region
    $region10: #{rwkv_forward.1} parent=1 // pred_check
      _
    $region11: #{rwkv_forward.1} parent=1 // pred_check_branch
      %91 = sbr.rel (0) target = $region13
    $region12: #{rwkv_forward.1} parent=1 // pred_region
      _
    $region13: #{rwkv_forward.1} parent=1 // pred_fallthru
      _
    // Predicated region
    $region14: #{rwkv_forward.1} parent=1 // pred_check
      _
    $region15: #{rwkv_forward.1} parent=1 // pred_check_branch
      %93 = sbr.rel (0) target = $region17
    $region16: #{rwkv_forward.1} parent=1 // pred_region
      _
    $region17: #{rwkv_forward.1} parent=1 // pred_fallthru
      _
    // Predicated region
    $region18: #{rwkv_forward.1} parent=1 // pred_check
      _
    $region19: #{rwkv_forward.1} parent=1 // pred_check_branch
      %95 = sbr.rel (0) target = $region21
    $region20: #{rwkv_forward.1} parent=1 // pred_region
      _
    $region21: #{rwkv_forward.1} parent=1 // pred_fallthru
      _
    // Predicated region
    $region22: #{rwkv_forward.1} parent=1 // pred_check
      _
    $region23: #{rwkv_forward.1} parent=1 // pred_check_branch
      %97 = sbr.rel (0) target = $region25
    $region24: #{rwkv_forward.1} parent=1 // pred_region
      _
    $region25: #{rwkv_forward.1} parent=1 // pred_fallthru
      _
    // Predicated region
    $region26: #{rwkv_forward.1} parent=1 // pred_check
      _
    $region27: #{rwkv_forward.1} parent=1 // pred_check_branch
      %99 = sbr.rel (0) target = $region29
    $region28: #{rwkv_forward.1} parent=1 // pred_region
      _
    $region29: #{rwkv_forward.1} parent=1 // pred_fallthru
      _
    // Predicated region
    $region30: #{rwkv_forward.1} parent=1 // pred_check
      _
    $region31: #{rwkv_forward.1} parent=1 // pred_check_branch
      %101 = sbr.rel (0) target = $region33
    $region32: #{rwkv_forward.1} parent=1 // pred_region
      _
    $region33: #{rwkv_forward.1} parent=1 // pred_fallthru
      _
    // Predicated region
    $region34: #{rwkv_forward.1} parent=1 // pred_check
      _
    $region35: #{rwkv_forward.1} parent=1 // pred_check_branch
      %103 = sbr.rel (0) target = $region37
    $region36: #{rwkv_forward.1} parent=1 // pred_region
      %s105 = ssub.s32 16, 16
      %106 = vsyncadd [#allocation4], %s105
      %s108 = sshll.u32 [#allocation3], 4
      %s109 = int_to_ptr.vmem [resolvable:$true] %s108
      %111 = dma.hbm_to_vmem [thread:$0]  %s17, 16, %s109, [#allocation4]
    $region37: #{rwkv_forward.1} parent=1 // pred_fallthru
      _
    // Predicated region
    $region38: #{rwkv_forward.1} parent=1 // pred_check
      _
    $region39: #{rwkv_forward.1} parent=1 // pred_check_branch
      %113 = sbr.rel (0) target = $region41
    $region40: #{rwkv_forward.1} parent=1 // pred_region
      %s115 = ssub.s32 16, 16
      %116 = vsyncadd [#allocation7], %s115
      %s118 = sshll.u32 [#allocation6], 4
      %s119 = int_to_ptr.vmem [resolvable:$true] %s118
      %121 = dma.hbm_to_vmem [thread:$0]  %s19, 16, %s119, [#allocation7]
    $region41: #{rwkv_forward.1} parent=1 // pred_fallthru
      _
    // Predicated region
    $region42: #{rwkv_forward.1} parent=1 // pred_check
      _
    $region43: #{rwkv_forward.1} parent=1 // pred_check_branch
      %123 = sbr.rel (0) target = $region45
    $region44: #{rwkv_forward.1} parent=1 // pred_region
      %s125 = ssub.s32 16, 16
      %126 = vsyncadd [#allocation7], %s125
      %s128 = sshll.u32 [#allocation8], 4
      %s129 = int_to_ptr.vmem [resolvable:$true] %s128
      %131 = dma.hbm_to_vmem [thread:$0]  %s21, 16, %s129, [#allocation7]
    $region45: #{rwkv_forward.1} parent=1 // pred_fallthru
      _
    // Predicated region
    $region46: #{rwkv_forward.1} parent=1 // pred_check
      _
    $region47: #{rwkv_forward.1} parent=1 // pred_check_branch
      %133 = sbr.rel (0) target = $region49
    $region48: #{rwkv_forward.1} parent=1 // pred_region
      %s135 = ssub.s32 16, 16
      %136 = vsyncadd [#allocation10], %s135
      %s138 = sshll.u32 [#allocation9], 4
      %s139 = int_to_ptr.vmem [resolvable:$true] %s138
      %141 = dma.hbm_to_vmem [thread:$0]  %s23, 16, %s139, [#allocation10]
    $region49: #{rwkv_forward.1} parent=1 // pred_fallthru
      _
    // Predicated region
    $region50: #{rwkv_forward.1} parent=1 // pred_check
      _
    $region51: #{rwkv_forward.1} parent=1 // pred_check_branch
      %143 = sbr.rel (0) target = $region53
    $region52: #{rwkv_forward.1} parent=1 // pred_region
      _
    $region53: #{rwkv_forward.1} parent=1 // pred_fallthru
      _
    // Predicated region
    $region54: #{rwkv_forward.1} parent=1 // pred_check
      _
    $region55: #{rwkv_forward.1} parent=1 // pred_check_branch
      %145 = sbr.rel (0) target = $region57
    $region56: #{rwkv_forward.1} parent=1 // pred_region
      _
    $region57: #{rwkv_forward.1} parent=1 // pred_fallthru
      _
    // Predicated region
    $region58: #{rwkv_forward.1} parent=1 // pred_check
      _
    $region59: #{rwkv_forward.1} parent=1 // pred_check_branch
      %147 = sbr.rel (0) target = $region61
    $region60: #{rwkv_forward.1} parent=1 // pred_region
      _
    $region61: #{rwkv_forward.1} parent=1 // pred_fallthru
      _
    // Predicated region
    $region62: #{rwkv_forward.1} parent=1 // pred_check
      _
    $region63: #{rwkv_forward.1} parent=1 // pred_check_branch
      %149 = sbr.rel (0) target = $region65
    $region64: #{rwkv_forward.1} parent=1 // pred_region
      %s151 = ssub.s32 16, 16
      %152 = vsyncadd [#allocation10], %s151
      %s154 = sshll.u32 [#allocation11], 4
      %s155 = int_to_ptr.vmem [resolvable:$true] %s154
      %157 = dma.hbm_to_vmem [thread:$0]  %s31, 16, %s155, [#allocation10]
    $region65: #{rwkv_forward.1} parent=1 // pred_fallthru
      _
    // Predicated region
    $region66: #{rwkv_forward.1} parent=1 // pred_check
      _
    $region67: #{rwkv_forward.1} parent=1 // pred_check_branch
      %159 = sbr.rel (0) target = $region69
    $region68: #{rwkv_forward.1} parent=1 // pred_region
      %s161 = ssub.s32 16, 16
      %162 = vsyncadd [#allocation13], %s161
      %s164 = sshll.u32 [#allocation12], 4
      %s165 = int_to_ptr.vmem [resolvable:$true] %s164
      %167 = dma.hbm_to_vmem [thread:$0]  %s33, 16, %s165, [#allocation13]
    $region69: #{rwkv_forward.1} parent=1 // pred_fallthru
      _
    // Predicated region
    $region70: #{rwkv_forward.1} parent=1 // pred_check
      _
    $region71: #{rwkv_forward.1} parent=1 // pred_check_branch
      %169 = sbr.rel (0) target = $region73
    $region72: #{rwkv_forward.1} parent=1 // pred_region
      _
    $region73: #{rwkv_forward.1} parent=1 // pred_fallthru
      _
    // Predicated region
    $region74: #{rwkv_forward.1} parent=1 // pred_check
      _
    $region75: #{rwkv_forward.1} parent=1 // pred_check_branch
      %171 = sbr.rel (0) target = $region77
    $region76: #{rwkv_forward.1} parent=1 // pred_region
      %s173 = ssub.s32 16, 16
      %174 = vsyncadd [#allocation13], %s173
      %s176 = sshll.u32 [#allocation14], 4
      %s177 = int_to_ptr.vmem [resolvable:$true] %s176
      %179 = dma.hbm_to_vmem [thread:$0]  %s37, 16, %s177, [#allocation13]
    $region77: #{rwkv_forward.1} parent=1 // pred_fallthru
      _
    // Predicated region
    $region78: #{rwkv_forward.1} parent=1 // pred_check
      _
    $region79: #{rwkv_forward.1} parent=1 // pred_check_branch
      %181 = sbr.rel (0) target = $region81
    $region80: #{rwkv_forward.1} parent=1 // pred_region
      %s183 = ssub.s32 16, 16
      %184 = vsyncadd [#allocation16], %s183
      %s186 = sshll.u32 [#allocation15], 4
      %s187 = int_to_ptr.vmem [resolvable:$true] %s186
      %189 = dma.hbm_to_vmem [thread:$0]  %s39, 16, %s187, [#allocation16]
    $region81: #{rwkv_forward.1} parent=1 // pred_fallthru
      _
    // Predicated region
    $region82: #{rwkv_forward.1} parent=1 // pred_check
      _
    $region83: #{rwkv_forward.1} parent=1 // pred_check_branch
      %191 = sbr.rel (0) target = $region85
    $region84: #{rwkv_forward.1} parent=1 // pred_region
      _
    $region85: #{rwkv_forward.1} parent=1 // pred_fallthru
      _
    // Predicated region
    $region86: #{rwkv_forward.1} parent=1 // pred_check
      _
    $region87: #{rwkv_forward.1} parent=1 // pred_check_branch
      %193 = sbr.rel (0) target = $region89
    $region88: #{rwkv_forward.1} parent=1 // pred_region
      _
    $region89: #{rwkv_forward.1} parent=1 // pred_fallthru
      _
    // Predicated region
    $region90: #{rwkv_forward.1} parent=1 // pred_check
      _
    $region91: #{rwkv_forward.1} parent=1 // pred_check_branch
      %195 = sbr.rel (0) target = $region93
    $region92: #{rwkv_forward.1} parent=1 // pred_region
      _
    $region93: #{rwkv_forward.1} parent=1 // pred_fallthru
      _
    // Predicated region
    $region94: #{rwkv_forward.1} parent=1 // pred_check
      _
    $region95: #{rwkv_forward.1} parent=1 // pred_check_branch
      %197 = sbr.rel (0) target = $region97
    $region96: #{rwkv_forward.1} parent=1 // pred_region
      _
    $region97: #{rwkv_forward.1} parent=1 // pred_fallthru
      _
    // Predicated region
    $region98: #{rwkv_forward.1} parent=1 // pred_check
      _
    $region99: #{rwkv_forward.1} parent=1 // pred_check_branch
      %199 = sbr.rel (0) target = $region101
    $region100: #{rwkv_forward.1} parent=1 // pred_region
      _
    $region101: #{rwkv_forward.1} parent=1 // pred_fallthru
      _
    // Predicated region
    $region102: #{rwkv_forward.1} parent=1 // pred_check
      _
    $region103: #{rwkv_forward.1} parent=1 // pred_check_branch
      %201 = sbr.rel (0) target = $region105
    $region104: #{rwkv_forward.1} parent=1 // pred_region
      _
    $region105: #{rwkv_forward.1} parent=1 // pred_fallthru
      _
    // Predicated region
    $region106: #{rwkv_forward.1} parent=1 // pred_check
      _
    $region107: #{rwkv_forward.1} parent=1 // pred_check_branch
      %203 = sbr.rel (0) target = $region109
    $region108: #{rwkv_forward.1} parent=1 // pred_region
      _
    $region109: #{rwkv_forward.1} parent=1 // pred_fallthru
      _
    // Predicated region
    $region110: #{rwkv_forward.1} parent=1 // pred_check
      _
    $region111: #{rwkv_forward.1} parent=1 // pred_check_branch
      %205 = sbr.rel (0) target = $region113
    $region112: #{rwkv_forward.1} parent=1 // pred_region
      _
    $region113: #{rwkv_forward.1} parent=1 // pred_fallthru
      _
    // Predicated region
    $region114: #{rwkv_forward.1} parent=1 // pred_check
      _
    $region115: #{rwkv_forward.1} parent=1 // pred_check_branch
      %207 = sbr.rel (0) target = $region117
    $region116: #{rwkv_forward.1} parent=1 // pred_region
      _
    $region117: #{rwkv_forward.1} parent=1 // pred_fallthru
      _
    // Predicated region
    $region118: #{rwkv_forward.1} parent=1 // pred_check
      _
    $region119: #{rwkv_forward.1} parent=1 // pred_check_branch
      %209 = sbr.rel (0) target = $region121
    $region120: #{rwkv_forward.1} parent=1 // pred_region
      _
    $region121: #{rwkv_forward.1} parent=1 // pred_fallthru
      _
    // Predicated region
    $region122: #{rwkv_forward.1} parent=1 // pred_check
      _
    $region123: #{rwkv_forward.1} parent=1 // pred_check_branch
      %211 = sbr.rel (0) target = $region125
    $region124: #{rwkv_forward.1} parent=1 // pred_region
      _
    $region125: #{rwkv_forward.1} parent=1 // pred_fallthru
      _
    // Predicated region
    $region126: #{rwkv_forward.1} parent=1 // pred_check
      _
    $region127: #{rwkv_forward.1} parent=1 // pred_check_branch
      %213 = sbr.rel (0) target = $region129
    $region128: #{rwkv_forward.1} parent=1 // pred_region
      _
    $region129: #{rwkv_forward.1} parent=1 // pred_fallthru
      _
    // Predicated region
    $region130: #{rwkv_forward.1} parent=1 // pred_check
      _
    $region131: #{rwkv_forward.1} parent=1 // pred_check_branch
      %215 = sbr.rel (0) target = $region133
    $region132: #{rwkv_forward.1} parent=1 // pred_region
      _
    $region133: #{rwkv_forward.1} parent=1 // pred_fallthru
      _
    // Predicated region
    $region134: #{rwkv_forward.1} parent=1 // pred_check
      _
    $region135: #{rwkv_forward.1} parent=1 // pred_check_branch
      %217 = sbr.rel (0) target = $region137
    $region136: #{rwkv_forward.1} parent=1 // pred_region
      _
    $region137: #{rwkv_forward.1} parent=1 // pred_fallthru
      _
    // Predicated region
    $region138: #{rwkv_forward.1} parent=1 // pred_check
      _
    $region139: #{rwkv_forward.1} parent=1 // pred_check_branch
      %219 = sbr.rel (0) target = $region141
    $region140: #{rwkv_forward.1} parent=1 // pred_region
      %220 = dma.done [#allocation4], 16
    $region141: #{rwkv_forward.1} parent=1 // pred_fallthru
      _
    // Predicated region
    $region142: #{rwkv_forward.1} parent=1 // pred_check
      _
    $region143: #{rwkv_forward.1} parent=1 // pred_check_branch
      %222 = sbr.rel (0) target = $region145
    $region144: #{rwkv_forward.1} parent=1 // pred_region
      %223 = dma.done [#allocation7], 16
    $region145: #{rwkv_forward.1} parent=1 // pred_fallthru
      _
    // Predicated region
    $region146: #{rwkv_forward.1} parent=1 // pred_check
      _
    $region147: #{rwkv_forward.1} parent=1 // pred_check_branch
      %225 = sbr.rel (0) target = $region149
    $region148: #{rwkv_forward.1} parent=1 // pred_region
      %226 = dma.done [#allocation7], 16
    $region149: #{rwkv_forward.1} parent=1 // pred_fallthru
      _
    // Predicated region
    $region150: #{rwkv_forward.1} parent=1 // pred_check
      _
    $region151: #{rwkv_forward.1} parent=1 // pred_check_branch
      %228 = sbr.rel (0) target = $region153
    $region152: #{rwkv_forward.1} parent=1 // pred_region
      %229 = dma.done [#allocation10], 16
    $region153: #{rwkv_forward.1} parent=1 // pred_fallthru
      _
    // Predicated region
    $region154: #{rwkv_forward.1} parent=1 // pred_check
      _
    $region155: #{rwkv_forward.1} parent=1 // pred_check_branch
      %231 = sbr.rel (0) target = $region157
    $region156: #{rwkv_forward.1} parent=1 // pred_region
      %232 = dma.done [#allocation10], 16
    $region157: #{rwkv_forward.1} parent=1 // pred_fallthru
      _
    // Predicated region
    $region158: #{rwkv_forward.1} parent=1 // pred_check
      _
    $region159: #{rwkv_forward.1} parent=1 // pred_check_branch
      %234 = sbr.rel (0) target = $region161
    $region160: #{rwkv_forward.1} parent=1 // pred_region
      %235 = dma.done [#allocation13], 16
    $region161: #{rwkv_forward.1} parent=1 // pred_fallthru
      _
    // Predicated region
    $region162: #{rwkv_forward.1} parent=1 // pred_check
      _
    $region163: #{rwkv_forward.1} parent=1 // pred_check_branch
      %237 = sbr.rel (0) target = $region165
    $region164: #{rwkv_forward.1} parent=1 // pred_region
      %238 = dma.done [#allocation13], 16
    $region165: #{rwkv_forward.1} parent=1 // pred_fallthru
      _
    // Predicated region
    $region166: #{rwkv_forward.1} parent=1 // pred_check
      _
    $region167: #{rwkv_forward.1} parent=1 // pred_check_branch
      %240 = sbr.rel (0) target = $region169
    $region168: #{rwkv_forward.1} parent=1 // pred_region
      %241 = dma.done [#allocation16], 16
    $region169: #{rwkv_forward.1} parent=1 // pred_fallthru
      _
    %v242 = vlaneseq
    %v243 = vshrl.u32 %v242, 7
    %v244 = vlaneseq
    %v245 = vand.u32 %v244, 127
    %v246 = vadd.s32 %v245, 1
    %vm247 = vcmp.eq.s32.totalorder %v243, %v246
    %v248 = vsel %vm247, 1.0, 0.0
    %v249 = vld [vmem:[%s1] sm:$0xff]
    %250 = vset.pattern.permute.xlu0 0
    %251 = vperm.xlu0 %250, %v249
    %v252 = vpop.permute.xlu0 %251
    %vm253 = vcmp.eq.s32.totalorder %v245, %v252
    %v254 = vsel %vm253, 1, 0
    %v255 = vcvt.s32.f32 %v254
    %v256 = vld [vmem:[%s7] sm:$0xff]
    %v257 = vld [vmem:[%s7 + $0x8] sm:$0xff]
    %v258 = vld [vmem:[%s7 + $0x10] sm:$0xff]
    %v259 = vld [vmem:[%s7 + $0x18] sm:$0xff]
    %v260 = vld [vmem:[%s7 + $0x20] sm:$0xff]
    %v261 = vld [vmem:[%s7 + $0x28] sm:$0xff]
    %v262 = vld [vmem:[%s7 + $0x30] sm:$0xff]
    %v263 = vld [vmem:[%s7 + $0x38] sm:$0xff]
    %vm264 = vcmask 523264
    %v266 = vsel %vm264, %v255, 0
    %268 = vmatprep.subr.mxu0 0.0
    %269 = vmatpush1.msra.mxu0 %v256
    %270 = vmatprep.subr.mxu0 0.0
    %271 = vmatpush1.msra.mxu0 %v257
    %272 = vmatprep.subr.mxu0 0.0
    %273 = vmatpush1.msra.mxu0 %v258
    %274 = vmatprep.subr.mxu0 0.0
    %275 = vmatpush1.msra.mxu0 %v259
    %276 = vmatprep.subr.mxu0 0.0
    %277 = vmatpush1.msra.mxu0 %v260
    %278 = vmatprep.subr.mxu0 0.0
    %279 = vmatpush1.msra.mxu0 %v261
    %280 = vmatprep.subr.mxu0 0.0
    %281 = vmatpush1.msra.mxu0 %v262
    %282 = vmatprep.subr.mxu0 0.0
    %283 = vmatpush1.msra.mxu0 %v263
    %284 = vmatprep.subr.mxu0 0.0
    %285 = vmatpush1.msra.mxu0 0.0
    %286 = vmatprep.subr.mxu0 0.0
    %287 = vmatpush1.msra.mxu0 0.0
    %288 = vmatprep.subr.mxu0 0.0
    %289 = vmatpush1.msra.mxu0 0.0
    %290 = vmatprep.subr.mxu0 0.0
    %291 = vmatpush1.msra.mxu0 0.0
    %292 = vmatprep.subr.mxu0 0.0
    %293 = vmatpush1.msra.mxu0 0.0
    %294 = vmatprep.subr.mxu0 0.0
    %295 = vmatpush1.msra.mxu0 0.0
    %296 = vmatprep.subr.mxu0 0.0
    %297 = vmatpush1.msra.mxu0 0.0
    %298 = vmatprep.subr.mxu0 0.0
    %299 = vmatpush1.msra.mxu0 0.0
    %300 = vmatprep.subr.mxu0 0.0
    %301 = vmatpush1.msra.mxu0 0.0
    %302 = vmatprep.subr.mxu0 0.0
    %303 = vmatpush1.msra.mxu0 0.0
    %304 = vmatprep.subr.mxu0 0.0
    %305 = vmatpush1.msra.mxu0 0.0
    %306 = vmatprep.subr.mxu0 0.0
    %307 = vmatpush1.msra.mxu0 0.0
    %308 = vmatprep.subr.mxu0 0.0
    %309 = vmatpush1.msra.mxu0 0.0
    %310 = vmatprep.subr.mxu0 0.0
    %311 = vmatpush1.msra.mxu0 0.0
    %312 = vmatprep.subr.mxu0 0.0
    %313 = vmatpush1.msra.mxu0 0.0
    %314 = vmatprep.subr.mxu0 0.0
    %315 = vmatpush1.msra.mxu0 0.0
    %316 = vmatprep.subr.mxu0 0.0
    %317 = vmatpush1.msra.mxu0 0.0
    %318 = vmatprep.subr.mxu0 0.0
    %319 = vmatpush1.msra.mxu0 0.0
    %320 = vmatprep.subr.mxu0 0.0
    %321 = vmatpush1.msra.mxu0 0.0
    %322 = vmatprep.subr.mxu0 0.0
    %323 = vmatpush1.msra.mxu0 0.0
    %324 = vmatprep.subr.mxu0 0.0
    %325 = vmatpush1.msra.mxu0 0.0
    %326 = vmatprep.subr.mxu0 0.0
    %327 = vmatpush1.msra.mxu0 0.0
    %328 = vmatprep.subr.mxu0 0.0
    %329 = vmatpush1.msra.mxu0 0.0
    %330 = vmatprep.subr.mxu0 0.0
    %331 = vmatpush1.msra.mxu0 0.0
    %332 = vmatprep.mubr.f32.mxu0 0.0
    %333 = vmatmul.mubr.f32.gmra.mrb[0].mxu0 %v266
    %v334 = vpop.f32.mrb[0].mxu0
    %v335 = vadd.f32 0.0, %v334
    %v336 = vpop.f32.mrb[0].mxu0
    %337 = vdwg.mxu0
    %v338 = vld [vmem:[#allocation3] sm:$0x1]
    %v339 = vld [vmem:[#allocation6] sm:$0x1]
    %vm340 = vcmask 261120
    %v341 = vsel %vm340, %v335, 0.0
    %342 = vadd.xlane.f32.xlu0 %v341
    %v343 = vpop.xlane.xlu0 %342
    %v344 = vrcp.pop 32.0
    %v345 = vmul.f32 %v343, %v344
    %v346 = vsub.f32 %v335, %v345
    %v347 = vmul.f32 %v346, %v346
    %v348 = vsel %vm340, %v347, 0.0
    %349 = vadd.xlane.f32.xlu0 %v348
    %v350 = vpop.xlane.xlu0 %349
    %v351 = vmul.f32 %v350, %v344
    %v352 = vadd.f32 %v351, 1e-05
    %v353 = vrsqrt.pop %v352
    %v354 = vmul.f32 %v346, %v353
    %v356 = vlaneseq
    %v357 = vshrl.u32 %v356, 7
    %v358 = vsub.s32 0, %v357
    %v359 = vrot.slane %v338, %v358
    %v361 = vmul.f32 %v354, %v359
    %v363 = vlaneseq
    %v364 = vshrl.u32 %v363, 7
    %v365 = vsub.s32 0, %v364
    %v366 = vrot.slane %v339, %v365
    %v368 = vadd.f32 %v361, %v366
    %v369 = vld [vmem:[#allocation8] sm:$0x1]
    %v370 = vld [vmem:[#allocation9] sm:$0x1]
    %v371 = vsel %vm340, %v368, 0.0
    %372 = vadd.xlane.f32.xlu0 %v371
    %v373 = vpop.xlane.xlu0 %372
    %v374 = vmul.f32 %v373, %v344
    %v375 = vsub.f32 %v368, %v374
    %v376 = vmul.f32 %v375, %v375
    %v377 = vsel %vm340, %v376, 0.0
    %378 = vadd.xlane.f32.xlu0 %v377
    %v379 = vpop.xlane.xlu0 %378
    %v380 = vmul.f32 %v379, %v344
    %v381 = vadd.f32 %v380, 1e-05
    %v382 = vrsqrt.pop %v381
    %v383 = vmul.f32 %v375, %v382
    %v385 = vlaneseq
    %v386 = vshrl.u32 %v385, 7
    %v387 = vsub.s32 0, %v386
    %v388 = vrot.slane %v369, %v387
    %v390 = vmul.f32 %v383, %v388
    %v392 = vlaneseq
    %v393 = vshrl.u32 %v392, 7
    %v394 = vsub.s32 0, %v393
    %v395 = vrot.slane %v370, %v394
    %v397 = vadd.f32 %v390, %v395
    %vm398 = vcmask 64512
    %v400 = vsel %vm398, %v248, 0
    %402 = vmatprep.subr.mxu0 0.0
    %403 = vmatpush1.msra.mxu0 %v397
    %404 = vmatprep.subr.mxu0 0.0
    %405 = vmatpush1.msra.mxu0 0.0
    %406 = vmatprep.subr.mxu0 0.0
    %407 = vmatpush1.msra.mxu0 0.0
    %408 = vmatprep.subr.mxu0 0.0
    %409 = vmatpush1.msra.mxu0 0.0
    %410 = vmatprep.subr.mxu0 0.0
    %411 = vmatpush1.msra.mxu0 0.0
    %412 = vmatprep.subr.mxu0 0.0
    %413 = vmatpush1.msra.mxu0 0.0
    %414 = vmatprep.subr.mxu0 0.0
    %415 = vmatpush1.msra.mxu0 0.0
    %416 = vmatprep.subr.mxu0 0.0
    %417 = vmatpush1.msra.mxu0 0.0
    %418 = vmatprep.subr.mxu0 0.0
    %419 = vmatpush1.msra.mxu0 0.0
    %420 = vmatprep.subr.mxu0 0.0
    %421 = vmatpush1.msra.mxu0 0.0
    %422 = vmatprep.subr.mxu0 0.0
    %423 = vmatpush1.msra.mxu0 0.0
    %424 = vmatprep.subr.mxu0 0.0
    %425 = vmatpush1.msra.mxu0 0.0
    %426 = vmatprep.subr.mxu0 0.0
    %427 = vmatpush1.msra.mxu0 0.0
    %428 = vmatprep.subr.mxu0 0.0
    %429 = vmatpush1.msra.mxu0 0.0
    %430 = vmatprep.subr.mxu0 0.0
    %431 = vmatpush1.msra.mxu0 0.0
    %432 = vmatprep.subr.mxu0 0.0
    %433 = vmatpush1.msra.mxu0 0.0
    %434 = vmatprep.subr.mxu0 0.0
    %435 = vmatpush1.msra.mxu0 0.0
    %436 = vmatprep.subr.mxu0 0.0
    %437 = vmatpush1.msra.mxu0 0.0
    %438 = vmatprep.subr.mxu0 0.0
    %439 = vmatpush1.msra.mxu0 0.0
    %440 = vmatprep.subr.mxu0 0.0
    %441 = vmatpush1.msra.mxu0 0.0
    %442 = vmatprep.subr.mxu0 0.0
    %443 = vmatpush1.msra.mxu0 0.0
    %444 = vmatprep.subr.mxu0 0.0
    %445 = vmatpush1.msra.mxu0 0.0
    %446 = vmatprep.subr.mxu0 0.0
    %447 = vmatpush1.msra.mxu0 0.0
    %448 = vmatprep.subr.mxu0 0.0
    %449 = vmatpush1.msra.mxu0 0.0
    %450 = vmatprep.subr.mxu0 0.0
    %451 = vmatpush1.msra.mxu0 0.0
    %452 = vmatprep.subr.mxu0 0.0
    %453 = vmatpush1.msra.mxu0 0.0
    %454 = vmatprep.subr.mxu0 0.0
    %455 = vmatpush1.msra.mxu0 0.0
    %456 = vmatprep.subr.mxu0 0.0
    %457 = vmatpush1.msra.mxu0 0.0
    %458 = vmatprep.subr.mxu0 0.0
    %459 = vmatpush1.msra.mxu0 0.0
    %460 = vmatprep.subr.mxu0 0.0
    %461 = vmatpush1.msra.mxu0 0.0
    %462 = vmatprep.subr.mxu0 0.0
    %463 = vmatpush1.msra.mxu0 0.0
    %464 = vmatprep.subr.mxu0 0.0
    %465 = vmatpush1.msra.mxu0 0.0
    %466 = vmatprep.mubr.f32.mxu0 0.0
    %467 = vmatmul.mubr.f32.gmra.mrb[0].mxu0 %v400
    %v468 = vpop.f32.mrb[0].mxu0
    %v469 = vadd.f32 0.0, %v468
    %v470 = vpop.f32.mrb[0].mxu0
    %471 = vdwg.mxu0
    %473 = vrot.lane.b32.xlu0 %v469, 32
    %v474 = vpop.permute.xlu0 %473
    %v476 = vsel %vm340, %v397, %v474
    %v477 = vld [vmem:[%s25] sm:$0xff]
    %v478 = vld [vmem:[%s25 + $0x8] sm:$0xff]
    %v479 = vld [vmem:[%s25 + $0x10] sm:$0xff]
    %v480 = vld [vmem:[%s25 + $0x18] sm:$0xff]
    %v481 = vld [vmem:[%s25 + $0x20] sm:$0xff]
    %v482 = vld [vmem:[%s25 + $0x28] sm:$0xff]
    %v483 = vld [vmem:[%s25 + $0x30] sm:$0xff]
    %v484 = vld [vmem:[%s25 + $0x38] sm:$0xff]
    %v486 = vsel %vm264, %v476, 0
    %488 = vmatprep.subr.mxu0 0.0
    %489 = vmatpush1.msra.mxu0 %v477
    %490 = vmatprep.subr.mxu0 0.0
    %491 = vmatpush1.msra.mxu0 %v478
    %492 = vmatprep.subr.mxu0 0.0
    %493 = vmatpush1.msra.mxu0 %v479
    %494 = vmatprep.subr.mxu0 0.0
    %495 = vmatpush1.msra.mxu0 %v480
    %496 = vmatprep.subr.mxu0 0.0
    %497 = vmatpush1.msra.mxu0 %v481
    %498 = vmatprep.subr.mxu0 0.0
    %499 = vmatpush1.msra.mxu0 %v482
    %500 = vmatprep.subr.mxu0 0.0
    %501 = vmatpush1.msra.mxu0 %v483
    %502 = vmatprep.subr.mxu0 0.0
    %503 = vmatpush1.msra.mxu0 %v484
    %504 = vmatprep.subr.mxu0 0.0
    %505 = vmatpush1.msra.mxu0 0.0
    %506 = vmatprep.subr.mxu0 0.0
    %507 = vmatpush1.msra.mxu0 0.0
    %508 = vmatprep.subr.mxu0 0.0
    %509 = vmatpush1.msra.mxu0 0.0
    %510 = vmatprep.subr.mxu0 0.0
    %511 = vmatpush1.msra.mxu0 0.0
    %512 = vmatprep.subr.mxu0 0.0
    %513 = vmatpush1.msra.mxu0 0.0
    %514 = vmatprep.subr.mxu0 0.0
    %515 = vmatpush1.msra.mxu0 0.0
    %516 = vmatprep.subr.mxu0 0.0
    %517 = vmatpush1.msra.mxu0 0.0
    %518 = vmatprep.subr.mxu0 0.0
    %519 = vmatpush1.msra.mxu0 0.0
    %520 = vmatprep.subr.mxu0 0.0
    %521 = vmatpush1.msra.mxu0 0.0
    %522 = vmatprep.subr.mxu0 0.0
    %523 = vmatpush1.msra.mxu0 0.0
    %524 = vmatprep.subr.mxu0 0.0
    %525 = vmatpush1.msra.mxu0 0.0
    %526 = vmatprep.subr.mxu0 0.0
    %527 = vmatpush1.msra.mxu0 0.0
    %528 = vmatprep.subr.mxu0 0.0
    %529 = vmatpush1.msra.mxu0 0.0
    %530 = vmatprep.subr.mxu0 0.0
    %531 = vmatpush1.msra.mxu0 0.0
    %532 = vmatprep.subr.mxu0 0.0
    %533 = vmatpush1.msra.mxu0 0.0
    %534 = vmatprep.subr.mxu0 0.0
    %535 = vmatpush1.msra.mxu0 0.0
    %536 = vmatprep.subr.mxu0 0.0
    %537 = vmatpush1.msra.mxu0 0.0
    %538 = vmatprep.subr.mxu0 0.0
    %539 = vmatpush1.msra.mxu0 0.0
    %540 = vmatprep.subr.mxu0 0.0
    %541 = vmatpush1.msra.mxu0 0.0
    %542 = vmatprep.subr.mxu0 0.0
    %543 = vmatpush1.msra.mxu0 0.0
    %544 = vmatprep.subr.mxu0 0.0
    %545 = vmatpush1.msra.mxu0 0.0
    %546 = vmatprep.subr.mxu0 0.0
    %547 = vmatpush1.msra.mxu0 0.0
    %548 = vmatprep.subr.mxu0 0.0
    %549 = vmatpush1.msra.mxu0 0.0
    %550 = vmatprep.subr.mxu0 0.0
    %551 = vmatpush1.msra.mxu0 0.0
    %552 = vmatprep.mubr.f32.mxu0 0.0
    %553 = vmatmul.mubr.f32.gmra.mrb[0].mxu0 %v486
    %v554 = vpop.f32.mrb[0].mxu0
    %v555 = vadd.f32 0.0, %v554
    %v556 = vpop.f32.mrb[0].mxu0
    %557 = vdwg.mxu0
    %v558 = vxor.u32 %v555, 2147483648
    %v559 = vmul.f32 %v558, 1.442695
    %v560 = vpow.pop %v559
    %v561 = vadd.f32 %v560, 1.0
    %v562 = vrcp.pop %v561
    %v563 = vmul.f32 1.0, %v562
    %v564 = vmul.f32 %v555, %v563
    %565 = vxpose.xlu0.b32.start [1/16] %v555, 128
    %566 = vxpose.xlu0.b32.cont [2/16] 0.0, 128
    %567 = vxpose.xlu0.b32.cont [3/16] 0.0, 128
    %568 = vxpose.xlu0.b32.cont [4/16] 0.0, 128
    %569 = vxpose.xlu0.b32.cont [5/16] 0.0, 128
    %570 = vxpose.xlu0.b32.cont [6/16] 0.0, 128
    %571 = vxpose.xlu0.b32.cont [7/16] 0.0, 128
    %572 = vxpose.xlu0.b32.cont [8/16] 0.0, 128
    %573 = vxpose.xlu0.b32.cont [9/16] 0.0, 128
    %574 = vxpose.xlu0.b32.cont [10/16] 0.0, 128
    %575 = vxpose.xlu0.b32.cont [11/16] 0.0, 128
    %576 = vxpose.xlu0.b32.cont [12/16] 0.0, 128
    %577 = vxpose.xlu0.b32.cont [13/16] 0.0, 128
    %578 = vxpose.xlu0.b32.cont [14/16] 0.0, 128
    %579 = vxpose.xlu0.b32.cont [15/16] 0.0, 128
    %580 = vxpose.xlu0.b32.end [16/16] 0.0, 128
    %v581 = vpop.trf.xlu0
    %v582 = vpop.trf.xlu0
    %v583 = vpop.trf.xlu0
    %v584 = vpop.trf.xlu0
    %v585 = vpop.trf.xlu0
    %v586 = vpop.trf.xlu0
    %v587 = vpop.trf.xlu0
    %v588 = vpop.trf.xlu0
    %v589 = vpop.trf.xlu0
    %v590 = vpop.trf.xlu0
    %v591 = vpop.trf.xlu0
    %v592 = vpop.trf.xlu0
    %v593 = vpop.trf.xlu0
    %v594 = vpop.trf.xlu0
    %v595 = vpop.trf.xlu0
    %v596 = vpop.trf.xlu0
    %598 = vrot.lane.b32.xlu0 %v555, 96
    %v599 = vpop.permute.xlu0 %598
    %601 = vxpose.xlu0.b32.start [1/16] %v599, 128
    %602 = vxpose.xlu0.b32.cont [2/16] 0.0, 128
    %603 = vxpose.xlu0.b32.cont [3/16] 0.0, 128
    %604 = vxpose.xlu0.b32.cont [4/16] 0.0, 128
    %605 = vxpose.xlu0.b32.cont [5/16] 0.0, 128
    %606 = vxpose.xlu0.b32.cont [6/16] 0.0, 128
    %607 = vxpose.xlu0.b32.cont [7/16] 0.0, 128
    %608 = vxpose.xlu0.b32.cont [8/16] 0.0, 128
    %609 = vxpose.xlu0.b32.cont [9/16] 0.0, 128
    %610 = vxpose.xlu0.b32.cont [10/16] 0.0, 128
    %611 = vxpose.xlu0.b32.cont [11/16] 0.0, 128
    %612 = vxpose.xlu0.b32.cont [12/16] 0.0, 128
    %613 = vxpose.xlu0.b32.cont [13/16] 0.0, 128
    %614 = vxpose.xlu0.b32.cont [14/16] 0.0, 128
    %615 = vxpose.xlu0.b32.cont [15/16] 0.0, 128
    %616 = vxpose.xlu0.b32.end [16/16] 0.0, 128
    %v617 = vpop.trf.xlu0
    %v618 = vpop.trf.xlu0
    %v619 = vpop.trf.xlu0
    %v620 = vpop.trf.xlu0
    %v621 = vpop.trf.xlu0
    %v622 = vpop.trf.xlu0
    %v623 = vpop.trf.xlu0
    %v624 = vpop.trf.xlu0
    %v625 = vpop.trf.xlu0
    %v626 = vpop.trf.xlu0
    %v627 = vpop.trf.xlu0
    %v628 = vpop.trf.xlu0
    %v629 = vpop.trf.xlu0
    %v630 = vpop.trf.xlu0
    %v631 = vpop.trf.xlu0
    %v632 = vpop.trf.xlu0
    %v633 = vld [vmem:[%s27] sm:$0xff]
    %v634 = vld [vmem:[%s29] sm:$0xff]
    %v635 = vld [vmem:[%s5] sm:$0xff]
    %v636 = vld [vmem:[%s5 + $0x8] sm:$0xff]
    %v637 = vld [vmem:[%s5 + $0x10] sm:$0xff]
    %v638 = vld [vmem:[%s5 + $0x18] sm:$0xff]
    %640 = vset.pattern.permute.xlu0 0
    %641 = vperm.xlu0 %640, %v617
    %v642 = vpop.permute.xlu0 %641
    %v644 = vlaneseq
    %v645 = vshrl.u32 %v644, 7
    %v646 = vsub.s32 0, %v645
    %v647 = vrot.slane %v555, %v646
    %v648 = vmul.f32 %v642, %v647
    %650 = vset.pattern.permute.xlu0 0
    %651 = vperm.xlu0 %650, %v633
    %v652 = vpop.permute.xlu0 %651
    %v654 = vmul.f32 %v652, %v648
    %656 = vrot.lane.b32.xlu0 %v654, 64
    %v657 = vpop.permute.xlu0 %656
    %v659 = vadd.f32 %v635, %v657
    %661 = vset.pattern.permute.xlu0 0
    %662 = vperm.xlu0 %661, %v581
    %v663 = vpop.permute.xlu0 %662
    %v665 = vmul.f32 %v663, %v659
    %v666 = vsel %vm398, %v665, 0.0
    %v667 = vrot.slane %v666, 4
    %v668 = vadd.f32 %v666, %v667
    %v669 = vrot.slane %v668, 2
    %v670 = vadd.f32 %v668, %v669
    %v671 = vrot.slane %v670, 1
    %v672 = vadd.f32 %v670, %v671
    %vm673 = vcmask 57344
    %674 = vst.msk [vmem:[#allocation2] sm:$0x1] %vm673, %v672
    %676 = vset.pattern.permute.xlu0 0
    %677 = vperm.xlu0 %676, %v634
    %v678 = vpop.permute.xlu0 %677
    %v680 = vmul.f32 %v678, %v635
    %682 = vrot.lane.b32.xlu0 %v648, 64
    %v683 = vpop.permute.xlu0 %682
    %v685 = vadd.f32 %v680, %v683
    %686 = vset.pattern.permute.xlu0 1
    %687 = vperm.xlu0 %686, %v617
    %v688 = vpop.permute.xlu0 %687
    %v690 = vlaneseq
    %v691 = vshrl.u32 %v690, 7
    %v692 = vsub.s32 1, %v691
    %v693 = vrot.slane %v555, %v692
    %v694 = vmul.f32 %v688, %v693
    %v695 = vmul.f32 %v652, %v694
    %697 = vrot.lane.b32.xlu0 %v695, 64
    %v698 = vpop.permute.xlu0 %697
    %v700 = vadd.f32 %v685, %v698
    %701 = vset.pattern.permute.xlu0 1
    %702 = vperm.xlu0 %701, %v581
    %v703 = vpop.permute.xlu0 %702
    %v705 = vmul.f32 %v703, %v700
    %v706 = vsel %vm398, %v705, 0.0
    %v707 = vrot.slane %v706, 4
    %v708 = vadd.f32 %v706, %v707
    %v709 = vrot.slane %v708, 2
    %v710 = vadd.f32 %v708, %v709
    %v711 = vrot.slane %v710, 1
    %v712 = vadd.f32 %v710, %v711
    %713 = vst.msk [vmem:[#allocation2 + $0x1] sm:$0x1] %vm673, %v712
    %v714 = vmul.f32 %v678, %v685
    %716 = vrot.lane.b32.xlu0 %v694, 64
    %v717 = vpop.permute.xlu0 %716
    %v719 = vadd.f32 %v714, %v717
    %720 = vset.pattern.permute.xlu0 2
    %721 = vperm.xlu0 %720, %v617
    %v722 = vpop.permute.xlu0 %721
    %v724 = vlaneseq
    %v725 = vshrl.u32 %v724, 7
    %v726 = vsub.s32 2, %v725
    %v727 = vrot.slane %v555, %v726
    %v728 = vmul.f32 %v722, %v727
    %v729 = vmul.f32 %v652, %v728
    %731 = vrot.lane.b32.xlu0 %v729, 64
    %v732 = vpop.permute.xlu0 %731
    %v734 = vadd.f32 %v719, %v732
    %735 = vset.pattern.permute.xlu0 2
    %736 = vperm.xlu0 %735, %v581
    %v737 = vpop.permute.xlu0 %736
    %v739 = vmul.f32 %v737, %v734
    %v740 = vsel %vm398, %v739, 0.0
    %v741 = vrot.slane %v740, 4
    %v742 = vadd.f32 %v740, %v741
    %v743 = vrot.slane %v742, 2
    %v744 = vadd.f32 %v742, %v743
    %v745 = vrot.slane %v744, 1
    %v746 = vadd.f32 %v744, %v745
    %747 = vst.msk [vmem:[#allocation2 + $0x2] sm:$0x1] %vm673, %v746
    %v748 = vmul.f32 %v678, %v719
    %750 = vrot.lane.b32.xlu0 %v728, 64
    %v751 = vpop.permute.xlu0 %750
    %v753 = vadd.f32 %v748, %v751
    %754 = vset.pattern.permute.xlu0 3
    %755 = vperm.xlu0 %754, %v617
    %v756 = vpop.permute.xlu0 %755
    %v758 = vlaneseq
    %v759 = vshrl.u32 %v758, 7
    %v760 = vsub.s32 3, %v759
    %v761 = vrot.slane %v555, %v760
    %v762 = vmul.f32 %v756, %v761
    %v763 = vmul.f32 %v652, %v762
    %765 = vrot.lane.b32.xlu0 %v763, 64
    %v766 = vpop.permute.xlu0 %765
    %v768 = vadd.f32 %v753, %v766
    %769 = vset.pattern.permute.xlu0 3
    %770 = vperm.xlu0 %769, %v581
    %v771 = vpop.permute.xlu0 %770
    %v773 = vmul.f32 %v771, %v768
    %v774 = vsel %vm398, %v773, 0.0
    %v775 = vrot.slane %v774, 4
    %v776 = vadd.f32 %v774, %v775
    %v777 = vrot.slane %v776, 2
    %v778 = vadd.f32 %v776, %v777
    %v779 = vrot.slane %v778, 1
    %v780 = vadd.f32 %v778, %v779
    %781 = vst.msk [vmem:[#allocation2 + $0x3] sm:$0x1] %vm673, %v780
    %v782 = vmul.f32 %v678, %v753
    %784 = vrot.lane.b32.xlu0 %v762, 64
    %v785 = vpop.permute.xlu0 %784
    %v787 = vadd.f32 %v782, %v785
    %788 = vset.pattern.permute.xlu0 4
    %789 = vperm.xlu0 %788, %v617
    %v790 = vpop.permute.xlu0 %789
    %v792 = vlaneseq
    %v793 = vshrl.u32 %v792, 7
    %v794 = vsub.s32 4, %v793
    %v795 = vrot.slane %v555, %v794
    %v796 = vmul.f32 %v790, %v795
    %v797 = vmul.f32 %v652, %v796
    %799 = vrot.lane.b32.xlu0 %v797, 64
    %v800 = vpop.permute.xlu0 %799
    %v802 = vadd.f32 %v787, %v800
    %803 = vset.pattern.permute.xlu0 4
    %804 = vperm.xlu0 %803, %v581
    %v805 = vpop.permute.xlu0 %804
    %v807 = vmul.f32 %v805, %v802
    %v808 = vsel %vm398, %v807, 0.0
    %v809 = vrot.slane %v808, 4
    %v810 = vadd.f32 %v808, %v809
    %v811 = vrot.slane %v810, 2
    %v812 = vadd.f32 %v810, %v811
    %v813 = vrot.slane %v812, 1
    %v814 = vadd.f32 %v812, %v813
    %815 = vst.msk [vmem:[#allocation2 + $0x4] sm:$0x1] %vm673, %v814
    %v816 = vmul.f32 %v678, %v787
    %818 = vrot.lane.b32.xlu0 %v796, 64
    %v819 = vpop.permute.xlu0 %818
    %v821 = vadd.f32 %v816, %v819
    %822 = vset.pattern.permute.xlu0 5
    %823 = vperm.xlu0 %822, %v617
    %v824 = vpop.permute.xlu0 %823
    %v826 = vlaneseq
    %v827 = vshrl.u32 %v826, 7
    %v828 = vsub.s32 5, %v827
    %v829 = vrot.slane %v555, %v828
    %v830 = vmul.f32 %v824, %v829
    %v831 = vmul.f32 %v652, %v830
    %833 = vrot.lane.b32.xlu0 %v831, 64
    %v834 = vpop.permute.xlu0 %833
    %v836 = vadd.f32 %v821, %v834
    %837 = vset.pattern.permute.xlu0 5
    %838 = vperm.xlu0 %837, %v581
    %v839 = vpop.permute.xlu0 %838
    %v841 = vmul.f32 %v839, %v836
    %v842 = vsel %vm398, %v841, 0.0
    %v843 = vrot.slane %v842, 4
    %v844 = vadd.f32 %v842, %v843
    %v845 = vrot.slane %v844, 2
    %v846 = vadd.f32 %v844, %v845
    %v847 = vrot.slane %v846, 1
    %v848 = vadd.f32 %v846, %v847
    %849 = vst.msk [vmem:[#allocation2 + $0x5] sm:$0x1] %vm673, %v848
    %v850 = vmul.f32 %v678, %v821
    %852 = vrot.lane.b32.xlu0 %v830, 64
    %v853 = vpop.permute.xlu0 %852
    %v855 = vadd.f32 %v850, %v853
    %856 = vset.pattern.permute.xlu0 6
    %857 = vperm.xlu0 %856, %v617
    %v858 = vpop.permute.xlu0 %857
    %v860 = vlaneseq
    %v861 = vshrl.u32 %v860, 7
    %v862 = vsub.s32 6, %v861
    %v863 = vrot.slane %v555, %v862
    %v864 = vmul.f32 %v858, %v863
    %v865 = vmul.f32 %v652, %v864
    %867 = vrot.lane.b32.xlu0 %v865, 64
    %v868 = vpop.permute.xlu0 %867
    %v870 = vadd.f32 %v855, %v868
    %871 = vset.pattern.permute.xlu0 6
    %872 = vperm.xlu0 %871, %v581
    %v873 = vpop.permute.xlu0 %872
    %v875 = vmul.f32 %v873, %v870
    %v876 = vsel %vm398, %v875, 0.0
    %v877 = vrot.slane %v876, 4
    %v878 = vadd.f32 %v876, %v877
    %v879 = vrot.slane %v878, 2
    %v880 = vadd.f32 %v878, %v879
    %v881 = vrot.slane %v880, 1
    %v882 = vadd.f32 %v880, %v881
    %883 = vst.msk [vmem:[#allocation2 + $0x6] sm:$0x1] %vm673, %v882
    %v884 = vmul.f32 %v678, %v855
    %886 = vrot.lane.b32.xlu0 %v864, 64
    %v887 = vpop.permute.xlu0 %886
    %v889 = vadd.f32 %v884, %v887
    %890 = vset.pattern.permute.xlu0 7
    %891 = vperm.xlu0 %890, %v617
    %v892 = vpop.permute.xlu0 %891
    %v894 = vlaneseq
    %v895 = vshrl.u32 %v894, 7
    %v896 = vsub.s32 7, %v895
    %v897 = vrot.slane %v555, %v896
    %v898 = vmul.f32 %v892, %v897
    %v899 = vmul.f32 %v652, %v898
    %901 = vrot.lane.b32.xlu0 %v899, 64
    %v902 = vpop.permute.xlu0 %901
    %v904 = vadd.f32 %v889, %v902
    %905 = vset.pattern.permute.xlu0 7
    %906 = vperm.xlu0 %905, %v581
    %v907 = vpop.permute.xlu0 %906
    %v909 = vmul.f32 %v907, %v904
    %v910 = vsel %vm398, %v909, 0.0
    %v911 = vrot.slane %v910, 4
    %v912 = vadd.f32 %v910, %v911
    %v913 = vrot.slane %v912, 2
    %v914 = vadd.f32 %v912, %v913
    %v915 = vrot.slane %v914, 1
    %v916 = vadd.f32 %v914, %v915
    %917 = vst.msk [vmem:[#allocation2 + $0x7] sm:$0x1] %vm673, %v916
    %v918 = vmul.f32 %v678, %v889
    %920 = vrot.lane.b32.xlu0 %v898, 64
    %v921 = vpop.permute.xlu0 %920
    %v923 = vadd.f32 %v918, %v921
    %924 = vst.msk [vmem:[#allocation18] sm:$0xff] %vm398, %v923
    %926 = vset.pattern.permute.xlu0 0
    %927 = vperm.xlu0 %926, %v618
    %v928 = vpop.permute.xlu0 %927
    %v930 = vmul.f32 %v928, %v647
    %931 = vset.pattern.permute.xlu0 1
    %932 = vperm.xlu0 %931, %v633
    %v933 = vpop.permute.xlu0 %932
    %v935 = vmul.f32 %v933, %v930
    %937 = vrot.lane.b32.xlu0 %v935, 56
    %v938 = vpop.permute.xlu0 %937
    %v940 = vadd.f32 %v636, %v938
    %942 = vset.pattern.permute.xlu0 0
    %943 = vperm.xlu0 %942, %v582
    %v944 = vpop.permute.xlu0 %943
    %v946 = vmul.f32 %v944, %v940
    %v947 = vsel %vm398, %v946, 0.0
    %v948 = vrot.slane %v947, 4
    %v949 = vadd.f32 %v947, %v948
    %v950 = vrot.slane %v949, 2
    %v951 = vadd.f32 %v949, %v950
    %v952 = vrot.slane %v951, 1
    %v953 = vadd.f32 %v951, %v952
    %955 = vrot.lane.b32.xlu0 %v953, 8
    %v956 = vpop.permute.xlu0 %955
    %vm958 = vcmask 122944
    %959 = vst.msk [vmem:[#allocation2] sm:$0x1] %vm958, %v956
    %960 = vset.pattern.permute.xlu0 1
    %961 = vperm.xlu0 %960, %v634
    %v962 = vpop.permute.xlu0 %961
    %v964 = vmul.f32 %v962, %v636
    %966 = vrot.lane.b32.xlu0 %v930, 56
    %v967 = vpop.permute.xlu0 %966
    %v969 = vadd.f32 %v964, %v967
    %970 = vset.pattern.permute.xlu0 1
    %971 = vperm.xlu0 %970, %v618
    %v972 = vpop.permute.xlu0 %971
    %v974 = vmul.f32 %v972, %v693
    %v975 = vmul.f32 %v933, %v974
    %977 = vrot.lane.b32.xlu0 %v975, 56
    %v978 = vpop.permute.xlu0 %977
    %v980 = vadd.f32 %v969, %v978
    %981 = vset.pattern.permute.xlu0 1
    %982 = vperm.xlu0 %981, %v582
    %v983 = vpop.permute.xlu0 %982
    %v985 = vmul.f32 %v983, %v980
    %v986 = vsel %vm398, %v985, 0.0
    %v987 = vrot.slane %v986, 4
    %v988 = vadd.f32 %v986, %v987
    %v989 = vrot.slane %v988, 2
    %v990 = vadd.f32 %v988, %v989
    %v991 = vrot.slane %v990, 1
    %v992 = vadd.f32 %v990, %v991
    %994 = vrot.lane.b32.xlu0 %v992, 8
    %v995 = vpop.permute.xlu0 %994
    %997 = vst.msk [vmem:[#allocation2 + $0x1] sm:$0x1] %vm958, %v995
    %v998 = vmul.f32 %v962, %v969
    %1000 = vrot.lane.b32.xlu0 %v974, 56
    %v1001 = vpop.permute.xlu0 %1000
    %v1003 = vadd.f32 %v998, %v1001
    %1004 = vset.pattern.permute.xlu0 2
    %1005 = vperm.xlu0 %1004, %v618
    %v1006 = vpop.permute.xlu0 %1005
    %v1008 = vmul.f32 %v1006, %v727
    %v1009 = vmul.f32 %v933, %v1008
    %1011 = vrot.lane.b32.xlu0 %v1009, 56
    %v1012 = vpop.permute.xlu0 %1011
    %v1014 = vadd.f32 %v1003, %v1012
    %1015 = vset.pattern.permute.xlu0 2
    %1016 = vperm.xlu0 %1015, %v582
    %v1017 = vpop.permute.xlu0 %1016
    %v1019 = vmul.f32 %v1017, %v1014
    %v1020 = vsel %vm398, %v1019, 0.0
    %v1021 = vrot.slane %v1020, 4
    %v1022 = vadd.f32 %v1020, %v1021
    %v1023 = vrot.slane %v1022, 2
    %v1024 = vadd.f32 %v1022, %v1023
    %v1025 = vrot.slane %v1024, 1
    %v1026 = vadd.f32 %v1024, %v1025
    %1028 = vrot.lane.b32.xlu0 %v1026, 8
    %v1029 = vpop.permute.xlu0 %1028
    %1031 = vst.msk [vmem:[#allocation2 + $0x2] sm:$0x1] %vm958, %v1029
    %v1032 = vmul.f32 %v962, %v1003
    %1034 = vrot.lane.b32.xlu0 %v1008, 56
    %v1035 = vpop.permute.xlu0 %1034
    %v1037 = vadd.f32 %v1032, %v1035
    %1038 = vset.pattern.permute.xlu0 3
    %1039 = vperm.xlu0 %1038, %v618
    %v1040 = vpop.permute.xlu0 %1039
    %v1042 = vmul.f32 %v1040, %v761
    %v1043 = vmul.f32 %v933, %v1042
    %1045 = vrot.lane.b32.xlu0 %v1043, 56
    %v1046 = vpop.permute.xlu0 %1045
    %v1048 = vadd.f32 %v1037, %v1046
    %1049 = vset.pattern.permute.xlu0 3
    %1050 = vperm.xlu0 %1049, %v582
    %v1051 = vpop.permute.xlu0 %1050
    %v1053 = vmul.f32 %v1051, %v1048
    %v1054 = vsel %vm398, %v1053, 0.0
    %v1055 = vrot.slane %v1054, 4
    %v1056 = vadd.f32 %v1054, %v1055
    %v1057 = vrot.slane %v1056, 2
    %v1058 = vadd.f32 %v1056, %v1057
    %v1059 = vrot.slane %v1058, 1
    %v1060 = vadd.f32 %v1058, %v1059
    %1062 = vrot.lane.b32.xlu0 %v1060, 8
    %v1063 = vpop.permute.xlu0 %1062
    %1065 = vst.msk [vmem:[#allocation2 + $0x3] sm:$0x1] %vm958, %v1063
    %v1066 = vmul.f32 %v962, %v1037
    %1068 = vrot.lane.b32.xlu0 %v1042, 56
    %v1069 = vpop.permute.xlu0 %1068
    %v1071 = vadd.f32 %v1066, %v1069
    %1072 = vset.pattern.permute.xlu0 4
    %1073 = vperm.xlu0 %1072, %v618
    %v1074 = vpop.permute.xlu0 %1073
    %v1076 = vmul.f32 %v1074, %v795
    %v1077 = vmul.f32 %v933, %v1076
    %1079 = vrot.lane.b32.xlu0 %v1077, 56
    %v1080 = vpop.permute.xlu0 %1079
    %v1082 = vadd.f32 %v1071, %v1080
    %1083 = vset.pattern.permute.xlu0 4
    %1084 = vperm.xlu0 %1083, %v582
    %v1085 = vpop.permute.xlu0 %1084
    %v1087 = vmul.f32 %v1085, %v1082
    %v1088 = vsel %vm398, %v1087, 0.0
    %v1089 = vrot.slane %v1088, 4
    %v1090 = vadd.f32 %v1088, %v1089
    %v1091 = vrot.slane %v1090, 2
    %v1092 = vadd.f32 %v1090, %v1091
    %v1093 = vrot.slane %v1092, 1
    %v1094 = vadd.f32 %v1092, %v1093
    %1096 = vrot.lane.b32.xlu0 %v1094, 8
    %v1097 = vpop.permute.xlu0 %1096
    %1099 = vst.msk [vmem:[#allocation2 + $0x4] sm:$0x1] %vm958, %v1097
    %v1100 = vmul.f32 %v962, %v1071
    %1102 = vrot.lane.b32.xlu0 %v1076, 56
    %v1103 = vpop.permute.xlu0 %1102
    %v1105 = vadd.f32 %v1100, %v1103
    %1106 = vset.pattern.permute.xlu0 5
    %1107 = vperm.xlu0 %1106, %v618
    %v1108 = vpop.permute.xlu0 %1107
    %v1110 = vmul.f32 %v1108, %v829
    %v1111 = vmul.f32 %v933, %v1110
    %1113 = vrot.lane.b32.xlu0 %v1111, 56
    %v1114 = vpop.permute.xlu0 %1113
    %v1116 = vadd.f32 %v1105, %v1114
    %1117 = vset.pattern.permute.xlu0 5
    %1118 = vperm.xlu0 %1117, %v582
    %v1119 = vpop.permute.xlu0 %1118
    %v1121 = vmul.f32 %v1119, %v1116
    %v1122 = vsel %vm398, %v1121, 0.0
    %v1123 = vrot.slane %v1122, 4
    %v1124 = vadd.f32 %v1122, %v1123
    %v1125 = vrot.slane %v1124, 2
    %v1126 = vadd.f32 %v1124, %v1125
    %v1127 = vrot.slane %v1126, 1
    %v1128 = vadd.f32 %v1126, %v1127
    %1130 = vrot.lane.b32.xlu0 %v1128, 8
    %v1131 = vpop.permute.xlu0 %1130
    %1133 = vst.msk [vmem:[#allocation2 + $0x5] sm:$0x1] %vm958, %v1131
    %v1134 = vmul.f32 %v962, %v1105
    %1136 = vrot.lane.b32.xlu0 %v1110, 56
    %v1137 = vpop.permute.xlu0 %1136
    %v1139 = vadd.f32 %v1134, %v1137
    %1140 = vset.pattern.permute.xlu0 6
    %1141 = vperm.xlu0 %1140, %v618
    %v1142 = vpop.permute.xlu0 %1141
    %v1144 = vmul.f32 %v1142, %v863
    %v1145 = vmul.f32 %v933, %v1144
    %1147 = vrot.lane.b32.xlu0 %v1145, 56
    %v1148 = vpop.permute.xlu0 %1147
    %v1150 = vadd.f32 %v1139, %v1148
    %1151 = vset.pattern.permute.xlu0 6
    %1152 = vperm.xlu0 %1151, %v582
    %v1153 = vpop.permute.xlu0 %1152
    %v1155 = vmul.f32 %v1153, %v1150
    %v1156 = vsel %vm398, %v1155, 0.0
    %v1157 = vrot.slane %v1156, 4
    %v1158 = vadd.f32 %v1156, %v1157
    %v1159 = vrot.slane %v1158, 2
    %v1160 = vadd.f32 %v1158, %v1159
    %v1161 = vrot.slane %v1160, 1
    %v1162 = vadd.f32 %v1160, %v1161
    %1164 = vrot.lane.b32.xlu0 %v1162, 8
    %v1165 = vpop.permute.xlu0 %1164
    %1167 = vst.msk [vmem:[#allocation2 + $0x6] sm:$0x1] %vm958, %v1165
    %v1168 = vmul.f32 %v962, %v1139
    %1170 = vrot.lane.b32.xlu0 %v1144, 56
    %v1171 = vpop.permute.xlu0 %1170
    %v1173 = vadd.f32 %v1168, %v1171
    %1174 = vset.pattern.permute.xlu0 7
    %1175 = vperm.xlu0 %1174, %v618
    %v1176 = vpop.permute.xlu0 %1175
    %v1178 = vmul.f32 %v1176, %v897
    %v1179 = vmul.f32 %v933, %v1178
    %1181 = vrot.lane.b32.xlu0 %v1179, 56
    %v1182 = vpop.permute.xlu0 %1181
    %v1184 = vadd.f32 %v1173, %v1182
    %1185 = vset.pattern.permute.xlu0 7
    %1186 = vperm.xlu0 %1185, %v582
    %v1187 = vpop.permute.xlu0 %1186
    %v1189 = vmul.f32 %v1187, %v1184
    %v1190 = vsel %vm398, %v1189, 0.0
    %v1191 = vrot.slane %v1190, 4
    %v1192 = vadd.f32 %v1190, %v1191
    %v1193 = vrot.slane %v1192, 2
    %v1194 = vadd.f32 %v1192, %v1193
    %v1195 = vrot.slane %v1194, 1
    %v1196 = vadd.f32 %v1194, %v1195
    %1198 = vrot.lane.b32.xlu0 %v1196, 8
    %v1199 = vpop.permute.xlu0 %1198
    %1201 = vst.msk [vmem:[#allocation2 + $0x7] sm:$0x1] %vm958, %v1199
    %v1202 = vmul.f32 %v962, %v1173
    %1204 = vrot.lane.b32.xlu0 %v1178, 56
    %v1205 = vpop.permute.xlu0 %1204
    %v1207 = vadd.f32 %v1202, %v1205
    %1208 = vst.msk [vmem:[#allocation18 + $0x8] sm:$0xff] %vm398, %v1207
    %1210 = vset.pattern.permute.xlu0 0
    %1211 = vperm.xlu0 %1210, %v619
    %v1212 = vpop.permute.xlu0 %1211
    %v1214 = vmul.f32 %v1212, %v647
    %1215 = vset.pattern.permute.xlu0 2
    %1216 = vperm.xlu0 %1215, %v633
    %v1217 = vpop.permute.xlu0 %1216
    %v1219 = vmul.f32 %v1217, %v1214
    %1221 = vrot.lane.b32.xlu0 %v1219, 48
    %v1222 = vpop.permute.xlu0 %1221
    %v1224 = vadd.f32 %v637, %v1222
    %1226 = vset.pattern.permute.xlu0 0
    %1227 = vperm.xlu0 %1226, %v583
    %v1228 = vpop.permute.xlu0 %1227
    %v1230 = vmul.f32 %v1228, %v1224
    %v1231 = vsel %vm398, %v1230, 0.0
    %v1232 = vrot.slane %v1231, 4
    %v1233 = vadd.f32 %v1231, %v1232
    %v1234 = vrot.slane %v1233, 2
    %v1235 = vadd.f32 %v1233, %v1234
    %v1236 = vrot.slane %v1235, 1
    %v1237 = vadd.f32 %v1235, %v1236
    %1239 = vrot.lane.b32.xlu0 %v1237, 16
    %v1240 = vpop.permute.xlu0 %1239
    %vm1242 = vcmask 188544
    %1243 = vst.msk [vmem:[#allocation2] sm:$0x1] %vm1242, %v1240
    %1244 = vset.pattern.permute.xlu0 2
    %1245 = vperm.xlu0 %1244, %v634
    %v1246 = vpop.permute.xlu0 %1245
    %v1248 = vmul.f32 %v1246, %v637
    %1250 = vrot.lane.b32.xlu0 %v1214, 48
    %v1251 = vpop.permute.xlu0 %1250
    %v1253 = vadd.f32 %v1248, %v1251
    %1254 = vset.pattern.permute.xlu0 1
    %1255 = vperm.xlu0 %1254, %v619
    %v1256 = vpop.permute.xlu0 %1255
    %v1258 = vmul.f32 %v1256, %v693
    %v1259 = vmul.f32 %v1217, %v1258
    %1261 = vrot.lane.b32.xlu0 %v1259, 48
    %v1262 = vpop.permute.xlu0 %1261
    %v1264 = vadd.f32 %v1253, %v1262
    %1265 = vset.pattern.permute.xlu0 1
    %1266 = vperm.xlu0 %1265, %v583
    %v1267 = vpop.permute.xlu0 %1266
    %v1269 = vmul.f32 %v1267, %v1264
    %v1270 = vsel %vm398, %v1269, 0.0
    %v1271 = vrot.slane %v1270, 4
    %v1272 = vadd.f32 %v1270, %v1271
    %v1273 = vrot.slane %v1272, 2
    %v1274 = vadd.f32 %v1272, %v1273
    %v1275 = vrot.slane %v1274, 1
    %v1276 = vadd.f32 %v1274, %v1275
    %1278 = vrot.lane.b32.xlu0 %v1276, 16
    %v1279 = vpop.permute.xlu0 %1278
    %1281 = vst.msk [vmem:[#allocation2 + $0x1] sm:$0x1] %vm1242, %v1279
    %v1282 = vmul.f32 %v1246, %v1253
    %1284 = vrot.lane.b32.xlu0 %v1258, 48
    %v1285 = vpop.permute.xlu0 %1284
    %v1287 = vadd.f32 %v1282, %v1285
    %1288 = vset.pattern.permute.xlu0 2
    %1289 = vperm.xlu0 %1288, %v619
    %v1290 = vpop.permute.xlu0 %1289
    %v1292 = vmul.f32 %v1290, %v727
    %v1293 = vmul.f32 %v1217, %v1292
    %1295 = vrot.lane.b32.xlu0 %v1293, 48
    %v1296 = vpop.permute.xlu0 %1295
    %v1298 = vadd.f32 %v1287, %v1296
    %1299 = vset.pattern.permute.xlu0 2
    %1300 = vperm.xlu0 %1299, %v583
    %v1301 = vpop.permute.xlu0 %1300
    %v1303 = vmul.f32 %v1301, %v1298
    %v1304 = vsel %vm398, %v1303, 0.0
    %v1305 = vrot.slane %v1304, 4
    %v1306 = vadd.f32 %v1304, %v1305
    %v1307 = vrot.slane %v1306, 2
    %v1308 = vadd.f32 %v1306, %v1307
    %v1309 = vrot.slane %v1308, 1
    %v1310 = vadd.f32 %v1308, %v1309
    %1312 = vrot.lane.b32.xlu0 %v1310, 16
    %v1313 = vpop.permute.xlu0 %1312
    %1315 = vst.msk [vmem:[#allocation2 + $0x2] sm:$0x1] %vm1242, %v1313
    %v1316 = vmul.f32 %v1246, %v1287
    %1318 = vrot.lane.b32.xlu0 %v1292, 48
    %v1319 = vpop.permute.xlu0 %1318
    %v1321 = vadd.f32 %v1316, %v1319
    %1322 = vset.pattern.permute.xlu0 3
    %1323 = vperm.xlu0 %1322, %v619
    %v1324 = vpop.permute.xlu0 %1323
    %v1326 = vmul.f32 %v1324, %v761
    %v1327 = vmul.f32 %v1217, %v1326
    %1329 = vrot.lane.b32.xlu0 %v1327, 48
    %v1330 = vpop.permute.xlu0 %1329
    %v1332 = vadd.f32 %v1321, %v1330
    %1333 = vset.pattern.permute.xlu0 3
    %1334 = vperm.xlu0 %1333, %v583
    %v1335 = vpop.permute.xlu0 %1334
    %v1337 = vmul.f32 %v1335, %v1332
    %v1338 = vsel %vm398, %v1337, 0.0
    %v1339 = vrot.slane %v1338, 4
    %v1340 = vadd.f32 %v1338, %v1339
    %v1341 = vrot.slane %v1340, 2
    %v1342 = vadd.f32 %v1340, %v1341
    %v1343 = vrot.slane %v1342, 1
    %v1344 = vadd.f32 %v1342, %v1343
    %1346 = vrot.lane.b32.xlu0 %v1344, 16
    %v1347 = vpop.permute.xlu0 %1346
    %1349 = vst.msk [vmem:[#allocation2 + $0x3] sm:$0x1] %vm1242, %v1347
    %v1350 = vmul.f32 %v1246, %v1321
    %1352 = vrot.lane.b32.xlu0 %v1326, 48
    %v1353 = vpop.permute.xlu0 %1352
    %v1355 = vadd.f32 %v1350, %v1353
    %1356 = vset.pattern.permute.xlu0 4
    %1357 = vperm.xlu0 %1356, %v619
    %v1358 = vpop.permute.xlu0 %1357
    %v1360 = vmul.f32 %v1358, %v795
    %v1361 = vmul.f32 %v1217, %v1360
    %1363 = vrot.lane.b32.xlu0 %v1361, 48
    %v1364 = vpop.permute.xlu0 %1363
    %v1366 = vadd.f32 %v1355, %v1364
    %1367 = vset.pattern.permute.xlu0 4
    %1368 = vperm.xlu0 %1367, %v583
    %v1369 = vpop.permute.xlu0 %1368
    %v1371 = vmul.f32 %v1369, %v1366
    %v1372 = vsel %vm398, %v1371, 0.0
    %v1373 = vrot.slane %v1372, 4
    %v1374 = vadd.f32 %v1372, %v1373
    %v1375 = vrot.slane %v1374, 2
    %v1376 = vadd.f32 %v1374, %v1375
    %v1377 = vrot.slane %v1376, 1
    %v1378 = vadd.f32 %v1376, %v1377
    %1380 = vrot.lane.b32.xlu0 %v1378, 16
    %v1381 = vpop.permute.xlu0 %1380
    %1383 = vst.msk [vmem:[#allocation2 + $0x4] sm:$0x1] %vm1242, %v1381
    %v1384 = vmul.f32 %v1246, %v1355
    %1386 = vrot.lane.b32.xlu0 %v1360, 48
    %v1387 = vpop.permute.xlu0 %1386
    %v1389 = vadd.f32 %v1384, %v1387
    %1390 = vset.pattern.permute.xlu0 5
    %1391 = vperm.xlu0 %1390, %v619
    %v1392 = vpop.permute.xlu0 %1391
    %v1394 = vmul.f32 %v1392, %v829
    %v1395 = vmul.f32 %v1217, %v1394
    %1397 = vrot.lane.b32.xlu0 %v1395, 48
    %v1398 = vpop.permute.xlu0 %1397
    %v1400 = vadd.f32 %v1389, %v1398
    %1401 = vset.pattern.permute.xlu0 5
    %1402 = vperm.xlu0 %1401, %v583
    %v1403 = vpop.permute.xlu0 %1402
    %v1405 = vmul.f32 %v1403, %v1400
    %v1406 = vsel %vm398, %v1405, 0.0
    %v1407 = vrot.slane %v1406, 4
    %v1408 = vadd.f32 %v1406, %v1407
    %v1409 = vrot.slane %v1408, 2
    %v1410 = vadd.f32 %v1408, %v1409
    %v1411 = vrot.slane %v1410, 1
    %v1412 = vadd.f32 %v1410, %v1411
    %1414 = vrot.lane.b32.xlu0 %v1412, 16
    %v1415 = vpop.permute.xlu0 %1414
    %1417 = vst.msk [vmem:[#allocation2 + $0x5] sm:$0x1] %vm1242, %v1415
    %v1418 = vmul.f32 %v1246, %v1389
    %1420 = vrot.lane.b32.xlu0 %v1394, 48
    %v1421 = vpop.permute.xlu0 %1420
    %v1423 = vadd.f32 %v1418, %v1421
    %1424 = vset.pattern.permute.xlu0 6
    %1425 = vperm.xlu0 %1424, %v619
    %v1426 = vpop.permute.xlu0 %1425
    %v1428 = vmul.f32 %v1426, %v863
    %v1429 = vmul.f32 %v1217, %v1428
    %1431 = vrot.lane.b32.xlu0 %v1429, 48
    %v1432 = vpop.permute.xlu0 %1431
    %v1434 = vadd.f32 %v1423, %v1432
    %1435 = vset.pattern.permute.xlu0 6
    %1436 = vperm.xlu0 %1435, %v583
    %v1437 = vpop.permute.xlu0 %1436
    %v1439 = vmul.f32 %v1437, %v1434
    %v1440 = vsel %vm398, %v1439, 0.0
    %v1441 = vrot.slane %v1440, 4
    %v1442 = vadd.f32 %v1440, %v1441
    %v1443 = vrot.slane %v1442, 2
    %v1444 = vadd.f32 %v1442, %v1443
    %v1445 = vrot.slane %v1444, 1
    %v1446 = vadd.f32 %v1444, %v1445
    %1448 = vrot.lane.b32.xlu0 %v1446, 16
    %v1449 = vpop.permute.xlu0 %1448
    %1451 = vst.msk [vmem:[#allocation2 + $0x6] sm:$0x1] %vm1242, %v1449
    %v1452 = vmul.f32 %v1246, %v1423
    %1454 = vrot.lane.b32.xlu0 %v1428, 48
    %v1455 = vpop.permute.xlu0 %1454
    %v1457 = vadd.f32 %v1452, %v1455
    %1458 = vset.pattern.permute.xlu0 7
    %1459 = vperm.xlu0 %1458, %v619
    %v1460 = vpop.permute.xlu0 %1459
    %v1462 = vmul.f32 %v1460, %v897
    %v1463 = vmul.f32 %v1217, %v1462
    %1465 = vrot.lane.b32.xlu0 %v1463, 48
    %v1466 = vpop.permute.xlu0 %1465
    %v1468 = vadd.f32 %v1457, %v1466
    %1469 = vset.pattern.permute.xlu0 7
    %1470 = vperm.xlu0 %1469, %v583
    %v1471 = vpop.permute.xlu0 %1470
    %v1473 = vmul.f32 %v1471, %v1468
    %v1474 = vsel %vm398, %v1473, 0.0
    %v1475 = vrot.slane %v1474, 4
    %v1476 = vadd.f32 %v1474, %v1475
    %v1477 = vrot.slane %v1476, 2
    %v1478 = vadd.f32 %v1476, %v1477
    %v1479 = vrot.slane %v1478, 1
    %v1480 = vadd.f32 %v1478, %v1479
    %1482 = vrot.lane.b32.xlu0 %v1480, 16
    %v1483 = vpop.permute.xlu0 %1482
    %1485 = vst.msk [vmem:[#allocation2 + $0x7] sm:$0x1] %vm1242, %v1483
    %v1486 = vmul.f32 %v1246, %v1457
    %1488 = vrot.lane.b32.xlu0 %v1462, 48
    %v1489 = vpop.permute.xlu0 %1488
    %v1491 = vadd.f32 %v1486, %v1489
    %1492 = vst.msk [vmem:[#allocation18 + $0x10] sm:$0xff] %vm398, %v1491
    %1494 = vset.pattern.permute.xlu0 0
    %1495 = vperm.xlu0 %1494, %v620
    %v1496 = vpop.permute.xlu0 %1495
    %v1498 = vmul.f32 %v1496, %v647
    %1499 = vset.pattern.permute.xlu0 3
    %1500 = vperm.xlu0 %1499, %v633
    %v1501 = vpop.permute.xlu0 %1500
    %v1503 = vmul.f32 %v1501, %v1498
    %1505 = vrot.lane.b32.xlu0 %v1503, 40
    %v1506 = vpop.permute.xlu0 %1505
    %v1508 = vadd.f32 %v638, %v1506
    %1510 = vset.pattern.permute.xlu0 0
    %1511 = vperm.xlu0 %1510, %v584
    %v1512 = vpop.permute.xlu0 %1511
    %v1514 = vmul.f32 %v1512, %v1508
    %v1515 = vsel %vm398, %v1514, 0.0
    %v1516 = vrot.slane %v1515, 4
    %v1517 = vadd.f32 %v1515, %v1516
    %v1518 = vrot.slane %v1517, 2
    %v1519 = vadd.f32 %v1517, %v1518
    %v1520 = vrot.slane %v1519, 1
    %v1521 = vadd.f32 %v1519, %v1520
    %1523 = vrot.lane.b32.xlu0 %v1521, 24
    %v1524 = vpop.permute.xlu0 %1523
    %vm1526 = vcmask 254144
    %1527 = vst.msk [vmem:[#allocation2] sm:$0x1] %vm1526, %v1524
    %1528 = vset.pattern.permute.xlu0 3
    %1529 = vperm.xlu0 %1528, %v634
    %v1530 = vpop.permute.xlu0 %1529
    %v1532 = vmul.f32 %v1530, %v638
    %1534 = vrot.lane.b32.xlu0 %v1498, 40
    %v1535 = vpop.permute.xlu0 %1534
    %v1537 = vadd.f32 %v1532, %v1535
    %1538 = vset.pattern.permute.xlu0 1
    %1539 = vperm.xlu0 %1538, %v620
    %v1540 = vpop.permute.xlu0 %1539
    %v1542 = vmul.f32 %v1540, %v693
    %v1543 = vmul.f32 %v1501, %v1542
    %1545 = vrot.lane.b32.xlu0 %v1543, 40
    %v1546 = vpop.permute.xlu0 %1545
    %v1548 = vadd.f32 %v1537, %v1546
    %1549 = vset.pattern.permute.xlu0 1
    %1550 = vperm.xlu0 %1549, %v584
    %v1551 = vpop.permute.xlu0 %1550
    %v1553 = vmul.f32 %v1551, %v1548
    %v1554 = vsel %vm398, %v1553, 0.0
    %v1555 = vrot.slane %v1554, 4
    %v1556 = vadd.f32 %v1554, %v1555
    %v1557 = vrot.slane %v1556, 2
    %v1558 = vadd.f32 %v1556, %v1557
    %v1559 = vrot.slane %v1558, 1
    %v1560 = vadd.f32 %v1558, %v1559
    %1562 = vrot.lane.b32.xlu0 %v1560, 24
    %v1563 = vpop.permute.xlu0 %1562
    %1565 = vst.msk [vmem:[#allocation2 + $0x1] sm:$0x1] %vm1526, %v1563
    %v1566 = vmul.f32 %v1530, %v1537
    %1568 = vrot.lane.b32.xlu0 %v1542, 40
    %v1569 = vpop.permute.xlu0 %1568
    %v1571 = vadd.f32 %v1566, %v1569
    %1572 = vset.pattern.permute.xlu0 2
    %1573 = vperm.xlu0 %1572, %v620
    %v1574 = vpop.permute.xlu0 %1573
    %v1576 = vmul.f32 %v1574, %v727
    %v1577 = vmul.f32 %v1501, %v1576
    %1579 = vrot.lane.b32.xlu0 %v1577, 40
    %v1580 = vpop.permute.xlu0 %1579
    %v1582 = vadd.f32 %v1571, %v1580
    %1583 = vset.pattern.permute.xlu0 2
    %1584 = vperm.xlu0 %1583, %v584
    %v1585 = vpop.permute.xlu0 %1584
    %v1587 = vmul.f32 %v1585, %v1582
    %v1588 = vsel %vm398, %v1587, 0.0
    %v1589 = vrot.slane %v1588, 4
    %v1590 = vadd.f32 %v1588, %v1589
    %v1591 = vrot.slane %v1590, 2
    %v1592 = vadd.f32 %v1590, %v1591
    %v1593 = vrot.slane %v1592, 1
    %v1594 = vadd.f32 %v1592, %v1593
    %1596 = vrot.lane.b32.xlu0 %v1594, 24
    %v1597 = vpop.permute.xlu0 %1596
    %1599 = vst.msk [vmem:[#allocation2 + $0x2] sm:$0x1] %vm1526, %v1597
    %v1600 = vmul.f32 %v1530, %v1571
    %1602 = vrot.lane.b32.xlu0 %v1576, 40
    %v1603 = vpop.permute.xlu0 %1602
    %v1605 = vadd.f32 %v1600, %v1603
    %1606 = vset.pattern.permute.xlu0 3
    %1607 = vperm.xlu0 %1606, %v620
    %v1608 = vpop.permute.xlu0 %1607
    %v1610 = vmul.f32 %v1608, %v761
    %v1611 = vmul.f32 %v1501, %v1610
    %1613 = vrot.lane.b32.xlu0 %v1611, 40
    %v1614 = vpop.permute.xlu0 %1613
    %v1616 = vadd.f32 %v1605, %v1614
    %1617 = vset.pattern.permute.xlu0 3
    %1618 = vperm.xlu0 %1617, %v584
    %v1619 = vpop.permute.xlu0 %1618
    %v1621 = vmul.f32 %v1619, %v1616
    %v1622 = vsel %vm398, %v1621, 0.0
    %v1623 = vrot.slane %v1622, 4
    %v1624 = vadd.f32 %v1622, %v1623
    %v1625 = vrot.slane %v1624, 2
    %v1626 = vadd.f32 %v1624, %v1625
    %v1627 = vrot.slane %v1626, 1
    %v1628 = vadd.f32 %v1626, %v1627
    %1630 = vrot.lane.b32.xlu0 %v1628, 24
    %v1631 = vpop.permute.xlu0 %1630
    %1633 = vst.msk [vmem:[#allocation2 + $0x3] sm:$0x1] %vm1526, %v1631
    %v1634 = vmul.f32 %v1530, %v1605
    %1636 = vrot.lane.b32.xlu0 %v1610, 40
    %v1637 = vpop.permute.xlu0 %1636
    %v1639 = vadd.f32 %v1634, %v1637
    %1640 = vset.pattern.permute.xlu0 4
    %1641 = vperm.xlu0 %1640, %v620
    %v1642 = vpop.permute.xlu0 %1641
    %v1644 = vmul.f32 %v1642, %v795
    %v1645 = vmul.f32 %v1501, %v1644
    %1647 = vrot.lane.b32.xlu0 %v1645, 40
    %v1648 = vpop.permute.xlu0 %1647
    %v1650 = vadd.f32 %v1639, %v1648
    %1651 = vset.pattern.permute.xlu0 4
    %1652 = vperm.xlu0 %1651, %v584
    %v1653 = vpop.permute.xlu0 %1652
    %v1655 = vmul.f32 %v1653, %v1650
    %v1656 = vsel %vm398, %v1655, 0.0
    %v1657 = vrot.slane %v1656, 4
    %v1658 = vadd.f32 %v1656, %v1657
    %v1659 = vrot.slane %v1658, 2
    %v1660 = vadd.f32 %v1658, %v1659
    %v1661 = vrot.slane %v1660, 1
    %v1662 = vadd.f32 %v1660, %v1661
    %1664 = vrot.lane.b32.xlu0 %v1662, 24
    %v1665 = vpop.permute.xlu0 %1664
    %1667 = vst.msk [vmem:[#allocation2 + $0x4] sm:$0x1] %vm1526, %v1665
    %v1668 = vmul.f32 %v1530, %v1639
    %1670 = vrot.lane.b32.xlu0 %v1644, 40
    %v1671 = vpop.permute.xlu0 %1670
    %v1673 = vadd.f32 %v1668, %v1671
    %1674 = vset.pattern.permute.xlu0 5
    %1675 = vperm.xlu0 %1674, %v620
    %v1676 = vpop.permute.xlu0 %1675
    %v1678 = vmul.f32 %v1676, %v829
    %v1679 = vmul.f32 %v1501, %v1678
    %1681 = vrot.lane.b32.xlu0 %v1679, 40
    %v1682 = vpop.permute.xlu0 %1681
    %v1684 = vadd.f32 %v1673, %v1682
    %1685 = vset.pattern.permute.xlu0 5
    %1686 = vperm.xlu0 %1685, %v584
    %v1687 = vpop.permute.xlu0 %1686
    %v1689 = vmul.f32 %v1687, %v1684
    %v1690 = vsel %vm398, %v1689, 0.0
    %v1691 = vrot.slane %v1690, 4
    %v1692 = vadd.f32 %v1690, %v1691
    %v1693 = vrot.slane %v1692, 2
    %v1694 = vadd.f32 %v1692, %v1693
    %v1695 = vrot.slane %v1694, 1
    %v1696 = vadd.f32 %v1694, %v1695
    %1698 = vrot.lane.b32.xlu0 %v1696, 24
    %v1699 = vpop.permute.xlu0 %1698
    %1701 = vst.msk [vmem:[#allocation2 + $0x5] sm:$0x1] %vm1526, %v1699
    %v1702 = vmul.f32 %v1530, %v1673
    %1704 = vrot.lane.b32.xlu0 %v1678, 40
    %v1705 = vpop.permute.xlu0 %1704
    %v1707 = vadd.f32 %v1702, %v1705
    %1708 = vset.pattern.permute.xlu0 6
    %1709 = vperm.xlu0 %1708, %v620
    %v1710 = vpop.permute.xlu0 %1709
    %v1712 = vmul.f32 %v1710, %v863
    %v1713 = vmul.f32 %v1501, %v1712
    %1715 = vrot.lane.b32.xlu0 %v1713, 40
    %v1716 = vpop.permute.xlu0 %1715
    %v1718 = vadd.f32 %v1707, %v1716
    %1719 = vset.pattern.permute.xlu0 6
    %1720 = vperm.xlu0 %1719, %v584
    %v1721 = vpop.permute.xlu0 %1720
    %v1723 = vmul.f32 %v1721, %v1718
    %v1724 = vsel %vm398, %v1723, 0.0
    %v1725 = vrot.slane %v1724, 4
    %v1726 = vadd.f32 %v1724, %v1725
    %v1727 = vrot.slane %v1726, 2
    %v1728 = vadd.f32 %v1726, %v1727
    %v1729 = vrot.slane %v1728, 1
    %v1730 = vadd.f32 %v1728, %v1729
    %1732 = vrot.lane.b32.xlu0 %v1730, 24
    %v1733 = vpop.permute.xlu0 %1732
    %1735 = vst.msk [vmem:[#allocation2 + $0x6] sm:$0x1] %vm1526, %v1733
    %v1736 = vmul.f32 %v1530, %v1707
    %1738 = vrot.lane.b32.xlu0 %v1712, 40
    %v1739 = vpop.permute.xlu0 %1738
    %v1741 = vadd.f32 %v1736, %v1739
    %1742 = vset.pattern.permute.xlu0 7
    %1743 = vperm.xlu0 %1742, %v620
    %v1744 = vpop.permute.xlu0 %1743
    %v1746 = vmul.f32 %v1744, %v897
    %v1747 = vmul.f32 %v1501, %v1746
    %1749 = vrot.lane.b32.xlu0 %v1747, 40
    %v1750 = vpop.permute.xlu0 %1749
    %v1752 = vadd.f32 %v1741, %v1750
    %1753 = vset.pattern.permute.xlu0 7
    %1754 = vperm.xlu0 %1753, %v584
    %v1755 = vpop.permute.xlu0 %1754
    %v1757 = vmul.f32 %v1755, %v1752
    %v1758 = vsel %vm398, %v1757, 0.0
    %v1759 = vrot.slane %v1758, 4
    %v1760 = vadd.f32 %v1758, %v1759
    %v1761 = vrot.slane %v1760, 2
    %v1762 = vadd.f32 %v1760, %v1761
    %v1763 = vrot.slane %v1762, 1
    %v1764 = vadd.f32 %v1762, %v1763
    %1766 = vrot.lane.b32.xlu0 %v1764, 24
    %v1767 = vpop.permute.xlu0 %1766
    %1769 = vst.msk [vmem:[#allocation2 + $0x7] sm:$0x1] %vm1526, %v1767
    %v1770 = vmul.f32 %v1530, %v1741
    %1772 = vrot.lane.b32.xlu0 %v1746, 40
    %v1773 = vpop.permute.xlu0 %1772
    %v1775 = vadd.f32 %v1770, %v1773
    %1776 = vst.msk [vmem:[#allocation18 + $0x18] sm:$0xff] %vm398, %v1775
    %v1777 = vld [vmem:[#allocation2] sm:$0xff]
    %v1778 = vmul.f32 %v1777, 0.125
    %v1779 = vld [vmem:[%s9] sm:$0xff]
    %v1780 = vld [vmem:[%s9 + $0x8] sm:$0xff]
    %v1781 = vld [vmem:[%s9 + $0x10] sm:$0xff]
    %v1782 = vld [vmem:[%s9 + $0x18] sm:$0xff]
    %v1784 = vsel %vm340, %v1778, 0
    %1786 = vmatprep.subr.mxu0 0.0
    %1787 = vmatpush1.msra.mxu0 %v1779
    %1788 = vmatprep.subr.mxu0 0.0
    %1789 = vmatpush1.msra.mxu0 %v1780
    %1790 = vmatprep.subr.mxu0 0.0
    %1791 = vmatpush1.msra.mxu0 %v1781
    %1792 = vmatprep.subr.mxu0 0.0
    %1793 = vmatpush1.msra.mxu0 %v1782
    %1794 = vmatprep.subr.mxu0 0.0
    %1795 = vmatpush1.msra.mxu0 0.0
    %1796 = vmatprep.subr.mxu0 0.0
    %1797 = vmatpush1.msra.mxu0 0.0
    %1798 = vmatprep.subr.mxu0 0.0
    %1799 = vmatpush1.msra.mxu0 0.0
    %1800 = vmatprep.subr.mxu0 0.0
    %1801 = vmatpush1.msra.mxu0 0.0
    %1802 = vmatprep.subr.mxu0 0.0
    %1803 = vmatpush1.msra.mxu0 0.0
    %1804 = vmatprep.subr.mxu0 0.0
    %1805 = vmatpush1.msra.mxu0 0.0
    %1806 = vmatprep.subr.mxu0 0.0
    %1807 = vmatpush1.msra.mxu0 0.0
    %1808 = vmatprep.subr.mxu0 0.0
    %1809 = vmatpush1.msra.mxu0 0.0
    %1810 = vmatprep.subr.mxu0 0.0
    %1811 = vmatpush1.msra.mxu0 0.0
    %1812 = vmatprep.subr.mxu0 0.0
    %1813 = vmatpush1.msra.mxu0 0.0
    %1814 = vmatprep.subr.mxu0 0.0
    %1815 = vmatpush1.msra.mxu0 0.0
    %1816 = vmatprep.subr.mxu0 0.0
    %1817 = vmatpush1.msra.mxu0 0.0
    %1818 = vmatprep.subr.mxu0 0.0
    %1819 = vmatpush1.msra.mxu0 0.0
    %1820 = vmatprep.subr.mxu0 0.0
    %1821 = vmatpush1.msra.mxu0 0.0
    %1822 = vmatprep.subr.mxu0 0.0
    %1823 = vmatpush1.msra.mxu0 0.0
    %1824 = vmatprep.subr.mxu0 0.0
    %1825 = vmatpush1.msra.mxu0 0.0
    %1826 = vmatprep.subr.mxu0 0.0
    %1827 = vmatpush1.msra.mxu0 0.0
    %1828 = vmatprep.subr.mxu0 0.0
    %1829 = vmatpush1.msra.mxu0 0.0
    %1830 = vmatprep.subr.mxu0 0.0
    %1831 = vmatpush1.msra.mxu0 0.0
    %1832 = vmatprep.subr.mxu0 0.0
    %1833 = vmatpush1.msra.mxu0 0.0
    %1834 = vmatprep.subr.mxu0 0.0
    %1835 = vmatpush1.msra.mxu0 0.0
    %1836 = vmatprep.subr.mxu0 0.0
    %1837 = vmatpush1.msra.mxu0 0.0
    %1838 = vmatprep.subr.mxu0 0.0
    %1839 = vmatpush1.msra.mxu0 0.0
    %1840 = vmatprep.subr.mxu0 0.0
    %1841 = vmatpush1.msra.mxu0 0.0
    %1842 = vmatprep.subr.mxu0 0.0
    %1843 = vmatpush1.msra.mxu0 0.0
    %1844 = vmatprep.subr.mxu0 0.0
    %1845 = vmatpush1.msra.mxu0 0.0
    %1846 = vmatprep.subr.mxu0 0.0
    %1847 = vmatpush1.msra.mxu0 0.0
    %1848 = vmatprep.subr.mxu0 0.0
    %1849 = vmatpush1.msra.mxu0 0.0
    %1850 = vmatprep.mubr.f32.mxu0 0.0
    %1851 = vmatmul.mubr.f32.gmra.mrb[0].mxu0 %v1784
    %v1852 = vpop.f32.mrb[0].mxu0
    %v1853 = vadd.f32 0.0, %v1852
    %v1854 = vpop.f32.mrb[0].mxu0
    %1855 = vdwg.mxu0
    %v1856 = vmul.f32 %v1778, %v1778
    %v1858 = vsel %vm340, %v1856, 0
    %1860 = vmatprep.subr.mxu0 0.0
    %1861 = vmatpush1.msra.mxu0 %v1779
    %1862 = vmatprep.subr.mxu0 0.0
    %1863 = vmatpush1.msra.mxu0 %v1780
    %1864 = vmatprep.subr.mxu0 0.0
    %1865 = vmatpush1.msra.mxu0 %v1781
    %1866 = vmatprep.subr.mxu0 0.0
    %1867 = vmatpush1.msra.mxu0 %v1782
    %1868 = vmatprep.subr.mxu0 0.0
    %1869 = vmatpush1.msra.mxu0 0.0
    %1870 = vmatprep.subr.mxu0 0.0
    %1871 = vmatpush1.msra.mxu0 0.0
    %1872 = vmatprep.subr.mxu0 0.0
    %1873 = vmatpush1.msra.mxu0 0.0
    %1874 = vmatprep.subr.mxu0 0.0
    %1875 = vmatpush1.msra.mxu0 0.0
    %1876 = vmatprep.subr.mxu0 0.0
    %1877 = vmatpush1.msra.mxu0 0.0
    %1878 = vmatprep.subr.mxu0 0.0
    %1879 = vmatpush1.msra.mxu0 0.0
    %1880 = vmatprep.subr.mxu0 0.0
    %1881 = vmatpush1.msra.mxu0 0.0
    %1882 = vmatprep.subr.mxu0 0.0
    %1883 = vmatpush1.msra.mxu0 0.0
    %1884 = vmatprep.subr.mxu0 0.0
    %1885 = vmatpush1.msra.mxu0 0.0
    %1886 = vmatprep.subr.mxu0 0.0
    %1887 = vmatpush1.msra.mxu0 0.0
    %1888 = vmatprep.subr.mxu0 0.0
    %1889 = vmatpush1.msra.mxu0 0.0
    %1890 = vmatprep.subr.mxu0 0.0
    %1891 = vmatpush1.msra.mxu0 0.0
    %1892 = vmatprep.subr.mxu0 0.0
    %1893 = vmatpush1.msra.mxu0 0.0
    %1894 = vmatprep.subr.mxu0 0.0
    %1895 = vmatpush1.msra.mxu0 0.0
    %1896 = vmatprep.subr.mxu0 0.0
    %1897 = vmatpush1.msra.mxu0 0.0
    %1898 = vmatprep.subr.mxu0 0.0
    %1899 = vmatpush1.msra.mxu0 0.0
    %1900 = vmatprep.subr.mxu0 0.0
    %1901 = vmatpush1.msra.mxu0 0.0
    %1902 = vmatprep.subr.mxu0 0.0
    %1903 = vmatpush1.msra.mxu0 0.0
    %1904 = vmatprep.subr.mxu0 0.0
    %1905 = vmatpush1.msra.mxu0 0.0
    %1906 = vmatprep.subr.mxu0 0.0
    %1907 = vmatpush1.msra.mxu0 0.0
    %1908 = vmatprep.subr.mxu0 0.0
    %1909 = vmatpush1.msra.mxu0 0.0
    %1910 = vmatprep.subr.mxu0 0.0
    %1911 = vmatpush1.msra.mxu0 0.0
    %1912 = vmatprep.subr.mxu0 0.0
    %1913 = vmatpush1.msra.mxu0 0.0
    %1914 = vmatprep.subr.mxu0 0.0
    %1915 = vmatpush1.msra.mxu0 0.0
    %1916 = vmatprep.subr.mxu0 0.0
    %1917 = vmatpush1.msra.mxu0 0.0
    %1918 = vmatprep.subr.mxu0 0.0
    %1919 = vmatpush1.msra.mxu0 0.0
    %1920 = vmatprep.subr.mxu0 0.0
    %1921 = vmatpush1.msra.mxu0 0.0
    %1922 = vmatprep.subr.mxu0 0.0
    %1923 = vmatpush1.msra.mxu0 0.0
    %1924 = vmatprep.mubr.f32.mxu0 0.0
    %1925 = vmatmul.mubr.f32.gmra.mrb[0].mxu0 %v1858
    %v1926 = vpop.f32.mrb[0].mxu0
    %v1927 = vadd.f32 0.0, %v1926
    %v1928 = vpop.f32.mrb[0].mxu0
    %1929 = vdwg.mxu0
    %v1930 = vmul.f32 %v1853, %v1853
    %v1931 = vsub.f32 %v1927, %v1930
    %v1932 = vmax.f32 %v1931, 0.0
    %v1933 = vsub.f32 %v1778, %v1853
    %v1934 = vadd.f32 %v1932, 1e-05
    %v1935 = vrsqrt.pop %v1934
    %v1936 = vmul.f32 %v1933, %v1935
    %v1937 = vld [vmem:[#allocation11] sm:$0x1]
    %v1939 = vlaneseq
    %v1940 = vshrl.u32 %v1939, 7
    %v1941 = vsub.s32 0, %v1940
    %v1942 = vrot.slane %v1937, %v1941
    %v1944 = vmul.f32 %v1936, %v1942
    %v1945 = vld [vmem:[#allocation12] sm:$0x1]
    %v1947 = vlaneseq
    %v1948 = vshrl.u32 %v1947, 7
    %v1949 = vsub.s32 0, %v1948
    %v1950 = vrot.slane %v1945, %v1949
    %v1952 = vadd.f32 %v1944, %v1950
    %1954 = vrot.lane.b32.xlu0 %v564, 32
    %v1955 = vpop.permute.xlu0 %1954
    %v1957 = vmul.f32 %v1952, %v1955
    %v1958 = vld [vmem:[%s35] sm:$0xff]
    %v1959 = vld [vmem:[%s35 + $0x8] sm:$0xff]
    %v1960 = vld [vmem:[%s35 + $0x10] sm:$0xff]
    %v1961 = vld [vmem:[%s35 + $0x18] sm:$0xff]
    %v1963 = vsel %vm340, %v1957, 0
    %1965 = vmatprep.subr.mxu0 0.0
    %1966 = vmatpush1.msra.mxu0 %v1958
    %1967 = vmatprep.subr.mxu0 0.0
    %1968 = vmatpush1.msra.mxu0 %v1959
    %1969 = vmatprep.subr.mxu0 0.0
    %1970 = vmatpush1.msra.mxu0 %v1960
    %1971 = vmatprep.subr.mxu0 0.0
    %1972 = vmatpush1.msra.mxu0 %v1961
    %1973 = vmatprep.subr.mxu0 0.0
    %1974 = vmatpush1.msra.mxu0 0.0
    %1975 = vmatprep.subr.mxu0 0.0
    %1976 = vmatpush1.msra.mxu0 0.0
    %1977 = vmatprep.subr.mxu0 0.0
    %1978 = vmatpush1.msra.mxu0 0.0
    %1979 = vmatprep.subr.mxu0 0.0
    %1980 = vmatpush1.msra.mxu0 0.0
    %1981 = vmatprep.subr.mxu0 0.0
    %1982 = vmatpush1.msra.mxu0 0.0
    %1983 = vmatprep.subr.mxu0 0.0
    %1984 = vmatpush1.msra.mxu0 0.0
    %1985 = vmatprep.subr.mxu0 0.0
    %1986 = vmatpush1.msra.mxu0 0.0
    %1987 = vmatprep.subr.mxu0 0.0
    %1988 = vmatpush1.msra.mxu0 0.0
    %1989 = vmatprep.subr.mxu0 0.0
    %1990 = vmatpush1.msra.mxu0 0.0
    %1991 = vmatprep.subr.mxu0 0.0
    %1992 = vmatpush1.msra.mxu0 0.0
    %1993 = vmatprep.subr.mxu0 0.0
    %1994 = vmatpush1.msra.mxu0 0.0
    %1995 = vmatprep.subr.mxu0 0.0
    %1996 = vmatpush1.msra.mxu0 0.0
    %1997 = vmatprep.subr.mxu0 0.0
    %1998 = vmatpush1.msra.mxu0 0.0
    %1999 = vmatprep.subr.mxu0 0.0
    %2000 = vmatpush1.msra.mxu0 0.0
    %2001 = vmatprep.subr.mxu0 0.0
    %2002 = vmatpush1.msra.mxu0 0.0
    %2003 = vmatprep.subr.mxu0 0.0
    %2004 = vmatpush1.msra.mxu0 0.0
    %2005 = vmatprep.subr.mxu0 0.0
    %2006 = vmatpush1.msra.mxu0 0.0
    %2007 = vmatprep.subr.mxu0 0.0
    %2008 = vmatpush1.msra.mxu0 0.0
    %2009 = vmatprep.subr.mxu0 0.0
    %2010 = vmatpush1.msra.mxu0 0.0
    %2011 = vmatprep.subr.mxu0 0.0
    %2012 = vmatpush1.msra.mxu0 0.0
    %2013 = vmatprep.subr.mxu0 0.0
    %2014 = vmatpush1.msra.mxu0 0.0
    %2015 = vmatprep.subr.mxu0 0.0
    %2016 = vmatpush1.msra.mxu0 0.0
    %2017 = vmatprep.subr.mxu0 0.0
    %2018 = vmatpush1.msra.mxu0 0.0
    %2019 = vmatprep.subr.mxu0 0.0
    %2020 = vmatpush1.msra.mxu0 0.0
    %2021 = vmatprep.subr.mxu0 0.0
    %2022 = vmatpush1.msra.mxu0 0.0
    %2023 = vmatprep.subr.mxu0 0.0
    %2024 = vmatpush1.msra.mxu0 0.0
    %2025 = vmatprep.subr.mxu0 0.0
    %2026 = vmatpush1.msra.mxu0 0.0
    %2027 = vmatprep.subr.mxu0 0.0
    %2028 = vmatpush1.msra.mxu0 0.0
    %2029 = vmatprep.mubr.f32.mxu0 0.0
    %2030 = vmatmul.mubr.f32.gmra.mrb[0].mxu0 %v1963
    %v2031 = vpop.f32.mrb[0].mxu0
    %v2032 = vadd.f32 0.0, %v2031
    %v2033 = vpop.f32.mrb[0].mxu0
    %2034 = vdwg.mxu0
    %v2035 = vadd.f32 %v368, %v2032
    %v2036 = vld [vmem:[#allocation14] sm:$0x1]
    %v2037 = vld [vmem:[#allocation15] sm:$0x1]
    %v2038 = vsel %vm340, %v2035, 0.0
    %2039 = vadd.xlane.f32.xlu0 %v2038
    %v2040 = vpop.xlane.xlu0 %2039
    %v2041 = vmul.f32 %v2040, %v344
    %v2042 = vsub.f32 %v2035, %v2041
    %v2043 = vmul.f32 %v2042, %v2042
    %v2044 = vsel %vm340, %v2043, 0.0
    %2045 = vadd.xlane.f32.xlu0 %v2044
    %v2046 = vpop.xlane.xlu0 %2045
    %v2047 = vmul.f32 %v2046, %v344
    %v2048 = vadd.f32 %v2047, 1e-05
    %v2049 = vrsqrt.pop %v2048
    %v2050 = vmul.f32 %v2042, %v2049
    %v2052 = vlaneseq
    %v2053 = vshrl.u32 %v2052, 7
    %v2054 = vsub.s32 0, %v2053
    %v2055 = vrot.slane %v2036, %v2054
    %v2057 = vmul.f32 %v2050, %v2055
    %v2059 = vlaneseq
    %v2060 = vshrl.u32 %v2059, 7
    %v2061 = vsub.s32 0, %v2060
    %v2062 = vrot.slane %v2037, %v2061
    %v2064 = vadd.f32 %v2057, %v2062
    %2065 = vmatprep.subr.mxu0 0.0
    %2066 = vmatpush1.msra.mxu0 %v2064
    %2067 = vmatprep.subr.mxu0 0.0
    %2068 = vmatpush1.msra.mxu0 0.0
    %2069 = vmatprep.subr.mxu0 0.0
    %2070 = vmatpush1.msra.mxu0 0.0
    %2071 = vmatprep.subr.mxu0 0.0
    %2072 = vmatpush1.msra.mxu0 0.0
    %2073 = vmatprep.subr.mxu0 0.0
    %2074 = vmatpush1.msra.mxu0 0.0
    %2075 = vmatprep.subr.mxu0 0.0
    %2076 = vmatpush1.msra.mxu0 0.0
    %2077 = vmatprep.subr.mxu0 0.0
    %2078 = vmatpush1.msra.mxu0 0.0
    %2079 = vmatprep.subr.mxu0 0.0
    %2080 = vmatpush1.msra.mxu0 0.0
    %2081 = vmatprep.subr.mxu0 0.0
    %2082 = vmatpush1.msra.mxu0 0.0
    %2083 = vmatprep.subr.mxu0 0.0
    %2084 = vmatpush1.msra.mxu0 0.0
    %2085 = vmatprep.subr.mxu0 0.0
    %2086 = vmatpush1.msra.mxu0 0.0
    %2087 = vmatprep.subr.mxu0 0.0
    %2088 = vmatpush1.msra.mxu0 0.0
    %2089 = vmatprep.subr.mxu0 0.0
    %2090 = vmatpush1.msra.mxu0 0.0
    %2091 = vmatprep.subr.mxu0 0.0
    %2092 = vmatpush1.msra.mxu0 0.0
    %2093 = vmatprep.subr.mxu0 0.0
    %2094 = vmatpush1.msra.mxu0 0.0
    %2095 = vmatprep.subr.mxu0 0.0
    %2096 = vmatpush1.msra.mxu0 0.0
    %2097 = vmatprep.subr.mxu0 0.0
    %2098 = vmatpush1.msra.mxu0 0.0
    %2099 = vmatprep.subr.mxu0 0.0
    %2100 = vmatpush1.msra.mxu0 0.0
    %2101 = vmatprep.subr.mxu0 0.0
    %2102 = vmatpush1.msra.mxu0 0.0
    %2103 = vmatprep.subr.mxu0 0.0
    %2104 = vmatpush1.msra.mxu0 0.0
    %2105 = vmatprep.subr.mxu0 0.0
    %2106 = vmatpush1.msra.mxu0 0.0
    %2107 = vmatprep.subr.mxu0 0.0
    %2108 = vmatpush1.msra.mxu0 0.0
    %2109 = vmatprep.subr.mxu0 0.0
    %2110 = vmatpush1.msra.mxu0 0.0
    %2111 = vmatprep.subr.mxu0 0.0
    %2112 = vmatpush1.msra.mxu0 0.0
    %2113 = vmatprep.subr.mxu0 0.0
    %2114 = vmatpush1.msra.mxu0 0.0
    %2115 = vmatprep.subr.mxu0 0.0
    %2116 = vmatpush1.msra.mxu0 0.0
    %2117 = vmatprep.subr.mxu0 0.0
    %2118 = vmatpush1.msra.mxu0 0.0
    %2119 = vmatprep.subr.mxu0 0.0
    %2120 = vmatpush1.msra.mxu0 0.0
    %2121 = vmatprep.subr.mxu0 0.0
    %2122 = vmatpush1.msra.mxu0 0.0
    %2123 = vmatprep.subr.mxu0 0.0
    %2124 = vmatpush1.msra.mxu0 0.0
    %2125 = vmatprep.subr.mxu0 0.0
    %2126 = vmatpush1.msra.mxu0 0.0
    %2127 = vmatprep.subr.mxu0 0.0
    %2128 = vmatpush1.msra.mxu0 0.0
    %2129 = vmatprep.mubr.f32.mxu0 0.0
    %2130 = vmatmul.mubr.f32.gmra.mrb[0].mxu0 %v400
    %v2131 = vpop.f32.mrb[0].mxu0
    %v2132 = vadd.f32 0.0, %v2131
    %v2133 = vpop.f32.mrb[0].mxu0
    %2134 = vdwg.mxu0
    %2136 = vrot.lane.b32.xlu0 %v2132, 32
    %v2137 = vpop.permute.xlu0 %2136
    %v2139 = vsel %vm340, %v2064, %v2137
    %v2140 = vld [vmem:[%s41] sm:$0xff]
    %v2141 = vld [vmem:[%s41 + $0x8] sm:$0xff]
    %v2142 = vld [vmem:[%s41 + $0x10] sm:$0xff]
    %v2143 = vld [vmem:[%s41 + $0x18] sm:$0xff]
    %v2144 = vld [vmem:[%s41 + $0x20] sm:$0xff]
    %v2145 = vld [vmem:[%s41 + $0x28] sm:$0xff]
    %v2146 = vld [vmem:[%s41 + $0x30] sm:$0xff]
    %v2147 = vld [vmem:[%s41 + $0x38] sm:$0xff]
    %v2149 = vsel %vm264, %v2139, 0
    %2151 = vmatprep.subr.mxu0 0.0
    %2152 = vmatpush1.msra.mxu0 %v2140
    %2153 = vmatprep.subr.mxu0 0.0
    %2154 = vmatpush1.msra.mxu0 %v2141
    %2155 = vmatprep.subr.mxu0 0.0
    %2156 = vmatpush1.msra.mxu0 %v2142
    %2157 = vmatprep.subr.mxu0 0.0
    %2158 = vmatpush1.msra.mxu0 %v2143
    %2159 = vmatprep.subr.mxu0 0.0
    %2160 = vmatpush1.msra.mxu0 %v2144
    %2161 = vmatprep.subr.mxu0 0.0
    %2162 = vmatpush1.msra.mxu0 %v2145
    %2163 = vmatprep.subr.mxu0 0.0
    %2164 = vmatpush1.msra.mxu0 %v2146
    %2165 = vmatprep.subr.mxu0 0.0
    %2166 = vmatpush1.msra.mxu0 %v2147
    %2167 = vmatprep.subr.mxu0 0.0
    %2168 = vmatpush1.msra.mxu0 0.0
    %2169 = vmatprep.subr.mxu0 0.0
    %2170 = vmatpush1.msra.mxu0 0.0
    %2171 = vmatprep.subr.mxu0 0.0
    %2172 = vmatpush1.msra.mxu0 0.0
    %2173 = vmatprep.subr.mxu0 0.0
    %2174 = vmatpush1.msra.mxu0 0.0
    %2175 = vmatprep.subr.mxu0 0.0
    %2176 = vmatpush1.msra.mxu0 0.0
    %2177 = vmatprep.subr.mxu0 0.0
    %2178 = vmatpush1.msra.mxu0 0.0
    %2179 = vmatprep.subr.mxu0 0.0
    %2180 = vmatpush1.msra.mxu0 0.0
    %2181 = vmatprep.subr.mxu0 0.0
    %2182 = vmatpush1.msra.mxu0 0.0
    %2183 = vmatprep.subr.mxu0 0.0
    %2184 = vmatpush1.msra.mxu0 0.0
    %2185 = vmatprep.subr.mxu0 0.0
    %2186 = vmatpush1.msra.mxu0 0.0
    %2187 = vmatprep.subr.mxu0 0.0
    %2188 = vmatpush1.msra.mxu0 0.0
    %2189 = vmatprep.subr.mxu0 0.0
    %2190 = vmatpush1.msra.mxu0 0.0
    %2191 = vmatprep.subr.mxu0 0.0
    %2192 = vmatpush1.msra.mxu0 0.0
    %2193 = vmatprep.subr.mxu0 0.0
    %2194 = vmatpush1.msra.mxu0 0.0
    %2195 = vmatprep.subr.mxu0 0.0
    %2196 = vmatpush1.msra.mxu0 0.0
    %2197 = vmatprep.subr.mxu0 0.0
    %2198 = vmatpush1.msra.mxu0 0.0
    %2199 = vmatprep.subr.mxu0 0.0
    %2200 = vmatpush1.msra.mxu0 0.0
    %2201 = vmatprep.subr.mxu0 0.0
    %2202 = vmatpush1.msra.mxu0 0.0
    %2203 = vmatprep.subr.mxu0 0.0
    %2204 = vmatpush1.msra.mxu0 0.0
    %2205 = vmatprep.subr.mxu0 0.0
    %2206 = vmatpush1.msra.mxu0 0.0
    %2207 = vmatprep.subr.mxu0 0.0
    %2208 = vmatpush1.msra.mxu0 0.0
    %2209 = vmatprep.subr.mxu0 0.0
    %2210 = vmatpush1.msra.mxu0 0.0
    %2211 = vmatprep.subr.mxu0 0.0
    %2212 = vmatpush1.msra.mxu0 0.0
    %2213 = vmatprep.subr.mxu0 0.0
    %2214 = vmatpush1.msra.mxu0 0.0
    %2215 = vmatprep.mubr.f32.mxu0 0.0
    %2216 = vmatmul.mubr.f32.gmra.mrb[0].mxu0 %v2149
    %v2217 = vpop.f32.mrb[0].mxu0
    %v2218 = vadd.f32 0.0, %v2217
    %v2219 = vpop.f32.mrb[0].mxu0
    %2220 = vdwg.mxu0
    %v2221 = vmax.f32 %v2218, 0.0
    %v2222 = vmul.f32 %v2221, %v2221
    %v2223 = vld [vmem:[%s43] sm:$0xff]
    %v2224 = vld [vmem:[%s43 + $0x8] sm:$0xff]
    %v2225 = vld [vmem:[%s43 + $0x10] sm:$0xff]
    %v2226 = vld [vmem:[%s43 + $0x18] sm:$0xff]
    %v2227 = vld [vmem:[%s43 + $0x20] sm:$0xff]
    %v2228 = vld [vmem:[%s43 + $0x28] sm:$0xff]
    %v2229 = vld [vmem:[%s43 + $0x30] sm:$0xff]
    %v2230 = vld [vmem:[%s43 + $0x38] sm:$0xff]
    %v2231 = vld [vmem:[%s43 + $0x40] sm:$0xff]
    %v2232 = vld [vmem:[%s43 + $0x48] sm:$0xff]
    %v2233 = vld [vmem:[%s43 + $0x50] sm:$0xff]
    %v2234 = vld [vmem:[%s43 + $0x58] sm:$0xff]
    %vm2235 = vcmask 785408
    %v2237 = vsel %vm2235, %v2222, 0
    %2239 = vmatprep.subr.mxu0 0.0
    %2240 = vmatpush1.msra.mxu0 %v2223
    %2241 = vmatprep.subr.mxu0 0.0
    %2242 = vmatpush1.msra.mxu0 %v2224
    %2243 = vmatprep.subr.mxu0 0.0
    %2244 = vmatpush1.msra.mxu0 %v2225
    %2245 = vmatprep.subr.mxu0 0.0
    %2246 = vmatpush1.msra.mxu0 %v2226
    %2247 = vmatprep.subr.mxu0 0.0
    %2248 = vmatpush1.msra.mxu0 %v2227
    %2249 = vmatprep.subr.mxu0 0.0
    %2250 = vmatpush1.msra.mxu0 %v2228
    %2251 = vmatprep.subr.mxu0 0.0
    %2252 = vmatpush1.msra.mxu0 %v2229
    %2253 = vmatprep.subr.mxu0 0.0
    %2254 = vmatpush1.msra.mxu0 %v2230
    %2255 = vmatprep.subr.mxu0 0.0
    %2256 = vmatpush1.msra.mxu0 %v2231
    %2257 = vmatprep.subr.mxu0 0.0
    %2258 = vmatpush1.msra.mxu0 %v2232
    %2259 = vmatprep.subr.mxu0 0.0
    %2260 = vmatpush1.msra.mxu0 %v2233
    %2261 = vmatprep.subr.mxu0 0.0
    %2262 = vmatpush1.msra.mxu0 %v2234
    %2263 = vmatprep.subr.mxu0 0.0
    %2264 = vmatpush1.msra.mxu0 0.0
    %2265 = vmatprep.subr.mxu0 0.0
    %2266 = vmatpush1.msra.mxu0 0.0
    %2267 = vmatprep.subr.mxu0 0.0
    %2268 = vmatpush1.msra.mxu0 0.0
    %2269 = vmatprep.subr.mxu0 0.0
    %2270 = vmatpush1.msra.mxu0 0.0
    %2271 = vmatprep.subr.mxu0 0.0
    %2272 = vmatpush1.msra.mxu0 0.0
    %2273 = vmatprep.subr.mxu0 0.0
    %2274 = vmatpush1.msra.mxu0 0.0
    %2275 = vmatprep.subr.mxu0 0.0
    %2276 = vmatpush1.msra.mxu0 0.0
    %2277 = vmatprep.subr.mxu0 0.0
    %2278 = vmatpush1.msra.mxu0 0.0
    %2279 = vmatprep.subr.mxu0 0.0
    %2280 = vmatpush1.msra.mxu0 0.0
    %2281 = vmatprep.subr.mxu0 0.0
    %2282 = vmatpush1.msra.mxu0 0.0
    %2283 = vmatprep.subr.mxu0 0.0
    %2284 = vmatpush1.msra.mxu0 0.0
    %2285 = vmatprep.subr.mxu0 0.0
    %2286 = vmatpush1.msra.mxu0 0.0
    %2287 = vmatprep.subr.mxu0 0.0
    %2288 = vmatpush1.msra.mxu0 0.0
    %2289 = vmatprep.subr.mxu0 0.0
    %2290 = vmatpush1.msra.mxu0 0.0
    %2291 = vmatprep.subr.mxu0 0.0
    %2292 = vmatpush1.msra.mxu0 0.0
    %2293 = vmatprep.subr.mxu0 0.0
    %2294 = vmatpush1.msra.mxu0 0.0
    %2295 = vmatprep.subr.mxu0 0.0
    %2296 = vmatpush1.msra.mxu0 0.0
    %2297 = vmatprep.subr.mxu0 0.0
    %2298 = vmatpush1.msra.mxu0 0.0
    %2299 = vmatprep.subr.mxu0 0.0
    %2300 = vmatpush1.msra.mxu0 0.0
    %2301 = vmatprep.subr.mxu0 0.0
    %2302 = vmatpush1.msra.mxu0 0.0
    %2303 = vmatprep.mubr.f32.mxu0 0.0
    %2304 = vmatmul.mubr.f32.gmra.mrb[0].mxu0 %v2237
    %v2305 = vpop.f32.mrb[0].mxu0
    %v2306 = vadd.f32 0.0, %v2305
    %v2307 = vpop.f32.mrb[0].mxu0
    %2308 = vdwg.mxu0
    %v2309 = vxor.u32 %v2218, 2147483648
    %v2310 = vmul.f32 %v2309, 1.442695
    %v2311 = vpow.pop %v2310
    %v2312 = vadd.f32 %v2311, 1.0
    %v2313 = vrcp.pop %v2312
    %v2314 = vmul.f32 1.0, %v2313
    %2316 = vrot.lane.b32.xlu0 %v2306, 96
    %v2317 = vpop.permute.xlu0 %2316
    %v2319 = vmul.f32 %v2314, %v2317
    %2321 = vrot.lane.b32.xlu0 %v2319, 32
    %v2322 = vpop.permute.xlu0 %2321
    %v2324 = vadd.f32 %v2035, %v2322
    %v2325 = vld [vmem:[%s45] sm:$0x1]
    %v2326 = vld [vmem:[%s47] sm:$0x1]
    %v2327 = vsel %vm340, %v2324, 0.0
    %2328 = vadd.xlane.f32.xlu0 %v2327
    %v2329 = vpop.xlane.xlu0 %2328
    %v2330 = vmul.f32 %v2329, %v344
    %v2331 = vsub.f32 %v2324, %v2330
    %v2332 = vmul.f32 %v2331, %v2331
    %v2333 = vsel %vm340, %v2332, 0.0
    %2334 = vadd.xlane.f32.xlu0 %v2333
    %v2335 = vpop.xlane.xlu0 %2334
    %v2336 = vmul.f32 %v2335, %v344
    %v2337 = vadd.f32 %v2336, 1e-05
    %v2338 = vrsqrt.pop %v2337
    %v2339 = vmul.f32 %v2331, %v2338
    %v2341 = vlaneseq
    %v2342 = vshrl.u32 %v2341, 7
    %v2343 = vsub.s32 0, %v2342
    %v2344 = vrot.slane %v2325, %v2343
    %v2346 = vmul.f32 %v2339, %v2344
    %v2348 = vlaneseq
    %v2349 = vshrl.u32 %v2348, 7
    %v2350 = vsub.s32 0, %v2349
    %v2351 = vrot.slane %v2326, %v2350
    %v2353 = vadd.f32 %v2346, %v2351
    %2354 = vmatprep.subr.mxu0 0.0
    %2355 = vmatpush1.msra.mxu0 %v2353
    %2356 = vmatprep.subr.mxu0 0.0
    %2357 = vmatpush1.msra.mxu0 0.0
    %2358 = vmatprep.subr.mxu0 0.0
    %2359 = vmatpush1.msra.mxu0 0.0
    %2360 = vmatprep.subr.mxu0 0.0
    %2361 = vmatpush1.msra.mxu0 0.0
    %2362 = vmatprep.subr.mxu0 0.0
    %2363 = vmatpush1.msra.mxu0 0.0
    %2364 = vmatprep.subr.mxu0 0.0
    %2365 = vmatpush1.msra.mxu0 0.0
    %2366 = vmatprep.subr.mxu0 0.0
    %2367 = vmatpush1.msra.mxu0 0.0
    %2368 = vmatprep.subr.mxu0 0.0
    %2369 = vmatpush1.msra.mxu0 0.0
    %2370 = vmatprep.subr.mxu0 0.0
    %2371 = vmatpush1.msra.mxu0 0.0
    %2372 = vmatprep.subr.mxu0 0.0
    %2373 = vmatpush1.msra.mxu0 0.0
    %2374 = vmatprep.subr.mxu0 0.0
    %2375 = vmatpush1.msra.mxu0 0.0
    %2376 = vmatprep.subr.mxu0 0.0
    %2377 = vmatpush1.msra.mxu0 0.0
    %2378 = vmatprep.subr.mxu0 0.0
    %2379 = vmatpush1.msra.mxu0 0.0
    %2380 = vmatprep.subr.mxu0 0.0
    %2381 = vmatpush1.msra.mxu0 0.0
    %2382 = vmatprep.subr.mxu0 0.0
    %2383 = vmatpush1.msra.mxu0 0.0
    %2384 = vmatprep.subr.mxu0 0.0
    %2385 = vmatpush1.msra.mxu0 0.0
    %2386 = vmatprep.subr.mxu0 0.0
    %2387 = vmatpush1.msra.mxu0 0.0
    %2388 = vmatprep.subr.mxu0 0.0
    %2389 = vmatpush1.msra.mxu0 0.0
    %2390 = vmatprep.subr.mxu0 0.0
    %2391 = vmatpush1.msra.mxu0 0.0
    %2392 = vmatprep.subr.mxu0 0.0
    %2393 = vmatpush1.msra.mxu0 0.0
    %2394 = vmatprep.subr.mxu0 0.0
    %2395 = vmatpush1.msra.mxu0 0.0
    %2396 = vmatprep.subr.mxu0 0.0
    %2397 = vmatpush1.msra.mxu0 0.0
    %2398 = vmatprep.subr.mxu0 0.0
    %2399 = vmatpush1.msra.mxu0 0.0
    %2400 = vmatprep.subr.mxu0 0.0
    %2401 = vmatpush1.msra.mxu0 0.0
    %2402 = vmatprep.subr.mxu0 0.0
    %2403 = vmatpush1.msra.mxu0 0.0
    %2404 = vmatprep.subr.mxu0 0.0
    %2405 = vmatpush1.msra.mxu0 0.0
    %2406 = vmatprep.subr.mxu0 0.0
    %2407 = vmatpush1.msra.mxu0 0.0
    %2408 = vmatprep.subr.mxu0 0.0
    %2409 = vmatpush1.msra.mxu0 0.0
    %2410 = vmatprep.subr.mxu0 0.0
    %2411 = vmatpush1.msra.mxu0 0.0
    %2412 = vmatprep.subr.mxu0 0.0
    %2413 = vmatpush1.msra.mxu0 0.0
    %2414 = vmatprep.subr.mxu0 0.0
    %2415 = vmatpush1.msra.mxu0 0.0
    %2416 = vmatprep.subr.mxu0 0.0
    %2417 = vmatpush1.msra.mxu0 0.0
    %2418 = vmatprep.mubr.f32.mxu0 0.0
    %2419 = vmatmul.mubr.f32.gmra.mrb[0].mxu0 %v400
    %v2420 = vpop.f32.mrb[0].mxu0
    %v2421 = vadd.f32 0.0, %v2420
    %v2422 = vpop.f32.mrb[0].mxu0
    %2423 = vdwg.mxu0
    %2425 = vrot.lane.b32.xlu0 %v2421, 32
    %v2426 = vpop.permute.xlu0 %2425
    %v2428 = vsel %vm340, %v2353, %v2426
    %v2429 = vld [vmem:[%s49] sm:$0xff]
    %v2430 = vld [vmem:[%s49 + $0x8] sm:$0xff]
    %v2431 = vld [vmem:[%s49 + $0x10] sm:$0xff]
    %v2432 = vld [vmem:[%s49 + $0x18] sm:$0xff]
    %v2433 = vld [vmem:[%s49 + $0x20] sm:$0xff]
    %v2434 = vld [vmem:[%s49 + $0x28] sm:$0xff]
    %v2435 = vld [vmem:[%s49 + $0x30] sm:$0xff]
    %v2436 = vld [vmem:[%s49 + $0x38] sm:$0xff]
    %v2438 = vsel %vm264, %v2428, 0
    %2440 = vmatprep.subr.mxu0 0.0
    %2441 = vmatpush1.msra.mxu0 %v2429
    %2442 = vmatprep.subr.mxu0 0.0
    %2443 = vmatpush1.msra.mxu0 %v2430
    %2444 = vmatprep.subr.mxu0 0.0
    %2445 = vmatpush1.msra.mxu0 %v2431
    %2446 = vmatprep.subr.mxu0 0.0
    %2447 = vmatpush1.msra.mxu0 %v2432
    %2448 = vmatprep.subr.mxu0 0.0
    %2449 = vmatpush1.msra.mxu0 %v2433
    %2450 = vmatprep.subr.mxu0 0.0
    %2451 = vmatpush1.msra.mxu0 %v2434
    %2452 = vmatprep.subr.mxu0 0.0
    %2453 = vmatpush1.msra.mxu0 %v2435
    %2454 = vmatprep.subr.mxu0 0.0
    %2455 = vmatpush1.msra.mxu0 %v2436
    %2456 = vmatprep.subr.mxu0 0.0
    %2457 = vmatpush1.msra.mxu0 0.0
    %2458 = vmatprep.subr.mxu0 0.0
    %2459 = vmatpush1.msra.mxu0 0.0
    %2460 = vmatprep.subr.mxu0 0.0
    %2461 = vmatpush1.msra.mxu0 0.0
    %2462 = vmatprep.subr.mxu0 0.0
    %2463 = vmatpush1.msra.mxu0 0.0
    %2464 = vmatprep.subr.mxu0 0.0
    %2465 = vmatpush1.msra.mxu0 0.0
    %2466 = vmatprep.subr.mxu0 0.0
    %2467 = vmatpush1.msra.mxu0 0.0
    %2468 = vmatprep.subr.mxu0 0.0
    %2469 = vmatpush1.msra.mxu0 0.0
    %2470 = vmatprep.subr.mxu0 0.0
    %2471 = vmatpush1.msra.mxu0 0.0
    %2472 = vmatprep.subr.mxu0 0.0
    %2473 = vmatpush1.msra.mxu0 0.0
    %2474 = vmatprep.subr.mxu0 0.0
    %2475 = vmatpush1.msra.mxu0 0.0
    %2476 = vmatprep.subr.mxu0 0.0
    %2477 = vmatpush1.msra.mxu0 0.0
    %2478 = vmatprep.subr.mxu0 0.0
    %2479 = vmatpush1.msra.mxu0 0.0
    %2480 = vmatprep.subr.mxu0 0.0
    %2481 = vmatpush1.msra.mxu0 0.0
    %2482 = vmatprep.subr.mxu0 0.0
    %2483 = vmatpush1.msra.mxu0 0.0
    %2484 = vmatprep.subr.mxu0 0.0
    %2485 = vmatpush1.msra.mxu0 0.0
    %2486 = vmatprep.subr.mxu0 0.0
    %2487 = vmatpush1.msra.mxu0 0.0
    %2488 = vmatprep.subr.mxu0 0.0
    %2489 = vmatpush1.msra.mxu0 0.0
    %2490 = vmatprep.subr.mxu0 0.0
    %2491 = vmatpush1.msra.mxu0 0.0
    %2492 = vmatprep.subr.mxu0 0.0
    %2493 = vmatpush1.msra.mxu0 0.0
    %2494 = vmatprep.subr.mxu0 0.0
    %2495 = vmatpush1.msra.mxu0 0.0
    %2496 = vmatprep.subr.mxu0 0.0
    %2497 = vmatpush1.msra.mxu0 0.0
    %2498 = vmatprep.subr.mxu0 0.0
    %2499 = vmatpush1.msra.mxu0 0.0
    %2500 = vmatprep.subr.mxu0 0.0
    %2501 = vmatpush1.msra.mxu0 0.0
    %2502 = vmatprep.subr.mxu0 0.0
    %2503 = vmatpush1.msra.mxu0 0.0
    %2504 = vmatprep.mubr.f32.mxu0 0.0
    %2505 = vmatmul.mubr.f32.gmra.mrb[0].mxu0 %v2438
    %v2506 = vpop.f32.mrb[0].mxu0
    %v2507 = vadd.f32 0.0, %v2506
    %v2508 = vpop.f32.mrb[0].mxu0
    %2509 = vdwg.mxu0
    %v2510 = vxor.u32 %v2507, 2147483648
    %v2511 = vmul.f32 %v2510, 1.442695
    %v2512 = vpow.pop %v2511
    %v2513 = vadd.f32 %v2512, 1.0
    %v2514 = vrcp.pop %v2513
    %v2515 = vmul.f32 1.0, %v2514
    %v2516 = vmul.f32 %v2507, %v2515
    %2517 = vxpose.xlu0.b32.start [1/16] %v2507, 128
    %2518 = vxpose.xlu0.b32.cont [2/16] 0.0, 128
    %2519 = vxpose.xlu0.b32.cont [3/16] 0.0, 128
    %2520 = vxpose.xlu0.b32.cont [4/16] 0.0, 128
    %2521 = vxpose.xlu0.b32.cont [5/16] 0.0, 128
    %2522 = vxpose.xlu0.b32.cont [6/16] 0.0, 128
    %2523 = vxpose.xlu0.b32.cont [7/16] 0.0, 128
    %2524 = vxpose.xlu0.b32.cont [8/16] 0.0, 128
    %2525 = vxpose.xlu0.b32.cont [9/16] 0.0, 128
    %2526 = vxpose.xlu0.b32.cont [10/16] 0.0, 128
    %2527 = vxpose.xlu0.b32.cont [11/16] 0.0, 128
    %2528 = vxpose.xlu0.b32.cont [12/16] 0.0, 128
    %2529 = vxpose.xlu0.b32.cont [13/16] 0.0, 128
    %2530 = vxpose.xlu0.b32.cont [14/16] 0.0, 128
    %2531 = vxpose.xlu0.b32.cont [15/16] 0.0, 128
    %2532 = vxpose.xlu0.b32.end [16/16] 0.0, 128
    %v2533 = vpop.trf.xlu0
    %v2534 = vpop.trf.xlu0
    %v2535 = vpop.trf.xlu0
    %v2536 = vpop.trf.xlu0
    %v2537 = vpop.trf.xlu0
    %v2538 = vpop.trf.xlu0
    %v2539 = vpop.trf.xlu0
    %v2540 = vpop.trf.xlu0
    %v2541 = vpop.trf.xlu0
    %v2542 = vpop.trf.xlu0
    %v2543 = vpop.trf.xlu0
    %v2544 = vpop.trf.xlu0
    %v2545 = vpop.trf.xlu0
    %v2546 = vpop.trf.xlu0
    %v2547 = vpop.trf.xlu0
    %v2548 = vpop.trf.xlu0
    %2550 = vrot.lane.b32.xlu0 %v2507, 96
    %v2551 = vpop.permute.xlu0 %2550
    %2553 = vxpose.xlu0.b32.start [1/16] %v2551, 128
    %2554 = vxpose.xlu0.b32.cont [2/16] 0.0, 128
    %2555 = vxpose.xlu0.b32.cont [3/16] 0.0, 128
    %2556 = vxpose.xlu0.b32.cont [4/16] 0.0, 128
    %2557 = vxpose.xlu0.b32.cont [5/16] 0.0, 128
    %2558 = vxpose.xlu0.b32.cont [6/16] 0.0, 128
    %2559 = vxpose.xlu0.b32.cont [7/16] 0.0, 128
    %2560 = vxpose.xlu0.b32.cont [8/16] 0.0, 128
    %2561 = vxpose.xlu0.b32.cont [9/16] 0.0, 128
    %2562 = vxpose.xlu0.b32.cont [10/16] 0.0, 128
    %2563 = vxpose.xlu0.b32.cont [11/16] 0.0, 128
    %2564 = vxpose.xlu0.b32.cont [12/16] 0.0, 128
    %2565 = vxpose.xlu0.b32.cont [13/16] 0.0, 128
    %2566 = vxpose.xlu0.b32.cont [14/16] 0.0, 128
    %2567 = vxpose.xlu0.b32.cont [15/16] 0.0, 128
    %2568 = vxpose.xlu0.b32.end [16/16] 0.0, 128
    %v2569 = vpop.trf.xlu0
    %v2570 = vpop.trf.xlu0
    %v2571 = vpop.trf.xlu0
    %v2572 = vpop.trf.xlu0
    %v2573 = vpop.trf.xlu0
    %v2574 = vpop.trf.xlu0
    %v2575 = vpop.trf.xlu0
    %v2576 = vpop.trf.xlu0
    %v2577 = vpop.trf.xlu0
    %v2578 = vpop.trf.xlu0
    %v2579 = vpop.trf.xlu0
    %v2580 = vpop.trf.xlu0
    %v2581 = vpop.trf.xlu0
    %v2582 = vpop.trf.xlu0
    %v2583 = vpop.trf.xlu0
    %v2584 = vpop.trf.xlu0
    %v2585 = vld [vmem:[%s51] sm:$0xff]
    %v2586 = vld [vmem:[%s53] sm:$0xff]
    %v2587 = vld [vmem:[#allocation18] sm:$0xff]
    %v2588 = vld [vmem:[#allocation18 + $0x8] sm:$0xff]
    %v2589 = vld [vmem:[#allocation18 + $0x10] sm:$0xff]
    %v2590 = vld [vmem:[#allocation18 + $0x18] sm:$0xff]
    %2592 = vset.pattern.permute.xlu0 0
    %2593 = vperm.xlu0 %2592, %v2569
    %v2594 = vpop.permute.xlu0 %2593
    %v2596 = vlaneseq
    %v2597 = vshrl.u32 %v2596, 7
    %v2598 = vsub.s32 0, %v2597
    %v2599 = vrot.slane %v2507, %v2598
    %v2600 = vmul.f32 %v2594, %v2599
    %2602 = vset.pattern.permute.xlu0 0
    %2603 = vperm.xlu0 %2602, %v2585
    %v2604 = vpop.permute.xlu0 %2603
    %v2606 = vmul.f32 %v2604, %v2600
    %2608 = vrot.lane.b32.xlu0 %v2606, 64
    %v2609 = vpop.permute.xlu0 %2608
    %v2611 = vadd.f32 %v2587, %v2609
    %2613 = vset.pattern.permute.xlu0 0
    %2614 = vperm.xlu0 %2613, %v2533
    %v2615 = vpop.permute.xlu0 %2614
    %v2617 = vmul.f32 %v2615, %v2611
    %v2618 = vsel %vm398, %v2617, 0.0
    %v2619 = vrot.slane %v2618, 4
    %v2620 = vadd.f32 %v2618, %v2619
    %v2621 = vrot.slane %v2620, 2
    %v2622 = vadd.f32 %v2620, %v2621
    %v2623 = vrot.slane %v2622, 1
    %v2624 = vadd.f32 %v2622, %v2623
    %2625 = vst.msk [vmem:[#allocation2] sm:$0x1] %vm673, %v2624
    %2627 = vset.pattern.permute.xlu0 0
    %2628 = vperm.xlu0 %2627, %v2586
    %v2629 = vpop.permute.xlu0 %2628
    %v2631 = vmul.f32 %v2629, %v2587
    %2633 = vrot.lane.b32.xlu0 %v2600, 64
    %v2634 = vpop.permute.xlu0 %2633
    %v2636 = vadd.f32 %v2631, %v2634
    %2637 = vset.pattern.permute.xlu0 1
    %2638 = vperm.xlu0 %2637, %v2569
    %v2639 = vpop.permute.xlu0 %2638
    %v2641 = vlaneseq
    %v2642 = vshrl.u32 %v2641, 7
    %v2643 = vsub.s32 1, %v2642
    %v2644 = vrot.slane %v2507, %v2643
    %v2645 = vmul.f32 %v2639, %v2644
    %v2646 = vmul.f32 %v2604, %v2645
    %2648 = vrot.lane.b32.xlu0 %v2646, 64
    %v2649 = vpop.permute.xlu0 %2648
    %v2651 = vadd.f32 %v2636, %v2649
    %2652 = vset.pattern.permute.xlu0 1
    %2653 = vperm.xlu0 %2652, %v2533
    %v2654 = vpop.permute.xlu0 %2653
    %v2656 = vmul.f32 %v2654, %v2651
    %v2657 = vsel %vm398, %v2656, 0.0
    %v2658 = vrot.slane %v2657, 4
    %v2659 = vadd.f32 %v2657, %v2658
    %v2660 = vrot.slane %v2659, 2
    %v2661 = vadd.f32 %v2659, %v2660
    %v2662 = vrot.slane %v2661, 1
    %v2663 = vadd.f32 %v2661, %v2662
    %2664 = vst.msk [vmem:[#allocation2 + $0x1] sm:$0x1] %vm673, %v2663
    %v2665 = vmul.f32 %v2629, %v2636
    %2667 = vrot.lane.b32.xlu0 %v2645, 64
    %v2668 = vpop.permute.xlu0 %2667
    %v2670 = vadd.f32 %v2665, %v2668
    %2671 = vset.pattern.permute.xlu0 2
    %2672 = vperm.xlu0 %2671, %v2569
    %v2673 = vpop.permute.xlu0 %2672
    %v2675 = vlaneseq
    %v2676 = vshrl.u32 %v2675, 7
    %v2677 = vsub.s32 2, %v2676
    %v2678 = vrot.slane %v2507, %v2677
    %v2679 = vmul.f32 %v2673, %v2678
    %v2680 = vmul.f32 %v2604, %v2679
    %2682 = vrot.lane.b32.xlu0 %v2680, 64
    %v2683 = vpop.permute.xlu0 %2682
    %v2685 = vadd.f32 %v2670, %v2683
    %2686 = vset.pattern.permute.xlu0 2
    %2687 = vperm.xlu0 %2686, %v2533
    %v2688 = vpop.permute.xlu0 %2687
    %v2690 = vmul.f32 %v2688, %v2685
    %v2691 = vsel %vm398, %v2690, 0.0
    %v2692 = vrot.slane %v2691, 4
    %v2693 = vadd.f32 %v2691, %v2692
    %v2694 = vrot.slane %v2693, 2
    %v2695 = vadd.f32 %v2693, %v2694
    %v2696 = vrot.slane %v2695, 1
    %v2697 = vadd.f32 %v2695, %v2696
    %2698 = vst.msk [vmem:[#allocation2 + $0x2] sm:$0x1] %vm673, %v2697
    %v2699 = vmul.f32 %v2629, %v2670
    %2701 = vrot.lane.b32.xlu0 %v2679, 64
    %v2702 = vpop.permute.xlu0 %2701
    %v2704 = vadd.f32 %v2699, %v2702
    %2705 = vset.pattern.permute.xlu0 3
    %2706 = vperm.xlu0 %2705, %v2569
    %v2707 = vpop.permute.xlu0 %2706
    %v2709 = vlaneseq
    %v2710 = vshrl.u32 %v2709, 7
    %v2711 = vsub.s32 3, %v2710
    %v2712 = vrot.slane %v2507, %v2711
    %v2713 = vmul.f32 %v2707, %v2712
    %v2714 = vmul.f32 %v2604, %v2713
    %2716 = vrot.lane.b32.xlu0 %v2714, 64
    %v2717 = vpop.permute.xlu0 %2716
    %v2719 = vadd.f32 %v2704, %v2717
    %2720 = vset.pattern.permute.xlu0 3
    %2721 = vperm.xlu0 %2720, %v2533
    %v2722 = vpop.permute.xlu0 %2721
    %v2724 = vmul.f32 %v2722, %v2719
    %v2725 = vsel %vm398, %v2724, 0.0
    %v2726 = vrot.slane %v2725, 4
    %v2727 = vadd.f32 %v2725, %v2726
    %v2728 = vrot.slane %v2727, 2
    %v2729 = vadd.f32 %v2727, %v2728
    %v2730 = vrot.slane %v2729, 1
    %v2731 = vadd.f32 %v2729, %v2730
    %2732 = vst.msk [vmem:[#allocation2 + $0x3] sm:$0x1] %vm673, %v2731
    %v2733 = vmul.f32 %v2629, %v2704
    %2735 = vrot.lane.b32.xlu0 %v2713, 64
    %v2736 = vpop.permute.xlu0 %2735
    %v2738 = vadd.f32 %v2733, %v2736
    %2739 = vset.pattern.permute.xlu0 4
    %2740 = vperm.xlu0 %2739, %v2569
    %v2741 = vpop.permute.xlu0 %2740
    %v2743 = vlaneseq
    %v2744 = vshrl.u32 %v2743, 7
    %v2745 = vsub.s32 4, %v2744
    %v2746 = vrot.slane %v2507, %v2745
    %v2747 = vmul.f32 %v2741, %v2746
    %v2748 = vmul.f32 %v2604, %v2747
    %2750 = vrot.lane.b32.xlu0 %v2748, 64
    %v2751 = vpop.permute.xlu0 %2750
    %v2753 = vadd.f32 %v2738, %v2751
    %2754 = vset.pattern.permute.xlu0 4
    %2755 = vperm.xlu0 %2754, %v2533
    %v2756 = vpop.permute.xlu0 %2755
    %v2758 = vmul.f32 %v2756, %v2753
    %v2759 = vsel %vm398, %v2758, 0.0
    %v2760 = vrot.slane %v2759, 4
    %v2761 = vadd.f32 %v2759, %v2760
    %v2762 = vrot.slane %v2761, 2
    %v2763 = vadd.f32 %v2761, %v2762
    %v2764 = vrot.slane %v2763, 1
    %v2765 = vadd.f32 %v2763, %v2764
    %2766 = vst.msk [vmem:[#allocation2 + $0x4] sm:$0x1] %vm673, %v2765
    %v2767 = vmul.f32 %v2629, %v2738
    %2769 = vrot.lane.b32.xlu0 %v2747, 64
    %v2770 = vpop.permute.xlu0 %2769
    %v2772 = vadd.f32 %v2767, %v2770
    %2773 = vset.pattern.permute.xlu0 5
    %2774 = vperm.xlu0 %2773, %v2569
    %v2775 = vpop.permute.xlu0 %2774
    %v2777 = vlaneseq
    %v2778 = vshrl.u32 %v2777, 7
    %v2779 = vsub.s32 5, %v2778
    %v2780 = vrot.slane %v2507, %v2779
    %v2781 = vmul.f32 %v2775, %v2780
    %v2782 = vmul.f32 %v2604, %v2781
    %2784 = vrot.lane.b32.xlu0 %v2782, 64
    %v2785 = vpop.permute.xlu0 %2784
    %v2787 = vadd.f32 %v2772, %v2785
    %2788 = vset.pattern.permute.xlu0 5
    %2789 = vperm.xlu0 %2788, %v2533
    %v2790 = vpop.permute.xlu0 %2789
    %v2792 = vmul.f32 %v2790, %v2787
    %v2793 = vsel %vm398, %v2792, 0.0
    %v2794 = vrot.slane %v2793, 4
    %v2795 = vadd.f32 %v2793, %v2794
    %v2796 = vrot.slane %v2795, 2
    %v2797 = vadd.f32 %v2795, %v2796
    %v2798 = vrot.slane %v2797, 1
    %v2799 = vadd.f32 %v2797, %v2798
    %2800 = vst.msk [vmem:[#allocation2 + $0x5] sm:$0x1] %vm673, %v2799
    %v2801 = vmul.f32 %v2629, %v2772
    %2803 = vrot.lane.b32.xlu0 %v2781, 64
    %v2804 = vpop.permute.xlu0 %2803
    %v2806 = vadd.f32 %v2801, %v2804
    %2807 = vset.pattern.permute.xlu0 6
    %2808 = vperm.xlu0 %2807, %v2569
    %v2809 = vpop.permute.xlu0 %2808
    %v2811 = vlaneseq
    %v2812 = vshrl.u32 %v2811, 7
    %v2813 = vsub.s32 6, %v2812
    %v2814 = vrot.slane %v2507, %v2813
    %v2815 = vmul.f32 %v2809, %v2814
    %v2816 = vmul.f32 %v2604, %v2815
    %2818 = vrot.lane.b32.xlu0 %v2816, 64
    %v2819 = vpop.permute.xlu0 %2818
    %v2821 = vadd.f32 %v2806, %v2819
    %2822 = vset.pattern.permute.xlu0 6
    %2823 = vperm.xlu0 %2822, %v2533
    %v2824 = vpop.permute.xlu0 %2823
    %v2826 = vmul.f32 %v2824, %v2821
    %v2827 = vsel %vm398, %v2826, 0.0
    %v2828 = vrot.slane %v2827, 4
    %v2829 = vadd.f32 %v2827, %v2828
    %v2830 = vrot.slane %v2829, 2
    %v2831 = vadd.f32 %v2829, %v2830
    %v2832 = vrot.slane %v2831, 1
    %v2833 = vadd.f32 %v2831, %v2832
    %2834 = vst.msk [vmem:[#allocation2 + $0x6] sm:$0x1] %vm673, %v2833
    %v2835 = vmul.f32 %v2629, %v2806
    %2837 = vrot.lane.b32.xlu0 %v2815, 64
    %v2838 = vpop.permute.xlu0 %2837
    %v2840 = vadd.f32 %v2835, %v2838
    %2841 = vset.pattern.permute.xlu0 7
    %2842 = vperm.xlu0 %2841, %v2569
    %v2843 = vpop.permute.xlu0 %2842
    %v2845 = vlaneseq
    %v2846 = vshrl.u32 %v2845, 7
    %v2847 = vsub.s32 7, %v2846
    %v2848 = vrot.slane %v2507, %v2847
    %v2849 = vmul.f32 %v2843, %v2848
    %v2850 = vmul.f32 %v2604, %v2849
    %2852 = vrot.lane.b32.xlu0 %v2850, 64
    %v2853 = vpop.permute.xlu0 %2852
    %v2855 = vadd.f32 %v2840, %v2853
    %2856 = vset.pattern.permute.xlu0 7
    %2857 = vperm.xlu0 %2856, %v2533
    %v2858 = vpop.permute.xlu0 %2857
    %v2860 = vmul.f32 %v2858, %v2855
    %v2861 = vsel %vm398, %v2860, 0.0
    %v2862 = vrot.slane %v2861, 4
    %v2863 = vadd.f32 %v2861, %v2862
    %v2864 = vrot.slane %v2863, 2
    %v2865 = vadd.f32 %v2863, %v2864
    %v2866 = vrot.slane %v2865, 1
    %v2867 = vadd.f32 %v2865, %v2866
    %2868 = vst.msk [vmem:[#allocation2 + $0x7] sm:$0x1] %vm673, %v2867
    %v2869 = vmul.f32 %v2629, %v2840
    %2871 = vrot.lane.b32.xlu0 %v2849, 64
    %v2872 = vpop.permute.xlu0 %2871
    %v2874 = vadd.f32 %v2869, %v2872
    %2875 = vst.msk [vmem:[#allocation18] sm:$0xff] %vm398, %v2874
    %2877 = vset.pattern.permute.xlu0 0
    %2878 = vperm.xlu0 %2877, %v2570
    %v2879 = vpop.permute.xlu0 %2878
    %v2881 = vmul.f32 %v2879, %v2599
    %2882 = vset.pattern.permute.xlu0 1
    %2883 = vperm.xlu0 %2882, %v2585
    %v2884 = vpop.permute.xlu0 %2883
    %v2886 = vmul.f32 %v2884, %v2881
    %2888 = vrot.lane.b32.xlu0 %v2886, 56
    %v2889 = vpop.permute.xlu0 %2888
    %v2891 = vadd.f32 %v2588, %v2889
    %2893 = vset.pattern.permute.xlu0 0
    %2894 = vperm.xlu0 %2893, %v2534
    %v2895 = vpop.permute.xlu0 %2894
    %v2897 = vmul.f32 %v2895, %v2891
    %v2898 = vsel %vm398, %v2897, 0.0
    %v2899 = vrot.slane %v2898, 4
    %v2900 = vadd.f32 %v2898, %v2899
    %v2901 = vrot.slane %v2900, 2
    %v2902 = vadd.f32 %v2900, %v2901
    %v2903 = vrot.slane %v2902, 1
    %v2904 = vadd.f32 %v2902, %v2903
    %2906 = vrot.lane.b32.xlu0 %v2904, 8
    %v2907 = vpop.permute.xlu0 %2906
    %2909 = vst.msk [vmem:[#allocation2] sm:$0x1] %vm958, %v2907
    %2910 = vset.pattern.permute.xlu0 1
    %2911 = vperm.xlu0 %2910, %v2586
    %v2912 = vpop.permute.xlu0 %2911
    %v2914 = vmul.f32 %v2912, %v2588
    %2916 = vrot.lane.b32.xlu0 %v2881, 56
    %v2917 = vpop.permute.xlu0 %2916
    %v2919 = vadd.f32 %v2914, %v2917
    %2920 = vset.pattern.permute.xlu0 1
    %2921 = vperm.xlu0 %2920, %v2570
    %v2922 = vpop.permute.xlu0 %2921
    %v2924 = vmul.f32 %v2922, %v2644
    %v2925 = vmul.f32 %v2884, %v2924
    %2927 = vrot.lane.b32.xlu0 %v2925, 56
    %v2928 = vpop.permute.xlu0 %2927
    %v2930 = vadd.f32 %v2919, %v2928
    %2931 = vset.pattern.permute.xlu0 1
    %2932 = vperm.xlu0 %2931, %v2534
    %v2933 = vpop.permute.xlu0 %2932
    %v2935 = vmul.f32 %v2933, %v2930
    %v2936 = vsel %vm398, %v2935, 0.0
    %v2937 = vrot.slane %v2936, 4
    %v2938 = vadd.f32 %v2936, %v2937
    %v2939 = vrot.slane %v2938, 2
    %v2940 = vadd.f32 %v2938, %v2939
    %v2941 = vrot.slane %v2940, 1
    %v2942 = vadd.f32 %v2940, %v2941
    %2944 = vrot.lane.b32.xlu0 %v2942, 8
    %v2945 = vpop.permute.xlu0 %2944
    %2947 = vst.msk [vmem:[#allocation2 + $0x1] sm:$0x1] %vm958, %v2945
    %v2948 = vmul.f32 %v2912, %v2919
    %2950 = vrot.lane.b32.xlu0 %v2924, 56
    %v2951 = vpop.permute.xlu0 %2950
    %v2953 = vadd.f32 %v2948, %v2951
    %2954 = vset.pattern.permute.xlu0 2
    %2955 = vperm.xlu0 %2954, %v2570
    %v2956 = vpop.permute.xlu0 %2955
    %v2958 = vmul.f32 %v2956, %v2678
    %v2959 = vmul.f32 %v2884, %v2958
    %2961 = vrot.lane.b32.xlu0 %v2959, 56
    %v2962 = vpop.permute.xlu0 %2961
    %v2964 = vadd.f32 %v2953, %v2962
    %2965 = vset.pattern.permute.xlu0 2
    %2966 = vperm.xlu0 %2965, %v2534
    %v2967 = vpop.permute.xlu0 %2966
    %v2969 = vmul.f32 %v2967, %v2964
    %v2970 = vsel %vm398, %v2969, 0.0
    %v2971 = vrot.slane %v2970, 4
    %v2972 = vadd.f32 %v2970, %v2971
    %v2973 = vrot.slane %v2972, 2
    %v2974 = vadd.f32 %v2972, %v2973
    %v2975 = vrot.slane %v2974, 1
    %v2976 = vadd.f32 %v2974, %v2975
    %2978 = vrot.lane.b32.xlu0 %v2976, 8
    %v2979 = vpop.permute.xlu0 %2978
    %2981 = vst.msk [vmem:[#allocation2 + $0x2] sm:$0x1] %vm958, %v2979
    %v2982 = vmul.f32 %v2912, %v2953
    %2984 = vrot.lane.b32.xlu0 %v2958, 56
    %v2985 = vpop.permute.xlu0 %2984
    %v2987 = vadd.f32 %v2982, %v2985
    %2988 = vset.pattern.permute.xlu0 3
    %2989 = vperm.xlu0 %2988, %v2570
    %v2990 = vpop.permute.xlu0 %2989
    %v2992 = vmul.f32 %v2990, %v2712
    %v2993 = vmul.f32 %v2884, %v2992
    %2995 = vrot.lane.b32.xlu0 %v2993, 56
    %v2996 = vpop.permute.xlu0 %2995
    %v2998 = vadd.f32 %v2987, %v2996
    %2999 = vset.pattern.permute.xlu0 3
    %3000 = vperm.xlu0 %2999, %v2534
    %v3001 = vpop.permute.xlu0 %3000
    %v3003 = vmul.f32 %v3001, %v2998
    %v3004 = vsel %vm398, %v3003, 0.0
    %v3005 = vrot.slane %v3004, 4
    %v3006 = vadd.f32 %v3004, %v3005
    %v3007 = vrot.slane %v3006, 2
    %v3008 = vadd.f32 %v3006, %v3007
    %v3009 = vrot.slane %v3008, 1
    %v3010 = vadd.f32 %v3008, %v3009
    %3012 = vrot.lane.b32.xlu0 %v3010, 8
    %v3013 = vpop.permute.xlu0 %3012
    %3015 = vst.msk [vmem:[#allocation2 + $0x3] sm:$0x1] %vm958, %v3013
    %v3016 = vmul.f32 %v2912, %v2987
    %3018 = vrot.lane.b32.xlu0 %v2992, 56
    %v3019 = vpop.permute.xlu0 %3018
    %v3021 = vadd.f32 %v3016, %v3019
    %3022 = vset.pattern.permute.xlu0 4
    %3023 = vperm.xlu0 %3022, %v2570
    %v3024 = vpop.permute.xlu0 %3023
    %v3026 = vmul.f32 %v3024, %v2746
    %v3027 = vmul.f32 %v2884, %v3026
    %3029 = vrot.lane.b32.xlu0 %v3027, 56
    %v3030 = vpop.permute.xlu0 %3029
    %v3032 = vadd.f32 %v3021, %v3030
    %3033 = vset.pattern.permute.xlu0 4
    %3034 = vperm.xlu0 %3033, %v2534
    %v3035 = vpop.permute.xlu0 %3034
    %v3037 = vmul.f32 %v3035, %v3032
    %v3038 = vsel %vm398, %v3037, 0.0
    %v3039 = vrot.slane %v3038, 4
    %v3040 = vadd.f32 %v3038, %v3039
    %v3041 = vrot.slane %v3040, 2
    %v3042 = vadd.f32 %v3040, %v3041
    %v3043 = vrot.slane %v3042, 1
    %v3044 = vadd.f32 %v3042, %v3043
    %3046 = vrot.lane.b32.xlu0 %v3044, 8
    %v3047 = vpop.permute.xlu0 %3046
    %3049 = vst.msk [vmem:[#allocation2 + $0x4] sm:$0x1] %vm958, %v3047
    %v3050 = vmul.f32 %v2912, %v3021
    %3052 = vrot.lane.b32.xlu0 %v3026, 56
    %v3053 = vpop.permute.xlu0 %3052
    %v3055 = vadd.f32 %v3050, %v3053
    %3056 = vset.pattern.permute.xlu0 5
    %3057 = vperm.xlu0 %3056, %v2570
    %v3058 = vpop.permute.xlu0 %3057
    %v3060 = vmul.f32 %v3058, %v2780
    %v3061 = vmul.f32 %v2884, %v3060
    %3063 = vrot.lane.b32.xlu0 %v3061, 56
    %v3064 = vpop.permute.xlu0 %3063
    %v3066 = vadd.f32 %v3055, %v3064
    %3067 = vset.pattern.permute.xlu0 5
    %3068 = vperm.xlu0 %3067, %v2534
    %v3069 = vpop.permute.xlu0 %3068
    %v3071 = vmul.f32 %v3069, %v3066
    %v3072 = vsel %vm398, %v3071, 0.0
    %v3073 = vrot.slane %v3072, 4
    %v3074 = vadd.f32 %v3072, %v3073
    %v3075 = vrot.slane %v3074, 2
    %v3076 = vadd.f32 %v3074, %v3075
    %v3077 = vrot.slane %v3076, 1
    %v3078 = vadd.f32 %v3076, %v3077
    %3080 = vrot.lane.b32.xlu0 %v3078, 8
    %v3081 = vpop.permute.xlu0 %3080
    %3083 = vst.msk [vmem:[#allocation2 + $0x5] sm:$0x1] %vm958, %v3081
    %v3084 = vmul.f32 %v2912, %v3055
    %3086 = vrot.lane.b32.xlu0 %v3060, 56
    %v3087 = vpop.permute.xlu0 %3086
    %v3089 = vadd.f32 %v3084, %v3087
    %3090 = vset.pattern.permute.xlu0 6
    %3091 = vperm.xlu0 %3090, %v2570
    %v3092 = vpop.permute.xlu0 %3091
    %v3094 = vmul.f32 %v3092, %v2814
    %v3095 = vmul.f32 %v2884, %v3094
    %3097 = vrot.lane.b32.xlu0 %v3095, 56
    %v3098 = vpop.permute.xlu0 %3097
    %v3100 = vadd.f32 %v3089, %v3098
    %3101 = vset.pattern.permute.xlu0 6
    %3102 = vperm.xlu0 %3101, %v2534
    %v3103 = vpop.permute.xlu0 %3102
    %v3105 = vmul.f32 %v3103, %v3100
    %v3106 = vsel %vm398, %v3105, 0.0
    %v3107 = vrot.slane %v3106, 4
    %v3108 = vadd.f32 %v3106, %v3107
    %v3109 = vrot.slane %v3108, 2
    %v3110 = vadd.f32 %v3108, %v3109
    %v3111 = vrot.slane %v3110, 1
    %v3112 = vadd.f32 %v3110, %v3111
    %3114 = vrot.lane.b32.xlu0 %v3112, 8
    %v3115 = vpop.permute.xlu0 %3114
    %3117 = vst.msk [vmem:[#allocation2 + $0x6] sm:$0x1] %vm958, %v3115
    %v3118 = vmul.f32 %v2912, %v3089
    %3120 = vrot.lane.b32.xlu0 %v3094, 56
    %v3121 = vpop.permute.xlu0 %3120
    %v3123 = vadd.f32 %v3118, %v3121
    %3124 = vset.pattern.permute.xlu0 7
    %3125 = vperm.xlu0 %3124, %v2570
    %v3126 = vpop.permute.xlu0 %3125
    %v3128 = vmul.f32 %v3126, %v2848
    %v3129 = vmul.f32 %v2884, %v3128
    %3131 = vrot.lane.b32.xlu0 %v3129, 56
    %v3132 = vpop.permute.xlu0 %3131
    %v3134 = vadd.f32 %v3123, %v3132
    %3135 = vset.pattern.permute.xlu0 7
    %3136 = vperm.xlu0 %3135, %v2534
    %v3137 = vpop.permute.xlu0 %3136
    %v3139 = vmul.f32 %v3137, %v3134
    %v3140 = vsel %vm398, %v3139, 0.0
    %v3141 = vrot.slane %v3140, 4
    %v3142 = vadd.f32 %v3140, %v3141
    %v3143 = vrot.slane %v3142, 2
    %v3144 = vadd.f32 %v3142, %v3143
    %v3145 = vrot.slane %v3144, 1
    %v3146 = vadd.f32 %v3144, %v3145
    %3148 = vrot.lane.b32.xlu0 %v3146, 8
    %v3149 = vpop.permute.xlu0 %3148
    %3151 = vst.msk [vmem:[#allocation2 + $0x7] sm:$0x1] %vm958, %v3149
    %v3152 = vmul.f32 %v2912, %v3123
    %3154 = vrot.lane.b32.xlu0 %v3128, 56
    %v3155 = vpop.permute.xlu0 %3154
    %v3157 = vadd.f32 %v3152, %v3155
    %3158 = vst.msk [vmem:[#allocation18 + $0x8] sm:$0xff] %vm398, %v3157
    %3160 = vset.pattern.permute.xlu0 0
    %3161 = vperm.xlu0 %3160, %v2571
    %v3162 = vpop.permute.xlu0 %3161
    %v3164 = vmul.f32 %v3162, %v2599
    %3165 = vset.pattern.permute.xlu0 2
    %3166 = vperm.xlu0 %3165, %v2585
    %v3167 = vpop.permute.xlu0 %3166
    %v3169 = vmul.f32 %v3167, %v3164
    %3171 = vrot.lane.b32.xlu0 %v3169, 48
    %v3172 = vpop.permute.xlu0 %3171
    %v3174 = vadd.f32 %v2589, %v3172
    %3176 = vset.pattern.permute.xlu0 0
    %3177 = vperm.xlu0 %3176, %v2535
    %v3178 = vpop.permute.xlu0 %3177
    %v3180 = vmul.f32 %v3178, %v3174
    %v3181 = vsel %vm398, %v3180, 0.0
    %v3182 = vrot.slane %v3181, 4
    %v3183 = vadd.f32 %v3181, %v3182
    %v3184 = vrot.slane %v3183, 2
    %v3185 = vadd.f32 %v3183, %v3184
    %v3186 = vrot.slane %v3185, 1
    %v3187 = vadd.f32 %v3185, %v3186
    %3189 = vrot.lane.b32.xlu0 %v3187, 16
    %v3190 = vpop.permute.xlu0 %3189
    %3192 = vst.msk [vmem:[#allocation2] sm:$0x1] %vm1242, %v3190
    %3193 = vset.pattern.permute.xlu0 2
    %3194 = vperm.xlu0 %3193, %v2586
    %v3195 = vpop.permute.xlu0 %3194
    %v3197 = vmul.f32 %v3195, %v2589
    %3199 = vrot.lane.b32.xlu0 %v3164, 48
    %v3200 = vpop.permute.xlu0 %3199
    %v3202 = vadd.f32 %v3197, %v3200
    %3203 = vset.pattern.permute.xlu0 1
    %3204 = vperm.xlu0 %3203, %v2571
    %v3205 = vpop.permute.xlu0 %3204
    %v3207 = vmul.f32 %v3205, %v2644
    %v3208 = vmul.f32 %v3167, %v3207
    %3210 = vrot.lane.b32.xlu0 %v3208, 48
    %v3211 = vpop.permute.xlu0 %3210
    %v3213 = vadd.f32 %v3202, %v3211
    %3214 = vset.pattern.permute.xlu0 1
    %3215 = vperm.xlu0 %3214, %v2535
    %v3216 = vpop.permute.xlu0 %3215
    %v3218 = vmul.f32 %v3216, %v3213
    %v3219 = vsel %vm398, %v3218, 0.0
    %v3220 = vrot.slane %v3219, 4
    %v3221 = vadd.f32 %v3219, %v3220
    %v3222 = vrot.slane %v3221, 2
    %v3223 = vadd.f32 %v3221, %v3222
    %v3224 = vrot.slane %v3223, 1
    %v3225 = vadd.f32 %v3223, %v3224
    %3227 = vrot.lane.b32.xlu0 %v3225, 16
    %v3228 = vpop.permute.xlu0 %3227
    %3230 = vst.msk [vmem:[#allocation2 + $0x1] sm:$0x1] %vm1242, %v3228
    %v3231 = vmul.f32 %v3195, %v3202
    %3233 = vrot.lane.b32.xlu0 %v3207, 48
    %v3234 = vpop.permute.xlu0 %3233
    %v3236 = vadd.f32 %v3231, %v3234
    %3237 = vset.pattern.permute.xlu0 2
    %3238 = vperm.xlu0 %3237, %v2571
    %v3239 = vpop.permute.xlu0 %3238
    %v3241 = vmul.f32 %v3239, %v2678
    %v3242 = vmul.f32 %v3167, %v3241
    %3244 = vrot.lane.b32.xlu0 %v3242, 48
    %v3245 = vpop.permute.xlu0 %3244
    %v3247 = vadd.f32 %v3236, %v3245
    %3248 = vset.pattern.permute.xlu0 2
    %3249 = vperm.xlu0 %3248, %v2535
    %v3250 = vpop.permute.xlu0 %3249
    %v3252 = vmul.f32 %v3250, %v3247
    %v3253 = vsel %vm398, %v3252, 0.0
    %v3254 = vrot.slane %v3253, 4
    %v3255 = vadd.f32 %v3253, %v3254
    %v3256 = vrot.slane %v3255, 2
    %v3257 = vadd.f32 %v3255, %v3256
    %v3258 = vrot.slane %v3257, 1
    %v3259 = vadd.f32 %v3257, %v3258
    %3261 = vrot.lane.b32.xlu0 %v3259, 16
    %v3262 = vpop.permute.xlu0 %3261
    %3264 = vst.msk [vmem:[#allocation2 + $0x2] sm:$0x1] %vm1242, %v3262
    %v3265 = vmul.f32 %v3195, %v3236
    %3267 = vrot.lane.b32.xlu0 %v3241, 48
    %v3268 = vpop.permute.xlu0 %3267
    %v3270 = vadd.f32 %v3265, %v3268
    %3271 = vset.pattern.permute.xlu0 3
    %3272 = vperm.xlu0 %3271, %v2571
    %v3273 = vpop.permute.xlu0 %3272
    %v3275 = vmul.f32 %v3273, %v2712
    %v3276 = vmul.f32 %v3167, %v3275
    %3278 = vrot.lane.b32.xlu0 %v3276, 48
    %v3279 = vpop.permute.xlu0 %3278
    %v3281 = vadd.f32 %v3270, %v3279
    %3282 = vset.pattern.permute.xlu0 3
    %3283 = vperm.xlu0 %3282, %v2535
    %v3284 = vpop.permute.xlu0 %3283
    %v3286 = vmul.f32 %v3284, %v3281
    %v3287 = vsel %vm398, %v3286, 0.0
    %v3288 = vrot.slane %v3287, 4
    %v3289 = vadd.f32 %v3287, %v3288
    %v3290 = vrot.slane %v3289, 2
    %v3291 = vadd.f32 %v3289, %v3290
    %v3292 = vrot.slane %v3291, 1
    %v3293 = vadd.f32 %v3291, %v3292
    %3295 = vrot.lane.b32.xlu0 %v3293, 16
    %v3296 = vpop.permute.xlu0 %3295
    %3298 = vst.msk [vmem:[#allocation2 + $0x3] sm:$0x1] %vm1242, %v3296
    %v3299 = vmul.f32 %v3195, %v3270
    %3301 = vrot.lane.b32.xlu0 %v3275, 48
    %v3302 = vpop.permute.xlu0 %3301
    %v3304 = vadd.f32 %v3299, %v3302
    %3305 = vset.pattern.permute.xlu0 4
    %3306 = vperm.xlu0 %3305, %v2571
    %v3307 = vpop.permute.xlu0 %3306
    %v3309 = vmul.f32 %v3307, %v2746
    %v3310 = vmul.f32 %v3167, %v3309
    %3312 = vrot.lane.b32.xlu0 %v3310, 48
    %v3313 = vpop.permute.xlu0 %3312
    %v3315 = vadd.f32 %v3304, %v3313
    %3316 = vset.pattern.permute.xlu0 4
    %3317 = vperm.xlu0 %3316, %v2535
    %v3318 = vpop.permute.xlu0 %3317
    %v3320 = vmul.f32 %v3318, %v3315
    %v3321 = vsel %vm398, %v3320, 0.0
    %v3322 = vrot.slane %v3321, 4
    %v3323 = vadd.f32 %v3321, %v3322
    %v3324 = vrot.slane %v3323, 2
    %v3325 = vadd.f32 %v3323, %v3324
    %v3326 = vrot.slane %v3325, 1
    %v3327 = vadd.f32 %v3325, %v3326
    %3329 = vrot.lane.b32.xlu0 %v3327, 16
    %v3330 = vpop.permute.xlu0 %3329
    %3332 = vst.msk [vmem:[#allocation2 + $0x4] sm:$0x1] %vm1242, %v3330
    %v3333 = vmul.f32 %v3195, %v3304
    %3335 = vrot.lane.b32.xlu0 %v3309, 48
    %v3336 = vpop.permute.xlu0 %3335
    %v3338 = vadd.f32 %v3333, %v3336
    %3339 = vset.pattern.permute.xlu0 5
    %3340 = vperm.xlu0 %3339, %v2571
    %v3341 = vpop.permute.xlu0 %3340
    %v3343 = vmul.f32 %v3341, %v2780
    %v3344 = vmul.f32 %v3167, %v3343
    %3346 = vrot.lane.b32.xlu0 %v3344, 48
    %v3347 = vpop.permute.xlu0 %3346
    %v3349 = vadd.f32 %v3338, %v3347
    %3350 = vset.pattern.permute.xlu0 5
    %3351 = vperm.xlu0 %3350, %v2535
    %v3352 = vpop.permute.xlu0 %3351
    %v3354 = vmul.f32 %v3352, %v3349
    %v3355 = vsel %vm398, %v3354, 0.0
    %v3356 = vrot.slane %v3355, 4
    %v3357 = vadd.f32 %v3355, %v3356
    %v3358 = vrot.slane %v3357, 2
    %v3359 = vadd.f32 %v3357, %v3358
    %v3360 = vrot.slane %v3359, 1
    %v3361 = vadd.f32 %v3359, %v3360
    %3363 = vrot.lane.b32.xlu0 %v3361, 16
    %v3364 = vpop.permute.xlu0 %3363
    %3366 = vst.msk [vmem:[#allocation2 + $0x5] sm:$0x1] %vm1242, %v3364
    %v3367 = vmul.f32 %v3195, %v3338
    %3369 = vrot.lane.b32.xlu0 %v3343, 48
    %v3370 = vpop.permute.xlu0 %3369
    %v3372 = vadd.f32 %v3367, %v3370
    %3373 = vset.pattern.permute.xlu0 6
    %3374 = vperm.xlu0 %3373, %v2571
    %v3375 = vpop.permute.xlu0 %3374
    %v3377 = vmul.f32 %v3375, %v2814
    %v3378 = vmul.f32 %v3167, %v3377
    %3380 = vrot.lane.b32.xlu0 %v3378, 48
    %v3381 = vpop.permute.xlu0 %3380
    %v3383 = vadd.f32 %v3372, %v3381
    %3384 = vset.pattern.permute.xlu0 6
    %3385 = vperm.xlu0 %3384, %v2535
    %v3386 = vpop.permute.xlu0 %3385
    %v3388 = vmul.f32 %v3386, %v3383
    %v3389 = vsel %vm398, %v3388, 0.0
    %v3390 = vrot.slane %v3389, 4
    %v3391 = vadd.f32 %v3389, %v3390
    %v3392 = vrot.slane %v3391, 2
    %v3393 = vadd.f32 %v3391, %v3392
    %v3394 = vrot.slane %v3393, 1
    %v3395 = vadd.f32 %v3393, %v3394
    %3397 = vrot.lane.b32.xlu0 %v3395, 16
    %v3398 = vpop.permute.xlu0 %3397
    %3400 = vst.msk [vmem:[#allocation2 + $0x6] sm:$0x1] %vm1242, %v3398
    %v3401 = vmul.f32 %v3195, %v3372
    %3403 = vrot.lane.b32.xlu0 %v3377, 48
    %v3404 = vpop.permute.xlu0 %3403
    %v3406 = vadd.f32 %v3401, %v3404
    %3407 = vset.pattern.permute.xlu0 7
    %3408 = vperm.xlu0 %3407, %v2571
    %v3409 = vpop.permute.xlu0 %3408
    %v3411 = vmul.f32 %v3409, %v2848
    %v3412 = vmul.f32 %v3167, %v3411
    %3414 = vrot.lane.b32.xlu0 %v3412, 48
    %v3415 = vpop.permute.xlu0 %3414
    %v3417 = vadd.f32 %v3406, %v3415
    %3418 = vset.pattern.permute.xlu0 7
    %3419 = vperm.xlu0 %3418, %v2535
    %v3420 = vpop.permute.xlu0 %3419
    %v3422 = vmul.f32 %v3420, %v3417
    %v3423 = vsel %vm398, %v3422, 0.0
    %v3424 = vrot.slane %v3423, 4
    %v3425 = vadd.f32 %v3423, %v3424
    %v3426 = vrot.slane %v3425, 2
    %v3427 = vadd.f32 %v3425, %v3426
    %v3428 = vrot.slane %v3427, 1
    %v3429 = vadd.f32 %v3427, %v3428
    %3431 = vrot.lane.b32.xlu0 %v3429, 16
    %v3432 = vpop.permute.xlu0 %3431
    %3434 = vst.msk [vmem:[#allocation2 + $0x7] sm:$0x1] %vm1242, %v3432
    %v3435 = vmul.f32 %v3195, %v3406
    %3437 = vrot.lane.b32.xlu0 %v3411, 48
    %v3438 = vpop.permute.xlu0 %3437
    %v3440 = vadd.f32 %v3435, %v3438
    %3441 = vst.msk [vmem:[#allocation18 + $0x10] sm:$0xff] %vm398, %v3440
    %3443 = vset.pattern.permute.xlu0 0
    %3444 = vperm.xlu0 %3443, %v2572
    %v3445 = vpop.permute.xlu0 %3444
    %v3447 = vmul.f32 %v3445, %v2599
    %3448 = vset.pattern.permute.xlu0 3
    %3449 = vperm.xlu0 %3448, %v2585
    %v3450 = vpop.permute.xlu0 %3449
    %v3452 = vmul.f32 %v3450, %v3447
    %3454 = vrot.lane.b32.xlu0 %v3452, 40
    %v3455 = vpop.permute.xlu0 %3454
    %v3457 = vadd.f32 %v2590, %v3455
    %3459 = vset.pattern.permute.xlu0 0
    %3460 = vperm.xlu0 %3459, %v2536
    %v3461 = vpop.permute.xlu0 %3460
    %v3463 = vmul.f32 %v3461, %v3457
    %v3464 = vsel %vm398, %v3463, 0.0
    %v3465 = vrot.slane %v3464, 4
    %v3466 = vadd.f32 %v3464, %v3465
    %v3467 = vrot.slane %v3466, 2
    %v3468 = vadd.f32 %v3466, %v3467
    %v3469 = vrot.slane %v3468, 1
    %v3470 = vadd.f32 %v3468, %v3469
    %3472 = vrot.lane.b32.xlu0 %v3470, 24
    %v3473 = vpop.permute.xlu0 %3472
    %3475 = vst.msk [vmem:[#allocation2] sm:$0x1] %vm1526, %v3473
    %3476 = vset.pattern.permute.xlu0 3
    %3477 = vperm.xlu0 %3476, %v2586
    %v3478 = vpop.permute.xlu0 %3477
    %v3480 = vmul.f32 %v3478, %v2590
    %3482 = vrot.lane.b32.xlu0 %v3447, 40
    %v3483 = vpop.permute.xlu0 %3482
    %v3485 = vadd.f32 %v3480, %v3483
    %3486 = vset.pattern.permute.xlu0 1
    %3487 = vperm.xlu0 %3486, %v2572
    %v3488 = vpop.permute.xlu0 %3487
    %v3490 = vmul.f32 %v3488, %v2644
    %v3491 = vmul.f32 %v3450, %v3490
    %3493 = vrot.lane.b32.xlu0 %v3491, 40
    %v3494 = vpop.permute.xlu0 %3493
    %v3496 = vadd.f32 %v3485, %v3494
    %3497 = vset.pattern.permute.xlu0 1
    %3498 = vperm.xlu0 %3497, %v2536
    %v3499 = vpop.permute.xlu0 %3498
    %v3501 = vmul.f32 %v3499, %v3496
    %v3502 = vsel %vm398, %v3501, 0.0
    %v3503 = vrot.slane %v3502, 4
    %v3504 = vadd.f32 %v3502, %v3503
    %v3505 = vrot.slane %v3504, 2
    %v3506 = vadd.f32 %v3504, %v3505
    %v3507 = vrot.slane %v3506, 1
    %v3508 = vadd.f32 %v3506, %v3507
    %3510 = vrot.lane.b32.xlu0 %v3508, 24
    %v3511 = vpop.permute.xlu0 %3510
    %3513 = vst.msk [vmem:[#allocation2 + $0x1] sm:$0x1] %vm1526, %v3511
    %v3514 = vmul.f32 %v3478, %v3485
    %3516 = vrot.lane.b32.xlu0 %v3490, 40
    %v3517 = vpop.permute.xlu0 %3516
    %v3519 = vadd.f32 %v3514, %v3517
    %3520 = vset.pattern.permute.xlu0 2
    %3521 = vperm.xlu0 %3520, %v2572
    %v3522 = vpop.permute.xlu0 %3521
    %v3524 = vmul.f32 %v3522, %v2678
    %v3525 = vmul.f32 %v3450, %v3524
    %3527 = vrot.lane.b32.xlu0 %v3525, 40
    %v3528 = vpop.permute.xlu0 %3527
    %v3530 = vadd.f32 %v3519, %v3528
    %3531 = vset.pattern.permute.xlu0 2
    %3532 = vperm.xlu0 %3531, %v2536
    %v3533 = vpop.permute.xlu0 %3532
    %v3535 = vmul.f32 %v3533, %v3530
    %v3536 = vsel %vm398, %v3535, 0.0
    %v3537 = vrot.slane %v3536, 4
    %v3538 = vadd.f32 %v3536, %v3537
    %v3539 = vrot.slane %v3538, 2
    %v3540 = vadd.f32 %v3538, %v3539
    %v3541 = vrot.slane %v3540, 1
    %v3542 = vadd.f32 %v3540, %v3541
    %3544 = vrot.lane.b32.xlu0 %v3542, 24
    %v3545 = vpop.permute.xlu0 %3544
    %3547 = vst.msk [vmem:[#allocation2 + $0x2] sm:$0x1] %vm1526, %v3545
    %v3548 = vmul.f32 %v3478, %v3519
    %3550 = vrot.lane.b32.xlu0 %v3524, 40
    %v3551 = vpop.permute.xlu0 %3550
    %v3553 = vadd.f32 %v3548, %v3551
    %3554 = vset.pattern.permute.xlu0 3
    %3555 = vperm.xlu0 %3554, %v2572
    %v3556 = vpop.permute.xlu0 %3555
    %v3558 = vmul.f32 %v3556, %v2712
    %v3559 = vmul.f32 %v3450, %v3558
    %3561 = vrot.lane.b32.xlu0 %v3559, 40
    %v3562 = vpop.permute.xlu0 %3561
    %v3564 = vadd.f32 %v3553, %v3562
    %3565 = vset.pattern.permute.xlu0 3
    %3566 = vperm.xlu0 %3565, %v2536
    %v3567 = vpop.permute.xlu0 %3566
    %v3569 = vmul.f32 %v3567, %v3564
    %v3570 = vsel %vm398, %v3569, 0.0
    %v3571 = vrot.slane %v3570, 4
    %v3572 = vadd.f32 %v3570, %v3571
    %v3573 = vrot.slane %v3572, 2
    %v3574 = vadd.f32 %v3572, %v3573
    %v3575 = vrot.slane %v3574, 1
    %v3576 = vadd.f32 %v3574, %v3575
    %3578 = vrot.lane.b32.xlu0 %v3576, 24
    %v3579 = vpop.permute.xlu0 %3578
    %3581 = vst.msk [vmem:[#allocation2 + $0x3] sm:$0x1] %vm1526, %v3579
    %v3582 = vmul.f32 %v3478, %v3553
    %3584 = vrot.lane.b32.xlu0 %v3558, 40
    %v3585 = vpop.permute.xlu0 %3584
    %v3587 = vadd.f32 %v3582, %v3585
    %3588 = vset.pattern.permute.xlu0 4
    %3589 = vperm.xlu0 %3588, %v2572
    %v3590 = vpop.permute.xlu0 %3589
    %v3592 = vmul.f32 %v3590, %v2746
    %v3593 = vmul.f32 %v3450, %v3592
    %3595 = vrot.lane.b32.xlu0 %v3593, 40
    %v3596 = vpop.permute.xlu0 %3595
    %v3598 = vadd.f32 %v3587, %v3596
    %3599 = vset.pattern.permute.xlu0 4
    %3600 = vperm.xlu0 %3599, %v2536
    %v3601 = vpop.permute.xlu0 %3600
    %v3603 = vmul.f32 %v3601, %v3598
    %v3604 = vsel %vm398, %v3603, 0.0
    %v3605 = vrot.slane %v3604, 4
    %v3606 = vadd.f32 %v3604, %v3605
    %v3607 = vrot.slane %v3606, 2
    %v3608 = vadd.f32 %v3606, %v3607
    %v3609 = vrot.slane %v3608, 1
    %v3610 = vadd.f32 %v3608, %v3609
    %3612 = vrot.lane.b32.xlu0 %v3610, 24
    %v3613 = vpop.permute.xlu0 %3612
    %3615 = vst.msk [vmem:[#allocation2 + $0x4] sm:$0x1] %vm1526, %v3613
    %v3616 = vmul.f32 %v3478, %v3587
    %3618 = vrot.lane.b32.xlu0 %v3592, 40
    %v3619 = vpop.permute.xlu0 %3618
    %v3621 = vadd.f32 %v3616, %v3619
    %3622 = vset.pattern.permute.xlu0 5
    %3623 = vperm.xlu0 %3622, %v2572
    %v3624 = vpop.permute.xlu0 %3623
    %v3626 = vmul.f32 %v3624, %v2780
    %v3627 = vmul.f32 %v3450, %v3626
    %3629 = vrot.lane.b32.xlu0 %v3627, 40
    %v3630 = vpop.permute.xlu0 %3629
    %v3632 = vadd.f32 %v3621, %v3630
    %3633 = vset.pattern.permute.xlu0 5
    %3634 = vperm.xlu0 %3633, %v2536
    %v3635 = vpop.permute.xlu0 %3634
    %v3637 = vmul.f32 %v3635, %v3632
    %v3638 = vsel %vm398, %v3637, 0.0
    %v3639 = vrot.slane %v3638, 4
    %v3640 = vadd.f32 %v3638, %v3639
    %v3641 = vrot.slane %v3640, 2
    %v3642 = vadd.f32 %v3640, %v3641
    %v3643 = vrot.slane %v3642, 1
    %v3644 = vadd.f32 %v3642, %v3643
    %3646 = vrot.lane.b32.xlu0 %v3644, 24
    %v3647 = vpop.permute.xlu0 %3646
    %3649 = vst.msk [vmem:[#allocation2 + $0x5] sm:$0x1] %vm1526, %v3647
    %v3650 = vmul.f32 %v3478, %v3621
    %3652 = vrot.lane.b32.xlu0 %v3626, 40
    %v3653 = vpop.permute.xlu0 %3652
    %v3655 = vadd.f32 %v3650, %v3653
    %3656 = vset.pattern.permute.xlu0 6
    %3657 = vperm.xlu0 %3656, %v2572
    %v3658 = vpop.permute.xlu0 %3657
    %v3660 = vmul.f32 %v3658, %v2814
    %v3661 = vmul.f32 %v3450, %v3660
    %3663 = vrot.lane.b32.xlu0 %v3661, 40
    %v3664 = vpop.permute.xlu0 %3663
    %v3666 = vadd.f32 %v3655, %v3664
    %3667 = vset.pattern.permute.xlu0 6
    %3668 = vperm.xlu0 %3667, %v2536
    %v3669 = vpop.permute.xlu0 %3668
    %v3671 = vmul.f32 %v3669, %v3666
    %v3672 = vsel %vm398, %v3671, 0.0
    %v3673 = vrot.slane %v3672, 4
    %v3674 = vadd.f32 %v3672, %v3673
    %v3675 = vrot.slane %v3674, 2
    %v3676 = vadd.f32 %v3674, %v3675
    %v3677 = vrot.slane %v3676, 1
    %v3678 = vadd.f32 %v3676, %v3677
    %3680 = vrot.lane.b32.xlu0 %v3678, 24
    %v3681 = vpop.permute.xlu0 %3680
    %3683 = vst.msk [vmem:[#allocation2 + $0x6] sm:$0x1] %vm1526, %v3681
    %v3684 = vmul.f32 %v3478, %v3655
    %3686 = vrot.lane.b32.xlu0 %v3660, 40
    %v3687 = vpop.permute.xlu0 %3686
    %v3689 = vadd.f32 %v3684, %v3687
    %3690 = vset.pattern.permute.xlu0 7
    %3691 = vperm.xlu0 %3690, %v2572
    %v3692 = vpop.permute.xlu0 %3691
    %v3694 = vmul.f32 %v3692, %v2848
    %v3695 = vmul.f32 %v3450, %v3694
    %3697 = vrot.lane.b32.xlu0 %v3695, 40
    %v3698 = vpop.permute.xlu0 %3697
    %v3700 = vadd.f32 %v3689, %v3698
    %3701 = vset.pattern.permute.xlu0 7
    %3702 = vperm.xlu0 %3701, %v2536
    %v3703 = vpop.permute.xlu0 %3702
    %v3705 = vmul.f32 %v3703, %v3700
    %v3706 = vsel %vm398, %v3705, 0.0
    %v3707 = vrot.slane %v3706, 4
    %v3708 = vadd.f32 %v3706, %v3707
    %v3709 = vrot.slane %v3708, 2
    %v3710 = vadd.f32 %v3708, %v3709
    %v3711 = vrot.slane %v3710, 1
    %v3712 = vadd.f32 %v3710, %v3711
    %3714 = vrot.lane.b32.xlu0 %v3712, 24
    %v3715 = vpop.permute.xlu0 %3714
    %3717 = vst.msk [vmem:[#allocation2 + $0x7] sm:$0x1] %vm1526, %v3715
    %v3718 = vmul.f32 %v3478, %v3689
    %3720 = vrot.lane.b32.xlu0 %v3694, 40
    %v3721 = vpop.permute.xlu0 %3720
    %v3723 = vadd.f32 %v3718, %v3721
    %3724 = vst.msk [vmem:[#allocation18 + $0x18] sm:$0xff] %vm398, %v3723
    %v3725 = vld [vmem:[#allocation2] sm:$0xff]
    %v3726 = vmul.f32 %v3725, 0.125
    %v3727 = vld [vmem:[%s9] sm:$0xff]
    %v3728 = vld [vmem:[%s9 + $0x8] sm:$0xff]
    %v3729 = vld [vmem:[%s9 + $0x10] sm:$0xff]
    %v3730 = vld [vmem:[%s9 + $0x18] sm:$0xff]
    %v3732 = vsel %vm340, %v3726, 0
    %3734 = vmatprep.subr.mxu0 0.0
    %3735 = vmatpush1.msra.mxu0 %v3727
    %3736 = vmatprep.subr.mxu0 0.0
    %3737 = vmatpush1.msra.mxu0 %v3728
    %3738 = vmatprep.subr.mxu0 0.0
    %3739 = vmatpush1.msra.mxu0 %v3729
    %3740 = vmatprep.subr.mxu0 0.0
    %3741 = vmatpush1.msra.mxu0 %v3730
    %3742 = vmatprep.subr.mxu0 0.0
    %3743 = vmatpush1.msra.mxu0 0.0
    %3744 = vmatprep.subr.mxu0 0.0
    %3745 = vmatpush1.msra.mxu0 0.0
    %3746 = vmatprep.subr.mxu0 0.0
    %3747 = vmatpush1.msra.mxu0 0.0
    %3748 = vmatprep.subr.mxu0 0.0
    %3749 = vmatpush1.msra.mxu0 0.0
    %3750 = vmatprep.subr.mxu0 0.0
    %3751 = vmatpush1.msra.mxu0 0.0
    %3752 = vmatprep.subr.mxu0 0.0
    %3753 = vmatpush1.msra.mxu0 0.0
    %3754 = vmatprep.subr.mxu0 0.0
    %3755 = vmatpush1.msra.mxu0 0.0
    %3756 = vmatprep.subr.mxu0 0.0
    %3757 = vmatpush1.msra.mxu0 0.0
    %3758 = vmatprep.subr.mxu0 0.0
    %3759 = vmatpush1.msra.mxu0 0.0
    %3760 = vmatprep.subr.mxu0 0.0
    %3761 = vmatpush1.msra.mxu0 0.0
    %3762 = vmatprep.subr.mxu0 0.0
    %3763 = vmatpush1.msra.mxu0 0.0
    %3764 = vmatprep.subr.mxu0 0.0
    %3765 = vmatpush1.msra.mxu0 0.0
    %3766 = vmatprep.subr.mxu0 0.0
    %3767 = vmatpush1.msra.mxu0 0.0
    %3768 = vmatprep.subr.mxu0 0.0
    %3769 = vmatpush1.msra.mxu0 0.0
    %3770 = vmatprep.subr.mxu0 0.0
    %3771 = vmatpush1.msra.mxu0 0.0
    %3772 = vmatprep.subr.mxu0 0.0
    %3773 = vmatpush1.msra.mxu0 0.0
    %3774 = vmatprep.subr.mxu0 0.0
    %3775 = vmatpush1.msra.mxu0 0.0
    %3776 = vmatprep.subr.mxu0 0.0
    %3777 = vmatpush1.msra.mxu0 0.0
    %3778 = vmatprep.subr.mxu0 0.0
    %3779 = vmatpush1.msra.mxu0 0.0
    %3780 = vmatprep.subr.mxu0 0.0
    %3781 = vmatpush1.msra.mxu0 0.0
    %3782 = vmatprep.subr.mxu0 0.0
    %3783 = vmatpush1.msra.mxu0 0.0
    %3784 = vmatprep.subr.mxu0 0.0
    %3785 = vmatpush1.msra.mxu0 0.0
    %3786 = vmatprep.subr.mxu0 0.0
    %3787 = vmatpush1.msra.mxu0 0.0
    %3788 = vmatprep.subr.mxu0 0.0
    %3789 = vmatpush1.msra.mxu0 0.0
    %3790 = vmatprep.subr.mxu0 0.0
    %3791 = vmatpush1.msra.mxu0 0.0
    %3792 = vmatprep.subr.mxu0 0.0
    %3793 = vmatpush1.msra.mxu0 0.0
    %3794 = vmatprep.subr.mxu0 0.0
    %3795 = vmatpush1.msra.mxu0 0.0
    %3796 = vmatprep.subr.mxu0 0.0
    %3797 = vmatpush1.msra.mxu0 0.0
    %3798 = vmatprep.mubr.f32.mxu0 0.0
    %3799 = vmatmul.mubr.f32.gmra.mrb[0].mxu0 %v3732
    %v3800 = vpop.f32.mrb[0].mxu0
    %v3801 = vadd.f32 0.0, %v3800
    %v3802 = vpop.f32.mrb[0].mxu0
    %3803 = vdwg.mxu0
    %v3804 = vmul.f32 %v3726, %v3726
    %v3806 = vsel %vm340, %v3804, 0
    %3808 = vmatprep.subr.mxu0 0.0
    %3809 = vmatpush1.msra.mxu0 %v3727
    %3810 = vmatprep.subr.mxu0 0.0
    %3811 = vmatpush1.msra.mxu0 %v3728
    %3812 = vmatprep.subr.mxu0 0.0
    %3813 = vmatpush1.msra.mxu0 %v3729
    %3814 = vmatprep.subr.mxu0 0.0
    %3815 = vmatpush1.msra.mxu0 %v3730
    %3816 = vmatprep.subr.mxu0 0.0
    %3817 = vmatpush1.msra.mxu0 0.0
    %3818 = vmatprep.subr.mxu0 0.0
    %3819 = vmatpush1.msra.mxu0 0.0
    %3820 = vmatprep.subr.mxu0 0.0
    %3821 = vmatpush1.msra.mxu0 0.0
    %3822 = vmatprep.subr.mxu0 0.0
    %3823 = vmatpush1.msra.mxu0 0.0
    %3824 = vmatprep.subr.mxu0 0.0
    %3825 = vmatpush1.msra.mxu0 0.0
    %3826 = vmatprep.subr.mxu0 0.0
    %3827 = vmatpush1.msra.mxu0 0.0
    %3828 = vmatprep.subr.mxu0 0.0
    %3829 = vmatpush1.msra.mxu0 0.0
    %3830 = vmatprep.subr.mxu0 0.0
    %3831 = vmatpush1.msra.mxu0 0.0
    %3832 = vmatprep.subr.mxu0 0.0
    %3833 = vmatpush1.msra.mxu0 0.0
    %3834 = vmatprep.subr.mxu0 0.0
    %3835 = vmatpush1.msra.mxu0 0.0
    %3836 = vmatprep.subr.mxu0 0.0
    %3837 = vmatpush1.msra.mxu0 0.0
    %3838 = vmatprep.subr.mxu0 0.0
    %3839 = vmatpush1.msra.mxu0 0.0
    %3840 = vmatprep.subr.mxu0 0.0
    %3841 = vmatpush1.msra.mxu0 0.0
    %3842 = vmatprep.subr.mxu0 0.0
    %3843 = vmatpush1.msra.mxu0 0.0
    %3844 = vmatprep.subr.mxu0 0.0
    %3845 = vmatpush1.msra.mxu0 0.0
    %3846 = vmatprep.subr.mxu0 0.0
    %3847 = vmatpush1.msra.mxu0 0.0
    %3848 = vmatprep.subr.mxu0 0.0
    %3849 = vmatpush1.msra.mxu0 0.0
    %3850 = vmatprep.subr.mxu0 0.0
    %3851 = vmatpush1.msra.mxu0 0.0
    %3852 = vmatprep.subr.mxu0 0.0
    %3853 = vmatpush1.msra.mxu0 0.0
    %3854 = vmatprep.subr.mxu0 0.0
    %3855 = vmatpush1.msra.mxu0 0.0
    %3856 = vmatprep.subr.mxu0 0.0
    %3857 = vmatpush1.msra.mxu0 0.0
    %3858 = vmatprep.subr.mxu0 0.0
    %3859 = vmatpush1.msra.mxu0 0.0
    %3860 = vmatprep.subr.mxu0 0.0
    %3861 = vmatpush1.msra.mxu0 0.0
    %3862 = vmatprep.subr.mxu0 0.0
    %3863 = vmatpush1.msra.mxu0 0.0
    %3864 = vmatprep.subr.mxu0 0.0
    %3865 = vmatpush1.msra.mxu0 0.0
    %3866 = vmatprep.subr.mxu0 0.0
    %3867 = vmatpush1.msra.mxu0 0.0
    %3868 = vmatprep.subr.mxu0 0.0
    %3869 = vmatpush1.msra.mxu0 0.0
    %3870 = vmatprep.subr.mxu0 0.0
    %3871 = vmatpush1.msra.mxu0 0.0
    %3872 = vmatprep.mubr.f32.mxu0 0.0
    %3873 = vmatmul.mubr.f32.gmra.mrb[0].mxu0 %v3806
    %v3874 = vpop.f32.mrb[0].mxu0
    %v3875 = vadd.f32 0.0, %v3874
    %v3876 = vpop.f32.mrb[0].mxu0
    %3877 = vdwg.mxu0
    %v3878 = vmul.f32 %v3801, %v3801
    %v3879 = vsub.f32 %v3875, %v3878
    %v3880 = vmax.f32 %v3879, 0.0
    %v3881 = vsub.f32 %v3726, %v3801
    %v3882 = vadd.f32 %v3880, 1e-05
    %v3883 = vrsqrt.pop %v3882
    %v3884 = vmul.f32 %v3881, %v3883
    %v3885 = vld [vmem:[%s55] sm:$0x1]
    %v3887 = vlaneseq
    %v3888 = vshrl.u32 %v3887, 7
    %v3889 = vsub.s32 0, %v3888
    %v3890 = vrot.slane %v3885, %v3889
    %v3892 = vmul.f32 %v3884, %v3890
    %v3893 = vld [vmem:[%s57] sm:$0x1]
    %v3895 = vlaneseq
    %v3896 = vshrl.u32 %v3895, 7
    %v3897 = vsub.s32 0, %v3896
    %v3898 = vrot.slane %v3893, %v3897
    %v3900 = vadd.f32 %v3892, %v3898
    %3902 = vrot.lane.b32.xlu0 %v2516, 32
    %v3903 = vpop.permute.xlu0 %3902
    %v3905 = vmul.f32 %v3900, %v3903
    %v3906 = vld [vmem:[%s59] sm:$0xff]
    %v3907 = vld [vmem:[%s59 + $0x8] sm:$0xff]
    %v3908 = vld [vmem:[%s59 + $0x10] sm:$0xff]
    %v3909 = vld [vmem:[%s59 + $0x18] sm:$0xff]
    %v3911 = vsel %vm340, %v3905, 0
    %3913 = vmatprep.subr.mxu0 0.0
    %3914 = vmatpush1.msra.mxu0 %v3906
    %3915 = vmatprep.subr.mxu0 0.0
    %3916 = vmatpush1.msra.mxu0 %v3907
    %3917 = vmatprep.subr.mxu0 0.0
    %3918 = vmatpush1.msra.mxu0 %v3908
    %3919 = vmatprep.subr.mxu0 0.0
    %3920 = vmatpush1.msra.mxu0 %v3909
    %3921 = vmatprep.subr.mxu0 0.0
    %3922 = vmatpush1.msra.mxu0 0.0
    %3923 = vmatprep.subr.mxu0 0.0
    %3924 = vmatpush1.msra.mxu0 0.0
    %3925 = vmatprep.subr.mxu0 0.0
    %3926 = vmatpush1.msra.mxu0 0.0
    %3927 = vmatprep.subr.mxu0 0.0
    %3928 = vmatpush1.msra.mxu0 0.0
    %3929 = vmatprep.subr.mxu0 0.0
    %3930 = vmatpush1.msra.mxu0 0.0
    %3931 = vmatprep.subr.mxu0 0.0
    %3932 = vmatpush1.msra.mxu0 0.0
    %3933 = vmatprep.subr.mxu0 0.0
    %3934 = vmatpush1.msra.mxu0 0.0
    %3935 = vmatprep.subr.mxu0 0.0
    %3936 = vmatpush1.msra.mxu0 0.0
    %3937 = vmatprep.subr.mxu0 0.0
    %3938 = vmatpush1.msra.mxu0 0.0
    %3939 = vmatprep.subr.mxu0 0.0
    %3940 = vmatpush1.msra.mxu0 0.0
    %3941 = vmatprep.subr.mxu0 0.0
    %3942 = vmatpush1.msra.mxu0 0.0
    %3943 = vmatprep.subr.mxu0 0.0
    %3944 = vmatpush1.msra.mxu0 0.0
    %3945 = vmatprep.subr.mxu0 0.0
    %3946 = vmatpush1.msra.mxu0 0.0
    %3947 = vmatprep.subr.mxu0 0.0
    %3948 = vmatpush1.msra.mxu0 0.0
    %3949 = vmatprep.subr.mxu0 0.0
    %3950 = vmatpush1.msra.mxu0 0.0
    %3951 = vmatprep.subr.mxu0 0.0
    %3952 = vmatpush1.msra.mxu0 0.0
    %3953 = vmatprep.subr.mxu0 0.0
    %3954 = vmatpush1.msra.mxu0 0.0
    %3955 = vmatprep.subr.mxu0 0.0
    %3956 = vmatpush1.msra.mxu0 0.0
    %3957 = vmatprep.subr.mxu0 0.0
    %3958 = vmatpush1.msra.mxu0 0.0
    %3959 = vmatprep.subr.mxu0 0.0
    %3960 = vmatpush1.msra.mxu0 0.0
    %3961 = vmatprep.subr.mxu0 0.0
    %3962 = vmatpush1.msra.mxu0 0.0
    %3963 = vmatprep.subr.mxu0 0.0
    %3964 = vmatpush1.msra.mxu0 0.0
    %3965 = vmatprep.subr.mxu0 0.0
    %3966 = vmatpush1.msra.mxu0 0.0
    %3967 = vmatprep.subr.mxu0 0.0
    %3968 = vmatpush1.msra.mxu0 0.0
    %3969 = vmatprep.subr.mxu0 0.0
    %3970 = vmatpush1.msra.mxu0 0.0
    %3971 = vmatprep.subr.mxu0 0.0
    %3972 = vmatpush1.msra.mxu0 0.0
    %3973 = vmatprep.subr.mxu0 0.0
    %3974 = vmatpush1.msra.mxu0 0.0
    %3975 = vmatprep.subr.mxu0 0.0
    %3976 = vmatpush1.msra.mxu0 0.0
    %3977 = vmatprep.mubr.f32.mxu0 0.0
    %3978 = vmatmul.mubr.f32.gmra.mrb[0].mxu0 %v3911
    %v3979 = vpop.f32.mrb[0].mxu0
    %v3980 = vadd.f32 0.0, %v3979
    %v3981 = vpop.f32.mrb[0].mxu0
    %3982 = vdwg.mxu0
    %v3983 = vadd.f32 %v2324, %v3980
    %v3984 = vld [vmem:[%s61] sm:$0x1]
    %v3985 = vld [vmem:[%s63] sm:$0x1]
    %v3986 = vsel %vm340, %v3983, 0.0
    %3987 = vadd.xlane.f32.xlu0 %v3986
    %v3988 = vpop.xlane.xlu0 %3987
    %v3989 = vmul.f32 %v3988, %v344
    %v3990 = vsub.f32 %v3983, %v3989
    %v3991 = vmul.f32 %v3990, %v3990
    %v3992 = vsel %vm340, %v3991, 0.0
    %3993 = vadd.xlane.f32.xlu0 %v3992
    %v3994 = vpop.xlane.xlu0 %3993
    %v3995 = vmul.f32 %v3994, %v344
    %v3996 = vadd.f32 %v3995, 1e-05
    %v3997 = vrsqrt.pop %v3996
    %v3998 = vmul.f32 %v3990, %v3997
    %v4000 = vlaneseq
    %v4001 = vshrl.u32 %v4000, 7
    %v4002 = vsub.s32 0, %v4001
    %v4003 = vrot.slane %v3984, %v4002
    %v4005 = vmul.f32 %v3998, %v4003
    %v4007 = vlaneseq
    %v4008 = vshrl.u32 %v4007, 7
    %v4009 = vsub.s32 0, %v4008
    %v4010 = vrot.slane %v3985, %v4009
    %v4012 = vadd.f32 %v4005, %v4010
    %4013 = vmatprep.subr.mxu0 0.0
    %4014 = vmatpush1.msra.mxu0 %v4012
    %4015 = vmatprep.subr.mxu0 0.0
    %4016 = vmatpush1.msra.mxu0 0.0
    %4017 = vmatprep.subr.mxu0 0.0
    %4018 = vmatpush1.msra.mxu0 0.0
    %4019 = vmatprep.subr.mxu0 0.0
    %4020 = vmatpush1.msra.mxu0 0.0
    %4021 = vmatprep.subr.mxu0 0.0
    %4022 = vmatpush1.msra.mxu0 0.0
    %4023 = vmatprep.subr.mxu0 0.0
    %4024 = vmatpush1.msra.mxu0 0.0
    %4025 = vmatprep.subr.mxu0 0.0
    %4026 = vmatpush1.msra.mxu0 0.0
    %4027 = vmatprep.subr.mxu0 0.0
    %4028 = vmatpush1.msra.mxu0 0.0
    %4029 = vmatprep.subr.mxu0 0.0
    %4030 = vmatpush1.msra.mxu0 0.0
    %4031 = vmatprep.subr.mxu0 0.0
    %4032 = vmatpush1.msra.mxu0 0.0
    %4033 = vmatprep.subr.mxu0 0.0
    %4034 = vmatpush1.msra.mxu0 0.0
    %4035 = vmatprep.subr.mxu0 0.0
    %4036 = vmatpush1.msra.mxu0 0.0
    %4037 = vmatprep.subr.mxu0 0.0
    %4038 = vmatpush1.msra.mxu0 0.0
    %4039 = vmatprep.subr.mxu0 0.0
    %4040 = vmatpush1.msra.mxu0 0.0
    %4041 = vmatprep.subr.mxu0 0.0
    %4042 = vmatpush1.msra.mxu0 0.0
    %4043 = vmatprep.subr.mxu0 0.0
    %4044 = vmatpush1.msra.mxu0 0.0
    %4045 = vmatprep.subr.mxu0 0.0
    %4046 = vmatpush1.msra.mxu0 0.0
    %4047 = vmatprep.subr.mxu0 0.0
    %4048 = vmatpush1.msra.mxu0 0.0
    %4049 = vmatprep.subr.mxu0 0.0
    %4050 = vmatpush1.msra.mxu0 0.0
    %4051 = vmatprep.subr.mxu0 0.0
    %4052 = vmatpush1.msra.mxu0 0.0
    %4053 = vmatprep.subr.mxu0 0.0
    %4054 = vmatpush1.msra.mxu0 0.0
    %4055 = vmatprep.subr.mxu0 0.0
    %4056 = vmatpush1.msra.mxu0 0.0
    %4057 = vmatprep.subr.mxu0 0.0
    %4058 = vmatpush1.msra.mxu0 0.0
    %4059 = vmatprep.subr.mxu0 0.0
    %4060 = vmatpush1.msra.mxu0 0.0
    %4061 = vmatprep.subr.mxu0 0.0
    %4062 = vmatpush1.msra.mxu0 0.0
    %4063 = vmatprep.subr.mxu0 0.0
    %4064 = vmatpush1.msra.mxu0 0.0
    %4065 = vmatprep.subr.mxu0 0.0
    %4066 = vmatpush1.msra.mxu0 0.0
    %4067 = vmatprep.subr.mxu0 0.0
    %4068 = vmatpush1.msra.mxu0 0.0
    %4069 = vmatprep.subr.mxu0 0.0
    %4070 = vmatpush1.msra.mxu0 0.0
    %4071 = vmatprep.subr.mxu0 0.0
    %4072 = vmatpush1.msra.mxu0 0.0
    %4073 = vmatprep.subr.mxu0 0.0
    %4074 = vmatpush1.msra.mxu0 0.0
    %4075 = vmatprep.subr.mxu0 0.0
    %4076 = vmatpush1.msra.mxu0 0.0
    %4077 = vmatprep.mubr.f32.mxu0 0.0
    %4078 = vmatmul.mubr.f32.gmra.mrb[0].mxu0 %v400
    %v4079 = vpop.f32.mrb[0].mxu0
    %v4080 = vadd.f32 0.0, %v4079
    %v4081 = vpop.f32.mrb[0].mxu0
    %4082 = vdwg.mxu0
    %4084 = vrot.lane.b32.xlu0 %v4080, 32
    %v4085 = vpop.permute.xlu0 %4084
    %v4087 = vsel %vm340, %v4012, %v4085
    %v4088 = vld [vmem:[%s65] sm:$0xff]
    %v4089 = vld [vmem:[%s65 + $0x8] sm:$0xff]
    %v4090 = vld [vmem:[%s65 + $0x10] sm:$0xff]
    %v4091 = vld [vmem:[%s65 + $0x18] sm:$0xff]
    %v4092 = vld [vmem:[%s65 + $0x20] sm:$0xff]
    %v4093 = vld [vmem:[%s65 + $0x28] sm:$0xff]
    %v4094 = vld [vmem:[%s65 + $0x30] sm:$0xff]
    %v4095 = vld [vmem:[%s65 + $0x38] sm:$0xff]
    %v4097 = vsel %vm264, %v4087, 0
    %4099 = vmatprep.subr.mxu0 0.0
    %4100 = vmatpush1.msra.mxu0 %v4088
    %4101 = vmatprep.subr.mxu0 0.0
    %4102 = vmatpush1.msra.mxu0 %v4089
    %4103 = vmatprep.subr.mxu0 0.0
    %4104 = vmatpush1.msra.mxu0 %v4090
    %4105 = vmatprep.subr.mxu0 0.0
    %4106 = vmatpush1.msra.mxu0 %v4091
    %4107 = vmatprep.subr.mxu0 0.0
    %4108 = vmatpush1.msra.mxu0 %v4092
    %4109 = vmatprep.subr.mxu0 0.0
    %4110 = vmatpush1.msra.mxu0 %v4093
    %4111 = vmatprep.subr.mxu0 0.0
    %4112 = vmatpush1.msra.mxu0 %v4094
    %4113 = vmatprep.subr.mxu0 0.0
    %4114 = vmatpush1.msra.mxu0 %v4095
    %4115 = vmatprep.subr.mxu0 0.0
    %4116 = vmatpush1.msra.mxu0 0.0
    %4117 = vmatprep.subr.mxu0 0.0
    %4118 = vmatpush1.msra.mxu0 0.0
    %4119 = vmatprep.subr.mxu0 0.0
    %4120 = vmatpush1.msra.mxu0 0.0
    %4121 = vmatprep.subr.mxu0 0.0
    %4122 = vmatpush1.msra.mxu0 0.0
    %4123 = vmatprep.subr.mxu0 0.0
    %4124 = vmatpush1.msra.mxu0 0.0
    %4125 = vmatprep.subr.mxu0 0.0
    %4126 = vmatpush1.msra.mxu0 0.0
    %4127 = vmatprep.subr.mxu0 0.0
    %4128 = vmatpush1.msra.mxu0 0.0
    %4129 = vmatprep.subr.mxu0 0.0
    %4130 = vmatpush1.msra.mxu0 0.0
    %4131 = vmatprep.subr.mxu0 0.0
    %4132 = vmatpush1.msra.mxu0 0.0
    %4133 = vmatprep.subr.mxu0 0.0
    %4134 = vmatpush1.msra.mxu0 0.0
    %4135 = vmatprep.subr.mxu0 0.0
    %4136 = vmatpush1.msra.mxu0 0.0
    %4137 = vmatprep.subr.mxu0 0.0
    %4138 = vmatpush1.msra.mxu0 0.0
    %4139 = vmatprep.subr.mxu0 0.0
    %4140 = vmatpush1.msra.mxu0 0.0
    %4141 = vmatprep.subr.mxu0 0.0
    %4142 = vmatpush1.msra.mxu0 0.0
    %4143 = vmatprep.subr.mxu0 0.0
    %4144 = vmatpush1.msra.mxu0 0.0
    %4145 = vmatprep.subr.mxu0 0.0
    %4146 = vmatpush1.msra.mxu0 0.0
    %4147 = vmatprep.subr.mxu0 0.0
    %4148 = vmatpush1.msra.mxu0 0.0
    %4149 = vmatprep.subr.mxu0 0.0
    %4150 = vmatpush1.msra.mxu0 0.0
    %4151 = vmatprep.subr.mxu0 0.0
    %4152 = vmatpush1.msra.mxu0 0.0
    %4153 = vmatprep.subr.mxu0 0.0
    %4154 = vmatpush1.msra.mxu0 0.0
    %4155 = vmatprep.subr.mxu0 0.0
    %4156 = vmatpush1.msra.mxu0 0.0
    %4157 = vmatprep.subr.mxu0 0.0
    %4158 = vmatpush1.msra.mxu0 0.0
    %4159 = vmatprep.subr.mxu0 0.0
    %4160 = vmatpush1.msra.mxu0 0.0
    %4161 = vmatprep.subr.mxu0 0.0
    %4162 = vmatpush1.msra.mxu0 0.0
    %4163 = vmatprep.mubr.f32.mxu0 0.0
    %4164 = vmatmul.mubr.f32.gmra.mrb[0].mxu0 %v4097
    %v4165 = vpop.f32.mrb[0].mxu0
    %v4166 = vadd.f32 0.0, %v4165
    %v4167 = vpop.f32.mrb[0].mxu0
    %4168 = vdwg.mxu0
    %v4169 = vmax.f32 %v4166, 0.0
    %v4170 = vmul.f32 %v4169, %v4169
    %v4171 = vld [vmem:[%s67] sm:$0xff]
    %v4172 = vld [vmem:[%s67 + $0x8] sm:$0xff]
    %v4173 = vld [vmem:[%s67 + $0x10] sm:$0xff]
    %v4174 = vld [vmem:[%s67 + $0x18] sm:$0xff]
    %v4175 = vld [vmem:[%s67 + $0x20] sm:$0xff]
    %v4176 = vld [vmem:[%s67 + $0x28] sm:$0xff]
    %v4177 = vld [vmem:[%s67 + $0x30] sm:$0xff]
    %v4178 = vld [vmem:[%s67 + $0x38] sm:$0xff]
    %v4179 = vld [vmem:[%s67 + $0x40] sm:$0xff]
    %v4180 = vld [vmem:[%s67 + $0x48] sm:$0xff]
    %v4181 = vld [vmem:[%s67 + $0x50] sm:$0xff]
    %v4182 = vld [vmem:[%s67 + $0x58] sm:$0xff]
    %v4184 = vsel %vm2235, %v4170, 0
    %4186 = vmatprep.subr.mxu0 0.0
    %4187 = vmatpush1.msra.mxu0 %v4171
    %4188 = vmatprep.subr.mxu0 0.0
    %4189 = vmatpush1.msra.mxu0 %v4172
    %4190 = vmatprep.subr.mxu0 0.0
    %4191 = vmatpush1.msra.mxu0 %v4173
    %4192 = vmatprep.subr.mxu0 0.0
    %4193 = vmatpush1.msra.mxu0 %v4174
    %4194 = vmatprep.subr.mxu0 0.0
    %4195 = vmatpush1.msra.mxu0 %v4175
    %4196 = vmatprep.subr.mxu0 0.0
    %4197 = vmatpush1.msra.mxu0 %v4176
    %4198 = vmatprep.subr.mxu0 0.0
    %4199 = vmatpush1.msra.mxu0 %v4177
    %4200 = vmatprep.subr.mxu0 0.0
    %4201 = vmatpush1.msra.mxu0 %v4178
    %4202 = vmatprep.subr.mxu0 0.0
    %4203 = vmatpush1.msra.mxu0 %v4179
    %4204 = vmatprep.subr.mxu0 0.0
    %4205 = vmatpush1.msra.mxu0 %v4180
    %4206 = vmatprep.subr.mxu0 0.0
    %4207 = vmatpush1.msra.mxu0 %v4181
    %4208 = vmatprep.subr.mxu0 0.0
    %4209 = vmatpush1.msra.mxu0 %v4182
    %4210 = vmatprep.subr.mxu0 0.0
    %4211 = vmatpush1.msra.mxu0 0.0
    %4212 = vmatprep.subr.mxu0 0.0
    %4213 = vmatpush1.msra.mxu0 0.0
    %4214 = vmatprep.subr.mxu0 0.0
    %4215 = vmatpush1.msra.mxu0 0.0
    %4216 = vmatprep.subr.mxu0 0.0
    %4217 = vmatpush1.msra.mxu0 0.0
    %4218 = vmatprep.subr.mxu0 0.0
    %4219 = vmatpush1.msra.mxu0 0.0
    %4220 = vmatprep.subr.mxu0 0.0
    %4221 = vmatpush1.msra.mxu0 0.0
    %4222 = vmatprep.subr.mxu0 0.0
    %4223 = vmatpush1.msra.mxu0 0.0
    %4224 = vmatprep.subr.mxu0 0.0
    %4225 = vmatpush1.msra.mxu0 0.0
    %4226 = vmatprep.subr.mxu0 0.0
    %4227 = vmatpush1.msra.mxu0 0.0
    %4228 = vmatprep.subr.mxu0 0.0
    %4229 = vmatpush1.msra.mxu0 0.0
    %4230 = vmatprep.subr.mxu0 0.0
    %4231 = vmatpush1.msra.mxu0 0.0
    %4232 = vmatprep.subr.mxu0 0.0
    %4233 = vmatpush1.msra.mxu0 0.0
    %4234 = vmatprep.subr.mxu0 0.0
    %4235 = vmatpush1.msra.mxu0 0.0
    %4236 = vmatprep.subr.mxu0 0.0
    %4237 = vmatpush1.msra.mxu0 0.0
    %4238 = vmatprep.subr.mxu0 0.0
    %4239 = vmatpush1.msra.mxu0 0.0
    %4240 = vmatprep.subr.mxu0 0.0
    %4241 = vmatpush1.msra.mxu0 0.0
    %4242 = vmatprep.subr.mxu0 0.0
    %4243 = vmatpush1.msra.mxu0 0.0
    %4244 = vmatprep.subr.mxu0 0.0
    %4245 = vmatpush1.msra.mxu0 0.0
    %4246 = vmatprep.subr.mxu0 0.0
    %4247 = vmatpush1.msra.mxu0 0.0
    %4248 = vmatprep.subr.mxu0 0.0
    %4249 = vmatpush1.msra.mxu0 0.0
    %4250 = vmatprep.mubr.f32.mxu0 0.0
    %4251 = vmatmul.mubr.f32.gmra.mrb[0].mxu0 %v4184
    %v4252 = vpop.f32.mrb[0].mxu0
    %v4253 = vadd.f32 0.0, %v4252
    %v4254 = vpop.f32.mrb[0].mxu0
    %4255 = vdwg.mxu0
    %v4256 = vxor.u32 %v4166, 2147483648
    %v4257 = vmul.f32 %v4256, 1.442695
    %v4258 = vpow.pop %v4257
    %v4259 = vadd.f32 %v4258, 1.0
    %v4260 = vrcp.pop %v4259
    %v4261 = vmul.f32 1.0, %v4260
    %4263 = vrot.lane.b32.xlu0 %v4253, 96
    %v4264 = vpop.permute.xlu0 %4263
    %v4266 = vmul.f32 %v4261, %v4264
    %4268 = vrot.lane.b32.xlu0 %v4266, 32
    %v4269 = vpop.permute.xlu0 %4268
    %v4271 = vadd.f32 %v3983, %v4269
    %v4272 = vld [vmem:[%s11] sm:$0x1]
    %v4273 = vld [vmem:[%s13] sm:$0x1]
    %v4274 = vsel %vm340, %v4271, 0.0
    %4275 = vadd.xlane.f32.xlu0 %v4274
    %v4276 = vpop.xlane.xlu0 %4275
    %v4277 = vmul.f32 %v4276, %v344
    %v4278 = vsub.f32 %v4271, %v4277
    %v4279 = vmul.f32 %v4278, %v4278
    %v4280 = vsel %vm340, %v4279, 0.0
    %4281 = vadd.xlane.f32.xlu0 %v4280
    %v4282 = vpop.xlane.xlu0 %4281
    %v4283 = vmul.f32 %v4282, %v344
    %v4284 = vadd.f32 %v4283, 1e-05
    %v4285 = vrsqrt.pop %v4284
    %v4286 = vmul.f32 %v4278, %v4285
    %v4288 = vlaneseq
    %v4289 = vshrl.u32 %v4288, 7
    %v4290 = vsub.s32 0, %v4289
    %v4291 = vrot.slane %v4272, %v4290
    %v4293 = vmul.f32 %v4286, %v4291
    %v4295 = vlaneseq
    %v4296 = vshrl.u32 %v4295, 7
    %v4297 = vsub.s32 0, %v4296
    %v4298 = vrot.slane %v4273, %v4297
    %v4300 = vadd.f32 %v4293, %v4298
    %v4301 = vld [vmem:[%s15] sm:$0xff]
    %v4302 = vld [vmem:[%s15 + $0x8] sm:$0xff]
    %v4303 = vld [vmem:[%s15 + $0x10] sm:$0xff]
    %v4304 = vld [vmem:[%s15 + $0x18] sm:$0xff]
    %v4306 = vsel %vm340, %v4300, 0
    %4308 = vmatprep.subr.mxu0 0.0
    %4309 = vmatpush1.msra.mxu0 %v4301
    %4310 = vmatprep.subr.mxu0 0.0
    %4311 = vmatpush1.msra.mxu0 %v4302
    %4312 = vmatprep.subr.mxu0 0.0
    %4313 = vmatpush1.msra.mxu0 %v4303
    %4314 = vmatprep.subr.mxu0 0.0
    %4315 = vmatpush1.msra.mxu0 %v4304
    %4316 = vmatprep.subr.mxu0 0.0
    %4317 = vmatpush1.msra.mxu0 0.0
    %4318 = vmatprep.subr.mxu0 0.0
    %4319 = vmatpush1.msra.mxu0 0.0
    %4320 = vmatprep.subr.mxu0 0.0
    %4321 = vmatpush1.msra.mxu0 0.0
    %4322 = vmatprep.subr.mxu0 0.0
    %4323 = vmatpush1.msra.mxu0 0.0
    %4324 = vmatprep.subr.mxu0 0.0
    %4325 = vmatpush1.msra.mxu0 0.0
    %4326 = vmatprep.subr.mxu0 0.0
    %4327 = vmatpush1.msra.mxu0 0.0
    %4328 = vmatprep.subr.mxu0 0.0
    %4329 = vmatpush1.msra.mxu0 0.0
    %4330 = vmatprep.subr.mxu0 0.0
    %4331 = vmatpush1.msra.mxu0 0.0
    %4332 = vmatprep.subr.mxu0 0.0
    %4333 = vmatpush1.msra.mxu0 0.0
    %4334 = vmatprep.subr.mxu0 0.0
    %4335 = vmatpush1.msra.mxu0 0.0
    %4336 = vmatprep.subr.mxu0 0.0
    %4337 = vmatpush1.msra.mxu0 0.0
    %4338 = vmatprep.subr.mxu0 0.0
    %4339 = vmatpush1.msra.mxu0 0.0
    %4340 = vmatprep.subr.mxu0 0.0
    %4341 = vmatpush1.msra.mxu0 0.0
    %4342 = vmatprep.subr.mxu0 0.0
    %4343 = vmatpush1.msra.mxu0 0.0
    %4344 = vmatprep.subr.mxu0 0.0
    %4345 = vmatpush1.msra.mxu0 0.0
    %4346 = vmatprep.subr.mxu0 0.0
    %4347 = vmatpush1.msra.mxu0 0.0
    %4348 = vmatprep.subr.mxu0 0.0
    %4349 = vmatpush1.msra.mxu0 0.0
    %4350 = vmatprep.subr.mxu0 0.0
    %4351 = vmatpush1.msra.mxu0 0.0
    %4352 = vmatprep.subr.mxu0 0.0
    %4353 = vmatpush1.msra.mxu0 0.0
    %4354 = vmatprep.subr.mxu0 0.0
    %4355 = vmatpush1.msra.mxu0 0.0
    %4356 = vmatprep.subr.mxu0 0.0
    %4357 = vmatpush1.msra.mxu0 0.0
    %4358 = vmatprep.subr.mxu0 0.0
    %4359 = vmatpush1.msra.mxu0 0.0
    %4360 = vmatprep.subr.mxu0 0.0
    %4361 = vmatpush1.msra.mxu0 0.0
    %4362 = vmatprep.subr.mxu0 0.0
    %4363 = vmatpush1.msra.mxu0 0.0
    %4364 = vmatprep.subr.mxu0 0.0
    %4365 = vmatpush1.msra.mxu0 0.0
    %4366 = vmatprep.subr.mxu0 0.0
    %4367 = vmatpush1.msra.mxu0 0.0
    %4368 = vmatprep.subr.mxu0 0.0
    %4369 = vmatpush1.msra.mxu0 0.0
    %4370 = vmatprep.subr.mxu0 0.0
    %4371 = vmatpush1.msra.mxu0 0.0
    %4372 = vmatprep.mubr.f32.mxu0 0.0
    %4373 = vmatmul.mubr.f32.gmra.mrb[0].mxu0 %v4306
    %v4374 = vpop.f32.mrb[0].mxu0
    %v4375 = vadd.f32 0.0, %v4374
    %v4376 = vpop.f32.mrb[0].mxu0
    %4377 = vdwg.mxu0
    %4378 = vst [vmem:[%s71] sm:$0xff] %v4375
    %vm4379 = vcmp.lt.s32.totalorder %v245, 64
    %v4380 = vsel %vm4379, %v4375, -1e+30
    %4381 = vmax.xlane.f32.xlu0 %v4380
    %v4382 = vpop.xlane.xlu0 %4381
    %v4383 = vsub.f32 %v4380, %v4382
    %v4384 = vmul.f32 %v4383, 1.442695
    %v4385 = vpow.pop %v4384
    %v4386 = vsel %vm4379, %v4385, 0.0
    %4387 = vadd.xlane.f32.xlu0 %v4386
    %v4388 = vpop.xlane.xlu0 %4387
    %v4389 = vlog2.pop %v4388
    %v4390 = vmul.f32 %v4389, 0.6931472
    %v4391 = vsub.f32 %v4383, %v4390
    %v4392 = vld [vmem:[%s3] sm:$0xff]
    %4393 = vset.pattern.permute.xlu0 0
    %4394 = vperm.xlu0 %4393, %v4392
    %v4395 = vpop.permute.xlu0 %4394
    %vm4396 = vcmp.eq.s32.totalorder %v245, %v4395
    %v4397 = vsel %vm4396, 1, 0
    %v4398 = vcvt.s32.f32 %v4397
    %v4399 = vmul.f32 %v4398, %v4391
    %4400 = vadd.xlane.f32.xlu0 %v4399
    %v4401 = vpop.xlane.xlu0 %4400
    %v4402 = vsub.f32 0.0, %v4401
    %vm4403 = vcmp.ne.s32.totalorder %v249, 0
    %v4404 = vsel %vm4403, 1, 0
    %v4405 = vcvt.s32.f32 %v4404
    %v4406 = vmul.f32 %v4402, %v4405
    %vm4407 = vcmask 7168
    %v4408 = vsel %vm4407, %v4406, 0.0
    %4409 = vadd.xlane.f32.xlu0 %v4408
    %v4410 = vpop.xlane.xlu0 %4409
    %v4411 = vrot.slane %v4410, 4
    %v4412 = vadd.f32 %v4410, %v4411
    %v4413 = vrot.slane %v4412, 2
    %v4414 = vadd.f32 %v4412, %v4413
    %v4415 = vrot.slane %v4414, 1
    %v4416 = vadd.f32 %v4414, %v4415
    %s4417 = vtos %v4416
    %v4418 = vstv %s4417
    %v4419 = vsel %vm4407, %v4405, 0.0
    %4420 = vadd.xlane.f32.xlu0 %v4419
    %v4421 = vpop.xlane.xlu0 %4420
    %v4422 = vrot.slane %v4421, 4
    %v4423 = vadd.f32 %v4421, %v4422
    %v4424 = vrot.slane %v4423, 2
    %v4425 = vadd.f32 %v4423, %v4424
    %v4426 = vrot.slane %v4425, 1
    %v4427 = vadd.f32 %v4425, %v4426
    %s4428 = vtos %v4427
    %v4429 = vstv %s4428
    %v4430 = vrcp.pop %v4429
    %v4431 = vmul.f32 %v4418, %v4430
    %vm4432 = vcmask 0
    %4433 = vst.msk [vmem:[#allocation17] sm:$0x1] %vm4432, %v4431
    // Predicated region
    $region170: #{rwkv_forward.1} parent=1 // pred_check
      _
    $region171: #{rwkv_forward.1} parent=1 // pred_check_branch
      %4435 = sbr.rel (0) target = $region173
    $region172: #{rwkv_forward.1} parent=1 // pred_region
      %s4437 = ssub.s32 16, 16
      %4438 = vsyncadd [#allocation5], %s4437
      %s4440 = sshll.u32 [#allocation17], 4
      %s4441 = int_to_ptr.vmem [resolvable:$true] %s4440
      %4443 = dma.vmem_to_hbm [thread:$0]  %s4441, 16, %s69, [#allocation5]
    $region173: #{rwkv_forward.1} parent=1 // pred_fallthru
      _
    // Predicated region
    $region174: #{rwkv_forward.1} parent=1 // pred_check
      _
    $region175: #{rwkv_forward.1} parent=1 // pred_check_branch
      %4445 = sbr.rel (0) target = $region177
    $region176: #{rwkv_forward.1} parent=1 // pred_region
      _
    $region177: #{rwkv_forward.1} parent=1 // pred_fallthru
      _
    // Predicated region
    $region178: #{rwkv_forward.1} parent=1 // pred_check
      _
    $region179: #{rwkv_forward.1} parent=1 // pred_check_branch
      %4447 = sbr.rel (0) target = $region181
    $region180: #{rwkv_forward.1} parent=1 // pred_region
      %s4449 = ssub.s32 512, 512
      %4450 = vsyncadd [#allocation19], %s4449
      %s4451 = sshll.u32 [#allocation18], 4
      %s4452 = int_to_ptr.vmem [resolvable:$true] %s4451
      %4457 = dma.vmem_to_hbm [thread:$0]  %s4452, 512, %s73, [#allocation19], 128, 128, 8
    $region181: #{rwkv_forward.1} parent=1 // pred_fallthru
      _
    // Predicated region
    $region182: #{rwkv_forward.1} parent=1 // pred_check
      _
    $region183: #{rwkv_forward.1} parent=1 // pred_check_branch
      %4459 = sbr.rel (0) target = $region185
    $region184: #{rwkv_forward.1} parent=1 // pred_region
      %4460 = dma.done [#allocation5], 16
    $region185: #{rwkv_forward.1} parent=1 // pred_fallthru
      _
    // Predicated region
    $region186: #{rwkv_forward.1} parent=1 // pred_check
      _
    $region187: #{rwkv_forward.1} parent=1 // pred_check_branch
      %4462 = sbr.rel (0) target = $region189
    $region188: #{rwkv_forward.1} parent=1 // pred_region
      _
    $region189: #{rwkv_forward.1} parent=1 // pred_fallthru
      _
    // Predicated region
    $region190: #{rwkv_forward.1} parent=1 // pred_check
      _
    $region191: #{rwkv_forward.1} parent=1 // pred_check_branch
      %4464 = sbr.rel (0) target = $region193
    $region192: #{rwkv_forward.1} parent=1 // pred_region
      %4465 = dma.done [#allocation19], 512
    $region193: #{rwkv_forward.1} parent=1 // pred_fallthru
      _
    %4466 = vsyncpa [#allocation4], 1
    %4467 = vsyncpa [#allocation7], 1
    %4468 = vsyncpa [#allocation10], 1
    %4469 = vsyncpa [#allocation13], 1
    %4470 = vsyncpa [#allocation16], 1
    %4471 = vsyncpa [#allocation5], 1
    %4472 = vsyncpa [#allocation19], 1

</llo_original>
